<compile_context>
chip_gen: v7x
topology: tpu7x:2x2x1
jax: 0.10.0
libtpu: 0.0.40
codegen_flags: <defaults>
</compile_context>

<pallas_src>
import functools

import jax
import jax.numpy as jnp
from jax import lax
from jax.experimental import pallas as pl
from jax.experimental.pallas import tpu as pltpu

# ----------------------------- model config ---------------------------------
IN_CHANNELS = 3
CONV_CHANNELS = [64, 64, 128, 128, 1024]
MLP_DIMS = [1024, 256, 256]
HEAD_CHANNELS = [512, 256, 256]
OUT_FEATURES = 128

N_CONV = len(CONV_CHANNELS)
N_MLP = len(MLP_DIMS)
N_HEAD = len(HEAD_CHANNELS)

GLOBAL_DIM = MLP_DIMS[-1]        # 256 global channels in the torch concat
POINT_DIM = CONV_CHANNELS[-1]    # 1024 point channels in the torch concat

# rows of the packed bias array: 5 conv biases, head2, head3, final conv
_BIAS_DIMS = CONV_CHANNELS + HEAD_CHANNELS[1:] + [OUT_FEATURES]
_BIAS_ROWS = len(_BIAS_DIMS)     # 8
_BIAS_WIDTH = max(_BIAS_DIMS)    # 1024


def _round_up(x, m):
    return (x + m - 1) // m * m


def layer_dims():
    """(cin, cout) for every weight in forward order (torch layout mirrored)."""
    dims = []
    cin = IN_CHANNELS
    for c in CONV_CHANNELS:          # PointNetfeat conv stack
        dims.append((cin, c))
        cin = c
    cin = CONV_CHANNELS[-1]
    for m in MLP_DIMS:               # PointNetfeat global MLP
        dims.append((cin, m))
        cin = m
    cin = GLOBAL_DIM + POINT_DIM     # concat(global, point) channels
    for c in HEAD_CHANNELS:          # head convs
        dims.append((cin, c))
        cin = c
    dims.append((cin, OUT_FEATURES))  # final conv
    return dims


def split_params(params):
    conv, mlp, head = [], [], []
    i = 0
    for _ in range(N_CONV):
        conv.append((params[i], params[i + 1])); i += 2
    for _ in range(N_MLP):
        mlp.append((params[i], params[i + 1])); i += 2
    for _ in range(N_HEAD):
        head.append((params[i], params[i + 1])); i += 2
    final = (params[i], params[i + 1])
    return conv, mlp, head, final


# ------------------------------- kernels -------------------------------------
def _conv_stack(x_tile, conv_w_refs, bias_ref):
    """Conv1d(k=1)+ReLU stack on one (TN, 3) tile -> (TN, 1024) f32."""
    h = x_tile
    for i in range(N_CONV):
        w = conv_w_refs[i][...]                         # bf16 (cin, cout)
        b = bias_ref[i:i + 1, : w.shape[1]]             # f32 (1, cout)
        h = jnp.dot(h.astype(w.dtype), w, preferred_element_type=jnp.float32)
        h = jnp.maximum(h + b, 0.0)
    return h


def _global_max_kernel(x_ref, *args, n_valid, tile_n):
    """Phase 1: conv stack + running max over point tiles -> (1, 1, 1024)."""
    conv_w = args[:N_CONV]
    bias_ref = args[N_CONV]
    gmax_ref = args[N_CONV + 1]

    n = pl.program_id(1)
    feat = _conv_stack(x_ref[0], conv_w, bias_ref)       # (TN, 1024) f32

    # Zero out padded rows: post-ReLU features are >= 0, so 0 is a neutral
    # element for the max and never changes the true result.
    row = lax.broadcasted_iota(jnp.int32, (tile_n, 1), 0) + n * tile_n
    feat = jnp.where(row < n_valid, feat, 0.0)
    tile_max = jnp.max(feat, axis=0, keepdims=True)      # (1, 1024)

    @pl.when(n == 0)
    def _():
        gmax_ref[0] = tile_max

    @pl.when(n > 0)
    def _():
        gmax_ref[0] = jnp.maximum(gmax_ref[0], tile_max)


def _point_feature_kernel(x_ref, g_ref, *rest):
    """Phase 2: recompute conv stack, fused global term, head, final conv."""
    *w_refs, bias_ref, out_ref = rest
    conv_w = w_refs[:N_CONV]
    w_h1_pt, w_h2, w_h3, w_final = w_refs[N_CONV:]

    pf = _conv_stack(x_ref[0], conv_w, bias_ref)         # (TN, 1024) f32
    g_term = g_ref[0]                                    # (1, 512) = g@W1[:256]+b1

    # head layer 1: concat([global, point]) @ W1 + b1
    #   == point_feat @ W1[256:] + (g @ W1[:256] + b1), second term precomputed.
    w1 = w_h1_pt[...]
    h = jnp.dot(pf.astype(w1.dtype), w1, preferred_element_type=jnp.float32)
    h = jnp.maximum(h + g_term, 0.0)

    # head layers 2 and 3 (Conv1d k=1 + ReLU)
    for j, w_ref in enumerate((w_h2, w_h3)):
        w = w_ref[...]
        b = bias_ref[N_CONV + j: N_CONV + j + 1, : w.shape[1]]
        h = jnp.dot(h.astype(w.dtype), w, preferred_element_type=jnp.float32)
        h = jnp.maximum(h + b, 0.0)

    # TODO(synk): nn.Dropout is identity in eval mode; no RNG masking applied.

    # final Conv1d (no activation)
    wf = w_final[...]
    bf = bias_ref[N_CONV + 2: N_CONV + 3, : wf.shape[1]]
    out = jnp.dot(h.astype(wf.dtype), wf, preferred_element_type=jnp.float32) + bf
    out_ref[0] = out.astype(out_ref.dtype)


# ------------------------------- wrapper -------------------------------------
@functools.partial(jax.jit, static_argnames=("tile_n",))
def pointnet_forward(x_bcn, params, tile_n=256):
    """x_bcn: (B, 3, N) float32 -> (B, N, OUT_FEATURES) float32."""
    B, C, N = x_bcn.shape
    assert C == IN_CHANNELS
    assert tile_n % 8 == 0
    conv, mlp, head, final = split_params(params)

    # ---- static tile / padding bookkeeping ----------------------------------
    tn = tile_n if N > tile_n else _round_up(max(N, 8), 8)
    n_pad = _round_up(N, tn)
    n_tiles = n_pad // tn

    # ---- layout + dtype prep -------------------------------------------------
    x = jnp.transpose(x_bcn, (0, 2, 1)).astype(jnp.float32)      # (B, N, 3)
    if n_pad != N:
        x = jnp.pad(x, ((0, 0), (0, n_pad - N), (0, 0)))

    conv_w = [w.astype(jnp.bfloat16) for w, _ in conv]

    w_h1, b_h1 = head[0]
    w_h1_pt = w_h1[GLOBAL_DIM:, :].astype(jnp.bfloat16)          # (1024, 512)
    head_w = [w_h1_pt,
              head[1][0].astype(jnp.bfloat16),
              head[2][0].astype(jnp.bfloat16),
              final[0].astype(jnp.bfloat16)]

    # pack all kernel biases into one (8, 1024) f32 array, one row per layer
    bias_rows = [b for _, b in conv] + [head[1][1], head[2][1], final[1]]
    bias_pack = jnp.zeros((_BIAS_ROWS, _BIAS_WIDTH), jnp.float32)
    for i, b in enumerate(bias_rows):
        bias_pack = bias_pack.at[i, : b.shape[1]].set(b[0])

    weight_spec = lambda a: pl.BlockSpec(a.shape, lambda bi, ni: (0, 0))

    # ---- phase 1: conv stack + global max over N -----------------------------
    gmax = pl.pallas_call(
        functools.partial(_global_max_kernel, n_valid=N, tile_n=tn),
        out_shape=jax.ShapeDtypeStruct((B, 1, POINT_DIM), jnp.float32),
        grid_spec=pltpu.PrefetchScalarGridSpec(
            num_scalar_prefetch=0,
            grid=(B, n_tiles),
            in_specs=[pl.BlockSpec((1, tn, C), lambda bi, ni: (bi, ni, 0))]
                     + [weight_spec(w) for w in conv_w]
                     + [weight_spec(bias_pack)],
            out_specs=pl.BlockSpec((1, 1, POINT_DIM), lambda bi, ni: (bi, 0, 0)),
        ),
        compiler_params=pltpu.CompilerParams(
            dimension_semantics=("parallel", "arbitrary"),
            vmem_limit_bytes=32 * 1024 * 1024,
        ),
    )(x, *conv_w, bias_pack)

    # ---- global MLP + global half of head layer 1, batched over B (tiny f32) -
    g = gmax[:, 0, :]                                            # (B, 1024)
    for w, b in mlp:
        g = jax.nn.relu(g @ w + b)
    g_term = (g @ w_h1[:GLOBAL_DIM, :] + b_h1)[:, None, :]       # (B, 1, 512)

    # ---- phase 2: per-point head with fused global term ----------------------
    out = pl.pallas_call(
        _point_feature_kernel,
        out_shape=jax.ShapeDtypeStruct((B, n_pad, OUT_FEATURES), jnp.float32),
        grid_spec=pltpu.PrefetchScalarGridSpec(
            num_scalar_prefetch=0,
            grid=(B, n_tiles),
            in_specs=[pl.BlockSpec((1, tn, C), lambda bi, ni: (bi, ni, 0)),
                      pl.BlockSpec((1, 1, HEAD_CHANNELS[0]),
                                   lambda bi, ni: (bi, 0, 0))]
                     + [weight_spec(w) for w in conv_w]
                     + [weight_spec(w) for w in head_w]
                     + [weight_spec(bias_pack)],
            out_specs=pl.BlockSpec((1, tn, OUT_FEATURES),
                                   lambda bi, ni: (bi, ni, 0)),
        ),
        compiler_params=pltpu.CompilerParams(
            dimension_semantics=("parallel", "parallel"),
            vmem_limit_bytes=32 * 1024 * 1024,
        ),
    )(x, g_term, *conv_w, *head_w, bias_pack)

    return out[:, :N, :]


# --------------------------- pure-JAX reference ------------------------------
def pointnet_reference(x_bcn, params):
    """Reference mirroring the kernel numerics (bf16 matmul inputs, f32 accum)."""
    conv, mlp, head, final = split_params(params)

    def mm(a, w):
        return jnp.einsum("bnk,km->bnm", a.astype(jnp.bfloat16),
                          w.astype(jnp.bfloat16),
                          preferred_element_type=jnp.float32)

    h = jnp.transpose(x_bcn, (0, 2, 1)).astype(jnp.float32)      # (B, N, 3)
    for w, b in conv:
        h = jax.nn.relu(mm(h, w) + b)
    pf = h                                                       # (B, N, 1024)

    g = jnp.max(h, axis=1)                                       # (B, 1024)
    for w, b in mlp:
        g = jax.nn.relu(g @ w + b)

    w_h1, b_h1 = head[0]
    g_term = g @ w_h1[:GLOBAL_DIM, :] + b_h1                     # (B, 512)
    h = jax.nn.relu(mm(pf, w_h1[GLOBAL_DIM:, :]) + g_term[:, None, :])
    for w, b in head[1:]:
        h = jax.nn.relu(mm(h, w) + b)
    wf, bfin = final
    return mm(h, wf) + bfin                                      # (B, N, 128)


# --------------------------------- main ---------------------------------------
def init_params(key):
    params = []
    for cin, cout in layer_dims():
        key, kw, kb = jax.random.split(key, 3)
        scale = 1.0 / jnp.sqrt(jnp.float32(cin))
        w = jax.random.uniform(kw, (cin, cout), jnp.float32, -scale, scale)
        b = jax.random.uniform(kb, (1, cout), jnp.float32, -scale, scale)
        params += [w, b]
    return params


if __name__ == "__main__":
    key = jax.random.PRNGKey(0)
    key, kx, kp = jax.random.split(key, 3)

    # small but non-trivial: ragged N exercises N-tiling and last-tile masking
    B, N = 2, 300
    x = jax.random.normal(kx, (B, IN_CHANNELS, N), jnp.float32)   # (B, 3, N)
    params = init_params(kp)

    out = pointnet_forward(x, params, tile_n=128)
    out = jax.block_until_ready(out)

    ref = pointnet_reference(x, params)

    assert out.shape == (B, N, OUT_FEATURES), out.shape
    assert jnp.allclose(out, ref, rtol=1e-3, atol=1e-3), (
        float(jnp.max(jnp.abs(out - ref)))
    )
    print("KERNEL_OK")
</pallas_src>

<mosaic_0001>
module attributes {stable_mosaic.version = 11 : i64} {
  func.func @_global_max_kernel(%arg0: i32, %arg1: i32, %arg2: memref<1x128x3xf32, #tpu.memory_space<vmem>>, %arg3: memref<3x64xbf16, #tpu.memory_space<vmem>>, %arg4: memref<64x64xbf16, #tpu.memory_space<vmem>>, %arg5: memref<64x128xbf16, #tpu.memory_space<vmem>>, %arg6: memref<128x128xbf16, #tpu.memory_space<vmem>>, %arg7: memref<128x1024xbf16, #tpu.memory_space<vmem>>, %arg8: memref<8x1024xf32, #tpu.memory_space<vmem>>, %arg9: memref<1x1x1024xf32, #tpu.memory_space<vmem>>) attributes {dimension_semantics = [#tpu.dimension_semantics<parallel>, #tpu.dimension_semantics<arbitrary>], iteration_bounds = array<i64: 2, 3>, scalar_prefetch = 0 : i64, scratch_operands = 0 : i64, tpu.core_type = #tpu.core_type<tc>, window_params = [{transform_indices = @transform_0, window_bounds = array<i64: 1, 128, 3>}, {pipeline_mode = #tpu.pipeline_mode<synchronous>, transform_indices = @transform_1, window_bounds = array<i64: 3, 64>}, {pipeline_mode = #tpu.pipeline_mode<synchronous>, transform_indices = @transform_2, window_bounds = array<i64: 64, 64>}, {pipeline_mode = #tpu.pipeline_mode<synchronous>, transform_indices = @transform_3, window_bounds = array<i64: 64, 128>}, {pipeline_mode = #tpu.pipeline_mode<synchronous>, transform_indices = @transform_4, window_bounds = array<i64: 128, 128>}, {pipeline_mode = #tpu.pipeline_mode<synchronous>, transform_indices = @transform_5, window_bounds = array<i64: 128, 1024>}, {pipeline_mode = #tpu.pipeline_mode<synchronous>, transform_indices = @transform_6, window_bounds = array<i64: 8, 1024>}, {transform_indices = @transform_7, window_bounds = array<i64: 1, 1, 1024>}]} {
    %c0 = arith.constant 0 : index
    %c0_0 = arith.constant 0 : index
    %c0_1 = arith.constant 0 : index
    %0 = vector.load %arg2[%c0, %c0_0, %c0_1] : memref<1x128x3xf32, #tpu.memory_space<vmem>>, vector<1x128x3xf32>
    %1 = vector.shape_cast %0 : vector<1x128x3xf32> to vector<128x3xf32>
    %c0_2 = arith.constant 0 : index
    %c0_3 = arith.constant 0 : index
    %2 = vector.load %arg3[%c0_2, %c0_3] : memref<3x64xbf16, #tpu.memory_space<vmem>>, vector<3x64xbf16>
    %c0_4 = arith.constant 0 : index
    %c0_5 = arith.constant 0 : index
    %3 = vector.load %arg8[%c0_4, %c0_5] : memref<8x1024xf32, #tpu.memory_space<vmem>>, vector<1x64xf32>
    %4 = arith.truncf %1 : vector<128x3xf32> to vector<128x3xbf16>
    %cst = arith.constant dense<0.000000e+00> : vector<128x64xf32>
    %5 = tpu.matmul %4, %2, %cst {dimension_numbers = #tpu.dot_dimension_numbers<[1], [0], [0], [1], [0, 0, 1, 1], [], []>} : vector<128x3xbf16>, vector<3x64xbf16>, vector<128x64xf32> -> vector<128x64xf32>
    %6 = vector.broadcast %3 : vector<1x64xf32> to vector<128x64xf32>
    %7 = arith.addf %5, %6 : vector<128x64xf32>
    %cst_6 = arith.constant 0.000000e+00 : f32
    %8 = vector.broadcast %cst_6 : f32 to vector<128x64xf32>
    %9 = arith.maximumf %7, %8 : vector<128x64xf32>
    %c0_7 = arith.constant 0 : index
    %c0_8 = arith.constant 0 : index
    %10 = vector.load %arg4[%c0_7, %c0_8] : memref<64x64xbf16, #tpu.memory_space<vmem>>, vector<64x64xbf16>
    %c1 = arith.constant 1 : index
    %c0_9 = arith.constant 0 : index
    %11 = vector.load %arg8[%c1, %c0_9] : memref<8x1024xf32, #tpu.memory_space<vmem>>, vector<1x64xf32>
    %12 = arith.truncf %9 : vector<128x64xf32> to vector<128x64xbf16>
    %cst_10 = arith.constant dense<0.000000e+00> : vector<128x64xf32>
    %13 = tpu.matmul %12, %10, %cst_10 {dimension_numbers = #tpu.dot_dimension_numbers<[1], [0], [0], [1], [0, 0, 1, 1], [], []>} : vector<128x64xbf16>, vector<64x64xbf16>, vector<128x64xf32> -> vector<128x64xf32>
    %14 = vector.broadcast %11 : vector<1x64xf32> to vector<128x64xf32>
    %15 = arith.addf %13, %14 : vector<128x64xf32>
    %cst_11 = arith.constant 0.000000e+00 : f32
    %16 = vector.broadcast %cst_11 : f32 to vector<128x64xf32>
    %17 = arith.maximumf %15, %16 : vector<128x64xf32>
    %c0_12 = arith.constant 0 : index
    %c0_13 = arith.constant 0 : index
    %18 = vector.load %arg5[%c0_12, %c0_13] : memref<64x128xbf16, #tpu.memory_space<vmem>>, vector<64x128xbf16>
    %c2 = arith.constant 2 : index
    %c0_14 = arith.constant 0 : index
    %19 = vector.load %arg8[%c2, %c0_14] : memref<8x1024xf32, #tpu.memory_space<vmem>>, vector<1x128xf32>
    %20 = arith.truncf %17 : vector<128x64xf32> to vector<128x64xbf16>
    %cst_15 = arith.constant dense<0.000000e+00> : vector<128x128xf32>
    %21 = tpu.matmul %20, %18, %cst_15 {dimension_numbers = #tpu.dot_dimension_numbers<[1], [0], [0], [1], [0, 0, 1, 1], [], []>} : vector<128x64xbf16>, vector<64x128xbf16>, vector<128x128xf32> -> vector<128x128xf32>
    %22 = vector.broadcast %19 : vector<1x128xf32> to vector<128x128xf32>
    %23 = arith.addf %21, %22 : vector<128x128xf32>
    %cst_16 = arith.constant 0.000000e+00 : f32
    %24 = vector.broadcast %cst_16 : f32 to vector<128x128xf32>
    %25 = arith.maximumf %23, %24 : vector<128x128xf32>
    %c0_17 = arith.constant 0 : index
    %c0_18 = arith.constant 0 : index
    %26 = vector.load %arg6[%c0_17, %c0_18] : memref<128x128xbf16, #tpu.memory_space<vmem>>, vector<128x128xbf16>
    %c3 = arith.constant 3 : index
    %c0_19 = arith.constant 0 : index
    %27 = vector.load %arg8[%c3, %c0_19] : memref<8x1024xf32, #tpu.memory_space<vmem>>, vector<1x128xf32>
    %28 = arith.truncf %25 : vector<128x128xf32> to vector<128x128xbf16>
    %cst_20 = arith.constant dense<0.000000e+00> : vector<128x128xf32>
    %29 = tpu.matmul %28, %26, %cst_20 {dimension_numbers = #tpu.dot_dimension_numbers<[1], [0], [0], [1], [0, 0, 1, 1], [], []>} : vector<128x128xbf16>, vector<128x128xbf16>, vector<128x128xf32> -> vector<128x128xf32>
    %30 = vector.broadcast %27 : vector<1x128xf32> to vector<128x128xf32>
    %31 = arith.addf %29, %30 : vector<128x128xf32>
    %cst_21 = arith.constant 0.000000e+00 : f32
    %32 = vector.broadcast %cst_21 : f32 to vector<128x128xf32>
    %33 = arith.maximumf %31, %32 : vector<128x128xf32>
    %c0_22 = arith.constant 0 : index
    %c0_23 = arith.constant 0 : index
    %34 = vector.load %arg7[%c0_22, %c0_23] : memref<128x1024xbf16, #tpu.memory_space<vmem>>, vector<128x1024xbf16>
    %c4 = arith.constant 4 : index
    %c0_24 = arith.constant 0 : index
    %35 = vector.load %arg8[%c4, %c0_24] : memref<8x1024xf32, #tpu.memory_space<vmem>>, vector<1x1024xf32>
    %36 = arith.truncf %33 : vector<128x128xf32> to vector<128x128xbf16>
    %cst_25 = arith.constant dense<0.000000e+00> : vector<128x1024xf32>
    %37 = tpu.matmul %36, %34, %cst_25 {dimension_numbers = #tpu.dot_dimension_numbers<[1], [0], [0], [1], [0, 0, 1, 1], [], []>} : vector<128x128xbf16>, vector<128x1024xbf16>, vector<128x1024xf32> -> vector<128x1024xf32>
    %38 = vector.broadcast %35 : vector<1x1024xf32> to vector<128x1024xf32>
    %39 = arith.addf %37, %38 : vector<128x1024xf32>
    %cst_26 = arith.constant 0.000000e+00 : f32
    %40 = vector.broadcast %cst_26 : f32 to vector<128x1024xf32>
    %41 = arith.maximumf %39, %40 : vector<128x1024xf32>
    %42 = tpu.iota {dimensions = array<i32: 0>} : vector<128x1xi32>
    %c128_i32 = arith.constant 128 : i32
    %43 = arith.muli %arg1, %c128_i32 : i32
    %44 = vector.broadcast %43 : i32 to vector<128x1xi32>
    %45 = arith.addi %42, %44 : vector<128x1xi32>
    %c300_i32 = arith.constant 300 : i32
    %46 = vector.broadcast %c300_i32 : i32 to vector<128x1xi32>
    %47 = arith.cmpi slt, %45, %46 : vector<128x1xi32>
    %cst_27 = arith.constant 0.000000e+00 : f32
    %48 = vector.shape_cast %47 : vector<128x1xi1> to vector<128x1xi1>
    %49 = vector.broadcast %48 : vector<128x1xi1> to vector<128x1024xi1>
    %50 = vector.broadcast %cst_27 : f32 to vector<128x1024xf32>
    %51 = arith.select %49, %41, %50 : vector<128x1024xi1>, vector<128x1024xf32>
    %cst_28 = arith.constant dense<0xFF800000> : vector<1024xf32>
    %52 = vector.multi_reduction <maximumf>, %51, %cst_28 [0] : vector<128x1024xf32> to vector<1024xf32>
    %53 = vector.shape_cast %52 : vector<1024xf32> to vector<1x1024xf32>
    %c0_i32 = arith.constant 0 : i32
    %54 = arith.cmpi eq, %arg1, %c0_i32 : i32
    %55 = arith.extui %54 : i1 to i32
    %c0_i32_29 = arith.constant 0 : i32
    %56 = arith.cmpi ne, %55, %c0_i32_29 : i32
    scf.if %56 {
      %c0_32 = arith.constant 0 : index
      %c0_33 = arith.constant 0 : index
      %c0_34 = arith.constant 0 : index
      %60 = vector.load %arg9[%c0_32, %c0_33, %c0_34] : memref<1x1x1024xf32, #tpu.memory_space<vmem>>, vector<1x1x1024xf32>
      %61 = vector.shape_cast %60 : vector<1x1x1024xf32> to vector<1x1024xf32>
      %62 = vector.shape_cast %53 : vector<1x1024xf32> to vector<1x1x1024xf32>
      tpu.vector_store %arg9[%c0_32, %c0_33, %c0_34], %62 {strides = array<i32>} : memref<1x1x1024xf32, #tpu.memory_space<vmem>>, vector<1x1x1024xf32>,
    } else {
    }
    %c0_i32_30 = arith.constant 0 : i32
    %57 = arith.cmpi sgt, %arg1, %c0_i32_30 : i32
    %58 = arith.extui %57 : i1 to i32
    %c0_i32_31 = arith.constant 0 : i32
    %59 = arith.cmpi ne, %58, %c0_i32_31 : i32
    scf.if %59 {
      %c0_32 = arith.constant 0 : index
      %c0_33 = arith.constant 0 : index
      %c0_34 = arith.constant 0 : index
      %60 = vector.load %arg9[%c0_32, %c0_33, %c0_34] : memref<1x1x1024xf32, #tpu.memory_space<vmem>>, vector<1x1x1024xf32>
      %61 = vector.shape_cast %60 : vector<1x1x1024xf32> to vector<1x1024xf32>
      %62 = arith.maximumf %61, %53 : vector<1x1024xf32>
      %c0_35 = arith.constant 0 : index
      %c0_36 = arith.constant 0 : index
      %c0_37 = arith.constant 0 : index
      %63 = vector.load %arg9[%c0_35, %c0_36, %c0_37] : memref<1x1x1024xf32, #tpu.memory_space<vmem>>, vector<1x1x1024xf32>
      %64 = vector.shape_cast %63 : vector<1x1x1024xf32> to vector<1x1024xf32>
      %65 = vector.shape_cast %62 : vector<1x1024xf32> to vector<1x1x1024xf32>
      tpu.vector_store %arg9[%c0_35, %c0_36, %c0_37], %65 {strides = array<i32>} : memref<1x1x1024xf32, #tpu.memory_space<vmem>>, vector<1x1x1024xf32>,
    } else {
    }
    return
  }
  func.func @transform_0(%arg0: i32, %arg1: i32) -> (i32, i32, i32) {
    %c0_i32 = arith.constant 0 : i32
    %c0_i32_0 = arith.constant 0 : i32
    return %arg0, %arg1, %c0_i32 : i32, i32, i32
  }
  func.func @transform_1(%arg0: i32, %arg1: i32) -> (i32, i32) {
    %c0_i32 = arith.constant 0 : i32
    %c0_i32_0 = arith.constant 0 : i32
    %c0_i32_1 = arith.constant 0 : i32
    return %c0_i32, %c0_i32_0 : i32, i32
  }
  func.func @transform_2(%arg0: i32, %arg1: i32) -> (i32, i32) {
    %c0_i32 = arith.constant 0 : i32
    %c0_i32_0 = arith.constant 0 : i32
    %c0_i32_1 = arith.constant 0 : i32
    return %c0_i32, %c0_i32_0 : i32, i32
  }
  func.func @transform_3(%arg0: i32, %arg1: i32) -> (i32, i32) {
    %c0_i32 = arith.constant 0 : i32
    %c0_i32_0 = arith.constant 0 : i32
    %c0_i32_1 = arith.constant 0 : i32
    return %c0_i32, %c0_i32_0 : i32, i32
  }
  func.func @transform_4(%arg0: i32, %arg1: i32) -> (i32, i32) {
    %c0_i32 = arith.constant 0 : i32
    %c0_i32_0 = arith.constant 0 : i32
    %c0_i32_1 = arith.constant 0 : i32
    return %c0_i32, %c0_i32_0 : i32, i32
  }
  func.func @transform_5(%arg0: i32, %arg1: i32) -> (i32, i32) {
    %c0_i32 = arith.constant 0 : i32
    %c0_i32_0 = arith.constant 0 : i32
    %c0_i32_1 = arith.constant 0 : i32
    return %c0_i32, %c0_i32_0 : i32, i32
  }
  func.func @transform_6(%arg0: i32, %arg1: i32) -> (i32, i32) {
    %c0_i32 = arith.constant 0 : i32
    %c0_i32_0 = arith.constant 0 : i32
    %c0_i32_1 = arith.constant 0 : i32
    return %c0_i32, %c0_i32_0 : i32, i32
  }
  func.func @transform_7(%arg0: i32, %arg1: i32) -> (i32, i32, i32) {
    %c0_i32 = arith.constant 0 : i32
    %c0_i32_0 = arith.constant 0 : i32
    %c0_i32_1 = arith.constant 0 : i32
    return %arg0, %c0_i32, %c0_i32_0 : i32, i32, i32
  }
}

module attributes {stable_mosaic.version = 11 : i64} {
  func.func @_point_feature_kernel(%arg0: i32, %arg1: i32, %arg2: memref<1x128x3xf32, #tpu.memory_space<vmem>>, %arg3: memref<1x1x512xf32, #tpu.memory_space<vmem>>, %arg4: memref<3x64xbf16, #tpu.memory_space<vmem>>, %arg5: memref<64x64xbf16, #tpu.memory_space<vmem>>, %arg6: memref<64x128xbf16, #tpu.memory_space<vmem>>, %arg7: memref<128x128xbf16, #tpu.memory_space<vmem>>, %arg8: memref<128x1024xbf16, #tpu.memory_space<vmem>>, %arg9: memref<1024x512xbf16, #tpu.memory_space<vmem>>, %arg10: memref<512x256xbf16, #tpu.memory_space<vmem>>, %arg11: memref<256x256xbf16, #tpu.memory_space<vmem>>, %arg12: memref<256x128xbf16, #tpu.memory_space<vmem>>, %arg13: memref<8x1024xf32, #tpu.memory_space<vmem>>, %arg14: memref<1x128x128xf32, #tpu.memory_space<vmem>>) attributes {dimension_semantics = [#tpu.dimension_semantics<parallel>, #tpu.dimension_semantics<parallel>], iteration_bounds = array<i64: 2, 3>, scalar_prefetch = 0 : i64, scratch_operands = 0 : i64, tpu.core_type = #tpu.core_type<tc>, window_params = [{transform_indices = @transform_0, window_bounds = array<i64: 1, 128, 3>}, {transform_indices = @transform_1, window_bounds = array<i64: 1, 1, 512>}, {pipeline_mode = #tpu.pipeline_mode<synchronous>, transform_indices = @transform_2, window_bounds = array<i64: 3, 64>}, {pipeline_mode = #tpu.pipeline_mode<synchronous>, transform_indices = @transform_3, window_bounds = array<i64: 64, 64>}, {pipeline_mode = #tpu.pipeline_mode<synchronous>, transform_indices = @transform_4, window_bounds = array<i64: 64, 128>}, {pipeline_mode = #tpu.pipeline_mode<synchronous>, transform_indices = @transform_5, window_bounds = array<i64: 128, 128>}, {pipeline_mode = #tpu.pipeline_mode<synchronous>, transform_indices = @transform_6, window_bounds = array<i64: 128, 1024>}, {pipeline_mode = #tpu.pipeline_mode<synchronous>, transform_indices = @transform_7, window_bounds = array<i64: 1024, 512>}, {pipeline_mode = #tpu.pipeline_mode<synchronous>, transform_indices = @transform_8, window_bounds = array<i64: 512, 256>}, {pipeline_mode = #tpu.pipeline_mode<synchronous>, transform_indices = @transform_9, window_bounds = array<i64: 256, 256>}, {pipeline_mode = #tpu.pipeline_mode<synchronous>, transform_indices = @transform_10, window_bounds = array<i64: 256, 128>}, {pipeline_mode = #tpu.pipeline_mode<synchronous>, transform_indices = @transform_11, window_bounds = array<i64: 8, 1024>}, {transform_indices = @transform_12, window_bounds = array<i64: 1, 128, 128>}]} {
    %c0 = arith.constant 0 : index
    %c0_0 = arith.constant 0 : index
    %c0_1 = arith.constant 0 : index
    %0 = vector.load %arg2[%c0, %c0_0, %c0_1] : memref<1x128x3xf32, #tpu.memory_space<vmem>>, vector<1x128x3xf32>
    %1 = vector.shape_cast %0 : vector<1x128x3xf32> to vector<128x3xf32>
    %c0_2 = arith.constant 0 : index
    %c0_3 = arith.constant 0 : index
    %2 = vector.load %arg4[%c0_2, %c0_3] : memref<3x64xbf16, #tpu.memory_space<vmem>>, vector<3x64xbf16>
    %c0_4 = arith.constant 0 : index
    %c0_5 = arith.constant 0 : index
    %3 = vector.load %arg13[%c0_4, %c0_5] : memref<8x1024xf32, #tpu.memory_space<vmem>>, vector<1x64xf32>
    %4 = arith.truncf %1 : vector<128x3xf32> to vector<128x3xbf16>
    %cst = arith.constant dense<0.000000e+00> : vector<128x64xf32>
    %5 = tpu.matmul %4, %2, %cst {dimension_numbers = #tpu.dot_dimension_numbers<[1], [0], [0], [1], [0, 0, 1, 1], [], []>} : vector<128x3xbf16>, vector<3x64xbf16>, vector<128x64xf32> -> vector<128x64xf32>
    %6 = vector.broadcast %3 : vector<1x64xf32> to vector<128x64xf32>
    %7 = arith.addf %5, %6 : vector<128x64xf32>
    %cst_6 = arith.constant 0.000000e+00 : f32
    %8 = vector.broadcast %cst_6 : f32 to vector<128x64xf32>
    %9 = arith.maximumf %7, %8 : vector<128x64xf32>
    %c0_7 = arith.constant 0 : index
    %c0_8 = arith.constant 0 : index
    %10 = vector.load %arg5[%c0_7, %c0_8] : memref<64x64xbf16, #tpu.memory_space<vmem>>, vector<64x64xbf16>
    %c1 = arith.constant 1 : index
    %c0_9 = arith.constant 0 : index
    %11 = vector.load %arg13[%c1, %c0_9] : memref<8x1024xf32, #tpu.memory_space<vmem>>, vector<1x64xf32>
    %12 = arith.truncf %9 : vector<128x64xf32> to vector<128x64xbf16>
    %cst_10 = arith.constant dense<0.000000e+00> : vector<128x64xf32>
    %13 = tpu.matmul %12, %10, %cst_10 {dimension_numbers = #tpu.dot_dimension_numbers<[1], [0], [0], [1], [0, 0, 1, 1], [], []>} : vector<128x64xbf16>, vector<64x64xbf16>, vector<128x64xf32> -> vector<128x64xf32>
    %14 = vector.broadcast %11 : vector<1x64xf32> to vector<128x64xf32>
    %15 = arith.addf %13, %14 : vector<128x64xf32>
    %cst_11 = arith.constant 0.000000e+00 : f32
    %16 = vector.broadcast %cst_11 : f32 to vector<128x64xf32>
    %17 = arith.maximumf %15, %16 : vector<128x64xf32>
    %c0_12 = arith.constant 0 : index
    %c0_13 = arith.constant 0 : index
    %18 = vector.load %arg6[%c0_12, %c0_13] : memref<64x128xbf16, #tpu.memory_space<vmem>>, vector<64x128xbf16>
    %c2 = arith.constant 2 : index
    %c0_14 = arith.constant 0 : index
    %19 = vector.load %arg13[%c2, %c0_14] : memref<8x1024xf32, #tpu.memory_space<vmem>>, vector<1x128xf32>
    %20 = arith.truncf %17 : vector<128x64xf32> to vector<128x64xbf16>
    %cst_15 = arith.constant dense<0.000000e+00> : vector<128x128xf32>
    %21 = tpu.matmul %20, %18, %cst_15 {dimension_numbers = #tpu.dot_dimension_numbers<[1], [0], [0], [1], [0, 0, 1, 1], [], []>} : vector<128x64xbf16>, vector<64x128xbf16>, vector<128x128xf32> -> vector<128x128xf32>
    %22 = vector.broadcast %19 : vector<1x128xf32> to vector<128x128xf32>
    %23 = arith.addf %21, %22 : vector<128x128xf32>
    %cst_16 = arith.constant 0.000000e+00 : f32
    %24 = vector.broadcast %cst_16 : f32 to vector<128x128xf32>
    %25 = arith.maximumf %23, %24 : vector<128x128xf32>
    %c0_17 = arith.constant 0 : index
    %c0_18 = arith.constant 0 : index
    %26 = vector.load %arg7[%c0_17, %c0_18] : memref<128x128xbf16, #tpu.memory_space<vmem>>, vector<128x128xbf16>
    %c3 = arith.constant 3 : index
    %c0_19 = arith.constant 0 : index
    %27 = vector.load %arg13[%c3, %c0_19] : memref<8x1024xf32, #tpu.memory_space<vmem>>, vector<1x128xf32>
    %28 = arith.truncf %25 : vector<128x128xf32> to vector<128x128xbf16>
    %cst_20 = arith.constant dense<0.000000e+00> : vector<128x128xf32>
    %29 = tpu.matmul %28, %26, %cst_20 {dimension_numbers = #tpu.dot_dimension_numbers<[1], [0], [0], [1], [0, 0, 1, 1], [], []>} : vector<128x128xbf16>, vector<128x128xbf16>, vector<128x128xf32> -> vector<128x128xf32>
    %30 = vector.broadcast %27 : vector<1x128xf32> to vector<128x128xf32>
    %31 = arith.addf %29, %30 : vector<128x128xf32>
    %cst_21 = arith.constant 0.000000e+00 : f32
    %32 = vector.broadcast %cst_21 : f32 to vector<128x128xf32>
    %33 = arith.maximumf %31, %32 : vector<128x128xf32>
    %c0_22 = arith.constant 0 : index
    %c0_23 = arith.constant 0 : index
    %34 = vector.load %arg8[%c0_22, %c0_23] : memref<128x1024xbf16, #tpu.memory_space<vmem>>, vector<128x1024xbf16>
    %c4 = arith.constant 4 : index
    %c0_24 = arith.constant 0 : index
    %35 = vector.load %arg13[%c4, %c0_24] : memref<8x1024xf32, #tpu.memory_space<vmem>>, vector<1x1024xf32>
    %36 = arith.truncf %33 : vector<128x128xf32> to vector<128x128xbf16>
    %cst_25 = arith.constant dense<0.000000e+00> : vector<128x1024xf32>
    %37 = tpu.matmul %36, %34, %cst_25 {dimension_numbers = #tpu.dot_dimension_numbers<[1], [0], [0], [1], [0, 0, 1, 1], [], []>} : vector<128x128xbf16>, vector<128x1024xbf16>, vector<128x1024xf32> -> vector<128x1024xf32>
    %38 = vector.broadcast %35 : vector<1x1024xf32> to vector<128x1024xf32>
    %39 = arith.addf %37, %38 : vector<128x1024xf32>
    %cst_26 = arith.constant 0.000000e+00 : f32
    %40 = vector.broadcast %cst_26 : f32 to vector<128x1024xf32>
    %41 = arith.maximumf %39, %40 : vector<128x1024xf32>
    %c0_27 = arith.constant 0 : index
    %c0_28 = arith.constant 0 : index
    %c0_29 = arith.constant 0 : index
    %42 = vector.load %arg3[%c0_27, %c0_28, %c0_29] : memref<1x1x512xf32, #tpu.memory_space<vmem>>, vector<1x1x512xf32>
    %43 = vector.shape_cast %42 : vector<1x1x512xf32> to vector<1x512xf32>
    %c0_30 = arith.constant 0 : index
    %c0_31 = arith.constant 0 : index
    %44 = vector.load %arg9[%c0_30, %c0_31] : memref<1024x512xbf16, #tpu.memory_space<vmem>>, vector<1024x512xbf16>
    %45 = arith.truncf %41 : vector<128x1024xf32> to vector<128x1024xbf16>
    %cst_32 = arith.constant dense<0.000000e+00> : vector<128x512xf32>
    %46 = tpu.matmul %45, %44, %cst_32 {dimension_numbers = #tpu.dot_dimension_numbers<[1], [0], [0], [1], [0, 0, 1, 1], [], []>} : vector<128x1024xbf16>, vector<1024x512xbf16>, vector<128x512xf32> -> vector<128x512xf32>
    %47 = vector.broadcast %43 : vector<1x512xf32> to vector<128x512xf32>
    %48 = arith.addf %46, %47 : vector<128x512xf32>
    %cst_33 = arith.constant 0.000000e+00 : f32
    %49 = vector.broadcast %cst_33 : f32 to vector<128x512xf32>
    %50 = arith.maximumf %48, %49 : vector<128x512xf32>
    %c0_34 = arith.constant 0 : index
    %c0_35 = arith.constant 0 : index
    %51 = vector.load %arg10[%c0_34, %c0_35] : memref<512x256xbf16, #tpu.memory_space<vmem>>, vector<512x256xbf16>
    %c5 = arith.constant 5 : index
    %c0_36 = arith.constant 0 : index
    %52 = vector.load %arg13[%c5, %c0_36] : memref<8x1024xf32, #tpu.memory_space<vmem>>, vector<1x256xf32>
    %53 = arith.truncf %50 : vector<128x512xf32> to vector<128x512xbf16>
    %cst_37 = arith.constant dense<0.000000e+00> : vector<128x256xf32>
    %54 = tpu.matmul %53, %51, %cst_37 {dimension_numbers = #tpu.dot_dimension_numbers<[1], [0], [0], [1], [0, 0, 1, 1], [], []>} : vector<128x512xbf16>, vector<512x256xbf16>, vector<128x256xf32> -> vector<128x256xf32>
    %55 = vector.broadcast %52 : vector<1x256xf32> to vector<128x256xf32>
    %56 = arith.addf %54, %55 : vector<128x256xf32>
    %cst_38 = arith.constant 0.000000e+00 : f32
    %57 = vector.broadcast %cst_38 : f32 to vector<128x256xf32>
    %58 = arith.maximumf %56, %57 : vector<128x256xf32>
    %c0_39 = arith.constant 0 : index
    %c0_40 = arith.constant 0 : index
    %59 = vector.load %arg11[%c0_39, %c0_40] : memref<256x256xbf16, #tpu.memory_space<vmem>>, vector<256x256xbf16>
    %c6 = arith.constant 6 : index
    %c0_41 = arith.constant 0 : index
    %60 = vector.load %arg13[%c6, %c0_41] : memref<8x1024xf32, #tpu.memory_space<vmem>>, vector<1x256xf32>
    %61 = arith.truncf %58 : vector<128x256xf32> to vector<128x256xbf16>
    %cst_42 = arith.constant dense<0.000000e+00> : vector<128x256xf32>
    %62 = tpu.matmul %61, %59, %cst_42 {dimension_numbers = #tpu.dot_dimension_numbers<[1], [0], [0], [1], [0, 0, 1, 1], [], []>} : vector<128x256xbf16>, vector<256x256xbf16>, vector<128x256xf32> -> vector<128x256xf32>
    %63 = vector.broadcast %60 : vector<1x256xf32> to vector<128x256xf32>
    %64 = arith.addf %62, %63 : vector<128x256xf32>
    %cst_43 = arith.constant 0.000000e+00 : f32
    %65 = vector.broadcast %cst_43 : f32 to vector<128x256xf32>
    %66 = arith.maximumf %64, %65 : vector<128x256xf32>
    %c0_44 = arith.constant 0 : index
    %c0_45 = arith.constant 0 : index
    %67 = vector.load %arg12[%c0_44, %c0_45] : memref<256x128xbf16, #tpu.memory_space<vmem>>, vector<256x128xbf16>
    %c7 = arith.constant 7 : index
    %c0_46 = arith.constant 0 : index
    %68 = vector.load %arg13[%c7, %c0_46] : memref<8x1024xf32, #tpu.memory_space<vmem>>, vector<1x128xf32>
    %69 = arith.truncf %66 : vector<128x256xf32> to vector<128x256xbf16>
    %cst_47 = arith.constant dense<0.000000e+00> : vector<128x128xf32>
    %70 = tpu.matmul %69, %67, %cst_47 {dimension_numbers = #tpu.dot_dimension_numbers<[1], [0], [0], [1], [0, 0, 1, 1], [], []>} : vector<128x256xbf16>, vector<256x128xbf16>, vector<128x128xf32> -> vector<128x128xf32>
    %71 = vector.broadcast %68 : vector<1x128xf32> to vector<128x128xf32>
    %72 = arith.addf %70, %71 : vector<128x128xf32>
    %c0_48 = arith.constant 0 : index
    %c0_49 = arith.constant 0 : index
    %c0_50 = arith.constant 0 : index
    %73 = vector.load %arg14[%c0_48, %c0_49, %c0_50] : memref<1x128x128xf32, #tpu.memory_space<vmem>>, vector<1x128x128xf32>
    %74 = vector.shape_cast %73 : vector<1x128x128xf32> to vector<128x128xf32>
    %75 = vector.shape_cast %72 : vector<128x128xf32> to vector<1x128x128xf32>
    tpu.vector_store %arg14[%c0_48, %c0_49, %c0_50], %75 {strides = array<i32>} : memref<1x128x128xf32, #tpu.memory_space<vmem>>, vector<1x128x128xf32>,
    return
  }
  func.func @transform_0(%arg0: i32, %arg1: i32) -> (i32, i32, i32) {
    %c0_i32 = arith.constant 0 : i32
    %c0_i32_0 = arith.constant 0 : i32
    return %arg0, %arg1, %c0_i32 : i32, i32, i32
  }
  func.func @transform_1(%arg0: i32, %arg1: i32) -> (i32, i32, i32) {
    %c0_i32 = arith.constant 0 : i32
    %c0_i32_0 = arith.constant 0 : i32
    %c0_i32_1 = arith.constant 0 : i32
    return %arg0, %c0_i32, %c0_i32_0 : i32, i32, i32
  }
  func.func @transform_2(%arg0: i32, %arg1: i32) -> (i32, i32) {
    %c0_i32 = arith.constant 0 : i32
    %c0_i32_0 = arith.constant 0 : i32
    %c0_i32_1 = arith.constant 0 : i32
    return %c0_i32, %c0_i32_0 : i32, i32
  }
  func.func @transform_3(%arg0: i32, %arg1: i32) -> (i32, i32) {
    %c0_i32 = arith.constant 0 : i32
    %c0_i32_0 = arith.constant 0 : i32
    %c0_i32_1 = arith.constant 0 : i32
    return %c0_i32, %c0_i32_0 : i32, i32
  }
  func.func @transform_4(%arg0: i32, %arg1: i32) -> (i32, i32) {
    %c0_i32 = arith.constant 0 : i32
    %c0_i32_0 = arith.constant 0 : i32
    %c0_i32_1 = arith.constant 0 : i32
    return %c0_i32, %c0_i32_0 : i32, i32
  }
  func.func @transform_5(%arg0: i32, %arg1: i32) -> (i32, i32) {
    %c0_i32 = arith.constant 0 : i32
    %c0_i32_0 = arith.constant 0 : i32
    %c0_i32_1 = arith.constant 0 : i32
    return %c0_i32, %c0_i32_0 : i32, i32
  }
  func.func @transform_6(%arg0: i32, %arg1: i32) -> (i32, i32) {
    %c0_i32 = arith.constant 0 : i32
    %c0_i32_0 = arith.constant 0 : i32
    %c0_i32_1 = arith.constant 0 : i32
    return %c0_i32, %c0_i32_0 : i32, i32
  }
  func.func @transform_7(%arg0: i32, %arg1: i32) -> (i32, i32) {
    %c0_i32 = arith.constant 0 : i32
    %c0_i32_0 = arith.constant 0 : i32
    %c0_i32_1 = arith.constant 0 : i32
    return %c0_i32, %c0_i32_0 : i32, i32
  }
  func.func @transform_8(%arg0: i32, %arg1: i32) -> (i32, i32) {
    %c0_i32 = arith.constant 0 : i32
    %c0_i32_0 = arith.constant 0 : i32
    %c0_i32_1 = arith.constant 0 : i32
    return %c0_i32, %c0_i32_0 : i32, i32
  }
  func.func @transform_9(%arg0: i32, %arg1: i32) -> (i32, i32) {
    %c0_i32 = arith.constant 0 : i32
    %c0_i32_0 = arith.constant 0 : i32
    %c0_i32_1 = arith.constant 0 : i32
    return %c0_i32, %c0_i32_0 : i32, i32
  }
  func.func @transform_10(%arg0: i32, %arg1: i32) -> (i32, i32) {
    %c0_i32 = arith.constant 0 : i32
    %c0_i32_0 = arith.constant 0 : i32
    %c0_i32_1 = arith.constant 0 : i32
    return %c0_i32, %c0_i32_0 : i32, i32
  }
  func.func @transform_11(%arg0: i32, %arg1: i32) -> (i32, i32) {
    %c0_i32 = arith.constant 0 : i32
    %c0_i32_0 = arith.constant 0 : i32
    %c0_i32_1 = arith.constant 0 : i32
    return %c0_i32, %c0_i32_0 : i32, i32
  }
  func.func @transform_12(%arg0: i32, %arg1: i32) -> (i32, i32, i32) {
    %c0_i32 = arith.constant 0 : i32
    %c0_i32_0 = arith.constant 0 : i32
    return %arg0, %arg1, %c0_i32 : i32, i32, i32
  }
}

</mosaic_0001>

<llo_original>
// kernel: pointnet_forward.2
$region0: #{pointnet_forward.2}
  #allocation0 [shape = 'u32[]', space=smem, size = 0x4, offset = 0x4, fixed_abs, tag = 'smem constant byte address 0x4 - core index']
  #allocation1 [shape = 'u32[144,128]{1,0:T(1,128)}', space=vmem, size = 0x12000, scoped, tag = 'internal scratch']
  %s0 = inlined_call_operand.vmem [shape: f32[2,384,3], index: 0, kind: input, shape index: {}]
  %s1 = inlined_call_operand.vmem [shape: bf16[3,64], index: 1, kind: input, shape index: {}]
  %s2 = inlined_call_operand.vmem [shape: bf16[64,64], index: 2, kind: input, shape index: {}]
  %s3 = inlined_call_operand.vmem [shape: bf16[64,128], index: 3, kind: input, shape index: {}]
  %s4 = inlined_call_operand.vmem [shape: bf16[128,128], index: 4, kind: input, shape index: {}]
  %s5 = inlined_call_operand.vmem [shape: bf16[128,1024], index: 5, kind: input, shape index: {}]
  %s6 = inlined_call_operand.vmem [shape: f32[8,1024], index: 6, kind: input, shape index: {}]
  %s7 = inlined_call_operand.vmem [shape: f32[2,1,1024], index: 7, kind: output, shape index: {}]
  %s8 = sld [smem:[#allocation0]]
  $region69: #{pointnet_forward.2} parent=0
    _
  %s10 = ssub.s32 1, %s8
  %s11 = scalar_select 0, %s10, %s8
  loop: start=0, step=1, limit=8
  $region2: #{pointnet_forward.2} parent=0 // loop_pre_header
    _
  $region3: #{pointnet_forward.2} parent=0 // loop_header
    %s13 = sphi 0, %s17
    %p14 = scmp.ge.s32.totalorder %s13, 8
    %s20 = sphi 0, %s32
    %s21 = sphi 0, %s28
    %s22 = sphi 0, %s20
    %s23 = sphi 0, %s21
    %s24 = sphi 0, %s22
    %s25 = sphi 0, %s23
    %s37 = sphi 0, %s39
    %s40 = sphi 0, %s37
    %s41 = sphi 0, %s40
    %s57 = sphi 0, %s41
    %s61 = sphi 0, %s61
    %s63 = sphi 0, %s61
    %s64 = sphi 0, %s63
    %s78 = sphi 0, %s64
    %s82 = sphi 0, %s82
    %s84 = sphi 0, %s82
    %s85 = sphi 0, %s84
    %s99 = sphi 0, %s85
    %s103 = sphi 0, %s103
    %s105 = sphi 0, %s103
    %s106 = sphi 0, %s105
    %s120 = sphi 0, %s106
    %s124 = sphi 0, %s124
    %s126 = sphi 0, %s124
    %s127 = sphi 0, %s126
    %s141 = sphi 0, %s127
    %s145 = sphi 0, %s145
    %s147 = sphi 0, %s145
    %s148 = sphi 0, %s147
    %s162 = sphi 0, %s148
    %s166 = sphi 0, %s166
    %s168 = sphi 0, %s166
    %s169 = sphi 0, %s168
    %s183 = sphi 0, %s169
    %s189 = sphi 0, %s191
    %s192 = sphi 0, %s189
    %s193 = sphi 0, %s192
    %s209 = sphi 0, %s193
  $region4: #{pointnet_forward.2} parent=0 // loop_header_branch
    %16 = sbr.rel (%p14) target = $region8
  $region5: #{pointnet_forward.2} parent=0 // loop_body
    %s18 = ssub.s32 %s13, 1
    %s19 = ssub.s32 %s13, 2
    %s26 = sadd.s32 1, %s21
    %p27 = scmp.ge.s32.totalorder %s26, 3
    %s28 = scalar_select %p27, 0, %s26
    %s29 = sadd.s32 1, %s20
    %s30 = scalar_select %p27, %s29, %s20
    %p31 = scmp.ge.s32.totalorder %s30, 2
    %s32 = scalar_select %p31, 0, %s30
    %s33 = ssub.s32 %s20, %s32
    %s34 = ssub.s32 %s21, %s28
    %s35 = sor.u32 %s33, %s34
    %p36 = scmp.eq.s32.totalorder %s35, 0
    %s38 = sadd.s32 %s37, 1
    %s39 = scalar_select %p36, %s37, %s38
    %p42 = pneg %p36
    %p43 = scmp.eq.s32.totalorder %s13, 5
    %p44 = por %p42, %p43
    %p45 = scmp.ne.s32.totalorder %s37, %s40
    %p46 = scmp.eq.s32.totalorder %s13, 0
    %p47 = por %p45, %p46
    %p48 = scmp.ne.s32.totalorder %s37, %s40
    %p49 = scmp.eq.s32.totalorder %s18, 5
    %p50 = por %p48, %p49
    %p51 = scmp.ne.s32.totalorder %s40, %s41
    %p52 = scmp.eq.s32.totalorder %s18, 0
    %p53 = por %p51, %p52
    %p54 = scmp.ne.s32.totalorder %s40, %s41
    %p55 = scmp.eq.s32.totalorder %s19, 5
    %p56 = por %p54, %p55
    %p58 = scmp.ne.s32.totalorder %s41, %s57
    %p59 = scmp.eq.s32.totalorder %s19, 0
    %p60 = por %p58, %p59
    %s62 = sadd.s32 %s61, 1
    %p65 = scmp.eq.s32.totalorder %s13, 5
    %p66 = scmp.ne.s32.totalorder %s61, %s63
    %p67 = scmp.eq.s32.totalorder %s13, 0
    %p68 = por %p66, %p67
    %p69 = scmp.ne.s32.totalorder %s61, %s63
    %p70 = scmp.eq.s32.totalorder %s18, 5
    %p71 = por %p69, %p70
    %p72 = scmp.ne.s32.totalorder %s63, %s64
    %p73 = scmp.eq.s32.totalorder %s18, 0
    %p74 = por %p72, %p73
    %p75 = scmp.ne.s32.totalorder %s63, %s64
    %p76 = scmp.eq.s32.totalorder %s19, 5
    %p77 = por %p75, %p76
    %p79 = scmp.ne.s32.totalorder %s64, %s78
    %p80 = scmp.eq.s32.totalorder %s19, 0
    %p81 = por %p79, %p80
    %s83 = sadd.s32 %s82, 1
    %p86 = scmp.eq.s32.totalorder %s13, 5
    %p87 = scmp.ne.s32.totalorder %s82, %s84
    %p88 = scmp.eq.s32.totalorder %s13, 0
    %p89 = por %p87, %p88
    %p90 = scmp.ne.s32.totalorder %s82, %s84
    %p91 = scmp.eq.s32.totalorder %s18, 5
    %p92 = por %p90, %p91
    %p93 = scmp.ne.s32.totalorder %s84, %s85
    %p94 = scmp.eq.s32.totalorder %s18, 0
    %p95 = por %p93, %p94
    %p96 = scmp.ne.s32.totalorder %s84, %s85
    %p97 = scmp.eq.s32.totalorder %s19, 5
    %p98 = por %p96, %p97
    %p100 = scmp.ne.s32.totalorder %s85, %s99
    %p101 = scmp.eq.s32.totalorder %s19, 0
    %p102 = por %p100, %p101
    %s104 = sadd.s32 %s103, 1
    %p107 = scmp.eq.s32.totalorder %s13, 5
    %p108 = scmp.ne.s32.totalorder %s103, %s105
    %p109 = scmp.eq.s32.totalorder %s13, 0
    %p110 = por %p108, %p109
    %p111 = scmp.ne.s32.totalorder %s103, %s105
    %p112 = scmp.eq.s32.totalorder %s18, 5
    %p113 = por %p111, %p112
    %p114 = scmp.ne.s32.totalorder %s105, %s106
    %p115 = scmp.eq.s32.totalorder %s18, 0
    %p116 = por %p114, %p115
    %p117 = scmp.ne.s32.totalorder %s105, %s106
    %p118 = scmp.eq.s32.totalorder %s19, 5
    %p119 = por %p117, %p118
    %p121 = scmp.ne.s32.totalorder %s106, %s120
    %p122 = scmp.eq.s32.totalorder %s19, 0
    %p123 = por %p121, %p122
    %s125 = sadd.s32 %s124, 1
    %p128 = scmp.eq.s32.totalorder %s13, 5
    %p129 = scmp.ne.s32.totalorder %s124, %s126
    %p130 = scmp.eq.s32.totalorder %s13, 0
    %p131 = por %p129, %p130
    %p132 = scmp.ne.s32.totalorder %s124, %s126
    %p133 = scmp.eq.s32.totalorder %s18, 5
    %p134 = por %p132, %p133
    %p135 = scmp.ne.s32.totalorder %s126, %s127
    %p136 = scmp.eq.s32.totalorder %s18, 0
    %p137 = por %p135, %p136
    %p138 = scmp.ne.s32.totalorder %s126, %s127
    %p139 = scmp.eq.s32.totalorder %s19, 5
    %p140 = por %p138, %p139
    %p142 = scmp.ne.s32.totalorder %s127, %s141
    %p143 = scmp.eq.s32.totalorder %s19, 0
    %p144 = por %p142, %p143
    %s146 = sadd.s32 %s145, 1
    %p149 = scmp.eq.s32.totalorder %s13, 5
    %p150 = scmp.ne.s32.totalorder %s145, %s147
    %p151 = scmp.eq.s32.totalorder %s13, 0
    %p152 = por %p150, %p151
    %p153 = scmp.ne.s32.totalorder %s145, %s147
    %p154 = scmp.eq.s32.totalorder %s18, 5
    %p155 = por %p153, %p154
    %p156 = scmp.ne.s32.totalorder %s147, %s148
    %p157 = scmp.eq.s32.totalorder %s18, 0
    %p158 = por %p156, %p157
    %p159 = scmp.ne.s32.totalorder %s147, %s148
    %p160 = scmp.eq.s32.totalorder %s19, 5
    %p161 = por %p159, %p160
    %p163 = scmp.ne.s32.totalorder %s148, %s162
    %p164 = scmp.eq.s32.totalorder %s19, 0
    %p165 = por %p163, %p164
    %s167 = sadd.s32 %s166, 1
    %p170 = scmp.eq.s32.totalorder %s13, 5
    %p171 = scmp.ne.s32.totalorder %s166, %s168
    %p172 = scmp.eq.s32.totalorder %s13, 0
    %p173 = por %p171, %p172
    %p174 = scmp.ne.s32.totalorder %s166, %s168
    %p175 = scmp.eq.s32.totalorder %s18, 5
    %p176 = por %p174, %p175
    %p177 = scmp.ne.s32.totalorder %s168, %s169
    %p178 = scmp.eq.s32.totalorder %s18, 0
    %p179 = por %p177, %p178
    %p180 = scmp.ne.s32.totalorder %s168, %s169
    %p181 = scmp.eq.s32.totalorder %s19, 5
    %p182 = por %p180, %p181
    %p184 = scmp.ne.s32.totalorder %s169, %s183
    %p185 = scmp.eq.s32.totalorder %s19, 0
    %p186 = por %p184, %p185
    %s187 = ssub.s32 %s20, %s32
    %p188 = scmp.eq.s32.totalorder %s187, 0
    %s190 = sadd.s32 %s189, 1
    %s191 = scalar_select %p188, %s189, %s190
    %p194 = pneg %p188
    %p195 = scmp.eq.s32.totalorder %s13, 5
    %p196 = por %p194, %p195
    %p197 = scmp.ne.s32.totalorder %s189, %s192
    %p198 = scmp.eq.s32.totalorder %s13, 0
    %p199 = por %p197, %p198
    %p200 = scmp.ne.s32.totalorder %s189, %s192
    %p201 = scmp.eq.s32.totalorder %s18, 5
    %p202 = por %p200, %p201
    %p203 = scmp.ne.s32.totalorder %s192, %s193
    %p204 = scmp.eq.s32.totalorder %s18, 0
    %p205 = por %p203, %p204
    %p206 = scmp.ne.s32.totalorder %s192, %s193
    %p207 = scmp.eq.s32.totalorder %s19, 5
    %p208 = por %p206, %p207
    %p210 = scmp.ne.s32.totalorder %s193, %s209
    %p211 = scmp.eq.s32.totalorder %s19, 0
    %p212 = por %p210, %p211
    %p213 = scmp.le.s32.totalorder 1, %s13
    %p214 = scmp.lt.s32.totalorder %s13, 7
    %p215 = pnand %p213, %p214
    %p216 = pneg %p215
    // Predicated region
    $region9: #{pointnet_forward.2} parent=5 // pred_check
      _
    $region10: #{pointnet_forward.2} parent=5 // pred_check_branch
      %218 = sbr.rel (%p215) target = $region12
    $region11: #{pointnet_forward.2} parent=5 // pred_region
      %s219 = ssub.s32 %s13, 1
      // Predicated region
      $region13: #{pointnet_forward.2} parent=11 // pred_check
        %p220 = pneg %p74
      $region14: #{pointnet_forward.2} parent=11 // pred_check_branch
        %222 = sbr.rel (%p220) target = $region16
      $region15: #{pointnet_forward.2} parent=11 // pred_region
        _
      $region16: #{pointnet_forward.2} parent=11 // pred_fallthru
        _
      // Predicated region
      $region17: #{pointnet_forward.2} parent=11 // pred_check
        %p223 = pneg %p95
      $region18: #{pointnet_forward.2} parent=11 // pred_check_branch
        %225 = sbr.rel (%p223) target = $region20
      $region19: #{pointnet_forward.2} parent=11 // pred_region
        _
      $region20: #{pointnet_forward.2} parent=11 // pred_fallthru
        _
      // Predicated region
      $region21: #{pointnet_forward.2} parent=11 // pred_check
        %p226 = pneg %p116
      $region22: #{pointnet_forward.2} parent=11 // pred_check_branch
        %228 = sbr.rel (%p226) target = $region24
      $region23: #{pointnet_forward.2} parent=11 // pred_region
        _
      $region24: #{pointnet_forward.2} parent=11 // pred_fallthru
        _
      // Predicated region
      $region25: #{pointnet_forward.2} parent=11 // pred_check
        %p229 = pneg %p137
      $region26: #{pointnet_forward.2} parent=11 // pred_check_branch
        %231 = sbr.rel (%p229) target = $region28
      $region27: #{pointnet_forward.2} parent=11 // pred_region
        _
      $region28: #{pointnet_forward.2} parent=11 // pred_fallthru
        _
      // Predicated region
      $region29: #{pointnet_forward.2} parent=11 // pred_check
        %p232 = pneg %p158
      $region30: #{pointnet_forward.2} parent=11 // pred_check_branch
        %234 = sbr.rel (%p232) target = $region32
      $region31: #{pointnet_forward.2} parent=11 // pred_region
        _
      $region32: #{pointnet_forward.2} parent=11 // pred_fallthru
        _
      // Predicated region
      $region33: #{pointnet_forward.2} parent=11 // pred_check
        %p235 = pneg %p179
      $region34: #{pointnet_forward.2} parent=11 // pred_check_branch
        %237 = sbr.rel (%p235) target = $region36
      $region35: #{pointnet_forward.2} parent=11 // pred_region
        _
      $region36: #{pointnet_forward.2} parent=11 // pred_fallthru
        _
    $region12: #{pointnet_forward.2} parent=5 // pred_fallthru
      _
    %p238 = scmp.lt.s32.totalorder %s13, 6
    // Predicated region
    $region37: #{pointnet_forward.2} parent=5 // pred_check
      %p239 = pneg %p238
    $region38: #{pointnet_forward.2} parent=5 // pred_check_branch
      %241 = sbr.rel (%p239) target = $region40
    $region39: #{pointnet_forward.2} parent=5 // pred_region
      // Predicated region
      $region41: #{pointnet_forward.2} parent=39 // pred_check
        %p242 = pneg %p47
      $region42: #{pointnet_forward.2} parent=39 // pred_check_branch
        %244 = sbr.rel (%p242) target = $region44
      $region43: #{pointnet_forward.2} parent=39 // pred_region
        %s245 = smul.u32 16, %s21
        %p246 = scmp.lt.s32.totalorder %s20, 1
        %s247 = scalar_select %p246, %s20, 1
        %p248 = scmp.lt.s32.totalorder %s245, 47
        %s249 = scalar_select %p248, %s245, 47
        %s250 = smul.addr %s247, 48
        %s251 = sadd.s32 %s249, %s250
        %s252 = smul.addr %s251, 8
        %s253 = scalar_lea.vmem %s0, %s252
        %s254 = smul.u32 16, %s21
      $region44: #{pointnet_forward.2} parent=39 // pred_fallthru
        _
    $region40: #{pointnet_forward.2} parent=5 // pred_fallthru
      _
    %p255 = scmp.le.s32.totalorder 1, %s13
    %p256 = scmp.lt.s32.totalorder %s13, 7
    %p257 = pnand %p255, %p256
    %p258 = pneg %p257
    // Predicated region
    $region45: #{pointnet_forward.2} parent=5 // pred_check
      _
    $region46: #{pointnet_forward.2} parent=5 // pred_check_branch
      %260 = sbr.rel (%p257) target = $region48
    $region47: #{pointnet_forward.2} parent=5 // pred_region
      %s261 = ssub.s32 %s13, 1
      %s262 = smul.u32 16, %s23
      %p263 = scmp.lt.s32.totalorder %s22, 1
      %s264 = scalar_select %p263, %s22, 1
      %p265 = scmp.lt.s32.totalorder %s262, 47
      %s266 = scalar_select %p265, %s262, 47
      %s267 = smul.addr %s264, 48
      %s268 = sadd.s32 %s266, %s267
      %s269 = smul.addr %s268, 8
      %s270 = scalar_lea.vmem %s0, %s269
      %p271 = pneg %p53
      %p272 = pneg %p50
      %p273 = pneg %p74
      %p274 = pneg %p71
      %p275 = pneg %p95
      %p276 = pneg %p92
      %p277 = pneg %p116
      %p278 = pneg %p113
      %p279 = pneg %p137
      %p280 = pneg %p134
      %p281 = pneg %p158
      %p282 = pneg %p155
      %p283 = pneg %p179
      %p284 = pneg %p176
      %p285 = pneg %p205
      %p286 = pneg %p202
      %p287 = scmp.lt.s32.totalorder %s22, 1
      %s288 = scalar_select %p287, %s22, 1
      %s289 = smul.addr %s288, 8
      %s290 = scalar_lea.vmem %s7, %s289
      %s291 = smul.u32 16, %s23
      %p292 = scmp.lt.s32.totalorder %s22, 1
      %s293 = scalar_select %p292, %s22, 1
      %p294 = scmp.lt.s32.totalorder %s291, 47
      %s295 = scalar_select %p294, %s291, 47
      %s296 = smul.addr %s293, 48
      %s297 = sadd.s32 %s295, %s296
      %s298 = smul.addr %s297, 8
      %s299 = scalar_lea.vmem %s0, %s298
      %s300 = smul.u32 16, %s23
      %p301 = scmp.lt.s32.totalorder %s22, 1
      %s302 = scalar_select %p301, %s22, 1
      %s303 = smul.addr %s302, 8
      %s304 = scalar_lea.vmem %s7, %s303
      %v306 = vld [vmem:[%s299] sm:$0xff]
      %v307 = vld [vmem:[%s299 + $0x8] sm:$0xff]
      %v308 = vld [vmem:[%s299 + $0x10] sm:$0xff]
      %v309 = vld [vmem:[%s299 + $0x18] sm:$0xff]
      %v310 = vld [vmem:[%s299 + $0x20] sm:$0xff]
      %v311 = vld [vmem:[%s299 + $0x28] sm:$0xff]
      %v312 = vld [vmem:[%s299 + $0x30] sm:$0xff]
      %v313 = vld [vmem:[%s299 + $0x38] sm:$0xff]
      %v314 = vld [vmem:[%s299 + $0x40] sm:$0xff]
      %v315 = vld [vmem:[%s299 + $0x48] sm:$0xff]
      %v316 = vld [vmem:[%s299 + $0x50] sm:$0xff]
      %v317 = vld [vmem:[%s299 + $0x58] sm:$0xff]
      %v318 = vld [vmem:[%s299 + $0x60] sm:$0xff]
      %v319 = vld [vmem:[%s299 + $0x68] sm:$0xff]
      %v320 = vld [vmem:[%s299 + $0x70] sm:$0xff]
      %v321 = vld [vmem:[%s299 + $0x78] sm:$0xff]
      %v322 = vld [vmem:[%s1] sm:$0x3]
      %v323 = vld [vmem:[%s6] ss:$0 sm:$0xff]
      %v324 = vpack.c.bf16 %v307, %v306
      %v325 = vpack.c.bf16 %v309, %v308
      %v326 = vpack.c.bf16 %v311, %v310
      %v327 = vpack.c.bf16 %v313, %v312
      %v328 = vpack.c.bf16 %v315, %v314
      %v329 = vpack.c.bf16 %v317, %v316
      %v330 = vpack.c.bf16 %v319, %v318
      %v331 = vpack.c.bf16 %v321, %v320
      %vm332 = vcmask 23552
      %v334 = vsel %vm332, %v324, 0
      %v337 = vsel %vm332, %v325, 0
      %v340 = vsel %vm332, %v326, 0
      %v343 = vsel %vm332, %v327, 0
      %v346 = vsel %vm332, %v328, 0
      %v349 = vsel %vm332, %v329, 0
      %v352 = vsel %vm332, %v330, 0
      %v355 = vsel %vm332, %v331, 0
      %vm357 = vcmask 1040384
      %vm358 = vcmask 1041408
      %v359 = vsel %vm357, 4294967295, 65535
      %v360 = vsel %vm358, %v359, 0
      %v362 = vand.u32 %v322, %v360
      %364 = vmatprep.subr.bf16.mxu0 0
      %365 = vmatpush1.bf16.msra.mxu0 %v362
      %366 = vmatprep.subr.bf16.mxu0 0
      %367 = vmatpush1.bf16.msra.mxu0 0
      %368 = vmatprep.subr.bf16.mxu0 0
      %369 = vmatpush1.bf16.msra.mxu0 0
      %370 = vmatprep.subr.bf16.mxu0 0
      %371 = vmatpush1.bf16.msra.mxu0 0
      %372 = vmatprep.subr.bf16.mxu0 0
      %373 = vmatpush1.bf16.msra.mxu0 0
      %374 = vmatprep.subr.bf16.mxu0 0
      %375 = vmatpush1.bf16.msra.mxu0 0
      %376 = vmatprep.subr.bf16.mxu0 0
      %377 = vmatpush1.bf16.msra.mxu0 0
      %378 = vmatprep.subr.bf16.mxu0 0
      %379 = vmatpush1.bf16.msra.mxu0 0
      %380 = vmatprep.subr.bf16.mxu0 0
      %381 = vmatpush1.bf16.msra.mxu0 0
      %382 = vmatprep.subr.bf16.mxu0 0
      %383 = vmatpush1.bf16.msra.mxu0 0
      %384 = vmatprep.subr.bf16.mxu0 0
      %385 = vmatpush1.bf16.msra.mxu0 0
      %386 = vmatprep.subr.bf16.mxu0 0
      %387 = vmatpush1.bf16.msra.mxu0 0
      %388 = vmatprep.subr.bf16.mxu0 0
      %389 = vmatpush1.bf16.msra.mxu0 0
      %390 = vmatprep.subr.bf16.mxu0 0
      %391 = vmatpush1.bf16.msra.mxu0 0
      %392 = vmatprep.subr.bf16.mxu0 0
      %393 = vmatpush1.bf16.msra.mxu0 0
      %394 = vmatprep.subr.bf16.mxu0 0
      %395 = vmatpush1.bf16.msra.mxu0 0
      %396 = vmatprep.mubr.bf16.mxu0 0
      %397 = vmatmul.mubr.bf16.gmra.mrb[0].mxu0 %v334
      %v398 = vpop.f32.mrb[0].mxu0
      %v399 = vadd.f32 %v323, %v398
      %v400 = vpop.f32.mrb[0].mxu0
      %v401 = vpop.f32.mrb[0].mxu0
      %v402 = vadd.f32 %v323, %v401
      %v403 = vpop.f32.mrb[0].mxu0
      %404 = vmatprep.mubr.bf16.mxu0 0
      %405 = vmatmul.mubr.bf16.gmra.mrb[0].mxu0 %v337
      %v406 = vpop.f32.mrb[0].mxu0
      %v407 = vadd.f32 %v323, %v406
      %v408 = vpop.f32.mrb[0].mxu0
      %v409 = vpop.f32.mrb[0].mxu0
      %v410 = vadd.f32 %v323, %v409
      %v411 = vpop.f32.mrb[0].mxu0
      %412 = vmatprep.mubr.bf16.mxu0 0
      %413 = vmatmul.mubr.bf16.gmra.mrb[0].mxu0 %v340
      %v414 = vpop.f32.mrb[0].mxu0
      %v415 = vadd.f32 %v323, %v414
      %v416 = vpop.f32.mrb[0].mxu0
      %v417 = vpop.f32.mrb[0].mxu0
      %v418 = vadd.f32 %v323, %v417
      %v419 = vpop.f32.mrb[0].mxu0
      %420 = vmatprep.mubr.bf16.mxu0 0
      %421 = vmatmul.mubr.bf16.gmra.mrb[0].mxu0 %v343
      %v422 = vpop.f32.mrb[0].mxu0
      %v423 = vadd.f32 %v323, %v422
      %v424 = vpop.f32.mrb[0].mxu0
      %v425 = vpop.f32.mrb[0].mxu0
      %v426 = vadd.f32 %v323, %v425
      %v427 = vpop.f32.mrb[0].mxu0
      %428 = vmatprep.mubr.bf16.mxu0 0
      %429 = vmatmul.mubr.bf16.gmra.mrb[0].mxu0 %v346
      %v430 = vpop.f32.mrb[0].mxu0
      %v431 = vadd.f32 %v323, %v430
      %v432 = vpop.f32.mrb[0].mxu0
      %v433 = vpop.f32.mrb[0].mxu0
      %v434 = vadd.f32 %v323, %v433
      %v435 = vpop.f32.mrb[0].mxu0
      %436 = vmatprep.mubr.bf16.mxu0 0
      %437 = vmatmul.mubr.bf16.gmra.mrb[0].mxu0 %v349
      %v438 = vpop.f32.mrb[0].mxu0
      %v439 = vadd.f32 %v323, %v438
      %v440 = vpop.f32.mrb[0].mxu0
      %v441 = vpop.f32.mrb[0].mxu0
      %v442 = vadd.f32 %v323, %v441
      %v443 = vpop.f32.mrb[0].mxu0
      %444 = vmatprep.mubr.bf16.mxu0 0
      %445 = vmatmul.mubr.bf16.gmra.mrb[0].mxu0 %v352
      %v446 = vpop.f32.mrb[0].mxu0
      %v447 = vadd.f32 %v323, %v446
      %v448 = vpop.f32.mrb[0].mxu0
      %v449 = vpop.f32.mrb[0].mxu0
      %v450 = vadd.f32 %v323, %v449
      %v451 = vpop.f32.mrb[0].mxu0
      %452 = vmatprep.mubr.bf16.mxu0 0
      %453 = vmatmul.mubr.bf16.gmra.mrb[0].mxu0 %v355
      %v454 = vpop.f32.mrb[0].mxu0
      %v455 = vadd.f32 %v323, %v454
      %v456 = vpop.f32.mrb[0].mxu0
      %v457 = vpop.f32.mrb[0].mxu0
      %v458 = vadd.f32 %v323, %v457
      %v459 = vpop.f32.mrb[0].mxu0
      %460 = vdwg.mxu0
      %v461 = vmax.f32 %v399, 0.0
      %v462 = vmax.f32 %v402, 0.0
      %v463 = vmax.f32 %v407, 0.0
      %v464 = vmax.f32 %v410, 0.0
      %v465 = vmax.f32 %v415, 0.0
      %v466 = vmax.f32 %v418, 0.0
      %v467 = vmax.f32 %v423, 0.0
      %v468 = vmax.f32 %v426, 0.0
      %v469 = vmax.f32 %v431, 0.0
      %v470 = vmax.f32 %v434, 0.0
      %v471 = vmax.f32 %v439, 0.0
      %v472 = vmax.f32 %v442, 0.0
      %v473 = vmax.f32 %v447, 0.0
      %v474 = vmax.f32 %v450, 0.0
      %v475 = vmax.f32 %v455, 0.0
      %v476 = vmax.f32 %v458, 0.0
      %v477 = vld [vmem:[%s2] sm:$0xf]
      %v478 = vld [vmem:[%s2 + $0x4] sm:$0xf]
      %v479 = vld [vmem:[%s2 + $0x8] sm:$0xf]
      %v480 = vld [vmem:[%s2 + $0xc] sm:$0xf]
      %v481 = vld [vmem:[%s2 + $0x10] sm:$0xf]
      %v482 = vld [vmem:[%s2 + $0x14] sm:$0xf]
      %v483 = vld [vmem:[%s2 + $0x18] sm:$0xf]
      %v484 = vld [vmem:[%s2 + $0x1c] sm:$0xf]
      %v485 = vld [vmem:[%s6 + $0x1] ss:$0 sm:$0xff]
      %v486 = vpack.c.bf16 %v462, %v461
      %v487 = vpack.c.bf16 %v464, %v463
      %v488 = vpack.c.bf16 %v466, %v465
      %v489 = vpack.c.bf16 %v468, %v467
      %v490 = vpack.c.bf16 %v470, %v469
      %v491 = vpack.c.bf16 %v472, %v471
      %v492 = vpack.c.bf16 %v474, %v473
      %v493 = vpack.c.bf16 %v476, %v475
      %v502 = vunpack.c.l.b16 %v477
      %v503 = vunpack.c.l.b16 %v478
      %v504 = vunpack.c.l.b16 %v479
      %v505 = vunpack.c.l.b16 %v480
      %v506 = vunpack.c.l.b16 %v481
      %v507 = vunpack.c.l.b16 %v482
      %v508 = vunpack.c.l.b16 %v483
      %v509 = vunpack.c.l.b16 %v484
      %v510 = vpack.c.b16 %v503, %v502
      %v511 = vpack.c.b16 %v505, %v504
      %v512 = vpack.c.b16 %v507, %v506
      %v513 = vpack.c.b16 %v509, %v508
      %vm518 = vcmask 523264
      %v520 = vsel %vm518, %v486, 0
      %v523 = vsel %vm518, %v487, 0
      %v526 = vsel %vm518, %v488, 0
      %v529 = vsel %vm518, %v489, 0
      %v532 = vsel %vm518, %v490, 0
      %v535 = vsel %vm518, %v491, 0
      %v538 = vsel %vm518, %v492, 0
      %v541 = vsel %vm518, %v493, 0
      %543 = vmatprep.subr.bf16.mxu0 0
      %544 = vmatpush1.bf16.msra.mxu0 %v510
      %545 = vmatprep.subr.bf16.mxu0 0
      %546 = vmatpush1.bf16.msra.mxu0 %v511
      %547 = vmatprep.subr.bf16.mxu0 0
      %548 = vmatpush1.bf16.msra.mxu0 %v512
      %549 = vmatprep.subr.bf16.mxu0 0
      %550 = vmatpush1.bf16.msra.mxu0 %v513
      %551 = vmatprep.subr.bf16.mxu0 0
      %552 = vmatpush1.bf16.msra.mxu0 0
      %553 = vmatprep.subr.bf16.mxu0 0
      %554 = vmatpush1.bf16.msra.mxu0 0
      %555 = vmatprep.subr.bf16.mxu0 0
      %556 = vmatpush1.bf16.msra.mxu0 0
      %557 = vmatprep.subr.bf16.mxu0 0
      %558 = vmatpush1.bf16.msra.mxu0 0
      %559 = vmatprep.subr.bf16.mxu0 0
      %560 = vmatpush1.bf16.msra.mxu0 0
      %561 = vmatprep.subr.bf16.mxu0 0
      %562 = vmatpush1.bf16.msra.mxu0 0
      %563 = vmatprep.subr.bf16.mxu0 0
      %564 = vmatpush1.bf16.msra.mxu0 0
      %565 = vmatprep.subr.bf16.mxu0 0
      %566 = vmatpush1.bf16.msra.mxu0 0
      %567 = vmatprep.subr.bf16.mxu0 0
      %568 = vmatpush1.bf16.msra.mxu0 0
      %569 = vmatprep.subr.bf16.mxu0 0
      %570 = vmatpush1.bf16.msra.mxu0 0
      %571 = vmatprep.subr.bf16.mxu0 0
      %572 = vmatpush1.bf16.msra.mxu0 0
      %573 = vmatprep.subr.bf16.mxu0 0
      %574 = vmatpush1.bf16.msra.mxu0 0
      %575 = vmatprep.mubr.bf16.mxu0 0
      %576 = vmatmul.mubr.bf16.gmra.mrb[0].mxu0 %v520
      %v577 = vpop.f32.mrb[0].mxu0
      %v578 = vadd.f32 %v485, %v577
      %v579 = vpop.f32.mrb[0].mxu0
      %v580 = vpop.f32.mrb[0].mxu0
      %v581 = vadd.f32 %v485, %v580
      %v582 = vpop.f32.mrb[0].mxu0
      %583 = vmatprep.mubr.bf16.mxu0 0
      %584 = vmatmul.mubr.bf16.gmra.mrb[0].mxu0 %v523
      %v585 = vpop.f32.mrb[0].mxu0
      %v586 = vadd.f32 %v485, %v585
      %v587 = vpop.f32.mrb[0].mxu0
      %v588 = vpop.f32.mrb[0].mxu0
      %v589 = vadd.f32 %v485, %v588
      %v590 = vpop.f32.mrb[0].mxu0
      %591 = vmatprep.mubr.bf16.mxu0 0
      %592 = vmatmul.mubr.bf16.gmra.mrb[0].mxu0 %v526
      %v593 = vpop.f32.mrb[0].mxu0
      %v594 = vadd.f32 %v485, %v593
      %v595 = vpop.f32.mrb[0].mxu0
      %v596 = vpop.f32.mrb[0].mxu0
      %v597 = vadd.f32 %v485, %v596
      %v598 = vpop.f32.mrb[0].mxu0
      %599 = vmatprep.mubr.bf16.mxu0 0
      %600 = vmatmul.mubr.bf16.gmra.mrb[0].mxu0 %v529
      %v601 = vpop.f32.mrb[0].mxu0
      %v602 = vadd.f32 %v485, %v601
      %v603 = vpop.f32.mrb[0].mxu0
      %v604 = vpop.f32.mrb[0].mxu0
      %v605 = vadd.f32 %v485, %v604
      %v606 = vpop.f32.mrb[0].mxu0
      %607 = vmatprep.mubr.bf16.mxu0 0
      %608 = vmatmul.mubr.bf16.gmra.mrb[0].mxu0 %v532
      %v609 = vpop.f32.mrb[0].mxu0
      %v610 = vadd.f32 %v485, %v609
      %v611 = vpop.f32.mrb[0].mxu0
      %v612 = vpop.f32.mrb[0].mxu0
      %v613 = vadd.f32 %v485, %v612
      %v614 = vpop.f32.mrb[0].mxu0
      %615 = vmatprep.mubr.bf16.mxu0 0
      %616 = vmatmul.mubr.bf16.gmra.mrb[0].mxu0 %v535
      %v617 = vpop.f32.mrb[0].mxu0
      %v618 = vadd.f32 %v485, %v617
      %v619 = vpop.f32.mrb[0].mxu0
      %v620 = vpop.f32.mrb[0].mxu0
      %v621 = vadd.f32 %v485, %v620
      %v622 = vpop.f32.mrb[0].mxu0
      %623 = vmatprep.mubr.bf16.mxu0 0
      %624 = vmatmul.mubr.bf16.gmra.mrb[0].mxu0 %v538
      %v625 = vpop.f32.mrb[0].mxu0
      %v626 = vadd.f32 %v485, %v625
      %v627 = vpop.f32.mrb[0].mxu0
      %v628 = vpop.f32.mrb[0].mxu0
      %v629 = vadd.f32 %v485, %v628
      %v630 = vpop.f32.mrb[0].mxu0
      %631 = vmatprep.mubr.bf16.mxu0 0
      %632 = vmatmul.mubr.bf16.gmra.mrb[0].mxu0 %v541
      %v633 = vpop.f32.mrb[0].mxu0
      %v634 = vadd.f32 %v485, %v633
      %v635 = vpop.f32.mrb[0].mxu0
      %v636 = vpop.f32.mrb[0].mxu0
      %v637 = vadd.f32 %v485, %v636
      %v638 = vpop.f32.mrb[0].mxu0
      %639 = vdwg.mxu0
      %v640 = vmax.f32 %v578, 0.0
      %v641 = vmax.f32 %v581, 0.0
      %v642 = vmax.f32 %v586, 0.0
      %v643 = vmax.f32 %v589, 0.0
      %v644 = vmax.f32 %v594, 0.0
      %v645 = vmax.f32 %v597, 0.0
      %v646 = vmax.f32 %v602, 0.0
      %v647 = vmax.f32 %v605, 0.0
      %v648 = vmax.f32 %v610, 0.0
      %v649 = vmax.f32 %v613, 0.0
      %v650 = vmax.f32 %v618, 0.0
      %v651 = vmax.f32 %v621, 0.0
      %v652 = vmax.f32 %v626, 0.0
      %v653 = vmax.f32 %v629, 0.0
      %v654 = vmax.f32 %v634, 0.0
      %v655 = vmax.f32 %v637, 0.0
      %v656 = vld [vmem:[%s3] sm:$0xf]
      %v657 = vld [vmem:[%s3 + $0x4] sm:$0xf]
      %v658 = vld [vmem:[%s3 + $0x8] sm:$0xf]
      %v659 = vld [vmem:[%s3 + $0xc] sm:$0xf]
      %v660 = vld [vmem:[%s3 + $0x10] sm:$0xf]
      %v661 = vld [vmem:[%s3 + $0x14] sm:$0xf]
      %v662 = vld [vmem:[%s3 + $0x18] sm:$0xf]
      %v663 = vld [vmem:[%s3 + $0x1c] sm:$0xf]
      %v664 = vld [vmem:[%s6 + $0x2] ss:$0 sm:$0xff]
      %v665 = vpack.c.bf16 %v641, %v640
      %v666 = vpack.c.bf16 %v643, %v642
      %v667 = vpack.c.bf16 %v645, %v644
      %v668 = vpack.c.bf16 %v647, %v646
      %v669 = vpack.c.bf16 %v649, %v648
      %v670 = vpack.c.bf16 %v651, %v650
      %v671 = vpack.c.bf16 %v653, %v652
      %v672 = vpack.c.bf16 %v655, %v654
      %v681 = vunpack.c.l.b16 %v656
      %v682 = vunpack.c.l.b16 %v657
      %v683 = vunpack.c.l.b16 %v658
      %v684 = vunpack.c.l.b16 %v659
      %v685 = vunpack.c.l.b16 %v660
      %v686 = vunpack.c.l.b16 %v661
      %v687 = vunpack.c.l.b16 %v662
      %v688 = vunpack.c.l.b16 %v663
      %v689 = vpack.c.b16 %v682, %v681
      %v690 = vpack.c.b16 %v684, %v683
      %v691 = vpack.c.b16 %v686, %v685
      %v692 = vpack.c.b16 %v688, %v687
      %v698 = vsel %vm518, %v665, 0
      %v701 = vsel %vm518, %v666, 0
      %v704 = vsel %vm518, %v667, 0
      %v707 = vsel %vm518, %v668, 0
      %v710 = vsel %vm518, %v669, 0
      %v713 = vsel %vm518, %v670, 0
      %v716 = vsel %vm518, %v671, 0
      %v719 = vsel %vm518, %v672, 0
      %721 = vmatprep.subr.bf16.mxu0 0
      %722 = vmatpush1.bf16.msra.mxu0 %v689
      %723 = vmatprep.subr.bf16.mxu0 0
      %724 = vmatpush1.bf16.msra.mxu0 %v690
      %725 = vmatprep.subr.bf16.mxu0 0
      %726 = vmatpush1.bf16.msra.mxu0 %v691
      %727 = vmatprep.subr.bf16.mxu0 0
      %728 = vmatpush1.bf16.msra.mxu0 %v692
      %729 = vmatprep.subr.bf16.mxu0 0
      %730 = vmatpush1.bf16.msra.mxu0 0
      %731 = vmatprep.subr.bf16.mxu0 0
      %732 = vmatpush1.bf16.msra.mxu0 0
      %733 = vmatprep.subr.bf16.mxu0 0
      %734 = vmatpush1.bf16.msra.mxu0 0
      %735 = vmatprep.subr.bf16.mxu0 0
      %736 = vmatpush1.bf16.msra.mxu0 0
      %737 = vmatprep.subr.bf16.mxu0 0
      %738 = vmatpush1.bf16.msra.mxu0 0
      %739 = vmatprep.subr.bf16.mxu0 0
      %740 = vmatpush1.bf16.msra.mxu0 0
      %741 = vmatprep.subr.bf16.mxu0 0
      %742 = vmatpush1.bf16.msra.mxu0 0
      %743 = vmatprep.subr.bf16.mxu0 0
      %744 = vmatpush1.bf16.msra.mxu0 0
      %745 = vmatprep.subr.bf16.mxu0 0
      %746 = vmatpush1.bf16.msra.mxu0 0
      %747 = vmatprep.subr.bf16.mxu0 0
      %748 = vmatpush1.bf16.msra.mxu0 0
      %749 = vmatprep.subr.bf16.mxu0 0
      %750 = vmatpush1.bf16.msra.mxu0 0
      %751 = vmatprep.subr.bf16.mxu0 0
      %752 = vmatpush1.bf16.msra.mxu0 0
      %753 = vmatprep.mubr.bf16.mxu0 0
      %754 = vmatmul.mubr.bf16.gmra.mrb[0].mxu0 %v698
      %v755 = vpop.f32.mrb[0].mxu0
      %v756 = vadd.f32 %v664, %v755
      %v757 = vpop.f32.mrb[0].mxu0
      %v758 = vpop.f32.mrb[0].mxu0
      %v759 = vadd.f32 %v664, %v758
      %v760 = vpop.f32.mrb[0].mxu0
      %761 = vmatprep.mubr.bf16.mxu0 0
      %762 = vmatmul.mubr.bf16.gmra.mrb[0].mxu0 %v701
      %v763 = vpop.f32.mrb[0].mxu0
      %v764 = vadd.f32 %v664, %v763
      %v765 = vpop.f32.mrb[0].mxu0
      %v766 = vpop.f32.mrb[0].mxu0
      %v767 = vadd.f32 %v664, %v766
      %v768 = vpop.f32.mrb[0].mxu0
      %769 = vmatprep.mubr.bf16.mxu0 0
      %770 = vmatmul.mubr.bf16.gmra.mrb[0].mxu0 %v704
      %v771 = vpop.f32.mrb[0].mxu0
      %v772 = vadd.f32 %v664, %v771
      %v773 = vpop.f32.mrb[0].mxu0
      %v774 = vpop.f32.mrb[0].mxu0
      %v775 = vadd.f32 %v664, %v774
      %v776 = vpop.f32.mrb[0].mxu0
      %777 = vmatprep.mubr.bf16.mxu0 0
      %778 = vmatmul.mubr.bf16.gmra.mrb[0].mxu0 %v707
      %v779 = vpop.f32.mrb[0].mxu0
      %v780 = vadd.f32 %v664, %v779
      %v781 = vpop.f32.mrb[0].mxu0
      %v782 = vpop.f32.mrb[0].mxu0
      %v783 = vadd.f32 %v664, %v782
      %v784 = vpop.f32.mrb[0].mxu0
      %785 = vmatprep.mubr.bf16.mxu0 0
      %786 = vmatmul.mubr.bf16.gmra.mrb[0].mxu0 %v710
      %v787 = vpop.f32.mrb[0].mxu0
      %v788 = vadd.f32 %v664, %v787
      %v789 = vpop.f32.mrb[0].mxu0
      %v790 = vpop.f32.mrb[0].mxu0
      %v791 = vadd.f32 %v664, %v790
      %v792 = vpop.f32.mrb[0].mxu0
      %793 = vmatprep.mubr.bf16.mxu0 0
      %794 = vmatmul.mubr.bf16.gmra.mrb[0].mxu0 %v713
      %v795 = vpop.f32.mrb[0].mxu0
      %v796 = vadd.f32 %v664, %v795
      %v797 = vpop.f32.mrb[0].mxu0
      %v798 = vpop.f32.mrb[0].mxu0
      %v799 = vadd.f32 %v664, %v798
      %v800 = vpop.f32.mrb[0].mxu0
      %801 = vmatprep.mubr.bf16.mxu0 0
      %802 = vmatmul.mubr.bf16.gmra.mrb[0].mxu0 %v716
      %v803 = vpop.f32.mrb[0].mxu0
      %v804 = vadd.f32 %v664, %v803
      %v805 = vpop.f32.mrb[0].mxu0
      %v806 = vpop.f32.mrb[0].mxu0
      %v807 = vadd.f32 %v664, %v806
      %v808 = vpop.f32.mrb[0].mxu0
      %809 = vmatprep.mubr.bf16.mxu0 0
      %810 = vmatmul.mubr.bf16.gmra.mrb[0].mxu0 %v719
      %v811 = vpop.f32.mrb[0].mxu0
      %v812 = vadd.f32 %v664, %v811
      %v813 = vpop.f32.mrb[0].mxu0
      %v814 = vpop.f32.mrb[0].mxu0
      %v815 = vadd.f32 %v664, %v814
      %v816 = vpop.f32.mrb[0].mxu0
      %817 = vdwg.mxu0
      %v818 = vmax.f32 %v756, 0.0
      %v819 = vmax.f32 %v759, 0.0
      %v820 = vmax.f32 %v764, 0.0
      %v821 = vmax.f32 %v767, 0.0
      %v822 = vmax.f32 %v772, 0.0
      %v823 = vmax.f32 %v775, 0.0
      %v824 = vmax.f32 %v780, 0.0
      %v825 = vmax.f32 %v783, 0.0
      %v826 = vmax.f32 %v788, 0.0
      %v827 = vmax.f32 %v791, 0.0
      %v828 = vmax.f32 %v796, 0.0
      %v829 = vmax.f32 %v799, 0.0
      %v830 = vmax.f32 %v804, 0.0
      %v831 = vmax.f32 %v807, 0.0
      %v832 = vmax.f32 %v812, 0.0
      %v833 = vmax.f32 %v815, 0.0
      %v834 = vld [vmem:[%s4] sm:$0xf]
      %v835 = vld [vmem:[%s4 + $0x4] sm:$0xf]
      %v836 = vld [vmem:[%s4 + $0x8] sm:$0xf]
      %v837 = vld [vmem:[%s4 + $0xc] sm:$0xf]
      %v838 = vld [vmem:[%s4 + $0x10] sm:$0xf]
      %v839 = vld [vmem:[%s4 + $0x14] sm:$0xf]
      %v840 = vld [vmem:[%s4 + $0x18] sm:$0xf]
      %v841 = vld [vmem:[%s4 + $0x1c] sm:$0xf]
      %v842 = vld [vmem:[%s4 + $0x20] sm:$0xf]
      %v843 = vld [vmem:[%s4 + $0x24] sm:$0xf]
      %v844 = vld [vmem:[%s4 + $0x28] sm:$0xf]
      %v845 = vld [vmem:[%s4 + $0x2c] sm:$0xf]
      %v846 = vld [vmem:[%s4 + $0x30] sm:$0xf]
      %v847 = vld [vmem:[%s4 + $0x34] sm:$0xf]
      %v848 = vld [vmem:[%s4 + $0x38] sm:$0xf]
      %v849 = vld [vmem:[%s4 + $0x3c] sm:$0xf]
      %v850 = vld [vmem:[%s6 + $0x3] ss:$0 sm:$0xff]
      %v851 = vpack.c.bf16 %v819, %v818
      %v852 = vpack.c.bf16 %v821, %v820
      %v853 = vpack.c.bf16 %v823, %v822
      %v854 = vpack.c.bf16 %v825, %v824
      %v855 = vpack.c.bf16 %v827, %v826
      %v856 = vpack.c.bf16 %v829, %v828
      %v857 = vpack.c.bf16 %v831, %v830
      %v858 = vpack.c.bf16 %v833, %v832
      %v875 = vunpack.c.l.b16 %v834
      %v876 = vunpack.c.l.b16 %v835
      %v877 = vunpack.c.l.b16 %v836
      %v878 = vunpack.c.l.b16 %v837
      %v879 = vunpack.c.l.b16 %v838
      %v880 = vunpack.c.l.b16 %v839
      %v881 = vunpack.c.l.b16 %v840
      %v882 = vunpack.c.l.b16 %v841
      %v883 = vunpack.c.l.b16 %v842
      %v884 = vunpack.c.l.b16 %v843
      %v885 = vunpack.c.l.b16 %v844
      %v886 = vunpack.c.l.b16 %v845
      %v887 = vunpack.c.l.b16 %v846
      %v888 = vunpack.c.l.b16 %v847
      %v889 = vunpack.c.l.b16 %v848
      %v890 = vunpack.c.l.b16 %v849
      %v891 = vpack.c.b16 %v876, %v875
      %v892 = vpack.c.b16 %v878, %v877
      %v893 = vpack.c.b16 %v880, %v879
      %v894 = vpack.c.b16 %v882, %v881
      %v895 = vpack.c.b16 %v884, %v883
      %v896 = vpack.c.b16 %v886, %v885
      %v897 = vpack.c.b16 %v888, %v887
      %v898 = vpack.c.b16 %v890, %v889
      %907 = vmatprep.subr.bf16.mxu0 0
      %908 = vmatpush1.bf16.msra.mxu0 %v891
      %909 = vmatprep.subr.bf16.mxu0 0
      %910 = vmatpush1.bf16.msra.mxu0 %v892
      %911 = vmatprep.subr.bf16.mxu0 0
      %912 = vmatpush1.bf16.msra.mxu0 %v893
      %913 = vmatprep.subr.bf16.mxu0 0
      %914 = vmatpush1.bf16.msra.mxu0 %v894
      %915 = vmatprep.subr.bf16.mxu0 0
      %916 = vmatpush1.bf16.msra.mxu0 %v895
      %917 = vmatprep.subr.bf16.mxu0 0
      %918 = vmatpush1.bf16.msra.mxu0 %v896
      %919 = vmatprep.subr.bf16.mxu0 0
      %920 = vmatpush1.bf16.msra.mxu0 %v897
      %921 = vmatprep.subr.bf16.mxu0 0
      %922 = vmatpush1.bf16.msra.mxu0 %v898
      %923 = vmatprep.subr.bf16.mxu0 0
      %924 = vmatpush1.bf16.msra.mxu0 0
      %925 = vmatprep.subr.bf16.mxu0 0
      %926 = vmatpush1.bf16.msra.mxu0 0
      %927 = vmatprep.subr.bf16.mxu0 0
      %928 = vmatpush1.bf16.msra.mxu0 0
      %929 = vmatprep.subr.bf16.mxu0 0
      %930 = vmatpush1.bf16.msra.mxu0 0
      %931 = vmatprep.subr.bf16.mxu0 0
      %932 = vmatpush1.bf16.msra.mxu0 0
      %933 = vmatprep.subr.bf16.mxu0 0
      %934 = vmatpush1.bf16.msra.mxu0 0
      %935 = vmatprep.subr.bf16.mxu0 0
      %936 = vmatpush1.bf16.msra.mxu0 0
      %937 = vmatprep.subr.bf16.mxu0 0
      %938 = vmatpush1.bf16.msra.mxu0 0
      %939 = vmatprep.mubr.bf16.mxu0 0
      %940 = vmatmul.mubr.bf16.gmra.mrb[0].mxu0 %v851
      %v941 = vpop.f32.mrb[0].mxu0
      %v942 = vadd.f32 %v850, %v941
      %v943 = vpop.f32.mrb[0].mxu0
      %v944 = vpop.f32.mrb[0].mxu0
      %v945 = vadd.f32 %v850, %v944
      %v946 = vpop.f32.mrb[0].mxu0
      %947 = vmatprep.mubr.bf16.mxu0 0
      %948 = vmatmul.mubr.bf16.gmra.mrb[0].mxu0 %v852
      %v949 = vpop.f32.mrb[0].mxu0
      %v950 = vadd.f32 %v850, %v949
      %v951 = vpop.f32.mrb[0].mxu0
      %v952 = vpop.f32.mrb[0].mxu0
      %v953 = vadd.f32 %v850, %v952
      %v954 = vpop.f32.mrb[0].mxu0
      %955 = vmatprep.mubr.bf16.mxu0 0
      %956 = vmatmul.mubr.bf16.gmra.mrb[0].mxu0 %v853
      %v957 = vpop.f32.mrb[0].mxu0
      %v958 = vadd.f32 %v850, %v957
      %v959 = vpop.f32.mrb[0].mxu0
      %v960 = vpop.f32.mrb[0].mxu0
      %v961 = vadd.f32 %v850, %v960
      %v962 = vpop.f32.mrb[0].mxu0
      %963 = vmatprep.mubr.bf16.mxu0 0
      %964 = vmatmul.mubr.bf16.gmra.mrb[0].mxu0 %v854
      %v965 = vpop.f32.mrb[0].mxu0
      %v966 = vadd.f32 %v850, %v965
      %v967 = vpop.f32.mrb[0].mxu0
      %v968 = vpop.f32.mrb[0].mxu0
      %v969 = vadd.f32 %v850, %v968
      %v970 = vpop.f32.mrb[0].mxu0
      %971 = vmatprep.mubr.bf16.mxu0 0
      %972 = vmatmul.mubr.bf16.gmra.mrb[0].mxu0 %v855
      %v973 = vpop.f32.mrb[0].mxu0
      %v974 = vadd.f32 %v850, %v973
      %v975 = vpop.f32.mrb[0].mxu0
      %v976 = vpop.f32.mrb[0].mxu0
      %v977 = vadd.f32 %v850, %v976
      %v978 = vpop.f32.mrb[0].mxu0
      %979 = vmatprep.mubr.bf16.mxu0 0
      %980 = vmatmul.mubr.bf16.gmra.mrb[0].mxu0 %v856
      %v981 = vpop.f32.mrb[0].mxu0
      %v982 = vadd.f32 %v850, %v981
      %v983 = vpop.f32.mrb[0].mxu0
      %v984 = vpop.f32.mrb[0].mxu0
      %v985 = vadd.f32 %v850, %v984
      %v986 = vpop.f32.mrb[0].mxu0
      %987 = vmatprep.mubr.bf16.mxu0 0
      %988 = vmatmul.mubr.bf16.gmra.mrb[0].mxu0 %v857
      %v989 = vpop.f32.mrb[0].mxu0
      %v990 = vadd.f32 %v850, %v989
      %v991 = vpop.f32.mrb[0].mxu0
      %v992 = vpop.f32.mrb[0].mxu0
      %v993 = vadd.f32 %v850, %v992
      %v994 = vpop.f32.mrb[0].mxu0
      %995 = vmatprep.mubr.bf16.mxu0 0
      %996 = vmatmul.mubr.bf16.gmra.mrb[0].mxu0 %v858
      %v997 = vpop.f32.mrb[0].mxu0
      %v998 = vadd.f32 %v850, %v997
      %v999 = vpop.f32.mrb[0].mxu0
      %v1000 = vpop.f32.mrb[0].mxu0
      %v1001 = vadd.f32 %v850, %v1000
      %v1002 = vpop.f32.mrb[0].mxu0
      %1003 = vdwg.mxu0
      %v1004 = vmax.f32 %v942, 0.0
      %v1005 = vmax.f32 %v945, 0.0
      %v1006 = vmax.f32 %v950, 0.0
      %v1007 = vmax.f32 %v953, 0.0
      %v1008 = vmax.f32 %v958, 0.0
      %v1009 = vmax.f32 %v961, 0.0
      %v1010 = vmax.f32 %v966, 0.0
      %v1011 = vmax.f32 %v969, 0.0
      %v1012 = vmax.f32 %v974, 0.0
      %v1013 = vmax.f32 %v977, 0.0
      %v1014 = vmax.f32 %v982, 0.0
      %v1015 = vmax.f32 %v985, 0.0
      %v1016 = vmax.f32 %v990, 0.0
      %v1017 = vmax.f32 %v993, 0.0
      %v1018 = vmax.f32 %v998, 0.0
      %v1019 = vmax.f32 %v1001, 0.0
      %v1020 = vld [vmem:[%s5] sm:$0xff]
      %v1021 = vld [vmem:[%s5 + $0x8] sm:$0xff]
      %v1022 = vld [vmem:[%s5 + $0x10] sm:$0xff]
      %v1023 = vld [vmem:[%s5 + $0x18] sm:$0xff]
      %v1024 = vld [vmem:[%s5 + $0x20] sm:$0xff]
      %v1025 = vld [vmem:[%s5 + $0x28] sm:$0xff]
      %v1026 = vld [vmem:[%s5 + $0x30] sm:$0xff]
      %v1027 = vld [vmem:[%s5 + $0x38] sm:$0xff]
      %v1028 = vld [vmem:[%s5 + $0x40] sm:$0xff]
      %v1029 = vld [vmem:[%s5 + $0x48] sm:$0xff]
      %v1030 = vld [vmem:[%s5 + $0x50] sm:$0xff]
      %v1031 = vld [vmem:[%s5 + $0x58] sm:$0xff]
      %v1032 = vld [vmem:[%s5 + $0x60] sm:$0xff]
      %v1033 = vld [vmem:[%s5 + $0x68] sm:$0xff]
      %v1034 = vld [vmem:[%s5 + $0x70] sm:$0xff]
      %v1035 = vld [vmem:[%s5 + $0x78] sm:$0xff]
      %v1036 = vld [vmem:[%s5 + $0x80] sm:$0xff]
      %v1037 = vld [vmem:[%s5 + $0x88] sm:$0xff]
      %v1038 = vld [vmem:[%s5 + $0x90] sm:$0xff]
      %v1039 = vld [vmem:[%s5 + $0x98] sm:$0xff]
      %v1040 = vld [vmem:[%s5 + $0xa0] sm:$0xff]
      %v1041 = vld [vmem:[%s5 + $0xa8] sm:$0xff]
      %v1042 = vld [vmem:[%s5 + $0xb0] sm:$0xff]
      %v1043 = vld [vmem:[%s5 + $0xb8] sm:$0xff]
      %v1044 = vld [vmem:[%s5 + $0xc0] sm:$0xff]
      %v1045 = vld [vmem:[%s5 + $0xc8] sm:$0xff]
      %v1046 = vld [vmem:[%s5 + $0xd0] sm:$0xff]
      %v1047 = vld [vmem:[%s5 + $0xd8] sm:$0xff]
      %v1048 = vld [vmem:[%s5 + $0xe0] sm:$0xff]
      %v1049 = vld [vmem:[%s5 + $0xe8] sm:$0xff]
      %v1050 = vld [vmem:[%s5 + $0xf0] sm:$0xff]
      %v1051 = vld [vmem:[%s5 + $0xf8] sm:$0xff]
      %v1052 = vld [vmem:[%s5 + $0x100] sm:$0xff]
      %v1053 = vld [vmem:[%s5 + $0x108] sm:$0xff]
      %v1054 = vld [vmem:[%s5 + $0x110] sm:$0xff]
      %v1055 = vld [vmem:[%s5 + $0x118] sm:$0xff]
      %v1056 = vld [vmem:[%s5 + $0x120] sm:$0xff]
      %v1057 = vld [vmem:[%s5 + $0x128] sm:$0xff]
      %v1058 = vld [vmem:[%s5 + $0x130] sm:$0xff]
      %v1059 = vld [vmem:[%s5 + $0x138] sm:$0xff]
      %v1060 = vld [vmem:[%s5 + $0x140] sm:$0xff]
      %v1061 = vld [vmem:[%s5 + $0x148] sm:$0xff]
      %v1062 = vld [vmem:[%s5 + $0x150] sm:$0xff]
      %v1063 = vld [vmem:[%s5 + $0x158] sm:$0xff]
      %v1064 = vld [vmem:[%s5 + $0x160] sm:$0xff]
      %v1065 = vld [vmem:[%s5 + $0x168] sm:$0xff]
      %v1066 = vld [vmem:[%s5 + $0x170] sm:$0xff]
      %v1067 = vld [vmem:[%s5 + $0x178] sm:$0xff]
      %v1068 = vld [vmem:[%s5 + $0x180] sm:$0xff]
      %v1069 = vld [vmem:[%s5 + $0x188] sm:$0xff]
      %v1070 = vld [vmem:[%s5 + $0x190] sm:$0xff]
      %v1071 = vld [vmem:[%s5 + $0x198] sm:$0xff]
      %v1072 = vld [vmem:[%s5 + $0x1a0] sm:$0xff]
      %v1073 = vld [vmem:[%s5 + $0x1a8] sm:$0xff]
      %v1074 = vld [vmem:[%s5 + $0x1b0] sm:$0xff]
      %v1075 = vld [vmem:[%s5 + $0x1b8] sm:$0xff]
      %v1076 = vld [vmem:[%s5 + $0x1c0] sm:$0xff]
      %v1077 = vld [vmem:[%s5 + $0x1c8] sm:$0xff]
      %v1078 = vld [vmem:[%s5 + $0x1d0] sm:$0xff]
      %v1079 = vld [vmem:[%s5 + $0x1d8] sm:$0xff]
      %v1080 = vld [vmem:[%s5 + $0x1e0] sm:$0xff]
      %v1081 = vld [vmem:[%s5 + $0x1e8] sm:$0xff]
      %v1082 = vld [vmem:[%s5 + $0x1f0] sm:$0xff]
      %v1083 = vld [vmem:[%s5 + $0x1f8] sm:$0xff]
      %s1084 = scalar_lea.vmem %s6, 4
      %v1085 = vld [vmem:[%s1084] ss:$8 sm:$0xf]
      %v1086 = vld [vmem:[%s1084] ss:$8 sm:$0xf0]
      %v1087 = vor.u32 %v1085, %v1086
      %v1088 = vpack.c.bf16 %v1005, %v1004
      %v1089 = vpack.c.bf16 %v1007, %v1006
      %v1090 = vpack.c.bf16 %v1009, %v1008
      %v1091 = vpack.c.bf16 %v1011, %v1010
      %v1092 = vpack.c.bf16 %v1013, %v1012
      %v1093 = vpack.c.bf16 %v1015, %v1014
      %v1094 = vpack.c.bf16 %v1017, %v1016
      %v1095 = vpack.c.bf16 %v1019, %v1018
      %v1097 = vlaneseq
      %v1098 = vshrl.u32 %v1097, 7
      %v1099 = vsub.s32 0, %v1098
      %v1100 = vrot.slane %v1087, %v1099
      %v1101 = vlaneseq
      %v1102 = vshrl.u32 %v1101, 7
      %v1103 = vsub.s32 1, %v1102
      %v1104 = vrot.slane %v1087, %v1103
      %v1105 = vlaneseq
      %v1106 = vshrl.u32 %v1105, 7
      %v1107 = vsub.s32 2, %v1106
      %v1108 = vrot.slane %v1087, %v1107
      %v1109 = vlaneseq
      %v1110 = vshrl.u32 %v1109, 7
      %v1111 = vsub.s32 3, %v1110
      %v1112 = vrot.slane %v1087, %v1111
      %v1113 = vlaneseq
      %v1114 = vshrl.u32 %v1113, 7
      %v1115 = vsub.s32 4, %v1114
      %v1116 = vrot.slane %v1087, %v1115
      %v1117 = vlaneseq
      %v1118 = vshrl.u32 %v1117, 7
      %v1119 = vsub.s32 5, %v1118
      %v1120 = vrot.slane %v1087, %v1119
      %v1121 = vlaneseq
      %v1122 = vshrl.u32 %v1121, 7
      %v1123 = vsub.s32 6, %v1122
      %v1124 = vrot.slane %v1087, %v1123
      %v1125 = vlaneseq
      %v1126 = vshrl.u32 %v1125, 7
      %v1127 = vsub.s32 7, %v1126
      %v1128 = vrot.slane %v1087, %v1127
      %v1201 = vunpack.c.l.b16 %v1020
      %v1202 = vunpack.c.h.b16 %v1020
      %v1203 = vunpack.c.l.b16 %v1021
      %v1204 = vunpack.c.h.b16 %v1021
      %v1205 = vunpack.c.l.b16 %v1022
      %v1206 = vunpack.c.h.b16 %v1022
      %v1207 = vunpack.c.l.b16 %v1023
      %v1208 = vunpack.c.h.b16 %v1023
      %v1209 = vunpack.c.l.b16 %v1024
      %v1210 = vunpack.c.h.b16 %v1024
      %v1211 = vunpack.c.l.b16 %v1025
      %v1212 = vunpack.c.h.b16 %v1025
      %v1213 = vunpack.c.l.b16 %v1026
      %v1214 = vunpack.c.h.b16 %v1026
      %v1215 = vunpack.c.l.b16 %v1027
      %v1216 = vunpack.c.h.b16 %v1027
      %v1217 = vunpack.c.l.b16 %v1028
      %v1218 = vunpack.c.h.b16 %v1028
      %v1219 = vunpack.c.l.b16 %v1029
      %v1220 = vunpack.c.h.b16 %v1029
      %v1221 = vunpack.c.l.b16 %v1030
      %v1222 = vunpack.c.h.b16 %v1030
      %v1223 = vunpack.c.l.b16 %v1031
      %v1224 = vunpack.c.h.b16 %v1031
      %v1225 = vunpack.c.l.b16 %v1032
      %v1226 = vunpack.c.h.b16 %v1032
      %v1227 = vunpack.c.l.b16 %v1033
      %v1228 = vunpack.c.h.b16 %v1033
      %v1229 = vunpack.c.l.b16 %v1034
      %v1230 = vunpack.c.h.b16 %v1034
      %v1231 = vunpack.c.l.b16 %v1035
      %v1232 = vunpack.c.h.b16 %v1035
      %v1233 = vunpack.c.l.b16 %v1036
      %v1234 = vunpack.c.h.b16 %v1036
      %v1235 = vunpack.c.l.b16 %v1037
      %v1236 = vunpack.c.h.b16 %v1037
      %v1237 = vunpack.c.l.b16 %v1038
      %v1238 = vunpack.c.h.b16 %v1038
      %v1239 = vunpack.c.l.b16 %v1039
      %v1240 = vunpack.c.h.b16 %v1039
      %v1241 = vunpack.c.l.b16 %v1040
      %v1242 = vunpack.c.h.b16 %v1040
      %v1243 = vunpack.c.l.b16 %v1041
      %v1244 = vunpack.c.h.b16 %v1041
      %v1245 = vunpack.c.l.b16 %v1042
      %v1246 = vunpack.c.h.b16 %v1042
      %v1247 = vunpack.c.l.b16 %v1043
      %v1248 = vunpack.c.h.b16 %v1043
      %v1249 = vunpack.c.l.b16 %v1044
      %v1250 = vunpack.c.h.b16 %v1044
      %v1251 = vunpack.c.l.b16 %v1045
      %v1252 = vunpack.c.h.b16 %v1045
      %v1253 = vunpack.c.l.b16 %v1046
      %v1254 = vunpack.c.h.b16 %v1046
      %v1255 = vunpack.c.l.b16 %v1047
      %v1256 = vunpack.c.h.b16 %v1047
      %v1257 = vunpack.c.l.b16 %v1048
      %v1258 = vunpack.c.h.b16 %v1048
      %v1259 = vunpack.c.l.b16 %v1049
      %v1260 = vunpack.c.h.b16 %v1049
      %v1261 = vunpack.c.l.b16 %v1050
      %v1262 = vunpack.c.h.b16 %v1050
      %v1263 = vunpack.c.l.b16 %v1051
      %v1264 = vunpack.c.h.b16 %v1051
      %v1265 = vunpack.c.l.b16 %v1052
      %v1266 = vunpack.c.h.b16 %v1052
      %v1267 = vunpack.c.l.b16 %v1053
      %v1268 = vunpack.c.h.b16 %v1053
      %v1269 = vunpack.c.l.b16 %v1054
      %v1270 = vunpack.c.h.b16 %v1054
      %v1271 = vunpack.c.l.b16 %v1055
      %v1272 = vunpack.c.h.b16 %v1055
      %v1273 = vunpack.c.l.b16 %v1056
      %v1274 = vunpack.c.h.b16 %v1056
      %v1275 = vunpack.c.l.b16 %v1057
      %v1276 = vunpack.c.h.b16 %v1057
      %v1277 = vunpack.c.l.b16 %v1058
      %v1278 = vunpack.c.h.b16 %v1058
      %v1279 = vunpack.c.l.b16 %v1059
      %v1280 = vunpack.c.h.b16 %v1059
      %v1281 = vunpack.c.l.b16 %v1060
      %v1282 = vunpack.c.h.b16 %v1060
      %v1283 = vunpack.c.l.b16 %v1061
      %v1284 = vunpack.c.h.b16 %v1061
      %v1285 = vunpack.c.l.b16 %v1062
      %v1286 = vunpack.c.h.b16 %v1062
      %v1287 = vunpack.c.l.b16 %v1063
      %v1288 = vunpack.c.h.b16 %v1063
      %v1289 = vunpack.c.l.b16 %v1064
      %v1290 = vunpack.c.h.b16 %v1064
      %v1291 = vunpack.c.l.b16 %v1065
      %v1292 = vunpack.c.h.b16 %v1065
      %v1293 = vunpack.c.l.b16 %v1066
      %v1294 = vunpack.c.h.b16 %v1066
      %v1295 = vunpack.c.l.b16 %v1067
      %v1296 = vunpack.c.h.b16 %v1067
      %v1297 = vunpack.c.l.b16 %v1068
      %v1298 = vunpack.c.h.b16 %v1068
      %v1299 = vunpack.c.l.b16 %v1069
      %v1300 = vunpack.c.h.b16 %v1069
      %v1301 = vunpack.c.l.b16 %v1070
      %v1302 = vunpack.c.h.b16 %v1070
      %v1303 = vunpack.c.l.b16 %v1071
      %v1304 = vunpack.c.h.b16 %v1071
      %v1305 = vunpack.c.l.b16 %v1072
      %v1306 = vunpack.c.h.b16 %v1072
      %v1307 = vunpack.c.l.b16 %v1073
      %v1308 = vunpack.c.h.b16 %v1073
      %v1309 = vunpack.c.l.b16 %v1074
      %v1310 = vunpack.c.h.b16 %v1074
      %v1311 = vunpack.c.l.b16 %v1075
      %v1312 = vunpack.c.h.b16 %v1075
      %v1313 = vunpack.c.l.b16 %v1076
      %v1314 = vunpack.c.h.b16 %v1076
      %v1315 = vunpack.c.l.b16 %v1077
      %v1316 = vunpack.c.h.b16 %v1077
      %v1317 = vunpack.c.l.b16 %v1078
      %v1318 = vunpack.c.h.b16 %v1078
      %v1319 = vunpack.c.l.b16 %v1079
      %v1320 = vunpack.c.h.b16 %v1079
      %v1321 = vunpack.c.l.b16 %v1080
      %v1322 = vunpack.c.h.b16 %v1080
      %v1323 = vunpack.c.l.b16 %v1081
      %v1324 = vunpack.c.h.b16 %v1081
      %v1325 = vunpack.c.l.b16 %v1082
      %v1326 = vunpack.c.h.b16 %v1082
      %v1327 = vunpack.c.l.b16 %v1083
      %v1328 = vunpack.c.h.b16 %v1083
      %v1329 = vpack.c.b16 %v1209, %v1201
      %v1330 = vpack.c.b16 %v1210, %v1202
      %v1331 = vpack.c.b16 %v1211, %v1203
      %v1332 = vpack.c.b16 %v1212, %v1204
      %v1333 = vpack.c.b16 %v1213, %v1205
      %v1334 = vpack.c.b16 %v1214, %v1206
      %v1335 = vpack.c.b16 %v1215, %v1207
      %v1336 = vpack.c.b16 %v1216, %v1208
      %v1337 = vpack.c.b16 %v1225, %v1217
      %v1338 = vpack.c.b16 %v1226, %v1218
      %v1339 = vpack.c.b16 %v1227, %v1219
      %v1340 = vpack.c.b16 %v1228, %v1220
      %v1341 = vpack.c.b16 %v1229, %v1221
      %v1342 = vpack.c.b16 %v1230, %v1222
      %v1343 = vpack.c.b16 %v1231, %v1223
      %v1344 = vpack.c.b16 %v1232, %v1224
      %v1345 = vpack.c.b16 %v1241, %v1233
      %v1346 = vpack.c.b16 %v1242, %v1234
      %v1347 = vpack.c.b16 %v1243, %v1235
      %v1348 = vpack.c.b16 %v1244, %v1236
      %v1349 = vpack.c.b16 %v1245, %v1237
      %v1350 = vpack.c.b16 %v1246, %v1238
      %v1351 = vpack.c.b16 %v1247, %v1239
      %v1352 = vpack.c.b16 %v1248, %v1240
      %v1353 = vpack.c.b16 %v1257, %v1249
      %v1354 = vpack.c.b16 %v1258, %v1250
      %v1355 = vpack.c.b16 %v1259, %v1251
      %v1356 = vpack.c.b16 %v1260, %v1252
      %v1357 = vpack.c.b16 %v1261, %v1253
      %v1358 = vpack.c.b16 %v1262, %v1254
      %v1359 = vpack.c.b16 %v1263, %v1255
      %v1360 = vpack.c.b16 %v1264, %v1256
      %v1361 = vpack.c.b16 %v1273, %v1265
      %v1362 = vpack.c.b16 %v1274, %v1266
      %v1363 = vpack.c.b16 %v1275, %v1267
      %v1364 = vpack.c.b16 %v1276, %v1268
      %v1365 = vpack.c.b16 %v1277, %v1269
      %v1366 = vpack.c.b16 %v1278, %v1270
      %v1367 = vpack.c.b16 %v1279, %v1271
      %v1368 = vpack.c.b16 %v1280, %v1272
      %v1369 = vpack.c.b16 %v1289, %v1281
      %v1370 = vpack.c.b16 %v1290, %v1282
      %v1371 = vpack.c.b16 %v1291, %v1283
      %v1372 = vpack.c.b16 %v1292, %v1284
      %v1373 = vpack.c.b16 %v1293, %v1285
      %v1374 = vpack.c.b16 %v1294, %v1286
      %v1375 = vpack.c.b16 %v1295, %v1287
      %v1376 = vpack.c.b16 %v1296, %v1288
      %v1377 = vpack.c.b16 %v1305, %v1297
      %v1378 = vpack.c.b16 %v1306, %v1298
      %v1379 = vpack.c.b16 %v1307, %v1299
      %v1380 = vpack.c.b16 %v1308, %v1300
      %v1381 = vpack.c.b16 %v1309, %v1301
      %v1382 = vpack.c.b16 %v1310, %v1302
      %v1383 = vpack.c.b16 %v1311, %v1303
      %v1384 = vpack.c.b16 %v1312, %v1304
      %v1385 = vpack.c.b16 %v1321, %v1313
      %v1386 = vpack.c.b16 %v1322, %v1314
      %v1387 = vpack.c.b16 %v1323, %v1315
      %v1388 = vpack.c.b16 %v1324, %v1316
      %v1389 = vpack.c.b16 %v1325, %v1317
      %v1390 = vpack.c.b16 %v1326, %v1318
      %v1391 = vpack.c.b16 %v1327, %v1319
      %v1392 = vpack.c.b16 %v1328, %v1320
      %1457 = vmatprep.subr.bf16.mxu0 %v1330
      %1458 = vmatpush1.bf16.msra.mxu0 %v1329
      %1459 = vmatprep.subr.bf16.mxu0 %v1338
      %1460 = vmatpush1.bf16.msra.mxu0 %v1337
      %1461 = vmatprep.subr.bf16.mxu0 %v1346
      %1462 = vmatpush1.bf16.msra.mxu0 %v1345
      %1463 = vmatprep.subr.bf16.mxu0 %v1354
      %1464 = vmatpush1.bf16.msra.mxu0 %v1353
      %1465 = vmatprep.subr.bf16.mxu0 %v1362
      %1466 = vmatpush1.bf16.msra.mxu0 %v1361
      %1467 = vmatprep.subr.bf16.mxu0 %v1370
      %1468 = vmatpush1.bf16.msra.mxu0 %v1369
      %1469 = vmatprep.subr.bf16.mxu0 %v1378
      %1470 = vmatpush1.bf16.msra.mxu0 %v1377
      %1471 = vmatprep.subr.bf16.mxu0 %v1386
      %1472 = vmatpush1.bf16.msra.mxu0 %v1385
      %1473 = vmatprep.subr.bf16.mxu0 0
      %1474 = vmatpush1.bf16.msra.mxu0 0
      %1475 = vmatprep.subr.bf16.mxu0 0
      %1476 = vmatpush1.bf16.msra.mxu0 0
      %1477 = vmatprep.subr.bf16.mxu0 0
      %1478 = vmatpush1.bf16.msra.mxu0 0
      %1479 = vmatprep.subr.bf16.mxu0 0
      %1480 = vmatpush1.bf16.msra.mxu0 0
      %1481 = vmatprep.subr.bf16.mxu0 0
      %1482 = vmatpush1.bf16.msra.mxu0 0
      %1483 = vmatprep.subr.bf16.mxu0 0
      %1484 = vmatpush1.bf16.msra.mxu0 0
      %1485 = vmatprep.subr.bf16.mxu0 0
      %1486 = vmatpush1.bf16.msra.mxu0 0
      %1487 = vmatprep.subr.bf16.mxu0 0
      %1488 = vmatpush1.bf16.msra.mxu0 0
      %1489 = vmatprep.mubr.bf16.mxu0 0
      %1490 = vmatmul.mubr.bf16.gmra.mrb[0].mxu0 %v1088
      %v1491 = vpop.f32.mrb[0].mxu0
      %v1492 = vadd.f32 %v1100, %v1491
      %v1493 = vpop.f32.mrb[0].mxu0
      %v1494 = vadd.f32 %v1104, %v1493
      %v1495 = vpop.f32.mrb[0].mxu0
      %v1496 = vadd.f32 %v1100, %v1495
      %v1497 = vpop.f32.mrb[0].mxu0
      %v1498 = vadd.f32 %v1104, %v1497
      %1499 = vmatprep.mubr.bf16.mxu0 0
      %1500 = vmatmul.mubr.bf16.gmra.mrb[0].mxu0 %v1089
      %v1501 = vpop.f32.mrb[0].mxu0
      %v1502 = vadd.f32 %v1100, %v1501
      %v1503 = vpop.f32.mrb[0].mxu0
      %v1504 = vadd.f32 %v1104, %v1503
      %v1505 = vpop.f32.mrb[0].mxu0
      %v1506 = vadd.f32 %v1100, %v1505
      %v1507 = vpop.f32.mrb[0].mxu0
      %v1508 = vadd.f32 %v1104, %v1507
      %1509 = vmatprep.mubr.bf16.mxu0 0
      %1510 = vmatmul.mubr.bf16.gmra.mrb[0].mxu0 %v1090
      %v1511 = vpop.f32.mrb[0].mxu0
      %v1512 = vadd.f32 %v1100, %v1511
      %v1513 = vpop.f32.mrb[0].mxu0
      %v1514 = vadd.f32 %v1104, %v1513
      %v1515 = vpop.f32.mrb[0].mxu0
      %v1516 = vadd.f32 %v1100, %v1515
      %v1517 = vpop.f32.mrb[0].mxu0
      %v1518 = vadd.f32 %v1104, %v1517
      %1519 = vmatprep.mubr.bf16.mxu0 0
      %1520 = vmatmul.mubr.bf16.gmra.mrb[0].mxu0 %v1091
      %v1521 = vpop.f32.mrb[0].mxu0
      %v1522 = vadd.f32 %v1100, %v1521
      %v1523 = vpop.f32.mrb[0].mxu0
      %v1524 = vadd.f32 %v1104, %v1523
      %v1525 = vpop.f32.mrb[0].mxu0
      %v1526 = vadd.f32 %v1100, %v1525
      %v1527 = vpop.f32.mrb[0].mxu0
      %v1528 = vadd.f32 %v1104, %v1527
      %1529 = vmatprep.mubr.bf16.mxu0 0
      %1530 = vmatmul.mubr.bf16.gmra.mrb[0].mxu0 %v1092
      %v1531 = vpop.f32.mrb[0].mxu0
      %v1532 = vadd.f32 %v1100, %v1531
      %v1533 = vpop.f32.mrb[0].mxu0
      %v1534 = vadd.f32 %v1104, %v1533
      %v1535 = vpop.f32.mrb[0].mxu0
      %v1536 = vadd.f32 %v1100, %v1535
      %v1537 = vpop.f32.mrb[0].mxu0
      %v1538 = vadd.f32 %v1104, %v1537
      %1539 = vmatprep.mubr.bf16.mxu0 0
      %1540 = vmatmul.mubr.bf16.gmra.mrb[0].mxu0 %v1093
      %v1541 = vpop.f32.mrb[0].mxu0
      %v1542 = vadd.f32 %v1100, %v1541
      %v1543 = vpop.f32.mrb[0].mxu0
      %v1544 = vadd.f32 %v1104, %v1543
      %v1545 = vpop.f32.mrb[0].mxu0
      %v1546 = vadd.f32 %v1100, %v1545
      %v1547 = vpop.f32.mrb[0].mxu0
      %v1548 = vadd.f32 %v1104, %v1547
      %1549 = vmatprep.mubr.bf16.mxu0 0
      %1550 = vmatmul.mubr.bf16.gmra.mrb[0].mxu0 %v1094
      %v1551 = vpop.f32.mrb[0].mxu0
      %v1552 = vadd.f32 %v1100, %v1551
      %v1553 = vpop.f32.mrb[0].mxu0
      %v1554 = vadd.f32 %v1104, %v1553
      %v1555 = vpop.f32.mrb[0].mxu0
      %v1556 = vadd.f32 %v1100, %v1555
      %v1557 = vpop.f32.mrb[0].mxu0
      %v1558 = vadd.f32 %v1104, %v1557
      %1559 = vmatprep.mubr.bf16.mxu0 0
      %1560 = vmatmul.mubr.bf16.gmra.mrb[0].mxu0 %v1095
      %v1561 = vpop.f32.mrb[0].mxu0
      %v1562 = vadd.f32 %v1100, %v1561
      %v1563 = vpop.f32.mrb[0].mxu0
      %v1564 = vadd.f32 %v1104, %v1563
      %v1565 = vpop.f32.mrb[0].mxu0
      %v1566 = vadd.f32 %v1100, %v1565
      %v1567 = vpop.f32.mrb[0].mxu0
      %v1568 = vadd.f32 %v1104, %v1567
      %1569 = vdwg.mxu0
      %1570 = vmatprep.subr.bf16.mxu0 %v1332
      %1571 = vmatpush1.bf16.msra.mxu0 %v1331
      %1572 = vmatprep.subr.bf16.mxu0 %v1340
      %1573 = vmatpush1.bf16.msra.mxu0 %v1339
      %1574 = vmatprep.subr.bf16.mxu0 %v1348
      %1575 = vmatpush1.bf16.msra.mxu0 %v1347
      %1576 = vmatprep.subr.bf16.mxu0 %v1356
      %1577 = vmatpush1.bf16.msra.mxu0 %v1355
      %1578 = vmatprep.subr.bf16.mxu0 %v1364
      %1579 = vmatpush1.bf16.msra.mxu0 %v1363
      %1580 = vmatprep.subr.bf16.mxu0 %v1372
      %1581 = vmatpush1.bf16.msra.mxu0 %v1371
      %1582 = vmatprep.subr.bf16.mxu0 %v1380
      %1583 = vmatpush1.bf16.msra.mxu0 %v1379
      %1584 = vmatprep.subr.bf16.mxu0 %v1388
      %1585 = vmatpush1.bf16.msra.mxu0 %v1387
      %1586 = vmatprep.subr.bf16.mxu0 0
      %1587 = vmatpush1.bf16.msra.mxu0 0
      %1588 = vmatprep.subr.bf16.mxu0 0
      %1589 = vmatpush1.bf16.msra.mxu0 0
      %1590 = vmatprep.subr.bf16.mxu0 0
      %1591 = vmatpush1.bf16.msra.mxu0 0
      %1592 = vmatprep.subr.bf16.mxu0 0
      %1593 = vmatpush1.bf16.msra.mxu0 0
      %1594 = vmatprep.subr.bf16.mxu0 0
      %1595 = vmatpush1.bf16.msra.mxu0 0
      %1596 = vmatprep.subr.bf16.mxu0 0
      %1597 = vmatpush1.bf16.msra.mxu0 0
      %1598 = vmatprep.subr.bf16.mxu0 0
      %1599 = vmatpush1.bf16.msra.mxu0 0
      %1600 = vmatprep.subr.bf16.mxu0 0
      %1601 = vmatpush1.bf16.msra.mxu0 0
      %1602 = vmatprep.mubr.bf16.mxu0 0
      %1603 = vmatmul.mubr.bf16.gmra.mrb[0].mxu0 %v1088
      %v1604 = vpop.f32.mrb[0].mxu0
      %v1605 = vadd.f32 %v1108, %v1604
      %v1606 = vpop.f32.mrb[0].mxu0
      %v1607 = vadd.f32 %v1112, %v1606
      %v1608 = vpop.f32.mrb[0].mxu0
      %v1609 = vadd.f32 %v1108, %v1608
      %v1610 = vpop.f32.mrb[0].mxu0
      %v1611 = vadd.f32 %v1112, %v1610
      %1612 = vmatprep.mubr.bf16.mxu0 0
      %1613 = vmatmul.mubr.bf16.gmra.mrb[0].mxu0 %v1089
      %v1614 = vpop.f32.mrb[0].mxu0
      %v1615 = vadd.f32 %v1108, %v1614
      %v1616 = vpop.f32.mrb[0].mxu0
      %v1617 = vadd.f32 %v1112, %v1616
      %v1618 = vpop.f32.mrb[0].mxu0
      %v1619 = vadd.f32 %v1108, %v1618
      %v1620 = vpop.f32.mrb[0].mxu0
      %v1621 = vadd.f32 %v1112, %v1620
      %1622 = vmatprep.mubr.bf16.mxu0 0
      %1623 = vmatmul.mubr.bf16.gmra.mrb[0].mxu0 %v1090
      %v1624 = vpop.f32.mrb[0].mxu0
      %v1625 = vadd.f32 %v1108, %v1624
      %v1626 = vpop.f32.mrb[0].mxu0
      %v1627 = vadd.f32 %v1112, %v1626
      %v1628 = vpop.f32.mrb[0].mxu0
      %v1629 = vadd.f32 %v1108, %v1628
      %v1630 = vpop.f32.mrb[0].mxu0
      %v1631 = vadd.f32 %v1112, %v1630
      %1632 = vmatprep.mubr.bf16.mxu0 0
      %1633 = vmatmul.mubr.bf16.gmra.mrb[0].mxu0 %v1091
      %v1634 = vpop.f32.mrb[0].mxu0
      %v1635 = vadd.f32 %v1108, %v1634
      %v1636 = vpop.f32.mrb[0].mxu0
      %v1637 = vadd.f32 %v1112, %v1636
      %v1638 = vpop.f32.mrb[0].mxu0
      %v1639 = vadd.f32 %v1108, %v1638
      %v1640 = vpop.f32.mrb[0].mxu0
      %v1641 = vadd.f32 %v1112, %v1640
      %1642 = vmatprep.mubr.bf16.mxu0 0
      %1643 = vmatmul.mubr.bf16.gmra.mrb[0].mxu0 %v1092
      %v1644 = vpop.f32.mrb[0].mxu0
      %v1645 = vadd.f32 %v1108, %v1644
      %v1646 = vpop.f32.mrb[0].mxu0
      %v1647 = vadd.f32 %v1112, %v1646
      %v1648 = vpop.f32.mrb[0].mxu0
      %v1649 = vadd.f32 %v1108, %v1648
      %v1650 = vpop.f32.mrb[0].mxu0
      %v1651 = vadd.f32 %v1112, %v1650
      %1652 = vmatprep.mubr.bf16.mxu0 0
      %1653 = vmatmul.mubr.bf16.gmra.mrb[0].mxu0 %v1093
      %v1654 = vpop.f32.mrb[0].mxu0
      %v1655 = vadd.f32 %v1108, %v1654
      %v1656 = vpop.f32.mrb[0].mxu0
      %v1657 = vadd.f32 %v1112, %v1656
      %v1658 = vpop.f32.mrb[0].mxu0
      %v1659 = vadd.f32 %v1108, %v1658
      %v1660 = vpop.f32.mrb[0].mxu0
      %v1661 = vadd.f32 %v1112, %v1660
      %1662 = vmatprep.mubr.bf16.mxu0 0
      %1663 = vmatmul.mubr.bf16.gmra.mrb[0].mxu0 %v1094
      %v1664 = vpop.f32.mrb[0].mxu0
      %v1665 = vadd.f32 %v1108, %v1664
      %v1666 = vpop.f32.mrb[0].mxu0
      %v1667 = vadd.f32 %v1112, %v1666
      %v1668 = vpop.f32.mrb[0].mxu0
      %v1669 = vadd.f32 %v1108, %v1668
      %v1670 = vpop.f32.mrb[0].mxu0
      %v1671 = vadd.f32 %v1112, %v1670
      %1672 = vmatprep.mubr.bf16.mxu0 0
      %1673 = vmatmul.mubr.bf16.gmra.mrb[0].mxu0 %v1095
      %v1674 = vpop.f32.mrb[0].mxu0
      %v1675 = vadd.f32 %v1108, %v1674
      %v1676 = vpop.f32.mrb[0].mxu0
      %v1677 = vadd.f32 %v1112, %v1676
      %v1678 = vpop.f32.mrb[0].mxu0
      %v1679 = vadd.f32 %v1108, %v1678
      %v1680 = vpop.f32.mrb[0].mxu0
      %v1681 = vadd.f32 %v1112, %v1680
      %1682 = vdwg.mxu0
      %1683 = vmatprep.subr.bf16.mxu0 %v1334
      %1684 = vmatpush1.bf16.msra.mxu0 %v1333
      %1685 = vmatprep.subr.bf16.mxu0 %v1342
      %1686 = vmatpush1.bf16.msra.mxu0 %v1341
      %1687 = vmatprep.subr.bf16.mxu0 %v1350
      %1688 = vmatpush1.bf16.msra.mxu0 %v1349
      %1689 = vmatprep.subr.bf16.mxu0 %v1358
      %1690 = vmatpush1.bf16.msra.mxu0 %v1357
      %1691 = vmatprep.subr.bf16.mxu0 %v1366
      %1692 = vmatpush1.bf16.msra.mxu0 %v1365
      %1693 = vmatprep.subr.bf16.mxu0 %v1374
      %1694 = vmatpush1.bf16.msra.mxu0 %v1373
      %1695 = vmatprep.subr.bf16.mxu0 %v1382
      %1696 = vmatpush1.bf16.msra.mxu0 %v1381
      %1697 = vmatprep.subr.bf16.mxu0 %v1390
      %1698 = vmatpush1.bf16.msra.mxu0 %v1389
      %1699 = vmatprep.subr.bf16.mxu0 0
      %1700 = vmatpush1.bf16.msra.mxu0 0
      %1701 = vmatprep.subr.bf16.mxu0 0
      %1702 = vmatpush1.bf16.msra.mxu0 0
      %1703 = vmatprep.subr.bf16.mxu0 0
      %1704 = vmatpush1.bf16.msra.mxu0 0
      %1705 = vmatprep.subr.bf16.mxu0 0
      %1706 = vmatpush1.bf16.msra.mxu0 0
      %1707 = vmatprep.subr.bf16.mxu0 0
      %1708 = vmatpush1.bf16.msra.mxu0 0
      %1709 = vmatprep.subr.bf16.mxu0 0
      %1710 = vmatpush1.bf16.msra.mxu0 0
      %1711 = vmatprep.subr.bf16.mxu0 0
      %1712 = vmatpush1.bf16.msra.mxu0 0
      %1713 = vmatprep.subr.bf16.mxu0 0
      %1714 = vmatpush1.bf16.msra.mxu0 0
      %1715 = vmatprep.mubr.bf16.mxu0 0
      %1716 = vmatmul.mubr.bf16.gmra.mrb[0].mxu0 %v1088
      %v1717 = vpop.f32.mrb[0].mxu0
      %v1718 = vadd.f32 %v1116, %v1717
      %v1719 = vpop.f32.mrb[0].mxu0
      %v1720 = vadd.f32 %v1120, %v1719
      %v1721 = vpop.f32.mrb[0].mxu0
      %v1722 = vadd.f32 %v1116, %v1721
      %v1723 = vpop.f32.mrb[0].mxu0
      %v1724 = vadd.f32 %v1120, %v1723
      %1725 = vmatprep.mubr.bf16.mxu0 0
      %1726 = vmatmul.mubr.bf16.gmra.mrb[0].mxu0 %v1089
      %v1727 = vpop.f32.mrb[0].mxu0
      %v1728 = vadd.f32 %v1116, %v1727
      %v1729 = vpop.f32.mrb[0].mxu0
      %v1730 = vadd.f32 %v1120, %v1729
      %v1731 = vpop.f32.mrb[0].mxu0
      %v1732 = vadd.f32 %v1116, %v1731
      %v1733 = vpop.f32.mrb[0].mxu0
      %v1734 = vadd.f32 %v1120, %v1733
      %1735 = vmatprep.mubr.bf16.mxu0 0
      %1736 = vmatmul.mubr.bf16.gmra.mrb[0].mxu0 %v1090
      %v1737 = vpop.f32.mrb[0].mxu0
      %v1738 = vadd.f32 %v1116, %v1737
      %v1739 = vpop.f32.mrb[0].mxu0
      %v1740 = vadd.f32 %v1120, %v1739
      %v1741 = vpop.f32.mrb[0].mxu0
      %v1742 = vadd.f32 %v1116, %v1741
      %v1743 = vpop.f32.mrb[0].mxu0
      %v1744 = vadd.f32 %v1120, %v1743
      %1745 = vmatprep.mubr.bf16.mxu0 0
      %1746 = vmatmul.mubr.bf16.gmra.mrb[0].mxu0 %v1091
      %v1747 = vpop.f32.mrb[0].mxu0
      %v1748 = vadd.f32 %v1116, %v1747
      %v1749 = vpop.f32.mrb[0].mxu0
      %v1750 = vadd.f32 %v1120, %v1749
      %v1751 = vpop.f32.mrb[0].mxu0
      %v1752 = vadd.f32 %v1116, %v1751
      %v1753 = vpop.f32.mrb[0].mxu0
      %v1754 = vadd.f32 %v1120, %v1753
      %1755 = vmatprep.mubr.bf16.mxu0 0
      %1756 = vmatmul.mubr.bf16.gmra.mrb[0].mxu0 %v1092
      %v1757 = vpop.f32.mrb[0].mxu0
      %v1758 = vadd.f32 %v1116, %v1757
      %v1759 = vpop.f32.mrb[0].mxu0
      %v1760 = vadd.f32 %v1120, %v1759
      %v1761 = vpop.f32.mrb[0].mxu0
      %v1762 = vadd.f32 %v1116, %v1761
      %v1763 = vpop.f32.mrb[0].mxu0
      %v1764 = vadd.f32 %v1120, %v1763
      %1765 = vmatprep.mubr.bf16.mxu0 0
      %1766 = vmatmul.mubr.bf16.gmra.mrb[0].mxu0 %v1093
      %v1767 = vpop.f32.mrb[0].mxu0
      %v1768 = vadd.f32 %v1116, %v1767
      %v1769 = vpop.f32.mrb[0].mxu0
      %v1770 = vadd.f32 %v1120, %v1769
      %v1771 = vpop.f32.mrb[0].mxu0
      %v1772 = vadd.f32 %v1116, %v1771
      %v1773 = vpop.f32.mrb[0].mxu0
      %v1774 = vadd.f32 %v1120, %v1773
      %1775 = vmatprep.mubr.bf16.mxu0 0
      %1776 = vmatmul.mubr.bf16.gmra.mrb[0].mxu0 %v1094
      %v1777 = vpop.f32.mrb[0].mxu0
      %v1778 = vadd.f32 %v1116, %v1777
      %v1779 = vpop.f32.mrb[0].mxu0
      %v1780 = vadd.f32 %v1120, %v1779
      %v1781 = vpop.f32.mrb[0].mxu0
      %v1782 = vadd.f32 %v1116, %v1781
      %v1783 = vpop.f32.mrb[0].mxu0
      %v1784 = vadd.f32 %v1120, %v1783
      %1785 = vmatprep.mubr.bf16.mxu0 0
      %1786 = vmatmul.mubr.bf16.gmra.mrb[0].mxu0 %v1095
      %v1787 = vpop.f32.mrb[0].mxu0
      %v1788 = vadd.f32 %v1116, %v1787
      %v1789 = vpop.f32.mrb[0].mxu0
      %v1790 = vadd.f32 %v1120, %v1789
      %v1791 = vpop.f32.mrb[0].mxu0
      %v1792 = vadd.f32 %v1116, %v1791
      %v1793 = vpop.f32.mrb[0].mxu0
      %v1794 = vadd.f32 %v1120, %v1793
      %1795 = vdwg.mxu0
      %1796 = vmatprep.subr.bf16.mxu0 %v1336
      %1797 = vmatpush1.bf16.msra.mxu0 %v1335
      %1798 = vmatprep.subr.bf16.mxu0 %v1344
      %1799 = vmatpush1.bf16.msra.mxu0 %v1343
      %1800 = vmatprep.subr.bf16.mxu0 %v1352
      %1801 = vmatpush1.bf16.msra.mxu0 %v1351
      %1802 = vmatprep.subr.bf16.mxu0 %v1360
      %1803 = vmatpush1.bf16.msra.mxu0 %v1359
      %1804 = vmatprep.subr.bf16.mxu0 %v1368
      %1805 = vmatpush1.bf16.msra.mxu0 %v1367
      %1806 = vmatprep.subr.bf16.mxu0 %v1376
      %1807 = vmatpush1.bf16.msra.mxu0 %v1375
      %1808 = vmatprep.subr.bf16.mxu0 %v1384
      %1809 = vmatpush1.bf16.msra.mxu0 %v1383
      %1810 = vmatprep.subr.bf16.mxu0 %v1392
      %1811 = vmatpush1.bf16.msra.mxu0 %v1391
      %1812 = vmatprep.subr.bf16.mxu0 0
      %1813 = vmatpush1.bf16.msra.mxu0 0
      %1814 = vmatprep.subr.bf16.mxu0 0
      %1815 = vmatpush1.bf16.msra.mxu0 0
      %1816 = vmatprep.subr.bf16.mxu0 0
      %1817 = vmatpush1.bf16.msra.mxu0 0
      %1818 = vmatprep.subr.bf16.mxu0 0
      %1819 = vmatpush1.bf16.msra.mxu0 0
      %1820 = vmatprep.subr.bf16.mxu0 0
      %1821 = vmatpush1.bf16.msra.mxu0 0
      %1822 = vmatprep.subr.bf16.mxu0 0
      %1823 = vmatpush1.bf16.msra.mxu0 0
      %1824 = vmatprep.subr.bf16.mxu0 0
      %1825 = vmatpush1.bf16.msra.mxu0 0
      %1826 = vmatprep.subr.bf16.mxu0 0
      %1827 = vmatpush1.bf16.msra.mxu0 0
      %1828 = vmatprep.mubr.bf16.mxu0 0
      %1829 = vmatmul.mubr.bf16.gmra.mrb[0].mxu0 %v1088
      %v1830 = vpop.f32.mrb[0].mxu0
      %v1831 = vadd.f32 %v1124, %v1830
      %v1832 = vpop.f32.mrb[0].mxu0
      %v1833 = vadd.f32 %v1128, %v1832
      %v1834 = vpop.f32.mrb[0].mxu0
      %v1835 = vadd.f32 %v1124, %v1834
      %v1836 = vpop.f32.mrb[0].mxu0
      %v1837 = vadd.f32 %v1128, %v1836
      %1838 = vmatprep.mubr.bf16.mxu0 0
      %1839 = vmatmul.mubr.bf16.gmra.mrb[0].mxu0 %v1089
      %v1840 = vpop.f32.mrb[0].mxu0
      %v1841 = vadd.f32 %v1124, %v1840
      %v1842 = vpop.f32.mrb[0].mxu0
      %v1843 = vadd.f32 %v1128, %v1842
      %v1844 = vpop.f32.mrb[0].mxu0
      %v1845 = vadd.f32 %v1124, %v1844
      %v1846 = vpop.f32.mrb[0].mxu0
      %v1847 = vadd.f32 %v1128, %v1846
      %1848 = vmatprep.mubr.bf16.mxu0 0
      %1849 = vmatmul.mubr.bf16.gmra.mrb[0].mxu0 %v1090
      %v1850 = vpop.f32.mrb[0].mxu0
      %v1851 = vadd.f32 %v1124, %v1850
      %v1852 = vpop.f32.mrb[0].mxu0
      %v1853 = vadd.f32 %v1128, %v1852
      %v1854 = vpop.f32.mrb[0].mxu0
      %v1855 = vadd.f32 %v1124, %v1854
      %v1856 = vpop.f32.mrb[0].mxu0
      %v1857 = vadd.f32 %v1128, %v1856
      %1858 = vmatprep.mubr.bf16.mxu0 0
      %1859 = vmatmul.mubr.bf16.gmra.mrb[0].mxu0 %v1091
      %v1860 = vpop.f32.mrb[0].mxu0
      %v1861 = vadd.f32 %v1124, %v1860
      %v1862 = vpop.f32.mrb[0].mxu0
      %v1863 = vadd.f32 %v1128, %v1862
      %v1864 = vpop.f32.mrb[0].mxu0
      %v1865 = vadd.f32 %v1124, %v1864
      %v1866 = vpop.f32.mrb[0].mxu0
      %v1867 = vadd.f32 %v1128, %v1866
      %1868 = vmatprep.mubr.bf16.mxu0 0
      %1869 = vmatmul.mubr.bf16.gmra.mrb[0].mxu0 %v1092
      %v1870 = vpop.f32.mrb[0].mxu0
      %v1871 = vadd.f32 %v1124, %v1870
      %v1872 = vpop.f32.mrb[0].mxu0
      %v1873 = vadd.f32 %v1128, %v1872
      %v1874 = vpop.f32.mrb[0].mxu0
      %v1875 = vadd.f32 %v1124, %v1874
      %v1876 = vpop.f32.mrb[0].mxu0
      %v1877 = vadd.f32 %v1128, %v1876
      %1878 = vmatprep.mubr.bf16.mxu0 0
      %1879 = vmatmul.mubr.bf16.gmra.mrb[0].mxu0 %v1093
      %v1880 = vpop.f32.mrb[0].mxu0
      %v1881 = vadd.f32 %v1124, %v1880
      %v1882 = vpop.f32.mrb[0].mxu0
      %v1883 = vadd.f32 %v1128, %v1882
      %v1884 = vpop.f32.mrb[0].mxu0
      %v1885 = vadd.f32 %v1124, %v1884
      %v1886 = vpop.f32.mrb[0].mxu0
      %v1887 = vadd.f32 %v1128, %v1886
      %1888 = vmatprep.mubr.bf16.mxu0 0
      %1889 = vmatmul.mubr.bf16.gmra.mrb[0].mxu0 %v1094
      %v1890 = vpop.f32.mrb[0].mxu0
      %v1891 = vadd.f32 %v1124, %v1890
      %v1892 = vpop.f32.mrb[0].mxu0
      %v1893 = vadd.f32 %v1128, %v1892
      %v1894 = vpop.f32.mrb[0].mxu0
      %v1895 = vadd.f32 %v1124, %v1894
      %v1896 = vpop.f32.mrb[0].mxu0
      %v1897 = vadd.f32 %v1128, %v1896
      %1898 = vmatprep.mubr.bf16.mxu0 0
      %1899 = vmatmul.mubr.bf16.gmra.mrb[0].mxu0 %v1095
      %v1900 = vpop.f32.mrb[0].mxu0
      %v1901 = vadd.f32 %v1124, %v1900
      %v1902 = vpop.f32.mrb[0].mxu0
      %v1903 = vadd.f32 %v1128, %v1902
      %v1904 = vpop.f32.mrb[0].mxu0
      %v1905 = vadd.f32 %v1124, %v1904
      %v1906 = vpop.f32.mrb[0].mxu0
      %v1907 = vadd.f32 %v1128, %v1906
      %1908 = vdwg.mxu0
      %v1909 = vmax.f32 %v1492, 0.0
      %v1910 = vmax.f32 %v1494, 0.0
      %v1911 = vmax.f32 %v1605, 0.0
      %v1912 = vmax.f32 %v1607, 0.0
      %v1913 = vmax.f32 %v1718, 0.0
      %v1914 = vmax.f32 %v1720, 0.0
      %v1915 = vmax.f32 %v1831, 0.0
      %v1916 = vmax.f32 %v1833, 0.0
      %v1917 = vmax.f32 %v1496, 0.0
      %v1918 = vmax.f32 %v1498, 0.0
      %v1919 = vmax.f32 %v1609, 0.0
      %v1920 = vmax.f32 %v1611, 0.0
      %v1921 = vmax.f32 %v1722, 0.0
      %v1922 = vmax.f32 %v1724, 0.0
      %v1923 = vmax.f32 %v1835, 0.0
      %v1924 = vmax.f32 %v1837, 0.0
      %v1925 = vmax.f32 %v1502, 0.0
      %v1926 = vmax.f32 %v1504, 0.0
      %v1927 = vmax.f32 %v1615, 0.0
      %v1928 = vmax.f32 %v1617, 0.0
      %v1929 = vmax.f32 %v1728, 0.0
      %v1930 = vmax.f32 %v1730, 0.0
      %v1931 = vmax.f32 %v1841, 0.0
      %v1932 = vmax.f32 %v1843, 0.0
      %v1933 = vmax.f32 %v1506, 0.0
      %v1934 = vmax.f32 %v1508, 0.0
      %v1935 = vmax.f32 %v1619, 0.0
      %v1936 = vmax.f32 %v1621, 0.0
      %v1937 = vmax.f32 %v1732, 0.0
      %v1938 = vmax.f32 %v1734, 0.0
      %v1939 = vmax.f32 %v1845, 0.0
      %v1940 = vmax.f32 %v1847, 0.0
      %v1941 = vmax.f32 %v1512, 0.0
      %v1942 = vmax.f32 %v1514, 0.0
      %v1943 = vmax.f32 %v1625, 0.0
      %v1944 = vmax.f32 %v1627, 0.0
      %v1945 = vmax.f32 %v1738, 0.0
      %v1946 = vmax.f32 %v1740, 0.0
      %v1947 = vmax.f32 %v1851, 0.0
      %v1948 = vmax.f32 %v1853, 0.0
      %v1949 = vmax.f32 %v1516, 0.0
      %v1950 = vmax.f32 %v1518, 0.0
      %v1951 = vmax.f32 %v1629, 0.0
      %v1952 = vmax.f32 %v1631, 0.0
      %v1953 = vmax.f32 %v1742, 0.0
      %v1954 = vmax.f32 %v1744, 0.0
      %v1955 = vmax.f32 %v1855, 0.0
      %v1956 = vmax.f32 %v1857, 0.0
      %v1957 = vmax.f32 %v1522, 0.0
      %v1958 = vmax.f32 %v1524, 0.0
      %v1959 = vmax.f32 %v1635, 0.0
      %v1960 = vmax.f32 %v1637, 0.0
      %v1961 = vmax.f32 %v1748, 0.0
      %v1962 = vmax.f32 %v1750, 0.0
      %v1963 = vmax.f32 %v1861, 0.0
      %v1964 = vmax.f32 %v1863, 0.0
      %v1965 = vmax.f32 %v1526, 0.0
      %v1966 = vmax.f32 %v1528, 0.0
      %v1967 = vmax.f32 %v1639, 0.0
      %v1968 = vmax.f32 %v1641, 0.0
      %v1969 = vmax.f32 %v1752, 0.0
      %v1970 = vmax.f32 %v1754, 0.0
      %v1971 = vmax.f32 %v1865, 0.0
      %v1972 = vmax.f32 %v1867, 0.0
      %v1973 = vmax.f32 %v1532, 0.0
      %v1974 = vmax.f32 %v1534, 0.0
      %v1975 = vmax.f32 %v1645, 0.0
      %v1976 = vmax.f32 %v1647, 0.0
      %v1977 = vmax.f32 %v1758, 0.0
      %v1978 = vmax.f32 %v1760, 0.0
      %v1979 = vmax.f32 %v1871, 0.0
      %v1980 = vmax.f32 %v1873, 0.0
      %v1981 = vmax.f32 %v1536, 0.0
      %v1982 = vmax.f32 %v1538, 0.0
      %v1983 = vmax.f32 %v1649, 0.0
      %v1984 = vmax.f32 %v1651, 0.0
      %v1985 = vmax.f32 %v1762, 0.0
      %v1986 = vmax.f32 %v1764, 0.0
      %v1987 = vmax.f32 %v1875, 0.0
      %v1988 = vmax.f32 %v1877, 0.0
      %v1989 = vmax.f32 %v1542, 0.0
      %v1990 = vmax.f32 %v1544, 0.0
      %v1991 = vmax.f32 %v1655, 0.0
      %v1992 = vmax.f32 %v1657, 0.0
      %v1993 = vmax.f32 %v1768, 0.0
      %v1994 = vmax.f32 %v1770, 0.0
      %v1995 = vmax.f32 %v1881, 0.0
      %v1996 = vmax.f32 %v1883, 0.0
      %v1997 = vmax.f32 %v1546, 0.0
      %v1998 = vmax.f32 %v1548, 0.0
      %v1999 = vmax.f32 %v1659, 0.0
      %v2000 = vmax.f32 %v1661, 0.0
      %v2001 = vmax.f32 %v1772, 0.0
      %v2002 = vmax.f32 %v1774, 0.0
      %v2003 = vmax.f32 %v1885, 0.0
      %v2004 = vmax.f32 %v1887, 0.0
      %v2005 = vmax.f32 %v1552, 0.0
      %v2006 = vmax.f32 %v1554, 0.0
      %v2007 = vmax.f32 %v1665, 0.0
      %v2008 = vmax.f32 %v1667, 0.0
      %v2009 = vmax.f32 %v1778, 0.0
      %v2010 = vmax.f32 %v1780, 0.0
      %v2011 = vmax.f32 %v1891, 0.0
      %v2012 = vmax.f32 %v1893, 0.0
      %v2013 = vmax.f32 %v1556, 0.0
      %v2014 = vmax.f32 %v1558, 0.0
      %v2015 = vmax.f32 %v1669, 0.0
      %v2016 = vmax.f32 %v1671, 0.0
      %v2017 = vmax.f32 %v1782, 0.0
      %v2018 = vmax.f32 %v1784, 0.0
      %v2019 = vmax.f32 %v1895, 0.0
      %v2020 = vmax.f32 %v1897, 0.0
      %v2021 = vmax.f32 %v1562, 0.0
      %v2022 = vmax.f32 %v1564, 0.0
      %v2023 = vmax.f32 %v1675, 0.0
      %v2024 = vmax.f32 %v1677, 0.0
      %v2025 = vmax.f32 %v1788, 0.0
      %v2026 = vmax.f32 %v1790, 0.0
      %v2027 = vmax.f32 %v1901, 0.0
      %v2028 = vmax.f32 %v1903, 0.0
      %v2029 = vmax.f32 %v1566, 0.0
      %v2030 = vmax.f32 %v1568, 0.0
      %v2031 = vmax.f32 %v1679, 0.0
      %v2032 = vmax.f32 %v1681, 0.0
      %v2033 = vmax.f32 %v1792, 0.0
      %v2034 = vmax.f32 %v1794, 0.0
      %v2035 = vmax.f32 %v1905, 0.0
      %v2036 = vmax.f32 %v1907, 0.0
      %v2037 = vlaneseq
      %v2038 = vshrl.u32 %v2037, 7
      %v2039 = vadd.s32 %v2038, 8
      %v2040 = vadd.s32 %v2038, 16
      %v2041 = vadd.s32 %v2038, 24
      %v2042 = vadd.s32 %v2038, 32
      %v2043 = vadd.s32 %v2038, 40
      %v2044 = vadd.s32 %v2038, 48
      %v2045 = vadd.s32 %v2038, 56
      %v2046 = vadd.s32 %v2038, 64
      %v2047 = vadd.s32 %v2038, 72
      %v2048 = vadd.s32 %v2038, 80
      %v2049 = vadd.s32 %v2038, 88
      %v2050 = vadd.s32 %v2038, 96
      %v2051 = vadd.s32 %v2038, 104
      %v2052 = vadd.s32 %v2038, 112
      %v2053 = vadd.s32 %v2038, 120
      %s2054 = smul.u32 %s23, 128
      %v2055 = vstv %s2054
      %v2056 = vadd.s32 %v2038, %v2055
      %v2057 = vadd.s32 %v2039, %v2055
      %v2058 = vadd.s32 %v2040, %v2055
      %v2059 = vadd.s32 %v2041, %v2055
      %v2060 = vadd.s32 %v2042, %v2055
      %v2061 = vadd.s32 %v2043, %v2055
      %v2062 = vadd.s32 %v2044, %v2055
      %v2063 = vadd.s32 %v2045, %v2055
      %v2064 = vadd.s32 %v2046, %v2055
      %v2065 = vadd.s32 %v2047, %v2055
      %v2066 = vadd.s32 %v2048, %v2055
      %v2067 = vadd.s32 %v2049, %v2055
      %v2068 = vadd.s32 %v2050, %v2055
      %v2069 = vadd.s32 %v2051, %v2055
      %v2070 = vadd.s32 %v2052, %v2055
      %v2071 = vadd.s32 %v2053, %v2055
      %vm2072 = vcmp.lt.s32.totalorder %v2056, 300
      %vm2073 = vcmp.lt.s32.totalorder %v2057, 300
      %vm2074 = vcmp.lt.s32.totalorder %v2058, 300
      %vm2075 = vcmp.lt.s32.totalorder %v2059, 300
      %vm2076 = vcmp.lt.s32.totalorder %v2060, 300
      %vm2077 = vcmp.lt.s32.totalorder %v2061, 300
      %vm2078 = vcmp.lt.s32.totalorder %v2062, 300
      %vm2079 = vcmp.lt.s32.totalorder %v2063, 300
      %vm2080 = vcmp.lt.s32.totalorder %v2064, 300
      %vm2081 = vcmp.lt.s32.totalorder %v2065, 300
      %vm2082 = vcmp.lt.s32.totalorder %v2066, 300
      %vm2083 = vcmp.lt.s32.totalorder %v2067, 300
      %vm2084 = vcmp.lt.s32.totalorder %v2068, 300
      %vm2085 = vcmp.lt.s32.totalorder %v2069, 300
      %vm2086 = vcmp.lt.s32.totalorder %v2070, 300
      %vm2087 = vcmp.lt.s32.totalorder %v2071, 300
      %v2088 = vsel %vm2072, 1, 0
      %v2089 = vsel %vm2073, 1, 0
      %v2090 = vsel %vm2074, 1, 0
      %v2091 = vsel %vm2075, 1, 0
      %v2092 = vsel %vm2076, 1, 0
      %v2093 = vsel %vm2077, 1, 0
      %v2094 = vsel %vm2078, 1, 0
      %v2095 = vsel %vm2079, 1, 0
      %v2096 = vsel %vm2080, 1, 0
      %v2097 = vsel %vm2081, 1, 0
      %v2098 = vsel %vm2082, 1, 0
      %v2099 = vsel %vm2083, 1, 0
      %v2100 = vsel %vm2084, 1, 0
      %v2101 = vsel %vm2085, 1, 0
      %v2102 = vsel %vm2086, 1, 0
      %v2103 = vsel %vm2087, 1, 0
      %vm2104 = vcmp.eq.s32.totalorder %v2088, 1
      %vm2105 = vcmp.eq.s32.totalorder %v2089, 1
      %vm2106 = vcmp.eq.s32.totalorder %v2090, 1
      %vm2107 = vcmp.eq.s32.totalorder %v2091, 1
      %vm2108 = vcmp.eq.s32.totalorder %v2092, 1
      %vm2109 = vcmp.eq.s32.totalorder %v2093, 1
      %vm2110 = vcmp.eq.s32.totalorder %v2094, 1
      %vm2111 = vcmp.eq.s32.totalorder %v2095, 1
      %vm2112 = vcmp.eq.s32.totalorder %v2096, 1
      %vm2113 = vcmp.eq.s32.totalorder %v2097, 1
      %vm2114 = vcmp.eq.s32.totalorder %v2098, 1
      %vm2115 = vcmp.eq.s32.totalorder %v2099, 1
      %vm2116 = vcmp.eq.s32.totalorder %v2100, 1
      %vm2117 = vcmp.eq.s32.totalorder %v2101, 1
      %vm2118 = vcmp.eq.s32.totalorder %v2102, 1
      %vm2119 = vcmp.eq.s32.totalorder %v2103, 1
      %v2120 = vsel %vm2104, %v1909, 0.0
      %v2121 = vsel %vm2104, %v1910, 0.0
      %v2122 = vsel %vm2104, %v1911, 0.0
      %v2123 = vsel %vm2104, %v1912, 0.0
      %v2124 = vsel %vm2104, %v1913, 0.0
      %v2125 = vsel %vm2104, %v1914, 0.0
      %v2126 = vsel %vm2104, %v1915, 0.0
      %v2127 = vsel %vm2104, %v1916, 0.0
      %v2128 = vsel %vm2105, %v1917, 0.0
      %v2129 = vsel %vm2105, %v1918, 0.0
      %v2130 = vsel %vm2105, %v1919, 0.0
      %v2131 = vsel %vm2105, %v1920, 0.0
      %v2132 = vsel %vm2105, %v1921, 0.0
      %v2133 = vsel %vm2105, %v1922, 0.0
      %v2134 = vsel %vm2105, %v1923, 0.0
      %v2135 = vsel %vm2105, %v1924, 0.0
      %v2136 = vsel %vm2106, %v1925, 0.0
      %v2137 = vsel %vm2106, %v1926, 0.0
      %v2138 = vsel %vm2106, %v1927, 0.0
      %v2139 = vsel %vm2106, %v1928, 0.0
      %v2140 = vsel %vm2106, %v1929, 0.0
      %v2141 = vsel %vm2106, %v1930, 0.0
      %v2142 = vsel %vm2106, %v1931, 0.0
      %v2143 = vsel %vm2106, %v1932, 0.0
      %v2144 = vsel %vm2107, %v1933, 0.0
      %v2145 = vsel %vm2107, %v1934, 0.0
      %v2146 = vsel %vm2107, %v1935, 0.0
      %v2147 = vsel %vm2107, %v1936, 0.0
      %v2148 = vsel %vm2107, %v1937, 0.0
      %v2149 = vsel %vm2107, %v1938, 0.0
      %v2150 = vsel %vm2107, %v1939, 0.0
      %v2151 = vsel %vm2107, %v1940, 0.0
      %v2152 = vsel %vm2108, %v1941, 0.0
      %v2153 = vsel %vm2108, %v1942, 0.0
      %v2154 = vsel %vm2108, %v1943, 0.0
      %v2155 = vsel %vm2108, %v1944, 0.0
      %v2156 = vsel %vm2108, %v1945, 0.0
      %v2157 = vsel %vm2108, %v1946, 0.0
      %v2158 = vsel %vm2108, %v1947, 0.0
      %v2159 = vsel %vm2108, %v1948, 0.0
      %v2160 = vsel %vm2109, %v1949, 0.0
      %v2161 = vsel %vm2109, %v1950, 0.0
      %v2162 = vsel %vm2109, %v1951, 0.0
      %v2163 = vsel %vm2109, %v1952, 0.0
      %v2164 = vsel %vm2109, %v1953, 0.0
      %v2165 = vsel %vm2109, %v1954, 0.0
      %v2166 = vsel %vm2109, %v1955, 0.0
      %v2167 = vsel %vm2109, %v1956, 0.0
      %v2168 = vsel %vm2110, %v1957, 0.0
      %v2169 = vsel %vm2110, %v1958, 0.0
      %v2170 = vsel %vm2110, %v1959, 0.0
      %v2171 = vsel %vm2110, %v1960, 0.0
      %v2172 = vsel %vm2110, %v1961, 0.0
      %v2173 = vsel %vm2110, %v1962, 0.0
      %v2174 = vsel %vm2110, %v1963, 0.0
      %v2175 = vsel %vm2110, %v1964, 0.0
      %v2176 = vsel %vm2111, %v1965, 0.0
      %v2177 = vsel %vm2111, %v1966, 0.0
      %v2178 = vsel %vm2111, %v1967, 0.0
      %v2179 = vsel %vm2111, %v1968, 0.0
      %v2180 = vsel %vm2111, %v1969, 0.0
      %v2181 = vsel %vm2111, %v1970, 0.0
      %v2182 = vsel %vm2111, %v1971, 0.0
      %v2183 = vsel %vm2111, %v1972, 0.0
      %v2184 = vsel %vm2112, %v1973, 0.0
      %v2185 = vsel %vm2112, %v1974, 0.0
      %v2186 = vsel %vm2112, %v1975, 0.0
      %v2187 = vsel %vm2112, %v1976, 0.0
      %v2188 = vsel %vm2112, %v1977, 0.0
      %v2189 = vsel %vm2112, %v1978, 0.0
      %v2190 = vsel %vm2112, %v1979, 0.0
      %v2191 = vsel %vm2112, %v1980, 0.0
      %v2192 = vsel %vm2113, %v1981, 0.0
      %v2193 = vsel %vm2113, %v1982, 0.0
      %v2194 = vsel %vm2113, %v1983, 0.0
      %v2195 = vsel %vm2113, %v1984, 0.0
      %v2196 = vsel %vm2113, %v1985, 0.0
      %v2197 = vsel %vm2113, %v1986, 0.0
      %v2198 = vsel %vm2113, %v1987, 0.0
      %v2199 = vsel %vm2113, %v1988, 0.0
      %v2200 = vsel %vm2114, %v1989, 0.0
      %v2201 = vsel %vm2114, %v1990, 0.0
      %v2202 = vsel %vm2114, %v1991, 0.0
      %v2203 = vsel %vm2114, %v1992, 0.0
      %v2204 = vsel %vm2114, %v1993, 0.0
      %v2205 = vsel %vm2114, %v1994, 0.0
      %v2206 = vsel %vm2114, %v1995, 0.0
      %v2207 = vsel %vm2114, %v1996, 0.0
      %v2208 = vsel %vm2115, %v1997, 0.0
      %v2209 = vsel %vm2115, %v1998, 0.0
      %v2210 = vsel %vm2115, %v1999, 0.0
      %v2211 = vsel %vm2115, %v2000, 0.0
      %v2212 = vsel %vm2115, %v2001, 0.0
      %v2213 = vsel %vm2115, %v2002, 0.0
      %v2214 = vsel %vm2115, %v2003, 0.0
      %v2215 = vsel %vm2115, %v2004, 0.0
      %v2216 = vsel %vm2116, %v2005, 0.0
      %v2217 = vsel %vm2116, %v2006, 0.0
      %v2218 = vsel %vm2116, %v2007, 0.0
      %v2219 = vsel %vm2116, %v2008, 0.0
      %v2220 = vsel %vm2116, %v2009, 0.0
      %v2221 = vsel %vm2116, %v2010, 0.0
      %v2222 = vsel %vm2116, %v2011, 0.0
      %v2223 = vsel %vm2116, %v2012, 0.0
      %v2224 = vsel %vm2117, %v2013, 0.0
      %v2225 = vsel %vm2117, %v2014, 0.0
      %v2226 = vsel %vm2117, %v2015, 0.0
      %v2227 = vsel %vm2117, %v2016, 0.0
      %v2228 = vsel %vm2117, %v2017, 0.0
      %v2229 = vsel %vm2117, %v2018, 0.0
      %v2230 = vsel %vm2117, %v2019, 0.0
      %v2231 = vsel %vm2117, %v2020, 0.0
      %v2232 = vsel %vm2118, %v2021, 0.0
      %v2233 = vsel %vm2118, %v2022, 0.0
      %v2234 = vsel %vm2118, %v2023, 0.0
      %v2235 = vsel %vm2118, %v2024, 0.0
      %v2236 = vsel %vm2118, %v2025, 0.0
      %v2237 = vsel %vm2118, %v2026, 0.0
      %v2238 = vsel %vm2118, %v2027, 0.0
      %v2239 = vsel %vm2118, %v2028, 0.0
      %v2240 = vsel %vm2119, %v2029, 0.0
      %v2241 = vsel %vm2119, %v2030, 0.0
      %v2242 = vsel %vm2119, %v2031, 0.0
      %v2243 = vsel %vm2119, %v2032, 0.0
      %v2244 = vsel %vm2119, %v2033, 0.0
      %v2245 = vsel %vm2119, %v2034, 0.0
      %v2246 = vsel %vm2119, %v2035, 0.0
      %v2247 = vsel %vm2119, %v2036, 0.0
      %v2248 = vmax.f32 %v2120, %v2128
      %v2249 = vmax.f32 %v2248, %v2136
      %v2250 = vmax.f32 %v2249, %v2144
      %v2251 = vmax.f32 %v2250, %v2152
      %v2252 = vmax.f32 %v2251, %v2160
      %v2253 = vmax.f32 %v2252, %v2168
      %v2254 = vmax.f32 %v2253, %v2176
      %v2255 = vmax.f32 %v2254, %v2184
      %v2256 = vmax.f32 %v2255, %v2192
      %v2257 = vmax.f32 %v2256, %v2200
      %v2258 = vmax.f32 %v2257, %v2208
      %v2259 = vmax.f32 %v2258, %v2216
      %v2260 = vmax.f32 %v2259, %v2224
      %v2261 = vmax.f32 %v2260, %v2232
      %v2262 = vmax.f32 %v2261, %v2240
      %v2263 = vrot.slane %v2262, 4
      %v2264 = vmax.f32 %v2262, %v2263
      %v2265 = vrot.slane %v2264, 2
      %v2266 = vmax.f32 %v2264, %v2265
      %v2267 = vrot.slane %v2266, 1
      %v2268 = vmax.f32 %v2266, %v2267
      %v2269 = vmax.f32 %v2121, %v2129
      %v2270 = vmax.f32 %v2269, %v2137
      %v2271 = vmax.f32 %v2270, %v2145
      %v2272 = vmax.f32 %v2271, %v2153
      %v2273 = vmax.f32 %v2272, %v2161
      %v2274 = vmax.f32 %v2273, %v2169
      %v2275 = vmax.f32 %v2274, %v2177
      %v2276 = vmax.f32 %v2275, %v2185
      %v2277 = vmax.f32 %v2276, %v2193
      %v2278 = vmax.f32 %v2277, %v2201
      %v2279 = vmax.f32 %v2278, %v2209
      %v2280 = vmax.f32 %v2279, %v2217
      %v2281 = vmax.f32 %v2280, %v2225
      %v2282 = vmax.f32 %v2281, %v2233
      %v2283 = vmax.f32 %v2282, %v2241
      %v2284 = vrot.slane %v2283, 4
      %v2285 = vmax.f32 %v2283, %v2284
      %v2286 = vrot.slane %v2285, 2
      %v2287 = vmax.f32 %v2285, %v2286
      %v2288 = vrot.slane %v2287, 1
      %v2289 = vmax.f32 %v2287, %v2288
      %v2290 = vmax.f32 %v2122, %v2130
      %v2291 = vmax.f32 %v2290, %v2138
      %v2292 = vmax.f32 %v2291, %v2146
      %v2293 = vmax.f32 %v2292, %v2154
      %v2294 = vmax.f32 %v2293, %v2162
      %v2295 = vmax.f32 %v2294, %v2170
      %v2296 = vmax.f32 %v2295, %v2178
      %v2297 = vmax.f32 %v2296, %v2186
      %v2298 = vmax.f32 %v2297, %v2194
      %v2299 = vmax.f32 %v2298, %v2202
      %v2300 = vmax.f32 %v2299, %v2210
      %v2301 = vmax.f32 %v2300, %v2218
      %v2302 = vmax.f32 %v2301, %v2226
      %v2303 = vmax.f32 %v2302, %v2234
      %v2304 = vmax.f32 %v2303, %v2242
      %v2305 = vrot.slane %v2304, 4
      %v2306 = vmax.f32 %v2304, %v2305
      %v2307 = vrot.slane %v2306, 2
      %v2308 = vmax.f32 %v2306, %v2307
      %v2309 = vrot.slane %v2308, 1
      %v2310 = vmax.f32 %v2308, %v2309
      %v2311 = vmax.f32 %v2123, %v2131
      %v2312 = vmax.f32 %v2311, %v2139
      %v2313 = vmax.f32 %v2312, %v2147
      %v2314 = vmax.f32 %v2313, %v2155
      %v2315 = vmax.f32 %v2314, %v2163
      %v2316 = vmax.f32 %v2315, %v2171
      %v2317 = vmax.f32 %v2316, %v2179
      %v2318 = vmax.f32 %v2317, %v2187
      %v2319 = vmax.f32 %v2318, %v2195
      %v2320 = vmax.f32 %v2319, %v2203
      %v2321 = vmax.f32 %v2320, %v2211
      %v2322 = vmax.f32 %v2321, %v2219
      %v2323 = vmax.f32 %v2322, %v2227
      %v2324 = vmax.f32 %v2323, %v2235
      %v2325 = vmax.f32 %v2324, %v2243
      %v2326 = vrot.slane %v2325, 4
      %v2327 = vmax.f32 %v2325, %v2326
      %v2328 = vrot.slane %v2327, 2
      %v2329 = vmax.f32 %v2327, %v2328
      %v2330 = vrot.slane %v2329, 1
      %v2331 = vmax.f32 %v2329, %v2330
      %v2332 = vmax.f32 %v2124, %v2132
      %v2333 = vmax.f32 %v2332, %v2140
      %v2334 = vmax.f32 %v2333, %v2148
      %v2335 = vmax.f32 %v2334, %v2156
      %v2336 = vmax.f32 %v2335, %v2164
      %v2337 = vmax.f32 %v2336, %v2172
      %v2338 = vmax.f32 %v2337, %v2180
      %v2339 = vmax.f32 %v2338, %v2188
      %v2340 = vmax.f32 %v2339, %v2196
      %v2341 = vmax.f32 %v2340, %v2204
      %v2342 = vmax.f32 %v2341, %v2212
      %v2343 = vmax.f32 %v2342, %v2220
      %v2344 = vmax.f32 %v2343, %v2228
      %v2345 = vmax.f32 %v2344, %v2236
      %v2346 = vmax.f32 %v2345, %v2244
      %v2347 = vrot.slane %v2346, 4
      %v2348 = vmax.f32 %v2346, %v2347
      %v2349 = vrot.slane %v2348, 2
      %v2350 = vmax.f32 %v2348, %v2349
      %v2351 = vrot.slane %v2350, 1
      %v2352 = vmax.f32 %v2350, %v2351
      %v2353 = vmax.f32 %v2125, %v2133
      %v2354 = vmax.f32 %v2353, %v2141
      %v2355 = vmax.f32 %v2354, %v2149
      %v2356 = vmax.f32 %v2355, %v2157
      %v2357 = vmax.f32 %v2356, %v2165
      %v2358 = vmax.f32 %v2357, %v2173
      %v2359 = vmax.f32 %v2358, %v2181
      %v2360 = vmax.f32 %v2359, %v2189
      %v2361 = vmax.f32 %v2360, %v2197
      %v2362 = vmax.f32 %v2361, %v2205
      %v2363 = vmax.f32 %v2362, %v2213
      %v2364 = vmax.f32 %v2363, %v2221
      %v2365 = vmax.f32 %v2364, %v2229
      %v2366 = vmax.f32 %v2365, %v2237
      %v2367 = vmax.f32 %v2366, %v2245
      %v2368 = vrot.slane %v2367, 4
      %v2369 = vmax.f32 %v2367, %v2368
      %v2370 = vrot.slane %v2369, 2
      %v2371 = vmax.f32 %v2369, %v2370
      %v2372 = vrot.slane %v2371, 1
      %v2373 = vmax.f32 %v2371, %v2372
      %v2374 = vmax.f32 %v2126, %v2134
      %v2375 = vmax.f32 %v2374, %v2142
      %v2376 = vmax.f32 %v2375, %v2150
      %v2377 = vmax.f32 %v2376, %v2158
      %v2378 = vmax.f32 %v2377, %v2166
      %v2379 = vmax.f32 %v2378, %v2174
      %v2380 = vmax.f32 %v2379, %v2182
      %v2381 = vmax.f32 %v2380, %v2190
      %v2382 = vmax.f32 %v2381, %v2198
      %v2383 = vmax.f32 %v2382, %v2206
      %v2384 = vmax.f32 %v2383, %v2214
      %v2385 = vmax.f32 %v2384, %v2222
      %v2386 = vmax.f32 %v2385, %v2230
      %v2387 = vmax.f32 %v2386, %v2238
      %v2388 = vmax.f32 %v2387, %v2246
      %v2389 = vrot.slane %v2388, 4
      %v2390 = vmax.f32 %v2388, %v2389
      %v2391 = vrot.slane %v2390, 2
      %v2392 = vmax.f32 %v2390, %v2391
      %v2393 = vrot.slane %v2392, 1
      %v2394 = vmax.f32 %v2392, %v2393
      %v2395 = vmax.f32 %v2127, %v2135
      %v2396 = vmax.f32 %v2395, %v2143
      %v2397 = vmax.f32 %v2396, %v2151
      %v2398 = vmax.f32 %v2397, %v2159
      %v2399 = vmax.f32 %v2398, %v2167
      %v2400 = vmax.f32 %v2399, %v2175
      %v2401 = vmax.f32 %v2400, %v2183
      %v2402 = vmax.f32 %v2401, %v2191
      %v2403 = vmax.f32 %v2402, %v2199
      %v2404 = vmax.f32 %v2403, %v2207
      %v2405 = vmax.f32 %v2404, %v2215
      %v2406 = vmax.f32 %v2405, %v2223
      %v2407 = vmax.f32 %v2406, %v2231
      %v2408 = vmax.f32 %v2407, %v2239
      %v2409 = vmax.f32 %v2408, %v2247
      %v2410 = vrot.slane %v2409, 4
      %v2411 = vmax.f32 %v2409, %v2410
      %v2412 = vrot.slane %v2411, 2
      %v2413 = vmax.f32 %v2411, %v2412
      %v2414 = vrot.slane %v2413, 1
      %v2415 = vmax.f32 %v2413, %v2414
      %p2416 = scmp.eq.s32.totalorder %s23, 0
      // Predicated region
      $region49: #{pointnet_forward.2} parent=47 // pred_check
        %p2417 = pneg %p2416
      $region50: #{pointnet_forward.2} parent=47 // pred_check_branch
        %2419 = sbr.rel (%p2417) target = $region52
      $region51: #{pointnet_forward.2} parent=47 // pred_region
        %v2428 = vcombine.low %v2268, %v2289
        %v2429 = vcombine.low %v2310, %v2331
        %v2430 = vcombine.low %v2352, %v2373
        %v2431 = vcombine.low %v2394, %v2415
        %v2433 = vunpack.c.l.s4 1966171168
        %v2434 = vunpack.c.0.s8 %v2433
        %v2435 = vlaneseq
        %v2436 = vshrl.u32 %v2435, 7
        %v2437 = vsub.s32 %v2434, %v2436
        %v2438 = vrot.slane %v2428, %v2437
        %v2440 = vunpack.c.l.s4 1966171168
        %v2441 = vunpack.c.0.s8 %v2440
        %v2442 = vlaneseq
        %v2443 = vshrl.u32 %v2442, 7
        %v2444 = vsub.s32 %v2441, %v2443
        %v2445 = vrot.slane %v2429, %v2444
        %v2447 = vunpack.c.l.s4 1966171168
        %v2448 = vunpack.c.0.s8 %v2447
        %v2449 = vlaneseq
        %v2450 = vshrl.u32 %v2449, 7
        %v2451 = vsub.s32 %v2448, %v2450
        %v2452 = vrot.slane %v2430, %v2451
        %v2454 = vunpack.c.l.s4 1966171168
        %v2455 = vunpack.c.0.s8 %v2454
        %v2456 = vlaneseq
        %v2457 = vshrl.u32 %v2456, 7
        %v2458 = vsub.s32 %v2455, %v2457
        %v2459 = vrot.slane %v2431, %v2458
        %v2460 = vcombine.low %v2438, %v2445
        %v2461 = vcombine.low %v2452, %v2459
        %v2463 = vunpack.c.l.s4 1966171168
        %v2464 = vunpack.c.0.s8 %v2463
        %v2465 = vlaneseq
        %v2466 = vshrl.u32 %v2465, 7
        %v2467 = vsub.s32 %v2464, %v2466
        %v2468 = vrot.slane %v2460, %v2467
        %v2470 = vunpack.c.l.s4 1966171168
        %v2471 = vunpack.c.0.s8 %v2470
        %v2472 = vlaneseq
        %v2473 = vshrl.u32 %v2472, 7
        %v2474 = vsub.s32 %v2471, %v2473
        %v2475 = vrot.slane %v2461, %v2474
        %v2476 = vcombine.low %v2468, %v2475
        %2478 = vst [vmem:[%s304] sm:$0xff] %v2476
      $region52: #{pointnet_forward.2} parent=47 // pred_fallthru
        _
      %p2479 = scmp.gt.s32.totalorder %s23, 0
      // Predicated region
      $region53: #{pointnet_forward.2} parent=47 // pred_check
        %p2480 = pneg %p2479
      $region54: #{pointnet_forward.2} parent=47 // pred_check_branch
        %2482 = sbr.rel (%p2480) target = $region56
      $region55: #{pointnet_forward.2} parent=47 // pred_region
        %v2483 = vld [vmem:[%s304] sm:$0xff]
        %v2492 = vcombine.low %v2268, %v2289
        %v2493 = vcombine.low %v2310, %v2331
        %v2494 = vcombine.low %v2352, %v2373
        %v2495 = vcombine.low %v2394, %v2415
        %v2497 = vunpack.c.l.s4 1966171168
        %v2498 = vunpack.c.0.s8 %v2497
        %v2499 = vlaneseq
        %v2500 = vshrl.u32 %v2499, 7
        %v2501 = vsub.s32 %v2498, %v2500
        %v2502 = vrot.slane %v2492, %v2501
        %v2504 = vunpack.c.l.s4 1966171168
        %v2505 = vunpack.c.0.s8 %v2504
        %v2506 = vlaneseq
        %v2507 = vshrl.u32 %v2506, 7
        %v2508 = vsub.s32 %v2505, %v2507
        %v2509 = vrot.slane %v2493, %v2508
        %v2511 = vunpack.c.l.s4 1966171168
        %v2512 = vunpack.c.0.s8 %v2511
        %v2513 = vlaneseq
        %v2514 = vshrl.u32 %v2513, 7
        %v2515 = vsub.s32 %v2512, %v2514
        %v2516 = vrot.slane %v2494, %v2515
        %v2518 = vunpack.c.l.s4 1966171168
        %v2519 = vunpack.c.0.s8 %v2518
        %v2520 = vlaneseq
        %v2521 = vshrl.u32 %v2520, 7
        %v2522 = vsub.s32 %v2519, %v2521
        %v2523 = vrot.slane %v2495, %v2522
        %v2524 = vcombine.low %v2502, %v2509
        %v2525 = vcombine.low %v2516, %v2523
        %v2527 = vunpack.c.l.s4 1966171168
        %v2528 = vunpack.c.0.s8 %v2527
        %v2529 = vlaneseq
        %v2530 = vshrl.u32 %v2529, 7
        %v2531 = vsub.s32 %v2528, %v2530
        %v2532 = vrot.slane %v2524, %v2531
        %v2534 = vunpack.c.l.s4 1966171168
        %v2535 = vunpack.c.0.s8 %v2534
        %v2536 = vlaneseq
        %v2537 = vshrl.u32 %v2536, 7
        %v2538 = vsub.s32 %v2535, %v2537
        %v2539 = vrot.slane %v2525, %v2538
        %v2540 = vcombine.low %v2532, %v2539
        %v2542 = vmax.f32 %v2483, %v2540
        %2543 = vst [vmem:[%s304] sm:$0xff] %v2542
      $region56: #{pointnet_forward.2} parent=47 // pred_fallthru
        _
      %p2544 = scmp.lt.s32.totalorder %s22, 1
      %s2545 = scalar_select %p2544, %s22, 1
      %s2546 = smul.addr %s2545, 8
      %s2547 = scalar_lea.vmem %s7, %s2546
      // Predicated region
      $region57: #{pointnet_forward.2} parent=47 // pred_check
        %p2548 = pneg %p202
      $region58: #{pointnet_forward.2} parent=47 // pred_check_branch
        %2550 = sbr.rel (%p2548) target = $region60
      $region59: #{pointnet_forward.2} parent=47 // pred_region
        _
      $region60: #{pointnet_forward.2} parent=47 // pred_fallthru
        _
    $region48: #{pointnet_forward.2} parent=5 // pred_fallthru
      _
    %p2551 = scmp.le.s32.totalorder 2, %s13
    // Predicated region
    $region61: #{pointnet_forward.2} parent=5 // pred_check
      %p2552 = pneg %p2551
    $region62: #{pointnet_forward.2} parent=5 // pred_check_branch
      %2554 = sbr.rel (%p2552) target = $region64
    $region63: #{pointnet_forward.2} parent=5 // pred_region
      %s2555 = ssub.s32 %s13, 2
      // Predicated region
      $region65: #{pointnet_forward.2} parent=63 // pred_check
        %p2556 = pneg %p208
      $region66: #{pointnet_forward.2} parent=63 // pred_check_branch
        %2558 = sbr.rel (%p2556) target = $region68
      $region67: #{pointnet_forward.2} parent=63 // pred_region
        %p2559 = scmp.lt.s32.totalorder %s24, 1
        %s2560 = scalar_select %p2559, %s24, 1
        %s2561 = smul.addr %s2560, 8
        %s2562 = scalar_lea.vmem %s7, %s2561
      $region68: #{pointnet_forward.2} parent=63 // pred_fallthru
        _
    $region64: #{pointnet_forward.2} parent=5 // pred_fallthru
      _
  $region6: #{pointnet_forward.2} parent=0 // loop_footer
    %s17 = sadd.s32 1, %s13
  $region7: #{pointnet_forward.2} parent=0 // loop_footer_branch
    %12 = sbr.rel target = $region3
  $region8: #{pointnet_forward.2} parent=0 // loop_exit
    _

// kernel: pointnet_forward.3
$region0: #{pointnet_forward.3}
  #allocation0 [shape = 'u32[]', space=smem, size = 0x4, offset = 0x4, fixed_abs, tag = 'smem constant byte address 0x4 - core index']
  #allocation1 [shape = 'u32[144,128]{1,0:T(1,128)}', space=vmem, size = 0x12000, scoped, tag = 'internal scratch']
  %s0 = inlined_call_operand.vmem [shape: f32[2,384,3], index: 0, kind: input, shape index: {}]
  %s1 = inlined_call_operand.vmem [shape: f32[2,1,512], index: 1, kind: input, shape index: {}]
  %s2 = inlined_call_operand.vmem [shape: bf16[3,64], index: 2, kind: input, shape index: {}]
  %s3 = inlined_call_operand.vmem [shape: bf16[64,64], index: 3, kind: input, shape index: {}]
  %s4 = inlined_call_operand.vmem [shape: bf16[64,128], index: 4, kind: input, shape index: {}]
  %s5 = inlined_call_operand.vmem [shape: bf16[128,128], index: 5, kind: input, shape index: {}]
  %s6 = inlined_call_operand.vmem [shape: bf16[128,1024], index: 6, kind: input, shape index: {}]
  %s7 = inlined_call_operand.vmem [shape: bf16[1024,512], index: 7, kind: input, shape index: {}]
  %s8 = inlined_call_operand.vmem [shape: bf16[512,256], index: 8, kind: input, shape index: {}]
  %s9 = inlined_call_operand.vmem [shape: bf16[256,256], index: 9, kind: input, shape index: {}]
  %s10 = inlined_call_operand.vmem [shape: bf16[256,128], index: 10, kind: input, shape index: {}]
  %s11 = inlined_call_operand.vmem [shape: f32[8,1024], index: 11, kind: input, shape index: {}]
  %s12 = inlined_call_operand.vmem [shape: f32[2,384,128], index: 12, kind: output, shape index: {}]
  %s13 = sld [smem:[#allocation0]]
  $region81: #{pointnet_forward.3} parent=0
    _
  %s15 = ssub.s32 1, %s13
  %s16 = scalar_select 0, %s15, %s13
  loop: start=0, step=1, limit=8
  $region2: #{pointnet_forward.3} parent=0 // loop_pre_header
    _
  $region3: #{pointnet_forward.3} parent=0 // loop_header
    %s18 = sphi 0, %s22
    %p19 = scmp.ge.s32.totalorder %s18, 8
    %s25 = sphi 0, %s37
    %s26 = sphi 0, %s33
    %s27 = sphi 0, %s25
    %s28 = sphi 0, %s26
    %s29 = sphi 0, %s27
    %s30 = sphi 0, %s28
    %s42 = sphi 0, %s44
    %s45 = sphi 0, %s42
    %s46 = sphi 0, %s45
    %s62 = sphi 0, %s46
    %s68 = sphi 0, %s70
    %s71 = sphi 0, %s68
    %s72 = sphi 0, %s71
    %s88 = sphi 0, %s72
    %s92 = sphi 0, %s92
    %s94 = sphi 0, %s92
    %s95 = sphi 0, %s94
    %s109 = sphi 0, %s95
    %s113 = sphi 0, %s113
    %s115 = sphi 0, %s113
    %s116 = sphi 0, %s115
    %s130 = sphi 0, %s116
    %s134 = sphi 0, %s134
    %s136 = sphi 0, %s134
    %s137 = sphi 0, %s136
    %s151 = sphi 0, %s137
    %s155 = sphi 0, %s155
    %s157 = sphi 0, %s155
    %s158 = sphi 0, %s157
    %s172 = sphi 0, %s158
    %s176 = sphi 0, %s176
    %s178 = sphi 0, %s176
    %s179 = sphi 0, %s178
    %s193 = sphi 0, %s179
    %s197 = sphi 0, %s197
    %s199 = sphi 0, %s197
    %s200 = sphi 0, %s199
    %s214 = sphi 0, %s200
    %s218 = sphi 0, %s218
    %s220 = sphi 0, %s218
    %s221 = sphi 0, %s220
    %s235 = sphi 0, %s221
    %s239 = sphi 0, %s239
    %s241 = sphi 0, %s239
    %s242 = sphi 0, %s241
    %s256 = sphi 0, %s242
    %s260 = sphi 0, %s260
    %s262 = sphi 0, %s260
    %s263 = sphi 0, %s262
    %s277 = sphi 0, %s263
    %s281 = sphi 0, %s281
    %s283 = sphi 0, %s281
    %s284 = sphi 0, %s283
    %s298 = sphi 0, %s284
    %s306 = sphi 0, %s308
    %s309 = sphi 0, %s306
    %s310 = sphi 0, %s309
    %s326 = sphi 0, %s310
  $region4: #{pointnet_forward.3} parent=0 // loop_header_branch
    %21 = sbr.rel (%p19) target = $region8
  $region5: #{pointnet_forward.3} parent=0 // loop_body
    %s23 = ssub.s32 %s18, 1
    %s24 = ssub.s32 %s18, 2
    %s31 = sadd.s32 1, %s26
    %p32 = scmp.ge.s32.totalorder %s31, 3
    %s33 = scalar_select %p32, 0, %s31
    %s34 = sadd.s32 1, %s25
    %s35 = scalar_select %p32, %s34, %s25
    %p36 = scmp.ge.s32.totalorder %s35, 2
    %s37 = scalar_select %p36, 0, %s35
    %s38 = ssub.s32 %s25, %s37
    %s39 = ssub.s32 %s26, %s33
    %s40 = sor.u32 %s38, %s39
    %p41 = scmp.eq.s32.totalorder %s40, 0
    %s43 = sadd.s32 %s42, 1
    %s44 = scalar_select %p41, %s42, %s43
    %p47 = pneg %p41
    %p48 = scmp.eq.s32.totalorder %s18, 5
    %p49 = por %p47, %p48
    %p50 = scmp.ne.s32.totalorder %s42, %s45
    %p51 = scmp.eq.s32.totalorder %s18, 0
    %p52 = por %p50, %p51
    %p53 = scmp.ne.s32.totalorder %s42, %s45
    %p54 = scmp.eq.s32.totalorder %s23, 5
    %p55 = por %p53, %p54
    %p56 = scmp.ne.s32.totalorder %s45, %s46
    %p57 = scmp.eq.s32.totalorder %s23, 0
    %p58 = por %p56, %p57
    %p59 = scmp.ne.s32.totalorder %s45, %s46
    %p60 = scmp.eq.s32.totalorder %s24, 5
    %p61 = por %p59, %p60
    %p63 = scmp.ne.s32.totalorder %s46, %s62
    %p64 = scmp.eq.s32.totalorder %s24, 0
    %p65 = por %p63, %p64
    %s66 = ssub.s32 %s25, %s37
    %p67 = scmp.eq.s32.totalorder %s66, 0
    %s69 = sadd.s32 %s68, 1
    %s70 = scalar_select %p67, %s68, %s69
    %p73 = pneg %p67
    %p74 = scmp.eq.s32.totalorder %s18, 5
    %p75 = por %p73, %p74
    %p76 = scmp.ne.s32.totalorder %s68, %s71
    %p77 = scmp.eq.s32.totalorder %s18, 0
    %p78 = por %p76, %p77
    %p79 = scmp.ne.s32.totalorder %s68, %s71
    %p80 = scmp.eq.s32.totalorder %s23, 5
    %p81 = por %p79, %p80
    %p82 = scmp.ne.s32.totalorder %s71, %s72
    %p83 = scmp.eq.s32.totalorder %s23, 0
    %p84 = por %p82, %p83
    %p85 = scmp.ne.s32.totalorder %s71, %s72
    %p86 = scmp.eq.s32.totalorder %s24, 5
    %p87 = por %p85, %p86
    %p89 = scmp.ne.s32.totalorder %s72, %s88
    %p90 = scmp.eq.s32.totalorder %s24, 0
    %p91 = por %p89, %p90
    %s93 = sadd.s32 %s92, 1
    %p96 = scmp.eq.s32.totalorder %s18, 5
    %p97 = scmp.ne.s32.totalorder %s92, %s94
    %p98 = scmp.eq.s32.totalorder %s18, 0
    %p99 = por %p97, %p98
    %p100 = scmp.ne.s32.totalorder %s92, %s94
    %p101 = scmp.eq.s32.totalorder %s23, 5
    %p102 = por %p100, %p101
    %p103 = scmp.ne.s32.totalorder %s94, %s95
    %p104 = scmp.eq.s32.totalorder %s23, 0
    %p105 = por %p103, %p104
    %p106 = scmp.ne.s32.totalorder %s94, %s95
    %p107 = scmp.eq.s32.totalorder %s24, 5
    %p108 = por %p106, %p107
    %p110 = scmp.ne.s32.totalorder %s95, %s109
    %p111 = scmp.eq.s32.totalorder %s24, 0
    %p112 = por %p110, %p111
    %s114 = sadd.s32 %s113, 1
    %p117 = scmp.eq.s32.totalorder %s18, 5
    %p118 = scmp.ne.s32.totalorder %s113, %s115
    %p119 = scmp.eq.s32.totalorder %s18, 0
    %p120 = por %p118, %p119
    %p121 = scmp.ne.s32.totalorder %s113, %s115
    %p122 = scmp.eq.s32.totalorder %s23, 5
    %p123 = por %p121, %p122
    %p124 = scmp.ne.s32.totalorder %s115, %s116
    %p125 = scmp.eq.s32.totalorder %s23, 0
    %p126 = por %p124, %p125
    %p127 = scmp.ne.s32.totalorder %s115, %s116
    %p128 = scmp.eq.s32.totalorder %s24, 5
    %p129 = por %p127, %p128
    %p131 = scmp.ne.s32.totalorder %s116, %s130
    %p132 = scmp.eq.s32.totalorder %s24, 0
    %p133 = por %p131, %p132
    %s135 = sadd.s32 %s134, 1
    %p138 = scmp.eq.s32.totalorder %s18, 5
    %p139 = scmp.ne.s32.totalorder %s134, %s136
    %p140 = scmp.eq.s32.totalorder %s18, 0
    %p141 = por %p139, %p140
    %p142 = scmp.ne.s32.totalorder %s134, %s136
    %p143 = scmp.eq.s32.totalorder %s23, 5
    %p144 = por %p142, %p143
    %p145 = scmp.ne.s32.totalorder %s136, %s137
    %p146 = scmp.eq.s32.totalorder %s23, 0
    %p147 = por %p145, %p146
    %p148 = scmp.ne.s32.totalorder %s136, %s137
    %p149 = scmp.eq.s32.totalorder %s24, 5
    %p150 = por %p148, %p149
    %p152 = scmp.ne.s32.totalorder %s137, %s151
    %p153 = scmp.eq.s32.totalorder %s24, 0
    %p154 = por %p152, %p153
    %s156 = sadd.s32 %s155, 1
    %p159 = scmp.eq.s32.totalorder %s18, 5
    %p160 = scmp.ne.s32.totalorder %s155, %s157
    %p161 = scmp.eq.s32.totalorder %s18, 0
    %p162 = por %p160, %p161
    %p163 = scmp.ne.s32.totalorder %s155, %s157
    %p164 = scmp.eq.s32.totalorder %s23, 5
    %p165 = por %p163, %p164
    %p166 = scmp.ne.s32.totalorder %s157, %s158
    %p167 = scmp.eq.s32.totalorder %s23, 0
    %p168 = por %p166, %p167
    %p169 = scmp.ne.s32.totalorder %s157, %s158
    %p170 = scmp.eq.s32.totalorder %s24, 5
    %p171 = por %p169, %p170
    %p173 = scmp.ne.s32.totalorder %s158, %s172
    %p174 = scmp.eq.s32.totalorder %s24, 0
    %p175 = por %p173, %p174
    %s177 = sadd.s32 %s176, 1
    %p180 = scmp.eq.s32.totalorder %s18, 5
    %p181 = scmp.ne.s32.totalorder %s176, %s178
    %p182 = scmp.eq.s32.totalorder %s18, 0
    %p183 = por %p181, %p182
    %p184 = scmp.ne.s32.totalorder %s176, %s178
    %p185 = scmp.eq.s32.totalorder %s23, 5
    %p186 = por %p184, %p185
    %p187 = scmp.ne.s32.totalorder %s178, %s179
    %p188 = scmp.eq.s32.totalorder %s23, 0
    %p189 = por %p187, %p188
    %p190 = scmp.ne.s32.totalorder %s178, %s179
    %p191 = scmp.eq.s32.totalorder %s24, 5
    %p192 = por %p190, %p191
    %p194 = scmp.ne.s32.totalorder %s179, %s193
    %p195 = scmp.eq.s32.totalorder %s24, 0
    %p196 = por %p194, %p195
    %s198 = sadd.s32 %s197, 1
    %p201 = scmp.eq.s32.totalorder %s18, 5
    %p202 = scmp.ne.s32.totalorder %s197, %s199
    %p203 = scmp.eq.s32.totalorder %s18, 0
    %p204 = por %p202, %p203
    %p205 = scmp.ne.s32.totalorder %s197, %s199
    %p206 = scmp.eq.s32.totalorder %s23, 5
    %p207 = por %p205, %p206
    %p208 = scmp.ne.s32.totalorder %s199, %s200
    %p209 = scmp.eq.s32.totalorder %s23, 0
    %p210 = por %p208, %p209
    %p211 = scmp.ne.s32.totalorder %s199, %s200
    %p212 = scmp.eq.s32.totalorder %s24, 5
    %p213 = por %p211, %p212
    %p215 = scmp.ne.s32.totalorder %s200, %s214
    %p216 = scmp.eq.s32.totalorder %s24, 0
    %p217 = por %p215, %p216
    %s219 = sadd.s32 %s218, 1
    %p222 = scmp.eq.s32.totalorder %s18, 5
    %p223 = scmp.ne.s32.totalorder %s218, %s220
    %p224 = scmp.eq.s32.totalorder %s18, 0
    %p225 = por %p223, %p224
    %p226 = scmp.ne.s32.totalorder %s218, %s220
    %p227 = scmp.eq.s32.totalorder %s23, 5
    %p228 = por %p226, %p227
    %p229 = scmp.ne.s32.totalorder %s220, %s221
    %p230 = scmp.eq.s32.totalorder %s23, 0
    %p231 = por %p229, %p230
    %p232 = scmp.ne.s32.totalorder %s220, %s221
    %p233 = scmp.eq.s32.totalorder %s24, 5
    %p234 = por %p232, %p233
    %p236 = scmp.ne.s32.totalorder %s221, %s235
    %p237 = scmp.eq.s32.totalorder %s24, 0
    %p238 = por %p236, %p237
    %s240 = sadd.s32 %s239, 1
    %p243 = scmp.eq.s32.totalorder %s18, 5
    %p244 = scmp.ne.s32.totalorder %s239, %s241
    %p245 = scmp.eq.s32.totalorder %s18, 0
    %p246 = por %p244, %p245
    %p247 = scmp.ne.s32.totalorder %s239, %s241
    %p248 = scmp.eq.s32.totalorder %s23, 5
    %p249 = por %p247, %p248
    %p250 = scmp.ne.s32.totalorder %s241, %s242
    %p251 = scmp.eq.s32.totalorder %s23, 0
    %p252 = por %p250, %p251
    %p253 = scmp.ne.s32.totalorder %s241, %s242
    %p254 = scmp.eq.s32.totalorder %s24, 5
    %p255 = por %p253, %p254
    %p257 = scmp.ne.s32.totalorder %s242, %s256
    %p258 = scmp.eq.s32.totalorder %s24, 0
    %p259 = por %p257, %p258
    %s261 = sadd.s32 %s260, 1
    %p264 = scmp.eq.s32.totalorder %s18, 5
    %p265 = scmp.ne.s32.totalorder %s260, %s262
    %p266 = scmp.eq.s32.totalorder %s18, 0
    %p267 = por %p265, %p266
    %p268 = scmp.ne.s32.totalorder %s260, %s262
    %p269 = scmp.eq.s32.totalorder %s23, 5
    %p270 = por %p268, %p269
    %p271 = scmp.ne.s32.totalorder %s262, %s263
    %p272 = scmp.eq.s32.totalorder %s23, 0
    %p273 = por %p271, %p272
    %p274 = scmp.ne.s32.totalorder %s262, %s263
    %p275 = scmp.eq.s32.totalorder %s24, 5
    %p276 = por %p274, %p275
    %p278 = scmp.ne.s32.totalorder %s263, %s277
    %p279 = scmp.eq.s32.totalorder %s24, 0
    %p280 = por %p278, %p279
    %s282 = sadd.s32 %s281, 1
    %p285 = scmp.eq.s32.totalorder %s18, 5
    %p286 = scmp.ne.s32.totalorder %s281, %s283
    %p287 = scmp.eq.s32.totalorder %s18, 0
    %p288 = por %p286, %p287
    %p289 = scmp.ne.s32.totalorder %s281, %s283
    %p290 = scmp.eq.s32.totalorder %s23, 5
    %p291 = por %p289, %p290
    %p292 = scmp.ne.s32.totalorder %s283, %s284
    %p293 = scmp.eq.s32.totalorder %s23, 0
    %p294 = por %p292, %p293
    %p295 = scmp.ne.s32.totalorder %s283, %s284
    %p296 = scmp.eq.s32.totalorder %s24, 5
    %p297 = por %p295, %p296
    %p299 = scmp.ne.s32.totalorder %s284, %s298
    %p300 = scmp.eq.s32.totalorder %s24, 0
    %p301 = por %p299, %p300
    %s302 = ssub.s32 %s25, %s37
    %s303 = ssub.s32 %s26, %s33
    %s304 = sor.u32 %s302, %s303
    %p305 = scmp.eq.s32.totalorder %s304, 0
    %s307 = sadd.s32 %s306, 1
    %s308 = scalar_select %p305, %s306, %s307
    %p311 = pneg %p305
    %p312 = scmp.eq.s32.totalorder %s18, 5
    %p313 = por %p311, %p312
    %p314 = scmp.ne.s32.totalorder %s306, %s309
    %p315 = scmp.eq.s32.totalorder %s18, 0
    %p316 = por %p314, %p315
    %p317 = scmp.ne.s32.totalorder %s306, %s309
    %p318 = scmp.eq.s32.totalorder %s23, 5
    %p319 = por %p317, %p318
    %p320 = scmp.ne.s32.totalorder %s309, %s310
    %p321 = scmp.eq.s32.totalorder %s23, 0
    %p322 = por %p320, %p321
    %p323 = scmp.ne.s32.totalorder %s309, %s310
    %p324 = scmp.eq.s32.totalorder %s24, 5
    %p325 = por %p323, %p324
    %p327 = scmp.ne.s32.totalorder %s310, %s326
    %p328 = scmp.eq.s32.totalorder %s24, 0
    %p329 = por %p327, %p328
    %p330 = scmp.le.s32.totalorder 1, %s18
    %p331 = scmp.lt.s32.totalorder %s18, 7
    %p332 = pnand %p330, %p331
    %p333 = pneg %p332
    // Predicated region
    $region9: #{pointnet_forward.3} parent=5 // pred_check
      _
    $region10: #{pointnet_forward.3} parent=5 // pred_check_branch
      %335 = sbr.rel (%p332) target = $region12
    $region11: #{pointnet_forward.3} parent=5 // pred_region
      %s336 = ssub.s32 %s18, 1
      // Predicated region
      $region13: #{pointnet_forward.3} parent=11 // pred_check
        %p337 = pneg %p105
      $region14: #{pointnet_forward.3} parent=11 // pred_check_branch
        %339 = sbr.rel (%p337) target = $region16
      $region15: #{pointnet_forward.3} parent=11 // pred_region
        _
      $region16: #{pointnet_forward.3} parent=11 // pred_fallthru
        _
      // Predicated region
      $region17: #{pointnet_forward.3} parent=11 // pred_check
        %p340 = pneg %p126
      $region18: #{pointnet_forward.3} parent=11 // pred_check_branch
        %342 = sbr.rel (%p340) target = $region20
      $region19: #{pointnet_forward.3} parent=11 // pred_region
        _
      $region20: #{pointnet_forward.3} parent=11 // pred_fallthru
        _
      // Predicated region
      $region21: #{pointnet_forward.3} parent=11 // pred_check
        %p343 = pneg %p147
      $region22: #{pointnet_forward.3} parent=11 // pred_check_branch
        %345 = sbr.rel (%p343) target = $region24
      $region23: #{pointnet_forward.3} parent=11 // pred_region
        _
      $region24: #{pointnet_forward.3} parent=11 // pred_fallthru
        _
      // Predicated region
      $region25: #{pointnet_forward.3} parent=11 // pred_check
        %p346 = pneg %p168
      $region26: #{pointnet_forward.3} parent=11 // pred_check_branch
        %348 = sbr.rel (%p346) target = $region28
      $region27: #{pointnet_forward.3} parent=11 // pred_region
        _
      $region28: #{pointnet_forward.3} parent=11 // pred_fallthru
        _
      // Predicated region
      $region29: #{pointnet_forward.3} parent=11 // pred_check
        %p349 = pneg %p189
      $region30: #{pointnet_forward.3} parent=11 // pred_check_branch
        %351 = sbr.rel (%p349) target = $region32
      $region31: #{pointnet_forward.3} parent=11 // pred_region
        _
      $region32: #{pointnet_forward.3} parent=11 // pred_fallthru
        _
      // Predicated region
      $region33: #{pointnet_forward.3} parent=11 // pred_check
        %p352 = pneg %p210
      $region34: #{pointnet_forward.3} parent=11 // pred_check_branch
        %354 = sbr.rel (%p352) target = $region36
      $region35: #{pointnet_forward.3} parent=11 // pred_region
        _
      $region36: #{pointnet_forward.3} parent=11 // pred_fallthru
        _
      // Predicated region
      $region37: #{pointnet_forward.3} parent=11 // pred_check
        %p355 = pneg %p231
      $region38: #{pointnet_forward.3} parent=11 // pred_check_branch
        %357 = sbr.rel (%p355) target = $region40
      $region39: #{pointnet_forward.3} parent=11 // pred_region
        _
      $region40: #{pointnet_forward.3} parent=11 // pred_fallthru
        _
      // Predicated region
      $region41: #{pointnet_forward.3} parent=11 // pred_check
        %p358 = pneg %p252
      $region42: #{pointnet_forward.3} parent=11 // pred_check_branch
        %360 = sbr.rel (%p358) target = $region44
      $region43: #{pointnet_forward.3} parent=11 // pred_region
        _
      $region44: #{pointnet_forward.3} parent=11 // pred_fallthru
        _
      // Predicated region
      $region45: #{pointnet_forward.3} parent=11 // pred_check
        %p361 = pneg %p273
      $region46: #{pointnet_forward.3} parent=11 // pred_check_branch
        %363 = sbr.rel (%p361) target = $region48
      $region47: #{pointnet_forward.3} parent=11 // pred_region
        _
      $region48: #{pointnet_forward.3} parent=11 // pred_fallthru
        _
      // Predicated region
      $region49: #{pointnet_forward.3} parent=11 // pred_check
        %p364 = pneg %p294
      $region50: #{pointnet_forward.3} parent=11 // pred_check_branch
        %366 = sbr.rel (%p364) target = $region52
      $region51: #{pointnet_forward.3} parent=11 // pred_region
        _
      $region52: #{pointnet_forward.3} parent=11 // pred_fallthru
        _
    $region12: #{pointnet_forward.3} parent=5 // pred_fallthru
      _
    %p367 = scmp.lt.s32.totalorder %s18, 6
    // Predicated region
    $region53: #{pointnet_forward.3} parent=5 // pred_check
      %p368 = pneg %p367
    $region54: #{pointnet_forward.3} parent=5 // pred_check_branch
      %370 = sbr.rel (%p368) target = $region56
    $region55: #{pointnet_forward.3} parent=5 // pred_region
      // Predicated region
      $region57: #{pointnet_forward.3} parent=55 // pred_check
        %p371 = pneg %p52
      $region58: #{pointnet_forward.3} parent=55 // pred_check_branch
        %373 = sbr.rel (%p371) target = $region60
      $region59: #{pointnet_forward.3} parent=55 // pred_region
        %s374 = smul.u32 16, %s26
        %p375 = scmp.lt.s32.totalorder %s25, 1
        %s376 = scalar_select %p375, %s25, 1
        %p377 = scmp.lt.s32.totalorder %s374, 47
        %s378 = scalar_select %p377, %s374, 47
        %s379 = smul.addr %s376, 48
        %s380 = sadd.s32 %s378, %s379
        %s381 = smul.addr %s380, 8
        %s382 = scalar_lea.vmem %s0, %s381
        %s383 = smul.u32 16, %s26
      $region60: #{pointnet_forward.3} parent=55 // pred_fallthru
        _
      // Predicated region
      $region61: #{pointnet_forward.3} parent=55 // pred_check
        %p384 = pneg %p78
      $region62: #{pointnet_forward.3} parent=55 // pred_check_branch
        %386 = sbr.rel (%p384) target = $region64
      $region63: #{pointnet_forward.3} parent=55 // pred_region
        %p387 = scmp.lt.s32.totalorder %s25, 1
        %s388 = scalar_select %p387, %s25, 1
        %s389 = smul.addr %s388, 4
        %s390 = scalar_lea.vmem %s1, %s389
      $region64: #{pointnet_forward.3} parent=55 // pred_fallthru
        _
    $region56: #{pointnet_forward.3} parent=5 // pred_fallthru
      _
    %p391 = scmp.le.s32.totalorder 1, %s18
    %p392 = scmp.lt.s32.totalorder %s18, 7
    %p393 = pnand %p391, %p392
    %p394 = pneg %p393
    // Predicated region
    $region65: #{pointnet_forward.3} parent=5 // pred_check
      _
    $region66: #{pointnet_forward.3} parent=5 // pred_check_branch
      %396 = sbr.rel (%p393) target = $region68
    $region67: #{pointnet_forward.3} parent=5 // pred_region
      %s397 = ssub.s32 %s18, 1
      %s398 = smul.u32 16, %s28
      %p399 = scmp.lt.s32.totalorder %s27, 1
      %s400 = scalar_select %p399, %s27, 1
      %p401 = scmp.lt.s32.totalorder %s398, 47
      %s402 = scalar_select %p401, %s398, 47
      %s403 = smul.addr %s400, 48
      %s404 = sadd.s32 %s402, %s403
      %s405 = smul.addr %s404, 8
      %s406 = scalar_lea.vmem %s0, %s405
      %p407 = pneg %p58
      %p408 = pneg %p55
      %p409 = scmp.lt.s32.totalorder %s27, 1
      %s410 = scalar_select %p409, %s27, 1
      %s411 = smul.addr %s410, 4
      %s412 = scalar_lea.vmem %s1, %s411
      %p413 = pneg %p84
      %p414 = pneg %p81
      %p415 = pneg %p105
      %p416 = pneg %p102
      %p417 = pneg %p126
      %p418 = pneg %p123
      %p419 = pneg %p147
      %p420 = pneg %p144
      %p421 = pneg %p168
      %p422 = pneg %p165
      %p423 = pneg %p189
      %p424 = pneg %p186
      %p425 = pneg %p210
      %p426 = pneg %p207
      %p427 = pneg %p231
      %p428 = pneg %p228
      %p429 = pneg %p252
      %p430 = pneg %p249
      %p431 = pneg %p273
      %p432 = pneg %p270
      %p433 = pneg %p294
      %p434 = pneg %p291
      %p435 = pneg %p322
      %p436 = pneg %p319
      %s437 = smul.u32 16, %s28
      %p438 = scmp.lt.s32.totalorder %s27, 1
      %s439 = scalar_select %p438, %s27, 1
      %p440 = scmp.lt.s32.totalorder %s437, 47
      %s441 = scalar_select %p440, %s437, 47
      %s442 = smul.addr %s439, 48
      %s443 = sadd.s32 %s441, %s442
      %s444 = smul.addr %s443, 8
      %s445 = scalar_lea.vmem %s12, %s444
      %s446 = smul.u32 16, %s28
      %p447 = scmp.lt.s32.totalorder %s27, 1
      %s448 = scalar_select %p447, %s27, 1
      %p449 = scmp.lt.s32.totalorder %s446, 47
      %s450 = scalar_select %p449, %s446, 47
      %s451 = smul.addr %s448, 48
      %s452 = sadd.s32 %s450, %s451
      %s453 = smul.addr %s452, 8
      %s454 = scalar_lea.vmem %s0, %s453
      %s455 = smul.u32 16, %s28
      %p456 = scmp.lt.s32.totalorder %s27, 1
      %s457 = scalar_select %p456, %s27, 1
      %s458 = smul.addr %s457, 4
      %s459 = scalar_lea.vmem %s1, %s458
      %s460 = smul.u32 16, %s28
      %p461 = scmp.lt.s32.totalorder %s27, 1
      %s462 = scalar_select %p461, %s27, 1
      %p463 = scmp.lt.s32.totalorder %s460, 47
      %s464 = scalar_select %p463, %s460, 47
      %s465 = smul.addr %s462, 48
      %s466 = sadd.s32 %s464, %s465
      %s467 = smul.addr %s466, 8
      %s468 = scalar_lea.vmem %s12, %s467
      %s469 = smul.u32 16, %s28
      %v471 = vld [vmem:[%s454] sm:$0xff]
      %v472 = vld [vmem:[%s454 + $0x8] sm:$0xff]
      %v473 = vld [vmem:[%s454 + $0x10] sm:$0xff]
      %v474 = vld [vmem:[%s454 + $0x18] sm:$0xff]
      %v475 = vld [vmem:[%s454 + $0x20] sm:$0xff]
      %v476 = vld [vmem:[%s454 + $0x28] sm:$0xff]
      %v477 = vld [vmem:[%s454 + $0x30] sm:$0xff]
      %v478 = vld [vmem:[%s454 + $0x38] sm:$0xff]
      %v479 = vld [vmem:[%s454 + $0x40] sm:$0xff]
      %v480 = vld [vmem:[%s454 + $0x48] sm:$0xff]
      %v481 = vld [vmem:[%s454 + $0x50] sm:$0xff]
      %v482 = vld [vmem:[%s454 + $0x58] sm:$0xff]
      %v483 = vld [vmem:[%s454 + $0x60] sm:$0xff]
      %v484 = vld [vmem:[%s454 + $0x68] sm:$0xff]
      %v485 = vld [vmem:[%s454 + $0x70] sm:$0xff]
      %v486 = vld [vmem:[%s454 + $0x78] sm:$0xff]
      %v487 = vld [vmem:[%s2] sm:$0x3]
      %v488 = vld [vmem:[%s11] ss:$0 sm:$0xff]
      %v489 = vpack.c.bf16 %v472, %v471
      %v490 = vpack.c.bf16 %v474, %v473
      %v491 = vpack.c.bf16 %v476, %v475
      %v492 = vpack.c.bf16 %v478, %v477
      %v493 = vpack.c.bf16 %v480, %v479
      %v494 = vpack.c.bf16 %v482, %v481
      %v495 = vpack.c.bf16 %v484, %v483
      %v496 = vpack.c.bf16 %v486, %v485
      %vm497 = vcmask 23552
      %v499 = vsel %vm497, %v489, 0
      %v502 = vsel %vm497, %v490, 0
      %v505 = vsel %vm497, %v491, 0
      %v508 = vsel %vm497, %v492, 0
      %v511 = vsel %vm497, %v493, 0
      %v514 = vsel %vm497, %v494, 0
      %v517 = vsel %vm497, %v495, 0
      %v520 = vsel %vm497, %v496, 0
      %vm522 = vcmask 1040384
      %vm523 = vcmask 1041408
      %v524 = vsel %vm522, 4294967295, 65535
      %v525 = vsel %vm523, %v524, 0
      %v527 = vand.u32 %v487, %v525
      %529 = vmatprep.subr.bf16.mxu0 0
      %530 = vmatpush1.bf16.msra.mxu0 %v527
      %531 = vmatprep.subr.bf16.mxu0 0
      %532 = vmatpush1.bf16.msra.mxu0 0
      %533 = vmatprep.subr.bf16.mxu0 0
      %534 = vmatpush1.bf16.msra.mxu0 0
      %535 = vmatprep.subr.bf16.mxu0 0
      %536 = vmatpush1.bf16.msra.mxu0 0
      %537 = vmatprep.subr.bf16.mxu0 0
      %538 = vmatpush1.bf16.msra.mxu0 0
      %539 = vmatprep.subr.bf16.mxu0 0
      %540 = vmatpush1.bf16.msra.mxu0 0
      %541 = vmatprep.subr.bf16.mxu0 0
      %542 = vmatpush1.bf16.msra.mxu0 0
      %543 = vmatprep.subr.bf16.mxu0 0
      %544 = vmatpush1.bf16.msra.mxu0 0
      %545 = vmatprep.subr.bf16.mxu0 0
      %546 = vmatpush1.bf16.msra.mxu0 0
      %547 = vmatprep.subr.bf16.mxu0 0
      %548 = vmatpush1.bf16.msra.mxu0 0
      %549 = vmatprep.subr.bf16.mxu0 0
      %550 = vmatpush1.bf16.msra.mxu0 0
      %551 = vmatprep.subr.bf16.mxu0 0
      %552 = vmatpush1.bf16.msra.mxu0 0
      %553 = vmatprep.subr.bf16.mxu0 0
      %554 = vmatpush1.bf16.msra.mxu0 0
      %555 = vmatprep.subr.bf16.mxu0 0
      %556 = vmatpush1.bf16.msra.mxu0 0
      %557 = vmatprep.subr.bf16.mxu0 0
      %558 = vmatpush1.bf16.msra.mxu0 0
      %559 = vmatprep.subr.bf16.mxu0 0
      %560 = vmatpush1.bf16.msra.mxu0 0
      %561 = vmatprep.mubr.bf16.mxu0 0
      %562 = vmatmul.mubr.bf16.gmra.mrb[0].mxu0 %v499
      %v563 = vpop.f32.mrb[0].mxu0
      %v564 = vadd.f32 %v488, %v563
      %v565 = vpop.f32.mrb[0].mxu0
      %v566 = vpop.f32.mrb[0].mxu0
      %v567 = vadd.f32 %v488, %v566
      %v568 = vpop.f32.mrb[0].mxu0
      %569 = vmatprep.mubr.bf16.mxu0 0
      %570 = vmatmul.mubr.bf16.gmra.mrb[0].mxu0 %v502
      %v571 = vpop.f32.mrb[0].mxu0
      %v572 = vadd.f32 %v488, %v571
      %v573 = vpop.f32.mrb[0].mxu0
      %v574 = vpop.f32.mrb[0].mxu0
      %v575 = vadd.f32 %v488, %v574
      %v576 = vpop.f32.mrb[0].mxu0
      %577 = vmatprep.mubr.bf16.mxu0 0
      %578 = vmatmul.mubr.bf16.gmra.mrb[0].mxu0 %v505
      %v579 = vpop.f32.mrb[0].mxu0
      %v580 = vadd.f32 %v488, %v579
      %v581 = vpop.f32.mrb[0].mxu0
      %v582 = vpop.f32.mrb[0].mxu0
      %v583 = vadd.f32 %v488, %v582
      %v584 = vpop.f32.mrb[0].mxu0
      %585 = vmatprep.mubr.bf16.mxu0 0
      %586 = vmatmul.mubr.bf16.gmra.mrb[0].mxu0 %v508
      %v587 = vpop.f32.mrb[0].mxu0
      %v588 = vadd.f32 %v488, %v587
      %v589 = vpop.f32.mrb[0].mxu0
      %v590 = vpop.f32.mrb[0].mxu0
      %v591 = vadd.f32 %v488, %v590
      %v592 = vpop.f32.mrb[0].mxu0
      %593 = vmatprep.mubr.bf16.mxu0 0
      %594 = vmatmul.mubr.bf16.gmra.mrb[0].mxu0 %v511
      %v595 = vpop.f32.mrb[0].mxu0
      %v596 = vadd.f32 %v488, %v595
      %v597 = vpop.f32.mrb[0].mxu0
      %v598 = vpop.f32.mrb[0].mxu0
      %v599 = vadd.f32 %v488, %v598
      %v600 = vpop.f32.mrb[0].mxu0
      %601 = vmatprep.mubr.bf16.mxu0 0
      %602 = vmatmul.mubr.bf16.gmra.mrb[0].mxu0 %v514
      %v603 = vpop.f32.mrb[0].mxu0
      %v604 = vadd.f32 %v488, %v603
      %v605 = vpop.f32.mrb[0].mxu0
      %v606 = vpop.f32.mrb[0].mxu0
      %v607 = vadd.f32 %v488, %v606
      %v608 = vpop.f32.mrb[0].mxu0
      %609 = vmatprep.mubr.bf16.mxu0 0
      %610 = vmatmul.mubr.bf16.gmra.mrb[0].mxu0 %v517
      %v611 = vpop.f32.mrb[0].mxu0
      %v612 = vadd.f32 %v488, %v611
      %v613 = vpop.f32.mrb[0].mxu0
      %v614 = vpop.f32.mrb[0].mxu0
      %v615 = vadd.f32 %v488, %v614
      %v616 = vpop.f32.mrb[0].mxu0
      %617 = vmatprep.mubr.bf16.mxu0 0
      %618 = vmatmul.mubr.bf16.gmra.mrb[0].mxu0 %v520
      %v619 = vpop.f32.mrb[0].mxu0
      %v620 = vadd.f32 %v488, %v619
      %v621 = vpop.f32.mrb[0].mxu0
      %v622 = vpop.f32.mrb[0].mxu0
      %v623 = vadd.f32 %v488, %v622
      %v624 = vpop.f32.mrb[0].mxu0
      %625 = vdwg.mxu0
      %v626 = vmax.f32 %v564, 0.0
      %v627 = vmax.f32 %v567, 0.0
      %v628 = vmax.f32 %v572, 0.0
      %v629 = vmax.f32 %v575, 0.0
      %v630 = vmax.f32 %v580, 0.0
      %v631 = vmax.f32 %v583, 0.0
      %v632 = vmax.f32 %v588, 0.0
      %v633 = vmax.f32 %v591, 0.0
      %v634 = vmax.f32 %v596, 0.0
      %v635 = vmax.f32 %v599, 0.0
      %v636 = vmax.f32 %v604, 0.0
      %v637 = vmax.f32 %v607, 0.0
      %v638 = vmax.f32 %v612, 0.0
      %v639 = vmax.f32 %v615, 0.0
      %v640 = vmax.f32 %v620, 0.0
      %v641 = vmax.f32 %v623, 0.0
      %v642 = vld [vmem:[%s3] sm:$0xf]
      %v643 = vld [vmem:[%s3 + $0x4] sm:$0xf]
      %v644 = vld [vmem:[%s3 + $0x8] sm:$0xf]
      %v645 = vld [vmem:[%s3 + $0xc] sm:$0xf]
      %v646 = vld [vmem:[%s3 + $0x10] sm:$0xf]
      %v647 = vld [vmem:[%s3 + $0x14] sm:$0xf]
      %v648 = vld [vmem:[%s3 + $0x18] sm:$0xf]
      %v649 = vld [vmem:[%s3 + $0x1c] sm:$0xf]
      %v650 = vld [vmem:[%s11 + $0x1] ss:$0 sm:$0xff]
      %v651 = vpack.c.bf16 %v627, %v626
      %v652 = vpack.c.bf16 %v629, %v628
      %v653 = vpack.c.bf16 %v631, %v630
      %v654 = vpack.c.bf16 %v633, %v632
      %v655 = vpack.c.bf16 %v635, %v634
      %v656 = vpack.c.bf16 %v637, %v636
      %v657 = vpack.c.bf16 %v639, %v638
      %v658 = vpack.c.bf16 %v641, %v640
      %v667 = vunpack.c.l.b16 %v642
      %v668 = vunpack.c.l.b16 %v643
      %v669 = vunpack.c.l.b16 %v644
      %v670 = vunpack.c.l.b16 %v645
      %v671 = vunpack.c.l.b16 %v646
      %v672 = vunpack.c.l.b16 %v647
      %v673 = vunpack.c.l.b16 %v648
      %v674 = vunpack.c.l.b16 %v649
      %v675 = vpack.c.b16 %v668, %v667
      %v676 = vpack.c.b16 %v670, %v669
      %v677 = vpack.c.b16 %v672, %v671
      %v678 = vpack.c.b16 %v674, %v673
      %vm683 = vcmask 523264
      %v685 = vsel %vm683, %v651, 0
      %v688 = vsel %vm683, %v652, 0
      %v691 = vsel %vm683, %v653, 0
      %v694 = vsel %vm683, %v654, 0
      %v697 = vsel %vm683, %v655, 0
      %v700 = vsel %vm683, %v656, 0
      %v703 = vsel %vm683, %v657, 0
      %v706 = vsel %vm683, %v658, 0
      %708 = vmatprep.subr.bf16.mxu0 0
      %709 = vmatpush1.bf16.msra.mxu0 %v675
      %710 = vmatprep.subr.bf16.mxu0 0
      %711 = vmatpush1.bf16.msra.mxu0 %v676
      %712 = vmatprep.subr.bf16.mxu0 0
      %713 = vmatpush1.bf16.msra.mxu0 %v677
      %714 = vmatprep.subr.bf16.mxu0 0
      %715 = vmatpush1.bf16.msra.mxu0 %v678
      %716 = vmatprep.subr.bf16.mxu0 0
      %717 = vmatpush1.bf16.msra.mxu0 0
      %718 = vmatprep.subr.bf16.mxu0 0
      %719 = vmatpush1.bf16.msra.mxu0 0
      %720 = vmatprep.subr.bf16.mxu0 0
      %721 = vmatpush1.bf16.msra.mxu0 0
      %722 = vmatprep.subr.bf16.mxu0 0
      %723 = vmatpush1.bf16.msra.mxu0 0
      %724 = vmatprep.subr.bf16.mxu0 0
      %725 = vmatpush1.bf16.msra.mxu0 0
      %726 = vmatprep.subr.bf16.mxu0 0
      %727 = vmatpush1.bf16.msra.mxu0 0
      %728 = vmatprep.subr.bf16.mxu0 0
      %729 = vmatpush1.bf16.msra.mxu0 0
      %730 = vmatprep.subr.bf16.mxu0 0
      %731 = vmatpush1.bf16.msra.mxu0 0
      %732 = vmatprep.subr.bf16.mxu0 0
      %733 = vmatpush1.bf16.msra.mxu0 0
      %734 = vmatprep.subr.bf16.mxu0 0
      %735 = vmatpush1.bf16.msra.mxu0 0
      %736 = vmatprep.subr.bf16.mxu0 0
      %737 = vmatpush1.bf16.msra.mxu0 0
      %738 = vmatprep.subr.bf16.mxu0 0
      %739 = vmatpush1.bf16.msra.mxu0 0
      %740 = vmatprep.mubr.bf16.mxu0 0
      %741 = vmatmul.mubr.bf16.gmra.mrb[0].mxu0 %v685
      %v742 = vpop.f32.mrb[0].mxu0
      %v743 = vadd.f32 %v650, %v742
      %v744 = vpop.f32.mrb[0].mxu0
      %v745 = vpop.f32.mrb[0].mxu0
      %v746 = vadd.f32 %v650, %v745
      %v747 = vpop.f32.mrb[0].mxu0
      %748 = vmatprep.mubr.bf16.mxu0 0
      %749 = vmatmul.mubr.bf16.gmra.mrb[0].mxu0 %v688
      %v750 = vpop.f32.mrb[0].mxu0
      %v751 = vadd.f32 %v650, %v750
      %v752 = vpop.f32.mrb[0].mxu0
      %v753 = vpop.f32.mrb[0].mxu0
      %v754 = vadd.f32 %v650, %v753
      %v755 = vpop.f32.mrb[0].mxu0
      %756 = vmatprep.mubr.bf16.mxu0 0
      %757 = vmatmul.mubr.bf16.gmra.mrb[0].mxu0 %v691
      %v758 = vpop.f32.mrb[0].mxu0
      %v759 = vadd.f32 %v650, %v758
      %v760 = vpop.f32.mrb[0].mxu0
      %v761 = vpop.f32.mrb[0].mxu0
      %v762 = vadd.f32 %v650, %v761
      %v763 = vpop.f32.mrb[0].mxu0
      %764 = vmatprep.mubr.bf16.mxu0 0
      %765 = vmatmul.mubr.bf16.gmra.mrb[0].mxu0 %v694
      %v766 = vpop.f32.mrb[0].mxu0
      %v767 = vadd.f32 %v650, %v766
      %v768 = vpop.f32.mrb[0].mxu0
      %v769 = vpop.f32.mrb[0].mxu0
      %v770 = vadd.f32 %v650, %v769
      %v771 = vpop.f32.mrb[0].mxu0
      %772 = vmatprep.mubr.bf16.mxu0 0
      %773 = vmatmul.mubr.bf16.gmra.mrb[0].mxu0 %v697
      %v774 = vpop.f32.mrb[0].mxu0
      %v775 = vadd.f32 %v650, %v774
      %v776 = vpop.f32.mrb[0].mxu0
      %v777 = vpop.f32.mrb[0].mxu0
      %v778 = vadd.f32 %v650, %v777
      %v779 = vpop.f32.mrb[0].mxu0
      %780 = vmatprep.mubr.bf16.mxu0 0
      %781 = vmatmul.mubr.bf16.gmra.mrb[0].mxu0 %v700
      %v782 = vpop.f32.mrb[0].mxu0
      %v783 = vadd.f32 %v650, %v782
      %v784 = vpop.f32.mrb[0].mxu0
      %v785 = vpop.f32.mrb[0].mxu0
      %v786 = vadd.f32 %v650, %v785
      %v787 = vpop.f32.mrb[0].mxu0
      %788 = vmatprep.mubr.bf16.mxu0 0
      %789 = vmatmul.mubr.bf16.gmra.mrb[0].mxu0 %v703
      %v790 = vpop.f32.mrb[0].mxu0
      %v791 = vadd.f32 %v650, %v790
      %v792 = vpop.f32.mrb[0].mxu0
      %v793 = vpop.f32.mrb[0].mxu0
      %v794 = vadd.f32 %v650, %v793
      %v795 = vpop.f32.mrb[0].mxu0
      %796 = vmatprep.mubr.bf16.mxu0 0
      %797 = vmatmul.mubr.bf16.gmra.mrb[0].mxu0 %v706
      %v798 = vpop.f32.mrb[0].mxu0
      %v799 = vadd.f32 %v650, %v798
      %v800 = vpop.f32.mrb[0].mxu0
      %v801 = vpop.f32.mrb[0].mxu0
      %v802 = vadd.f32 %v650, %v801
      %v803 = vpop.f32.mrb[0].mxu0
      %804 = vdwg.mxu0
      %v805 = vmax.f32 %v743, 0.0
      %v806 = vmax.f32 %v746, 0.0
      %v807 = vmax.f32 %v751, 0.0
      %v808 = vmax.f32 %v754, 0.0
      %v809 = vmax.f32 %v759, 0.0
      %v810 = vmax.f32 %v762, 0.0
      %v811 = vmax.f32 %v767, 0.0
      %v812 = vmax.f32 %v770, 0.0
      %v813 = vmax.f32 %v775, 0.0
      %v814 = vmax.f32 %v778, 0.0
      %v815 = vmax.f32 %v783, 0.0
      %v816 = vmax.f32 %v786, 0.0
      %v817 = vmax.f32 %v791, 0.0
      %v818 = vmax.f32 %v794, 0.0
      %v819 = vmax.f32 %v799, 0.0
      %v820 = vmax.f32 %v802, 0.0
      %v821 = vld [vmem:[%s4] sm:$0xf]
      %v822 = vld [vmem:[%s4 + $0x4] sm:$0xf]
      %v823 = vld [vmem:[%s4 + $0x8] sm:$0xf]
      %v824 = vld [vmem:[%s4 + $0xc] sm:$0xf]
      %v825 = vld [vmem:[%s4 + $0x10] sm:$0xf]
      %v826 = vld [vmem:[%s4 + $0x14] sm:$0xf]
      %v827 = vld [vmem:[%s4 + $0x18] sm:$0xf]
      %v828 = vld [vmem:[%s4 + $0x1c] sm:$0xf]
      %v829 = vld [vmem:[%s11 + $0x2] ss:$0 sm:$0xff]
      %v830 = vpack.c.bf16 %v806, %v805
      %v831 = vpack.c.bf16 %v808, %v807
      %v832 = vpack.c.bf16 %v810, %v809
      %v833 = vpack.c.bf16 %v812, %v811
      %v834 = vpack.c.bf16 %v814, %v813
      %v835 = vpack.c.bf16 %v816, %v815
      %v836 = vpack.c.bf16 %v818, %v817
      %v837 = vpack.c.bf16 %v820, %v819
      %v846 = vunpack.c.l.b16 %v821
      %v847 = vunpack.c.l.b16 %v822
      %v848 = vunpack.c.l.b16 %v823
      %v849 = vunpack.c.l.b16 %v824
      %v850 = vunpack.c.l.b16 %v825
      %v851 = vunpack.c.l.b16 %v826
      %v852 = vunpack.c.l.b16 %v827
      %v853 = vunpack.c.l.b16 %v828
      %v854 = vpack.c.b16 %v847, %v846
      %v855 = vpack.c.b16 %v849, %v848
      %v856 = vpack.c.b16 %v851, %v850
      %v857 = vpack.c.b16 %v853, %v852
      %v863 = vsel %vm683, %v830, 0
      %v866 = vsel %vm683, %v831, 0
      %v869 = vsel %vm683, %v832, 0
      %v872 = vsel %vm683, %v833, 0
      %v875 = vsel %vm683, %v834, 0
      %v878 = vsel %vm683, %v835, 0
      %v881 = vsel %vm683, %v836, 0
      %v884 = vsel %vm683, %v837, 0
      %886 = vmatprep.subr.bf16.mxu0 0
      %887 = vmatpush1.bf16.msra.mxu0 %v854
      %888 = vmatprep.subr.bf16.mxu0 0
      %889 = vmatpush1.bf16.msra.mxu0 %v855
      %890 = vmatprep.subr.bf16.mxu0 0
      %891 = vmatpush1.bf16.msra.mxu0 %v856
      %892 = vmatprep.subr.bf16.mxu0 0
      %893 = vmatpush1.bf16.msra.mxu0 %v857
      %894 = vmatprep.subr.bf16.mxu0 0
      %895 = vmatpush1.bf16.msra.mxu0 0
      %896 = vmatprep.subr.bf16.mxu0 0
      %897 = vmatpush1.bf16.msra.mxu0 0
      %898 = vmatprep.subr.bf16.mxu0 0
      %899 = vmatpush1.bf16.msra.mxu0 0
      %900 = vmatprep.subr.bf16.mxu0 0
      %901 = vmatpush1.bf16.msra.mxu0 0
      %902 = vmatprep.subr.bf16.mxu0 0
      %903 = vmatpush1.bf16.msra.mxu0 0
      %904 = vmatprep.subr.bf16.mxu0 0
      %905 = vmatpush1.bf16.msra.mxu0 0
      %906 = vmatprep.subr.bf16.mxu0 0
      %907 = vmatpush1.bf16.msra.mxu0 0
      %908 = vmatprep.subr.bf16.mxu0 0
      %909 = vmatpush1.bf16.msra.mxu0 0
      %910 = vmatprep.subr.bf16.mxu0 0
      %911 = vmatpush1.bf16.msra.mxu0 0
      %912 = vmatprep.subr.bf16.mxu0 0
      %913 = vmatpush1.bf16.msra.mxu0 0
      %914 = vmatprep.subr.bf16.mxu0 0
      %915 = vmatpush1.bf16.msra.mxu0 0
      %916 = vmatprep.subr.bf16.mxu0 0
      %917 = vmatpush1.bf16.msra.mxu0 0
      %918 = vmatprep.mubr.bf16.mxu0 0
      %919 = vmatmul.mubr.bf16.gmra.mrb[0].mxu0 %v863
      %v920 = vpop.f32.mrb[0].mxu0
      %v921 = vadd.f32 %v829, %v920
      %v922 = vpop.f32.mrb[0].mxu0
      %v923 = vpop.f32.mrb[0].mxu0
      %v924 = vadd.f32 %v829, %v923
      %v925 = vpop.f32.mrb[0].mxu0
      %926 = vmatprep.mubr.bf16.mxu0 0
      %927 = vmatmul.mubr.bf16.gmra.mrb[0].mxu0 %v866
      %v928 = vpop.f32.mrb[0].mxu0
      %v929 = vadd.f32 %v829, %v928
      %v930 = vpop.f32.mrb[0].mxu0
      %v931 = vpop.f32.mrb[0].mxu0
      %v932 = vadd.f32 %v829, %v931
      %v933 = vpop.f32.mrb[0].mxu0
      %934 = vmatprep.mubr.bf16.mxu0 0
      %935 = vmatmul.mubr.bf16.gmra.mrb[0].mxu0 %v869
      %v936 = vpop.f32.mrb[0].mxu0
      %v937 = vadd.f32 %v829, %v936
      %v938 = vpop.f32.mrb[0].mxu0
      %v939 = vpop.f32.mrb[0].mxu0
      %v940 = vadd.f32 %v829, %v939
      %v941 = vpop.f32.mrb[0].mxu0
      %942 = vmatprep.mubr.bf16.mxu0 0
      %943 = vmatmul.mubr.bf16.gmra.mrb[0].mxu0 %v872
      %v944 = vpop.f32.mrb[0].mxu0
      %v945 = vadd.f32 %v829, %v944
      %v946 = vpop.f32.mrb[0].mxu0
      %v947 = vpop.f32.mrb[0].mxu0
      %v948 = vadd.f32 %v829, %v947
      %v949 = vpop.f32.mrb[0].mxu0
      %950 = vmatprep.mubr.bf16.mxu0 0
      %951 = vmatmul.mubr.bf16.gmra.mrb[0].mxu0 %v875
      %v952 = vpop.f32.mrb[0].mxu0
      %v953 = vadd.f32 %v829, %v952
      %v954 = vpop.f32.mrb[0].mxu0
      %v955 = vpop.f32.mrb[0].mxu0
      %v956 = vadd.f32 %v829, %v955
      %v957 = vpop.f32.mrb[0].mxu0
      %958 = vmatprep.mubr.bf16.mxu0 0
      %959 = vmatmul.mubr.bf16.gmra.mrb[0].mxu0 %v878
      %v960 = vpop.f32.mrb[0].mxu0
      %v961 = vadd.f32 %v829, %v960
      %v962 = vpop.f32.mrb[0].mxu0
      %v963 = vpop.f32.mrb[0].mxu0
      %v964 = vadd.f32 %v829, %v963
      %v965 = vpop.f32.mrb[0].mxu0
      %966 = vmatprep.mubr.bf16.mxu0 0
      %967 = vmatmul.mubr.bf16.gmra.mrb[0].mxu0 %v881
      %v968 = vpop.f32.mrb[0].mxu0
      %v969 = vadd.f32 %v829, %v968
      %v970 = vpop.f32.mrb[0].mxu0
      %v971 = vpop.f32.mrb[0].mxu0
      %v972 = vadd.f32 %v829, %v971
      %v973 = vpop.f32.mrb[0].mxu0
      %974 = vmatprep.mubr.bf16.mxu0 0
      %975 = vmatmul.mubr.bf16.gmra.mrb[0].mxu0 %v884
      %v976 = vpop.f32.mrb[0].mxu0
      %v977 = vadd.f32 %v829, %v976
      %v978 = vpop.f32.mrb[0].mxu0
      %v979 = vpop.f32.mrb[0].mxu0
      %v980 = vadd.f32 %v829, %v979
      %v981 = vpop.f32.mrb[0].mxu0
      %982 = vdwg.mxu0
      %v983 = vmax.f32 %v921, 0.0
      %v984 = vmax.f32 %v924, 0.0
      %v985 = vmax.f32 %v929, 0.0
      %v986 = vmax.f32 %v932, 0.0
      %v987 = vmax.f32 %v937, 0.0
      %v988 = vmax.f32 %v940, 0.0
      %v989 = vmax.f32 %v945, 0.0
      %v990 = vmax.f32 %v948, 0.0
      %v991 = vmax.f32 %v953, 0.0
      %v992 = vmax.f32 %v956, 0.0
      %v993 = vmax.f32 %v961, 0.0
      %v994 = vmax.f32 %v964, 0.0
      %v995 = vmax.f32 %v969, 0.0
      %v996 = vmax.f32 %v972, 0.0
      %v997 = vmax.f32 %v977, 0.0
      %v998 = vmax.f32 %v980, 0.0
      %v999 = vld [vmem:[%s5] sm:$0xf]
      %v1000 = vld [vmem:[%s5 + $0x4] sm:$0xf]
      %v1001 = vld [vmem:[%s5 + $0x8] sm:$0xf]
      %v1002 = vld [vmem:[%s5 + $0xc] sm:$0xf]
      %v1003 = vld [vmem:[%s5 + $0x10] sm:$0xf]
      %v1004 = vld [vmem:[%s5 + $0x14] sm:$0xf]
      %v1005 = vld [vmem:[%s5 + $0x18] sm:$0xf]
      %v1006 = vld [vmem:[%s5 + $0x1c] sm:$0xf]
      %v1007 = vld [vmem:[%s5 + $0x20] sm:$0xf]
      %v1008 = vld [vmem:[%s5 + $0x24] sm:$0xf]
      %v1009 = vld [vmem:[%s5 + $0x28] sm:$0xf]
      %v1010 = vld [vmem:[%s5 + $0x2c] sm:$0xf]
      %v1011 = vld [vmem:[%s5 + $0x30] sm:$0xf]
      %v1012 = vld [vmem:[%s5 + $0x34] sm:$0xf]
      %v1013 = vld [vmem:[%s5 + $0x38] sm:$0xf]
      %v1014 = vld [vmem:[%s5 + $0x3c] sm:$0xf]
      %v1015 = vld [vmem:[%s11 + $0x3] ss:$0 sm:$0xff]
      %v1016 = vpack.c.bf16 %v984, %v983
      %v1017 = vpack.c.bf16 %v986, %v985
      %v1018 = vpack.c.bf16 %v988, %v987
      %v1019 = vpack.c.bf16 %v990, %v989
      %v1020 = vpack.c.bf16 %v992, %v991
      %v1021 = vpack.c.bf16 %v994, %v993
      %v1022 = vpack.c.bf16 %v996, %v995
      %v1023 = vpack.c.bf16 %v998, %v997
      %v1040 = vunpack.c.l.b16 %v999
      %v1041 = vunpack.c.l.b16 %v1000
      %v1042 = vunpack.c.l.b16 %v1001
      %v1043 = vunpack.c.l.b16 %v1002
      %v1044 = vunpack.c.l.b16 %v1003
      %v1045 = vunpack.c.l.b16 %v1004
      %v1046 = vunpack.c.l.b16 %v1005
      %v1047 = vunpack.c.l.b16 %v1006
      %v1048 = vunpack.c.l.b16 %v1007
      %v1049 = vunpack.c.l.b16 %v1008
      %v1050 = vunpack.c.l.b16 %v1009
      %v1051 = vunpack.c.l.b16 %v1010
      %v1052 = vunpack.c.l.b16 %v1011
      %v1053 = vunpack.c.l.b16 %v1012
      %v1054 = vunpack.c.l.b16 %v1013
      %v1055 = vunpack.c.l.b16 %v1014
      %v1056 = vpack.c.b16 %v1041, %v1040
      %v1057 = vpack.c.b16 %v1043, %v1042
      %v1058 = vpack.c.b16 %v1045, %v1044
      %v1059 = vpack.c.b16 %v1047, %v1046
      %v1060 = vpack.c.b16 %v1049, %v1048
      %v1061 = vpack.c.b16 %v1051, %v1050
      %v1062 = vpack.c.b16 %v1053, %v1052
      %v1063 = vpack.c.b16 %v1055, %v1054
      %1072 = vmatprep.subr.bf16.mxu0 0
      %1073 = vmatpush1.bf16.msra.mxu0 %v1056
      %1074 = vmatprep.subr.bf16.mxu0 0
      %1075 = vmatpush1.bf16.msra.mxu0 %v1057
      %1076 = vmatprep.subr.bf16.mxu0 0
      %1077 = vmatpush1.bf16.msra.mxu0 %v1058
      %1078 = vmatprep.subr.bf16.mxu0 0
      %1079 = vmatpush1.bf16.msra.mxu0 %v1059
      %1080 = vmatprep.subr.bf16.mxu0 0
      %1081 = vmatpush1.bf16.msra.mxu0 %v1060
      %1082 = vmatprep.subr.bf16.mxu0 0
      %1083 = vmatpush1.bf16.msra.mxu0 %v1061
      %1084 = vmatprep.subr.bf16.mxu0 0
      %1085 = vmatpush1.bf16.msra.mxu0 %v1062
      %1086 = vmatprep.subr.bf16.mxu0 0
      %1087 = vmatpush1.bf16.msra.mxu0 %v1063
      %1088 = vmatprep.subr.bf16.mxu0 0
      %1089 = vmatpush1.bf16.msra.mxu0 0
      %1090 = vmatprep.subr.bf16.mxu0 0
      %1091 = vmatpush1.bf16.msra.mxu0 0
      %1092 = vmatprep.subr.bf16.mxu0 0
      %1093 = vmatpush1.bf16.msra.mxu0 0
      %1094 = vmatprep.subr.bf16.mxu0 0
      %1095 = vmatpush1.bf16.msra.mxu0 0
      %1096 = vmatprep.subr.bf16.mxu0 0
      %1097 = vmatpush1.bf16.msra.mxu0 0
      %1098 = vmatprep.subr.bf16.mxu0 0
      %1099 = vmatpush1.bf16.msra.mxu0 0
      %1100 = vmatprep.subr.bf16.mxu0 0
      %1101 = vmatpush1.bf16.msra.mxu0 0
      %1102 = vmatprep.subr.bf16.mxu0 0
      %1103 = vmatpush1.bf16.msra.mxu0 0
      %1104 = vmatprep.mubr.bf16.mxu0 0
      %1105 = vmatmul.mubr.bf16.gmra.mrb[0].mxu0 %v1016
      %v1106 = vpop.f32.mrb[0].mxu0
      %v1107 = vadd.f32 %v1015, %v1106
      %v1108 = vpop.f32.mrb[0].mxu0
      %v1109 = vpop.f32.mrb[0].mxu0
      %v1110 = vadd.f32 %v1015, %v1109
      %v1111 = vpop.f32.mrb[0].mxu0
      %1112 = vmatprep.mubr.bf16.mxu0 0
      %1113 = vmatmul.mubr.bf16.gmra.mrb[0].mxu0 %v1017
      %v1114 = vpop.f32.mrb[0].mxu0
      %v1115 = vadd.f32 %v1015, %v1114
      %v1116 = vpop.f32.mrb[0].mxu0
      %v1117 = vpop.f32.mrb[0].mxu0
      %v1118 = vadd.f32 %v1015, %v1117
      %v1119 = vpop.f32.mrb[0].mxu0
      %1120 = vmatprep.mubr.bf16.mxu0 0
      %1121 = vmatmul.mubr.bf16.gmra.mrb[0].mxu0 %v1018
      %v1122 = vpop.f32.mrb[0].mxu0
      %v1123 = vadd.f32 %v1015, %v1122
      %v1124 = vpop.f32.mrb[0].mxu0
      %v1125 = vpop.f32.mrb[0].mxu0
      %v1126 = vadd.f32 %v1015, %v1125
      %v1127 = vpop.f32.mrb[0].mxu0
      %1128 = vmatprep.mubr.bf16.mxu0 0
      %1129 = vmatmul.mubr.bf16.gmra.mrb[0].mxu0 %v1019
      %v1130 = vpop.f32.mrb[0].mxu0
      %v1131 = vadd.f32 %v1015, %v1130
      %v1132 = vpop.f32.mrb[0].mxu0
      %v1133 = vpop.f32.mrb[0].mxu0
      %v1134 = vadd.f32 %v1015, %v1133
      %v1135 = vpop.f32.mrb[0].mxu0
      %1136 = vmatprep.mubr.bf16.mxu0 0
      %1137 = vmatmul.mubr.bf16.gmra.mrb[0].mxu0 %v1020
      %v1138 = vpop.f32.mrb[0].mxu0
      %v1139 = vadd.f32 %v1015, %v1138
      %v1140 = vpop.f32.mrb[0].mxu0
      %v1141 = vpop.f32.mrb[0].mxu0
      %v1142 = vadd.f32 %v1015, %v1141
      %v1143 = vpop.f32.mrb[0].mxu0
      %1144 = vmatprep.mubr.bf16.mxu0 0
      %1145 = vmatmul.mubr.bf16.gmra.mrb[0].mxu0 %v1021
      %v1146 = vpop.f32.mrb[0].mxu0
      %v1147 = vadd.f32 %v1015, %v1146
      %v1148 = vpop.f32.mrb[0].mxu0
      %v1149 = vpop.f32.mrb[0].mxu0
      %v1150 = vadd.f32 %v1015, %v1149
      %v1151 = vpop.f32.mrb[0].mxu0
      %1152 = vmatprep.mubr.bf16.mxu0 0
      %1153 = vmatmul.mubr.bf16.gmra.mrb[0].mxu0 %v1022
      %v1154 = vpop.f32.mrb[0].mxu0
      %v1155 = vadd.f32 %v1015, %v1154
      %v1156 = vpop.f32.mrb[0].mxu0
      %v1157 = vpop.f32.mrb[0].mxu0
      %v1158 = vadd.f32 %v1015, %v1157
      %v1159 = vpop.f32.mrb[0].mxu0
      %1160 = vmatprep.mubr.bf16.mxu0 0
      %1161 = vmatmul.mubr.bf16.gmra.mrb[0].mxu0 %v1023
      %v1162 = vpop.f32.mrb[0].mxu0
      %v1163 = vadd.f32 %v1015, %v1162
      %v1164 = vpop.f32.mrb[0].mxu0
      %v1165 = vpop.f32.mrb[0].mxu0
      %v1166 = vadd.f32 %v1015, %v1165
      %v1167 = vpop.f32.mrb[0].mxu0
      %1168 = vdwg.mxu0
      %v1169 = vmax.f32 %v1107, 0.0
      %v1170 = vmax.f32 %v1110, 0.0
      %v1171 = vmax.f32 %v1115, 0.0
      %v1172 = vmax.f32 %v1118, 0.0
      %v1173 = vmax.f32 %v1123, 0.0
      %v1174 = vmax.f32 %v1126, 0.0
      %v1175 = vmax.f32 %v1131, 0.0
      %v1176 = vmax.f32 %v1134, 0.0
      %v1177 = vmax.f32 %v1139, 0.0
      %v1178 = vmax.f32 %v1142, 0.0
      %v1179 = vmax.f32 %v1147, 0.0
      %v1180 = vmax.f32 %v1150, 0.0
      %v1181 = vmax.f32 %v1155, 0.0
      %v1182 = vmax.f32 %v1158, 0.0
      %v1183 = vmax.f32 %v1163, 0.0
      %v1184 = vmax.f32 %v1166, 0.0
      %v1185 = vld [vmem:[%s6] sm:$0xff]
      %v1186 = vld [vmem:[%s6 + $0x8] sm:$0xff]
      %v1187 = vld [vmem:[%s6 + $0x10] sm:$0xff]
      %v1188 = vld [vmem:[%s6 + $0x18] sm:$0xff]
      %v1189 = vld [vmem:[%s6 + $0x20] sm:$0xff]
      %v1190 = vld [vmem:[%s6 + $0x28] sm:$0xff]
      %v1191 = vld [vmem:[%s6 + $0x30] sm:$0xff]
      %v1192 = vld [vmem:[%s6 + $0x38] sm:$0xff]
      %v1193 = vld [vmem:[%s6 + $0x40] sm:$0xff]
      %v1194 = vld [vmem:[%s6 + $0x48] sm:$0xff]
      %v1195 = vld [vmem:[%s6 + $0x50] sm:$0xff]
      %v1196 = vld [vmem:[%s6 + $0x58] sm:$0xff]
      %v1197 = vld [vmem:[%s6 + $0x60] sm:$0xff]
      %v1198 = vld [vmem:[%s6 + $0x68] sm:$0xff]
      %v1199 = vld [vmem:[%s6 + $0x70] sm:$0xff]
      %v1200 = vld [vmem:[%s6 + $0x78] sm:$0xff]
      %v1201 = vld [vmem:[%s6 + $0x80] sm:$0xff]
      %v1202 = vld [vmem:[%s6 + $0x88] sm:$0xff]
      %v1203 = vld [vmem:[%s6 + $0x90] sm:$0xff]
      %v1204 = vld [vmem:[%s6 + $0x98] sm:$0xff]
      %v1205 = vld [vmem:[%s6 + $0xa0] sm:$0xff]
      %v1206 = vld [vmem:[%s6 + $0xa8] sm:$0xff]
      %v1207 = vld [vmem:[%s6 + $0xb0] sm:$0xff]
      %v1208 = vld [vmem:[%s6 + $0xb8] sm:$0xff]
      %v1209 = vld [vmem:[%s6 + $0xc0] sm:$0xff]
      %v1210 = vld [vmem:[%s6 + $0xc8] sm:$0xff]
      %v1211 = vld [vmem:[%s6 + $0xd0] sm:$0xff]
      %v1212 = vld [vmem:[%s6 + $0xd8] sm:$0xff]
      %v1213 = vld [vmem:[%s6 + $0xe0] sm:$0xff]
      %v1214 = vld [vmem:[%s6 + $0xe8] sm:$0xff]
      %v1215 = vld [vmem:[%s6 + $0xf0] sm:$0xff]
      %v1216 = vld [vmem:[%s6 + $0xf8] sm:$0xff]
      %v1217 = vld [vmem:[%s6 + $0x100] sm:$0xff]
      %v1218 = vld [vmem:[%s6 + $0x108] sm:$0xff]
      %v1219 = vld [vmem:[%s6 + $0x110] sm:$0xff]
      %v1220 = vld [vmem:[%s6 + $0x118] sm:$0xff]
      %v1221 = vld [vmem:[%s6 + $0x120] sm:$0xff]
      %v1222 = vld [vmem:[%s6 + $0x128] sm:$0xff]
      %v1223 = vld [vmem:[%s6 + $0x130] sm:$0xff]
      %v1224 = vld [vmem:[%s6 + $0x138] sm:$0xff]
      %v1225 = vld [vmem:[%s6 + $0x140] sm:$0xff]
      %v1226 = vld [vmem:[%s6 + $0x148] sm:$0xff]
      %v1227 = vld [vmem:[%s6 + $0x150] sm:$0xff]
      %v1228 = vld [vmem:[%s6 + $0x158] sm:$0xff]
      %v1229 = vld [vmem:[%s6 + $0x160] sm:$0xff]
      %v1230 = vld [vmem:[%s6 + $0x168] sm:$0xff]
      %v1231 = vld [vmem:[%s6 + $0x170] sm:$0xff]
      %v1232 = vld [vmem:[%s6 + $0x178] sm:$0xff]
      %v1233 = vld [vmem:[%s6 + $0x180] sm:$0xff]
      %v1234 = vld [vmem:[%s6 + $0x188] sm:$0xff]
      %v1235 = vld [vmem:[%s6 + $0x190] sm:$0xff]
      %v1236 = vld [vmem:[%s6 + $0x198] sm:$0xff]
      %v1237 = vld [vmem:[%s6 + $0x1a0] sm:$0xff]
      %v1238 = vld [vmem:[%s6 + $0x1a8] sm:$0xff]
      %v1239 = vld [vmem:[%s6 + $0x1b0] sm:$0xff]
      %v1240 = vld [vmem:[%s6 + $0x1b8] sm:$0xff]
      %v1241 = vld [vmem:[%s6 + $0x1c0] sm:$0xff]
      %v1242 = vld [vmem:[%s6 + $0x1c8] sm:$0xff]
      %v1243 = vld [vmem:[%s6 + $0x1d0] sm:$0xff]
      %v1244 = vld [vmem:[%s6 + $0x1d8] sm:$0xff]
      %v1245 = vld [vmem:[%s6 + $0x1e0] sm:$0xff]
      %v1246 = vld [vmem:[%s6 + $0x1e8] sm:$0xff]
      %v1247 = vld [vmem:[%s6 + $0x1f0] sm:$0xff]
      %v1248 = vld [vmem:[%s6 + $0x1f8] sm:$0xff]
      %s1249 = scalar_lea.vmem %s11, 4
      %v1250 = vld [vmem:[%s1249] ss:$8 sm:$0xf]
      %v1251 = vld [vmem:[%s1249] ss:$8 sm:$0xf0]
      %v1252 = vor.u32 %v1250, %v1251
      %v1253 = vpack.c.bf16 %v1170, %v1169
      %v1254 = vpack.c.bf16 %v1172, %v1171
      %v1255 = vpack.c.bf16 %v1174, %v1173
      %v1256 = vpack.c.bf16 %v1176, %v1175
      %v1257 = vpack.c.bf16 %v1178, %v1177
      %v1258 = vpack.c.bf16 %v1180, %v1179
      %v1259 = vpack.c.bf16 %v1182, %v1181
      %v1260 = vpack.c.bf16 %v1184, %v1183
      %v1262 = vlaneseq
      %v1263 = vshrl.u32 %v1262, 7
      %v1264 = vsub.s32 0, %v1263
      %v1265 = vrot.slane %v1252, %v1264
      %v1266 = vlaneseq
      %v1267 = vshrl.u32 %v1266, 7
      %v1268 = vsub.s32 1, %v1267
      %v1269 = vrot.slane %v1252, %v1268
      %v1270 = vlaneseq
      %v1271 = vshrl.u32 %v1270, 7
      %v1272 = vsub.s32 2, %v1271
      %v1273 = vrot.slane %v1252, %v1272
      %v1274 = vlaneseq
      %v1275 = vshrl.u32 %v1274, 7
      %v1276 = vsub.s32 3, %v1275
      %v1277 = vrot.slane %v1252, %v1276
      %v1278 = vlaneseq
      %v1279 = vshrl.u32 %v1278, 7
      %v1280 = vsub.s32 4, %v1279
      %v1281 = vrot.slane %v1252, %v1280
      %v1282 = vlaneseq
      %v1283 = vshrl.u32 %v1282, 7
      %v1284 = vsub.s32 5, %v1283
      %v1285 = vrot.slane %v1252, %v1284
      %v1286 = vlaneseq
      %v1287 = vshrl.u32 %v1286, 7
      %v1288 = vsub.s32 6, %v1287
      %v1289 = vrot.slane %v1252, %v1288
      %v1290 = vlaneseq
      %v1291 = vshrl.u32 %v1290, 7
      %v1292 = vsub.s32 7, %v1291
      %v1293 = vrot.slane %v1252, %v1292
      %v1366 = vunpack.c.l.b16 %v1185
      %v1367 = vunpack.c.h.b16 %v1185
      %v1368 = vunpack.c.l.b16 %v1186
      %v1369 = vunpack.c.h.b16 %v1186
      %v1370 = vunpack.c.l.b16 %v1187
      %v1371 = vunpack.c.h.b16 %v1187
      %v1372 = vunpack.c.l.b16 %v1188
      %v1373 = vunpack.c.h.b16 %v1188
      %v1374 = vunpack.c.l.b16 %v1189
      %v1375 = vunpack.c.h.b16 %v1189
      %v1376 = vunpack.c.l.b16 %v1190
      %v1377 = vunpack.c.h.b16 %v1190
      %v1378 = vunpack.c.l.b16 %v1191
      %v1379 = vunpack.c.h.b16 %v1191
      %v1380 = vunpack.c.l.b16 %v1192
      %v1381 = vunpack.c.h.b16 %v1192
      %v1382 = vunpack.c.l.b16 %v1193
      %v1383 = vunpack.c.h.b16 %v1193
      %v1384 = vunpack.c.l.b16 %v1194
      %v1385 = vunpack.c.h.b16 %v1194
      %v1386 = vunpack.c.l.b16 %v1195
      %v1387 = vunpack.c.h.b16 %v1195
      %v1388 = vunpack.c.l.b16 %v1196
      %v1389 = vunpack.c.h.b16 %v1196
      %v1390 = vunpack.c.l.b16 %v1197
      %v1391 = vunpack.c.h.b16 %v1197
      %v1392 = vunpack.c.l.b16 %v1198
      %v1393 = vunpack.c.h.b16 %v1198
      %v1394 = vunpack.c.l.b16 %v1199
      %v1395 = vunpack.c.h.b16 %v1199
      %v1396 = vunpack.c.l.b16 %v1200
      %v1397 = vunpack.c.h.b16 %v1200
      %v1398 = vunpack.c.l.b16 %v1201
      %v1399 = vunpack.c.h.b16 %v1201
      %v1400 = vunpack.c.l.b16 %v1202
      %v1401 = vunpack.c.h.b16 %v1202
      %v1402 = vunpack.c.l.b16 %v1203
      %v1403 = vunpack.c.h.b16 %v1203
      %v1404 = vunpack.c.l.b16 %v1204
      %v1405 = vunpack.c.h.b16 %v1204
      %v1406 = vunpack.c.l.b16 %v1205
      %v1407 = vunpack.c.h.b16 %v1205
      %v1408 = vunpack.c.l.b16 %v1206
      %v1409 = vunpack.c.h.b16 %v1206
      %v1410 = vunpack.c.l.b16 %v1207
      %v1411 = vunpack.c.h.b16 %v1207
      %v1412 = vunpack.c.l.b16 %v1208
      %v1413 = vunpack.c.h.b16 %v1208
      %v1414 = vunpack.c.l.b16 %v1209
      %v1415 = vunpack.c.h.b16 %v1209
      %v1416 = vunpack.c.l.b16 %v1210
      %v1417 = vunpack.c.h.b16 %v1210
      %v1418 = vunpack.c.l.b16 %v1211
      %v1419 = vunpack.c.h.b16 %v1211
      %v1420 = vunpack.c.l.b16 %v1212
      %v1421 = vunpack.c.h.b16 %v1212
      %v1422 = vunpack.c.l.b16 %v1213
      %v1423 = vunpack.c.h.b16 %v1213
      %v1424 = vunpack.c.l.b16 %v1214
      %v1425 = vunpack.c.h.b16 %v1214
      %v1426 = vunpack.c.l.b16 %v1215
      %v1427 = vunpack.c.h.b16 %v1215
      %v1428 = vunpack.c.l.b16 %v1216
      %v1429 = vunpack.c.h.b16 %v1216
      %v1430 = vunpack.c.l.b16 %v1217
      %v1431 = vunpack.c.h.b16 %v1217
      %v1432 = vunpack.c.l.b16 %v1218
      %v1433 = vunpack.c.h.b16 %v1218
      %v1434 = vunpack.c.l.b16 %v1219
      %v1435 = vunpack.c.h.b16 %v1219
      %v1436 = vunpack.c.l.b16 %v1220
      %v1437 = vunpack.c.h.b16 %v1220
      %v1438 = vunpack.c.l.b16 %v1221
      %v1439 = vunpack.c.h.b16 %v1221
      %v1440 = vunpack.c.l.b16 %v1222
      %v1441 = vunpack.c.h.b16 %v1222
      %v1442 = vunpack.c.l.b16 %v1223
      %v1443 = vunpack.c.h.b16 %v1223
      %v1444 = vunpack.c.l.b16 %v1224
      %v1445 = vunpack.c.h.b16 %v1224
      %v1446 = vunpack.c.l.b16 %v1225
      %v1447 = vunpack.c.h.b16 %v1225
      %v1448 = vunpack.c.l.b16 %v1226
      %v1449 = vunpack.c.h.b16 %v1226
      %v1450 = vunpack.c.l.b16 %v1227
      %v1451 = vunpack.c.h.b16 %v1227
      %v1452 = vunpack.c.l.b16 %v1228
      %v1453 = vunpack.c.h.b16 %v1228
      %v1454 = vunpack.c.l.b16 %v1229
      %v1455 = vunpack.c.h.b16 %v1229
      %v1456 = vunpack.c.l.b16 %v1230
      %v1457 = vunpack.c.h.b16 %v1230
      %v1458 = vunpack.c.l.b16 %v1231
      %v1459 = vunpack.c.h.b16 %v1231
      %v1460 = vunpack.c.l.b16 %v1232
      %v1461 = vunpack.c.h.b16 %v1232
      %v1462 = vunpack.c.l.b16 %v1233
      %v1463 = vunpack.c.h.b16 %v1233
      %v1464 = vunpack.c.l.b16 %v1234
      %v1465 = vunpack.c.h.b16 %v1234
      %v1466 = vunpack.c.l.b16 %v1235
      %v1467 = vunpack.c.h.b16 %v1235
      %v1468 = vunpack.c.l.b16 %v1236
      %v1469 = vunpack.c.h.b16 %v1236
      %v1470 = vunpack.c.l.b16 %v1237
      %v1471 = vunpack.c.h.b16 %v1237
      %v1472 = vunpack.c.l.b16 %v1238
      %v1473 = vunpack.c.h.b16 %v1238
      %v1474 = vunpack.c.l.b16 %v1239
      %v1475 = vunpack.c.h.b16 %v1239
      %v1476 = vunpack.c.l.b16 %v1240
      %v1477 = vunpack.c.h.b16 %v1240
      %v1478 = vunpack.c.l.b16 %v1241
      %v1479 = vunpack.c.h.b16 %v1241
      %v1480 = vunpack.c.l.b16 %v1242
      %v1481 = vunpack.c.h.b16 %v1242
      %v1482 = vunpack.c.l.b16 %v1243
      %v1483 = vunpack.c.h.b16 %v1243
      %v1484 = vunpack.c.l.b16 %v1244
      %v1485 = vunpack.c.h.b16 %v1244
      %v1486 = vunpack.c.l.b16 %v1245
      %v1487 = vunpack.c.h.b16 %v1245
      %v1488 = vunpack.c.l.b16 %v1246
      %v1489 = vunpack.c.h.b16 %v1246
      %v1490 = vunpack.c.l.b16 %v1247
      %v1491 = vunpack.c.h.b16 %v1247
      %v1492 = vunpack.c.l.b16 %v1248
      %v1493 = vunpack.c.h.b16 %v1248
      %v1494 = vpack.c.b16 %v1374, %v1366
      %v1495 = vpack.c.b16 %v1375, %v1367
      %v1496 = vpack.c.b16 %v1376, %v1368
      %v1497 = vpack.c.b16 %v1377, %v1369
      %v1498 = vpack.c.b16 %v1378, %v1370
      %v1499 = vpack.c.b16 %v1379, %v1371
      %v1500 = vpack.c.b16 %v1380, %v1372
      %v1501 = vpack.c.b16 %v1381, %v1373
      %v1502 = vpack.c.b16 %v1390, %v1382
      %v1503 = vpack.c.b16 %v1391, %v1383
      %v1504 = vpack.c.b16 %v1392, %v1384
      %v1505 = vpack.c.b16 %v1393, %v1385
      %v1506 = vpack.c.b16 %v1394, %v1386
      %v1507 = vpack.c.b16 %v1395, %v1387
      %v1508 = vpack.c.b16 %v1396, %v1388
      %v1509 = vpack.c.b16 %v1397, %v1389
      %v1510 = vpack.c.b16 %v1406, %v1398
      %v1511 = vpack.c.b16 %v1407, %v1399
      %v1512 = vpack.c.b16 %v1408, %v1400
      %v1513 = vpack.c.b16 %v1409, %v1401
      %v1514 = vpack.c.b16 %v1410, %v1402
      %v1515 = vpack.c.b16 %v1411, %v1403
      %v1516 = vpack.c.b16 %v1412, %v1404
      %v1517 = vpack.c.b16 %v1413, %v1405
      %v1518 = vpack.c.b16 %v1422, %v1414
      %v1519 = vpack.c.b16 %v1423, %v1415
      %v1520 = vpack.c.b16 %v1424, %v1416
      %v1521 = vpack.c.b16 %v1425, %v1417
      %v1522 = vpack.c.b16 %v1426, %v1418
      %v1523 = vpack.c.b16 %v1427, %v1419
      %v1524 = vpack.c.b16 %v1428, %v1420
      %v1525 = vpack.c.b16 %v1429, %v1421
      %v1526 = vpack.c.b16 %v1438, %v1430
      %v1527 = vpack.c.b16 %v1439, %v1431
      %v1528 = vpack.c.b16 %v1440, %v1432
      %v1529 = vpack.c.b16 %v1441, %v1433
      %v1530 = vpack.c.b16 %v1442, %v1434
      %v1531 = vpack.c.b16 %v1443, %v1435
      %v1532 = vpack.c.b16 %v1444, %v1436
      %v1533 = vpack.c.b16 %v1445, %v1437
      %v1534 = vpack.c.b16 %v1454, %v1446
      %v1535 = vpack.c.b16 %v1455, %v1447
      %v1536 = vpack.c.b16 %v1456, %v1448
      %v1537 = vpack.c.b16 %v1457, %v1449
      %v1538 = vpack.c.b16 %v1458, %v1450
      %v1539 = vpack.c.b16 %v1459, %v1451
      %v1540 = vpack.c.b16 %v1460, %v1452
      %v1541 = vpack.c.b16 %v1461, %v1453
      %v1542 = vpack.c.b16 %v1470, %v1462
      %v1543 = vpack.c.b16 %v1471, %v1463
      %v1544 = vpack.c.b16 %v1472, %v1464
      %v1545 = vpack.c.b16 %v1473, %v1465
      %v1546 = vpack.c.b16 %v1474, %v1466
      %v1547 = vpack.c.b16 %v1475, %v1467
      %v1548 = vpack.c.b16 %v1476, %v1468
      %v1549 = vpack.c.b16 %v1477, %v1469
      %v1550 = vpack.c.b16 %v1486, %v1478
      %v1551 = vpack.c.b16 %v1487, %v1479
      %v1552 = vpack.c.b16 %v1488, %v1480
      %v1553 = vpack.c.b16 %v1489, %v1481
      %v1554 = vpack.c.b16 %v1490, %v1482
      %v1555 = vpack.c.b16 %v1491, %v1483
      %v1556 = vpack.c.b16 %v1492, %v1484
      %v1557 = vpack.c.b16 %v1493, %v1485
      %1622 = vmatprep.subr.bf16.mxu0 %v1495
      %1623 = vmatpush1.bf16.msra.mxu0 %v1494
      %1624 = vmatprep.subr.bf16.mxu0 %v1503
      %1625 = vmatpush1.bf16.msra.mxu0 %v1502
      %1626 = vmatprep.subr.bf16.mxu0 %v1511
      %1627 = vmatpush1.bf16.msra.mxu0 %v1510
      %1628 = vmatprep.subr.bf16.mxu0 %v1519
      %1629 = vmatpush1.bf16.msra.mxu0 %v1518
      %1630 = vmatprep.subr.bf16.mxu0 %v1527
      %1631 = vmatpush1.bf16.msra.mxu0 %v1526
      %1632 = vmatprep.subr.bf16.mxu0 %v1535
      %1633 = vmatpush1.bf16.msra.mxu0 %v1534
      %1634 = vmatprep.subr.bf16.mxu0 %v1543
      %1635 = vmatpush1.bf16.msra.mxu0 %v1542
      %1636 = vmatprep.subr.bf16.mxu0 %v1551
      %1637 = vmatpush1.bf16.msra.mxu0 %v1550
      %1638 = vmatprep.subr.bf16.mxu0 0
      %1639 = vmatpush1.bf16.msra.mxu0 0
      %1640 = vmatprep.subr.bf16.mxu0 0
      %1641 = vmatpush1.bf16.msra.mxu0 0
      %1642 = vmatprep.subr.bf16.mxu0 0
      %1643 = vmatpush1.bf16.msra.mxu0 0
      %1644 = vmatprep.subr.bf16.mxu0 0
      %1645 = vmatpush1.bf16.msra.mxu0 0
      %1646 = vmatprep.subr.bf16.mxu0 0
      %1647 = vmatpush1.bf16.msra.mxu0 0
      %1648 = vmatprep.subr.bf16.mxu0 0
      %1649 = vmatpush1.bf16.msra.mxu0 0
      %1650 = vmatprep.subr.bf16.mxu0 0
      %1651 = vmatpush1.bf16.msra.mxu0 0
      %1652 = vmatprep.subr.bf16.mxu0 0
      %1653 = vmatpush1.bf16.msra.mxu0 0
      %1654 = vmatprep.mubr.bf16.mxu0 0
      %1655 = vmatmul.mubr.bf16.gmra.mrb[0].mxu0 %v1253
      %v1656 = vpop.f32.mrb[0].mxu0
      %v1657 = vadd.f32 %v1265, %v1656
      %v1658 = vpop.f32.mrb[0].mxu0
      %v1659 = vadd.f32 %v1269, %v1658
      %v1660 = vpop.f32.mrb[0].mxu0
      %v1661 = vadd.f32 %v1265, %v1660
      %v1662 = vpop.f32.mrb[0].mxu0
      %v1663 = vadd.f32 %v1269, %v1662
      %1664 = vmatprep.mubr.bf16.mxu0 0
      %1665 = vmatmul.mubr.bf16.gmra.mrb[0].mxu0 %v1254
      %v1666 = vpop.f32.mrb[0].mxu0
      %v1667 = vadd.f32 %v1265, %v1666
      %v1668 = vpop.f32.mrb[0].mxu0
      %v1669 = vadd.f32 %v1269, %v1668
      %v1670 = vpop.f32.mrb[0].mxu0
      %v1671 = vadd.f32 %v1265, %v1670
      %v1672 = vpop.f32.mrb[0].mxu0
      %v1673 = vadd.f32 %v1269, %v1672
      %1674 = vmatprep.mubr.bf16.mxu0 0
      %1675 = vmatmul.mubr.bf16.gmra.mrb[0].mxu0 %v1255
      %v1676 = vpop.f32.mrb[0].mxu0
      %v1677 = vadd.f32 %v1265, %v1676
      %v1678 = vpop.f32.mrb[0].mxu0
      %v1679 = vadd.f32 %v1269, %v1678
      %v1680 = vpop.f32.mrb[0].mxu0
      %v1681 = vadd.f32 %v1265, %v1680
      %v1682 = vpop.f32.mrb[0].mxu0
      %v1683 = vadd.f32 %v1269, %v1682
      %1684 = vmatprep.mubr.bf16.mxu0 0
      %1685 = vmatmul.mubr.bf16.gmra.mrb[0].mxu0 %v1256
      %v1686 = vpop.f32.mrb[0].mxu0
      %v1687 = vadd.f32 %v1265, %v1686
      %v1688 = vpop.f32.mrb[0].mxu0
      %v1689 = vadd.f32 %v1269, %v1688
      %v1690 = vpop.f32.mrb[0].mxu0
      %v1691 = vadd.f32 %v1265, %v1690
      %v1692 = vpop.f32.mrb[0].mxu0
      %v1693 = vadd.f32 %v1269, %v1692
      %1694 = vmatprep.mubr.bf16.mxu0 0
      %1695 = vmatmul.mubr.bf16.gmra.mrb[0].mxu0 %v1257
      %v1696 = vpop.f32.mrb[0].mxu0
      %v1697 = vadd.f32 %v1265, %v1696
      %v1698 = vpop.f32.mrb[0].mxu0
      %v1699 = vadd.f32 %v1269, %v1698
      %v1700 = vpop.f32.mrb[0].mxu0
      %v1701 = vadd.f32 %v1265, %v1700
      %v1702 = vpop.f32.mrb[0].mxu0
      %v1703 = vadd.f32 %v1269, %v1702
      %1704 = vmatprep.mubr.bf16.mxu0 0
      %1705 = vmatmul.mubr.bf16.gmra.mrb[0].mxu0 %v1258
      %v1706 = vpop.f32.mrb[0].mxu0
      %v1707 = vadd.f32 %v1265, %v1706
      %v1708 = vpop.f32.mrb[0].mxu0
      %v1709 = vadd.f32 %v1269, %v1708
      %v1710 = vpop.f32.mrb[0].mxu0
      %v1711 = vadd.f32 %v1265, %v1710
      %v1712 = vpop.f32.mrb[0].mxu0
      %v1713 = vadd.f32 %v1269, %v1712
      %1714 = vmatprep.mubr.bf16.mxu0 0
      %1715 = vmatmul.mubr.bf16.gmra.mrb[0].mxu0 %v1259
      %v1716 = vpop.f32.mrb[0].mxu0
      %v1717 = vadd.f32 %v1265, %v1716
      %v1718 = vpop.f32.mrb[0].mxu0
      %v1719 = vadd.f32 %v1269, %v1718
      %v1720 = vpop.f32.mrb[0].mxu0
      %v1721 = vadd.f32 %v1265, %v1720
      %v1722 = vpop.f32.mrb[0].mxu0
      %v1723 = vadd.f32 %v1269, %v1722
      %1724 = vmatprep.mubr.bf16.mxu0 0
      %1725 = vmatmul.mubr.bf16.gmra.mrb[0].mxu0 %v1260
      %v1726 = vpop.f32.mrb[0].mxu0
      %v1727 = vadd.f32 %v1265, %v1726
      %v1728 = vpop.f32.mrb[0].mxu0
      %v1729 = vadd.f32 %v1269, %v1728
      %v1730 = vpop.f32.mrb[0].mxu0
      %v1731 = vadd.f32 %v1265, %v1730
      %v1732 = vpop.f32.mrb[0].mxu0
      %v1733 = vadd.f32 %v1269, %v1732
      %1734 = vdwg.mxu0
      %1735 = vmatprep.subr.bf16.mxu0 %v1497
      %1736 = vmatpush1.bf16.msra.mxu0 %v1496
      %1737 = vmatprep.subr.bf16.mxu0 %v1505
      %1738 = vmatpush1.bf16.msra.mxu0 %v1504
      %1739 = vmatprep.subr.bf16.mxu0 %v1513
      %1740 = vmatpush1.bf16.msra.mxu0 %v1512
      %1741 = vmatprep.subr.bf16.mxu0 %v1521
      %1742 = vmatpush1.bf16.msra.mxu0 %v1520
      %1743 = vmatprep.subr.bf16.mxu0 %v1529
      %1744 = vmatpush1.bf16.msra.mxu0 %v1528
      %1745 = vmatprep.subr.bf16.mxu0 %v1537
      %1746 = vmatpush1.bf16.msra.mxu0 %v1536
      %1747 = vmatprep.subr.bf16.mxu0 %v1545
      %1748 = vmatpush1.bf16.msra.mxu0 %v1544
      %1749 = vmatprep.subr.bf16.mxu0 %v1553
      %1750 = vmatpush1.bf16.msra.mxu0 %v1552
      %1751 = vmatprep.subr.bf16.mxu0 0
      %1752 = vmatpush1.bf16.msra.mxu0 0
      %1753 = vmatprep.subr.bf16.mxu0 0
      %1754 = vmatpush1.bf16.msra.mxu0 0
      %1755 = vmatprep.subr.bf16.mxu0 0
      %1756 = vmatpush1.bf16.msra.mxu0 0
      %1757 = vmatprep.subr.bf16.mxu0 0
      %1758 = vmatpush1.bf16.msra.mxu0 0
      %1759 = vmatprep.subr.bf16.mxu0 0
      %1760 = vmatpush1.bf16.msra.mxu0 0
      %1761 = vmatprep.subr.bf16.mxu0 0
      %1762 = vmatpush1.bf16.msra.mxu0 0
      %1763 = vmatprep.subr.bf16.mxu0 0
      %1764 = vmatpush1.bf16.msra.mxu0 0
      %1765 = vmatprep.subr.bf16.mxu0 0
      %1766 = vmatpush1.bf16.msra.mxu0 0
      %1767 = vmatprep.mubr.bf16.mxu0 0
      %1768 = vmatmul.mubr.bf16.gmra.mrb[0].mxu0 %v1253
      %v1769 = vpop.f32.mrb[0].mxu0
      %v1770 = vadd.f32 %v1273, %v1769
      %v1771 = vpop.f32.mrb[0].mxu0
      %v1772 = vadd.f32 %v1277, %v1771
      %v1773 = vpop.f32.mrb[0].mxu0
      %v1774 = vadd.f32 %v1273, %v1773
      %v1775 = vpop.f32.mrb[0].mxu0
      %v1776 = vadd.f32 %v1277, %v1775
      %1777 = vmatprep.mubr.bf16.mxu0 0
      %1778 = vmatmul.mubr.bf16.gmra.mrb[0].mxu0 %v1254
      %v1779 = vpop.f32.mrb[0].mxu0
      %v1780 = vadd.f32 %v1273, %v1779
      %v1781 = vpop.f32.mrb[0].mxu0
      %v1782 = vadd.f32 %v1277, %v1781
      %v1783 = vpop.f32.mrb[0].mxu0
      %v1784 = vadd.f32 %v1273, %v1783
      %v1785 = vpop.f32.mrb[0].mxu0
      %v1786 = vadd.f32 %v1277, %v1785
      %1787 = vmatprep.mubr.bf16.mxu0 0
      %1788 = vmatmul.mubr.bf16.gmra.mrb[0].mxu0 %v1255
      %v1789 = vpop.f32.mrb[0].mxu0
      %v1790 = vadd.f32 %v1273, %v1789
      %v1791 = vpop.f32.mrb[0].mxu0
      %v1792 = vadd.f32 %v1277, %v1791
      %v1793 = vpop.f32.mrb[0].mxu0
      %v1794 = vadd.f32 %v1273, %v1793
      %v1795 = vpop.f32.mrb[0].mxu0
      %v1796 = vadd.f32 %v1277, %v1795
      %1797 = vmatprep.mubr.bf16.mxu0 0
      %1798 = vmatmul.mubr.bf16.gmra.mrb[0].mxu0 %v1256
      %v1799 = vpop.f32.mrb[0].mxu0
      %v1800 = vadd.f32 %v1273, %v1799
      %v1801 = vpop.f32.mrb[0].mxu0
      %v1802 = vadd.f32 %v1277, %v1801
      %v1803 = vpop.f32.mrb[0].mxu0
      %v1804 = vadd.f32 %v1273, %v1803
      %v1805 = vpop.f32.mrb[0].mxu0
      %v1806 = vadd.f32 %v1277, %v1805
      %1807 = vmatprep.mubr.bf16.mxu0 0
      %1808 = vmatmul.mubr.bf16.gmra.mrb[0].mxu0 %v1257
      %v1809 = vpop.f32.mrb[0].mxu0
      %v1810 = vadd.f32 %v1273, %v1809
      %v1811 = vpop.f32.mrb[0].mxu0
      %v1812 = vadd.f32 %v1277, %v1811
      %v1813 = vpop.f32.mrb[0].mxu0
      %v1814 = vadd.f32 %v1273, %v1813
      %v1815 = vpop.f32.mrb[0].mxu0
      %v1816 = vadd.f32 %v1277, %v1815
      %1817 = vmatprep.mubr.bf16.mxu0 0
      %1818 = vmatmul.mubr.bf16.gmra.mrb[0].mxu0 %v1258
      %v1819 = vpop.f32.mrb[0].mxu0
      %v1820 = vadd.f32 %v1273, %v1819
      %v1821 = vpop.f32.mrb[0].mxu0
      %v1822 = vadd.f32 %v1277, %v1821
      %v1823 = vpop.f32.mrb[0].mxu0
      %v1824 = vadd.f32 %v1273, %v1823
      %v1825 = vpop.f32.mrb[0].mxu0
      %v1826 = vadd.f32 %v1277, %v1825
      %1827 = vmatprep.mubr.bf16.mxu0 0
      %1828 = vmatmul.mubr.bf16.gmra.mrb[0].mxu0 %v1259
      %v1829 = vpop.f32.mrb[0].mxu0
      %v1830 = vadd.f32 %v1273, %v1829
      %v1831 = vpop.f32.mrb[0].mxu0
      %v1832 = vadd.f32 %v1277, %v1831
      %v1833 = vpop.f32.mrb[0].mxu0
      %v1834 = vadd.f32 %v1273, %v1833
      %v1835 = vpop.f32.mrb[0].mxu0
      %v1836 = vadd.f32 %v1277, %v1835
      %1837 = vmatprep.mubr.bf16.mxu0 0
      %1838 = vmatmul.mubr.bf16.gmra.mrb[0].mxu0 %v1260
      %v1839 = vpop.f32.mrb[0].mxu0
      %v1840 = vadd.f32 %v1273, %v1839
      %v1841 = vpop.f32.mrb[0].mxu0
      %v1842 = vadd.f32 %v1277, %v1841
      %v1843 = vpop.f32.mrb[0].mxu0
      %v1844 = vadd.f32 %v1273, %v1843
      %v1845 = vpop.f32.mrb[0].mxu0
      %v1846 = vadd.f32 %v1277, %v1845
      %1847 = vdwg.mxu0
      %1848 = vmatprep.subr.bf16.mxu0 %v1499
      %1849 = vmatpush1.bf16.msra.mxu0 %v1498
      %1850 = vmatprep.subr.bf16.mxu0 %v1507
      %1851 = vmatpush1.bf16.msra.mxu0 %v1506
      %1852 = vmatprep.subr.bf16.mxu0 %v1515
      %1853 = vmatpush1.bf16.msra.mxu0 %v1514
      %1854 = vmatprep.subr.bf16.mxu0 %v1523
      %1855 = vmatpush1.bf16.msra.mxu0 %v1522
      %1856 = vmatprep.subr.bf16.mxu0 %v1531
      %1857 = vmatpush1.bf16.msra.mxu0 %v1530
      %1858 = vmatprep.subr.bf16.mxu0 %v1539
      %1859 = vmatpush1.bf16.msra.mxu0 %v1538
      %1860 = vmatprep.subr.bf16.mxu0 %v1547
      %1861 = vmatpush1.bf16.msra.mxu0 %v1546
      %1862 = vmatprep.subr.bf16.mxu0 %v1555
      %1863 = vmatpush1.bf16.msra.mxu0 %v1554
      %1864 = vmatprep.subr.bf16.mxu0 0
      %1865 = vmatpush1.bf16.msra.mxu0 0
      %1866 = vmatprep.subr.bf16.mxu0 0
      %1867 = vmatpush1.bf16.msra.mxu0 0
      %1868 = vmatprep.subr.bf16.mxu0 0
      %1869 = vmatpush1.bf16.msra.mxu0 0
      %1870 = vmatprep.subr.bf16.mxu0 0
      %1871 = vmatpush1.bf16.msra.mxu0 0
      %1872 = vmatprep.subr.bf16.mxu0 0
      %1873 = vmatpush1.bf16.msra.mxu0 0
      %1874 = vmatprep.subr.bf16.mxu0 0
      %1875 = vmatpush1.bf16.msra.mxu0 0
      %1876 = vmatprep.subr.bf16.mxu0 0
      %1877 = vmatpush1.bf16.msra.mxu0 0
      %1878 = vmatprep.subr.bf16.mxu0 0
      %1879 = vmatpush1.bf16.msra.mxu0 0
      %1880 = vmatprep.mubr.bf16.mxu0 0
      %1881 = vmatmul.mubr.bf16.gmra.mrb[0].mxu0 %v1253
      %v1882 = vpop.f32.mrb[0].mxu0
      %v1883 = vadd.f32 %v1281, %v1882
      %v1884 = vpop.f32.mrb[0].mxu0
      %v1885 = vadd.f32 %v1285, %v1884
      %v1886 = vpop.f32.mrb[0].mxu0
      %v1887 = vadd.f32 %v1281, %v1886
      %v1888 = vpop.f32.mrb[0].mxu0
      %v1889 = vadd.f32 %v1285, %v1888
      %1890 = vmatprep.mubr.bf16.mxu0 0
      %1891 = vmatmul.mubr.bf16.gmra.mrb[0].mxu0 %v1254
      %v1892 = vpop.f32.mrb[0].mxu0
      %v1893 = vadd.f32 %v1281, %v1892
      %v1894 = vpop.f32.mrb[0].mxu0
      %v1895 = vadd.f32 %v1285, %v1894
      %v1896 = vpop.f32.mrb[0].mxu0
      %v1897 = vadd.f32 %v1281, %v1896
      %v1898 = vpop.f32.mrb[0].mxu0
      %v1899 = vadd.f32 %v1285, %v1898
      %1900 = vmatprep.mubr.bf16.mxu0 0
      %1901 = vmatmul.mubr.bf16.gmra.mrb[0].mxu0 %v1255
      %v1902 = vpop.f32.mrb[0].mxu0
      %v1903 = vadd.f32 %v1281, %v1902
      %v1904 = vpop.f32.mrb[0].mxu0
      %v1905 = vadd.f32 %v1285, %v1904
      %v1906 = vpop.f32.mrb[0].mxu0
      %v1907 = vadd.f32 %v1281, %v1906
      %v1908 = vpop.f32.mrb[0].mxu0
      %v1909 = vadd.f32 %v1285, %v1908
      %1910 = vmatprep.mubr.bf16.mxu0 0
      %1911 = vmatmul.mubr.bf16.gmra.mrb[0].mxu0 %v1256
      %v1912 = vpop.f32.mrb[0].mxu0
      %v1913 = vadd.f32 %v1281, %v1912
      %v1914 = vpop.f32.mrb[0].mxu0
      %v1915 = vadd.f32 %v1285, %v1914
      %v1916 = vpop.f32.mrb[0].mxu0
      %v1917 = vadd.f32 %v1281, %v1916
      %v1918 = vpop.f32.mrb[0].mxu0
      %v1919 = vadd.f32 %v1285, %v1918
      %1920 = vmatprep.mubr.bf16.mxu0 0
      %1921 = vmatmul.mubr.bf16.gmra.mrb[0].mxu0 %v1257
      %v1922 = vpop.f32.mrb[0].mxu0
      %v1923 = vadd.f32 %v1281, %v1922
      %v1924 = vpop.f32.mrb[0].mxu0
      %v1925 = vadd.f32 %v1285, %v1924
      %v1926 = vpop.f32.mrb[0].mxu0
      %v1927 = vadd.f32 %v1281, %v1926
      %v1928 = vpop.f32.mrb[0].mxu0
      %v1929 = vadd.f32 %v1285, %v1928
      %1930 = vmatprep.mubr.bf16.mxu0 0
      %1931 = vmatmul.mubr.bf16.gmra.mrb[0].mxu0 %v1258
      %v1932 = vpop.f32.mrb[0].mxu0
      %v1933 = vadd.f32 %v1281, %v1932
      %v1934 = vpop.f32.mrb[0].mxu0
      %v1935 = vadd.f32 %v1285, %v1934
      %v1936 = vpop.f32.mrb[0].mxu0
      %v1937 = vadd.f32 %v1281, %v1936
      %v1938 = vpop.f32.mrb[0].mxu0
      %v1939 = vadd.f32 %v1285, %v1938
      %1940 = vmatprep.mubr.bf16.mxu0 0
      %1941 = vmatmul.mubr.bf16.gmra.mrb[0].mxu0 %v1259
      %v1942 = vpop.f32.mrb[0].mxu0
      %v1943 = vadd.f32 %v1281, %v1942
      %v1944 = vpop.f32.mrb[0].mxu0
      %v1945 = vadd.f32 %v1285, %v1944
      %v1946 = vpop.f32.mrb[0].mxu0
      %v1947 = vadd.f32 %v1281, %v1946
      %v1948 = vpop.f32.mrb[0].mxu0
      %v1949 = vadd.f32 %v1285, %v1948
      %1950 = vmatprep.mubr.bf16.mxu0 0
      %1951 = vmatmul.mubr.bf16.gmra.mrb[0].mxu0 %v1260
      %v1952 = vpop.f32.mrb[0].mxu0
      %v1953 = vadd.f32 %v1281, %v1952
      %v1954 = vpop.f32.mrb[0].mxu0
      %v1955 = vadd.f32 %v1285, %v1954
      %v1956 = vpop.f32.mrb[0].mxu0
      %v1957 = vadd.f32 %v1281, %v1956
      %v1958 = vpop.f32.mrb[0].mxu0
      %v1959 = vadd.f32 %v1285, %v1958
      %1960 = vdwg.mxu0
      %1961 = vmatprep.subr.bf16.mxu0 %v1501
      %1962 = vmatpush1.bf16.msra.mxu0 %v1500
      %1963 = vmatprep.subr.bf16.mxu0 %v1509
      %1964 = vmatpush1.bf16.msra.mxu0 %v1508
      %1965 = vmatprep.subr.bf16.mxu0 %v1517
      %1966 = vmatpush1.bf16.msra.mxu0 %v1516
      %1967 = vmatprep.subr.bf16.mxu0 %v1525
      %1968 = vmatpush1.bf16.msra.mxu0 %v1524
      %1969 = vmatprep.subr.bf16.mxu0 %v1533
      %1970 = vmatpush1.bf16.msra.mxu0 %v1532
      %1971 = vmatprep.subr.bf16.mxu0 %v1541
      %1972 = vmatpush1.bf16.msra.mxu0 %v1540
      %1973 = vmatprep.subr.bf16.mxu0 %v1549
      %1974 = vmatpush1.bf16.msra.mxu0 %v1548
      %1975 = vmatprep.subr.bf16.mxu0 %v1557
      %1976 = vmatpush1.bf16.msra.mxu0 %v1556
      %1977 = vmatprep.subr.bf16.mxu0 0
      %1978 = vmatpush1.bf16.msra.mxu0 0
      %1979 = vmatprep.subr.bf16.mxu0 0
      %1980 = vmatpush1.bf16.msra.mxu0 0
      %1981 = vmatprep.subr.bf16.mxu0 0
      %1982 = vmatpush1.bf16.msra.mxu0 0
      %1983 = vmatprep.subr.bf16.mxu0 0
      %1984 = vmatpush1.bf16.msra.mxu0 0
      %1985 = vmatprep.subr.bf16.mxu0 0
      %1986 = vmatpush1.bf16.msra.mxu0 0
      %1987 = vmatprep.subr.bf16.mxu0 0
      %1988 = vmatpush1.bf16.msra.mxu0 0
      %1989 = vmatprep.subr.bf16.mxu0 0
      %1990 = vmatpush1.bf16.msra.mxu0 0
      %1991 = vmatprep.subr.bf16.mxu0 0
      %1992 = vmatpush1.bf16.msra.mxu0 0
      %1993 = vmatprep.mubr.bf16.mxu0 0
      %1994 = vmatmul.mubr.bf16.gmra.mrb[0].mxu0 %v1253
      %v1995 = vpop.f32.mrb[0].mxu0
      %v1996 = vadd.f32 %v1289, %v1995
      %v1997 = vpop.f32.mrb[0].mxu0
      %v1998 = vadd.f32 %v1293, %v1997
      %v1999 = vpop.f32.mrb[0].mxu0
      %v2000 = vadd.f32 %v1289, %v1999
      %v2001 = vpop.f32.mrb[0].mxu0
      %v2002 = vadd.f32 %v1293, %v2001
      %2003 = vmatprep.mubr.bf16.mxu0 0
      %2004 = vmatmul.mubr.bf16.gmra.mrb[0].mxu0 %v1254
      %v2005 = vpop.f32.mrb[0].mxu0
      %v2006 = vadd.f32 %v1289, %v2005
      %v2007 = vpop.f32.mrb[0].mxu0
      %v2008 = vadd.f32 %v1293, %v2007
      %v2009 = vpop.f32.mrb[0].mxu0
      %v2010 = vadd.f32 %v1289, %v2009
      %v2011 = vpop.f32.mrb[0].mxu0
      %v2012 = vadd.f32 %v1293, %v2011
      %2013 = vmatprep.mubr.bf16.mxu0 0
      %2014 = vmatmul.mubr.bf16.gmra.mrb[0].mxu0 %v1255
      %v2015 = vpop.f32.mrb[0].mxu0
      %v2016 = vadd.f32 %v1289, %v2015
      %v2017 = vpop.f32.mrb[0].mxu0
      %v2018 = vadd.f32 %v1293, %v2017
      %v2019 = vpop.f32.mrb[0].mxu0
      %v2020 = vadd.f32 %v1289, %v2019
      %v2021 = vpop.f32.mrb[0].mxu0
      %v2022 = vadd.f32 %v1293, %v2021
      %2023 = vmatprep.mubr.bf16.mxu0 0
      %2024 = vmatmul.mubr.bf16.gmra.mrb[0].mxu0 %v1256
      %v2025 = vpop.f32.mrb[0].mxu0
      %v2026 = vadd.f32 %v1289, %v2025
      %v2027 = vpop.f32.mrb[0].mxu0
      %v2028 = vadd.f32 %v1293, %v2027
      %v2029 = vpop.f32.mrb[0].mxu0
      %v2030 = vadd.f32 %v1289, %v2029
      %v2031 = vpop.f32.mrb[0].mxu0
      %v2032 = vadd.f32 %v1293, %v2031
      %2033 = vmatprep.mubr.bf16.mxu0 0
      %2034 = vmatmul.mubr.bf16.gmra.mrb[0].mxu0 %v1257
      %v2035 = vpop.f32.mrb[0].mxu0
      %v2036 = vadd.f32 %v1289, %v2035
      %v2037 = vpop.f32.mrb[0].mxu0
      %v2038 = vadd.f32 %v1293, %v2037
      %v2039 = vpop.f32.mrb[0].mxu0
      %v2040 = vadd.f32 %v1289, %v2039
      %v2041 = vpop.f32.mrb[0].mxu0
      %v2042 = vadd.f32 %v1293, %v2041
      %2043 = vmatprep.mubr.bf16.mxu0 0
      %2044 = vmatmul.mubr.bf16.gmra.mrb[0].mxu0 %v1258
      %v2045 = vpop.f32.mrb[0].mxu0
      %v2046 = vadd.f32 %v1289, %v2045
      %v2047 = vpop.f32.mrb[0].mxu0
      %v2048 = vadd.f32 %v1293, %v2047
      %v2049 = vpop.f32.mrb[0].mxu0
      %v2050 = vadd.f32 %v1289, %v2049
      %v2051 = vpop.f32.mrb[0].mxu0
      %v2052 = vadd.f32 %v1293, %v2051
      %2053 = vmatprep.mubr.bf16.mxu0 0
      %2054 = vmatmul.mubr.bf16.gmra.mrb[0].mxu0 %v1259
      %v2055 = vpop.f32.mrb[0].mxu0
      %v2056 = vadd.f32 %v1289, %v2055
      %v2057 = vpop.f32.mrb[0].mxu0
      %v2058 = vadd.f32 %v1293, %v2057
      %v2059 = vpop.f32.mrb[0].mxu0
      %v2060 = vadd.f32 %v1289, %v2059
      %v2061 = vpop.f32.mrb[0].mxu0
      %v2062 = vadd.f32 %v1293, %v2061
      %2063 = vmatprep.mubr.bf16.mxu0 0
      %2064 = vmatmul.mubr.bf16.gmra.mrb[0].mxu0 %v1260
      %v2065 = vpop.f32.mrb[0].mxu0
      %v2066 = vadd.f32 %v1289, %v2065
      %v2067 = vpop.f32.mrb[0].mxu0
      %v2068 = vadd.f32 %v1293, %v2067
      %v2069 = vpop.f32.mrb[0].mxu0
      %v2070 = vadd.f32 %v1289, %v2069
      %v2071 = vpop.f32.mrb[0].mxu0
      %v2072 = vadd.f32 %v1293, %v2071
      %2073 = vdwg.mxu0
      %v2074 = vmax.f32 %v1657, 0.0
      %v2075 = vmax.f32 %v1659, 0.0
      %v2076 = vmax.f32 %v1770, 0.0
      %v2077 = vmax.f32 %v1772, 0.0
      %v2078 = vmax.f32 %v1883, 0.0
      %v2079 = vmax.f32 %v1885, 0.0
      %v2080 = vmax.f32 %v1996, 0.0
      %v2081 = vmax.f32 %v1998, 0.0
      %v2082 = vmax.f32 %v1661, 0.0
      %v2083 = vmax.f32 %v1663, 0.0
      %v2084 = vmax.f32 %v1774, 0.0
      %v2085 = vmax.f32 %v1776, 0.0
      %v2086 = vmax.f32 %v1887, 0.0
      %v2087 = vmax.f32 %v1889, 0.0
      %v2088 = vmax.f32 %v2000, 0.0
      %v2089 = vmax.f32 %v2002, 0.0
      %v2090 = vmax.f32 %v1667, 0.0
      %v2091 = vmax.f32 %v1669, 0.0
      %v2092 = vmax.f32 %v1780, 0.0
      %v2093 = vmax.f32 %v1782, 0.0
      %v2094 = vmax.f32 %v1893, 0.0
      %v2095 = vmax.f32 %v1895, 0.0
      %v2096 = vmax.f32 %v2006, 0.0
      %v2097 = vmax.f32 %v2008, 0.0
      %v2098 = vmax.f32 %v1671, 0.0
      %v2099 = vmax.f32 %v1673, 0.0
      %v2100 = vmax.f32 %v1784, 0.0
      %v2101 = vmax.f32 %v1786, 0.0
      %v2102 = vmax.f32 %v1897, 0.0
      %v2103 = vmax.f32 %v1899, 0.0
      %v2104 = vmax.f32 %v2010, 0.0
      %v2105 = vmax.f32 %v2012, 0.0
      %v2106 = vmax.f32 %v1677, 0.0
      %v2107 = vmax.f32 %v1679, 0.0
      %v2108 = vmax.f32 %v1790, 0.0
      %v2109 = vmax.f32 %v1792, 0.0
      %v2110 = vmax.f32 %v1903, 0.0
      %v2111 = vmax.f32 %v1905, 0.0
      %v2112 = vmax.f32 %v2016, 0.0
      %v2113 = vmax.f32 %v2018, 0.0
      %v2114 = vmax.f32 %v1681, 0.0
      %v2115 = vmax.f32 %v1683, 0.0
      %v2116 = vmax.f32 %v1794, 0.0
      %v2117 = vmax.f32 %v1796, 0.0
      %v2118 = vmax.f32 %v1907, 0.0
      %v2119 = vmax.f32 %v1909, 0.0
      %v2120 = vmax.f32 %v2020, 0.0
      %v2121 = vmax.f32 %v2022, 0.0
      %v2122 = vmax.f32 %v1687, 0.0
      %v2123 = vmax.f32 %v1689, 0.0
      %v2124 = vmax.f32 %v1800, 0.0
      %v2125 = vmax.f32 %v1802, 0.0
      %v2126 = vmax.f32 %v1913, 0.0
      %v2127 = vmax.f32 %v1915, 0.0
      %v2128 = vmax.f32 %v2026, 0.0
      %v2129 = vmax.f32 %v2028, 0.0
      %v2130 = vmax.f32 %v1691, 0.0
      %v2131 = vmax.f32 %v1693, 0.0
      %v2132 = vmax.f32 %v1804, 0.0
      %v2133 = vmax.f32 %v1806, 0.0
      %v2134 = vmax.f32 %v1917, 0.0
      %v2135 = vmax.f32 %v1919, 0.0
      %v2136 = vmax.f32 %v2030, 0.0
      %v2137 = vmax.f32 %v2032, 0.0
      %v2138 = vmax.f32 %v1697, 0.0
      %v2139 = vmax.f32 %v1699, 0.0
      %v2140 = vmax.f32 %v1810, 0.0
      %v2141 = vmax.f32 %v1812, 0.0
      %v2142 = vmax.f32 %v1923, 0.0
      %v2143 = vmax.f32 %v1925, 0.0
      %v2144 = vmax.f32 %v2036, 0.0
      %v2145 = vmax.f32 %v2038, 0.0
      %v2146 = vmax.f32 %v1701, 0.0
      %v2147 = vmax.f32 %v1703, 0.0
      %v2148 = vmax.f32 %v1814, 0.0
      %v2149 = vmax.f32 %v1816, 0.0
      %v2150 = vmax.f32 %v1927, 0.0
      %v2151 = vmax.f32 %v1929, 0.0
      %v2152 = vmax.f32 %v2040, 0.0
      %v2153 = vmax.f32 %v2042, 0.0
      %v2154 = vmax.f32 %v1707, 0.0
      %v2155 = vmax.f32 %v1709, 0.0
      %v2156 = vmax.f32 %v1820, 0.0
      %v2157 = vmax.f32 %v1822, 0.0
      %v2158 = vmax.f32 %v1933, 0.0
      %v2159 = vmax.f32 %v1935, 0.0
      %v2160 = vmax.f32 %v2046, 0.0
      %v2161 = vmax.f32 %v2048, 0.0
      %v2162 = vmax.f32 %v1711, 0.0
      %v2163 = vmax.f32 %v1713, 0.0
      %v2164 = vmax.f32 %v1824, 0.0
      %v2165 = vmax.f32 %v1826, 0.0
      %v2166 = vmax.f32 %v1937, 0.0
      %v2167 = vmax.f32 %v1939, 0.0
      %v2168 = vmax.f32 %v2050, 0.0
      %v2169 = vmax.f32 %v2052, 0.0
      %v2170 = vmax.f32 %v1717, 0.0
      %v2171 = vmax.f32 %v1719, 0.0
      %v2172 = vmax.f32 %v1830, 0.0
      %v2173 = vmax.f32 %v1832, 0.0
      %v2174 = vmax.f32 %v1943, 0.0
      %v2175 = vmax.f32 %v1945, 0.0
      %v2176 = vmax.f32 %v2056, 0.0
      %v2177 = vmax.f32 %v2058, 0.0
      %v2178 = vmax.f32 %v1721, 0.0
      %v2179 = vmax.f32 %v1723, 0.0
      %v2180 = vmax.f32 %v1834, 0.0
      %v2181 = vmax.f32 %v1836, 0.0
      %v2182 = vmax.f32 %v1947, 0.0
      %v2183 = vmax.f32 %v1949, 0.0
      %v2184 = vmax.f32 %v2060, 0.0
      %v2185 = vmax.f32 %v2062, 0.0
      %v2186 = vmax.f32 %v1727, 0.0
      %v2187 = vmax.f32 %v1729, 0.0
      %v2188 = vmax.f32 %v1840, 0.0
      %v2189 = vmax.f32 %v1842, 0.0
      %v2190 = vmax.f32 %v1953, 0.0
      %v2191 = vmax.f32 %v1955, 0.0
      %v2192 = vmax.f32 %v2066, 0.0
      %v2193 = vmax.f32 %v2068, 0.0
      %v2194 = vmax.f32 %v1731, 0.0
      %v2195 = vmax.f32 %v1733, 0.0
      %v2196 = vmax.f32 %v1844, 0.0
      %v2197 = vmax.f32 %v1846, 0.0
      %v2198 = vmax.f32 %v1957, 0.0
      %v2199 = vmax.f32 %v1959, 0.0
      %v2200 = vmax.f32 %v2070, 0.0
      %v2201 = vmax.f32 %v2072, 0.0
      %v2202 = vld [vmem:[%s459] sm:$0xf]
      %v2203 = vld [vmem:[%s7] sm:$0xff]
      %v2204 = vld [vmem:[%s7 + $0x8] sm:$0xff]
      %v2205 = vld [vmem:[%s7 + $0x10] sm:$0xff]
      %v2206 = vld [vmem:[%s7 + $0x18] sm:$0xff]
      %v2207 = vld [vmem:[%s7 + $0x20] sm:$0xff]
      %v2208 = vld [vmem:[%s7 + $0x28] sm:$0xff]
      %v2209 = vld [vmem:[%s7 + $0x30] sm:$0xff]
      %v2210 = vld [vmem:[%s7 + $0x38] sm:$0xff]
      %v2211 = vld [vmem:[%s7 + $0x40] sm:$0xff]
      %v2212 = vld [vmem:[%s7 + $0x48] sm:$0xff]
      %v2213 = vld [vmem:[%s7 + $0x50] sm:$0xff]
      %v2214 = vld [vmem:[%s7 + $0x58] sm:$0xff]
      %v2215 = vld [vmem:[%s7 + $0x60] sm:$0xff]
      %v2216 = vld [vmem:[%s7 + $0x68] sm:$0xff]
      %v2217 = vld [vmem:[%s7 + $0x70] sm:$0xff]
      %v2218 = vld [vmem:[%s7 + $0x78] sm:$0xff]
      %v2219 = vld [vmem:[%s7 + $0x80] sm:$0xff]
      %v2220 = vld [vmem:[%s7 + $0x88] sm:$0xff]
      %v2221 = vld [vmem:[%s7 + $0x90] sm:$0xff]
      %v2222 = vld [vmem:[%s7 + $0x98] sm:$0xff]
      %v2223 = vld [vmem:[%s7 + $0xa0] sm:$0xff]
      %v2224 = vld [vmem:[%s7 + $0xa8] sm:$0xff]
      %v2225 = vld [vmem:[%s7 + $0xb0] sm:$0xff]
      %v2226 = vld [vmem:[%s7 + $0xb8] sm:$0xff]
      %v2227 = vld [vmem:[%s7 + $0xc0] sm:$0xff]
      %v2228 = vld [vmem:[%s7 + $0xc8] sm:$0xff]
      %v2229 = vld [vmem:[%s7 + $0xd0] sm:$0xff]
      %v2230 = vld [vmem:[%s7 + $0xd8] sm:$0xff]
      %v2231 = vld [vmem:[%s7 + $0xe0] sm:$0xff]
      %v2232 = vld [vmem:[%s7 + $0xe8] sm:$0xff]
      %v2233 = vld [vmem:[%s7 + $0xf0] sm:$0xff]
      %v2234 = vld [vmem:[%s7 + $0xf8] sm:$0xff]
      %v2235 = vld [vmem:[%s7 + $0x100] sm:$0xff]
      %v2236 = vld [vmem:[%s7 + $0x108] sm:$0xff]
      %v2237 = vld [vmem:[%s7 + $0x110] sm:$0xff]
      %v2238 = vld [vmem:[%s7 + $0x118] sm:$0xff]
      %v2239 = vld [vmem:[%s7 + $0x120] sm:$0xff]
      %v2240 = vld [vmem:[%s7 + $0x128] sm:$0xff]
      %v2241 = vld [vmem:[%s7 + $0x130] sm:$0xff]
      %v2242 = vld [vmem:[%s7 + $0x138] sm:$0xff]
      %v2243 = vld [vmem:[%s7 + $0x140] sm:$0xff]
      %v2244 = vld [vmem:[%s7 + $0x148] sm:$0xff]
      %v2245 = vld [vmem:[%s7 + $0x150] sm:$0xff]
      %v2246 = vld [vmem:[%s7 + $0x158] sm:$0xff]
      %v2247 = vld [vmem:[%s7 + $0x160] sm:$0xff]
      %v2248 = vld [vmem:[%s7 + $0x168] sm:$0xff]
      %v2249 = vld [vmem:[%s7 + $0x170] sm:$0xff]
      %v2250 = vld [vmem:[%s7 + $0x178] sm:$0xff]
      %v2251 = vld [vmem:[%s7 + $0x180] sm:$0xff]
      %v2252 = vld [vmem:[%s7 + $0x188] sm:$0xff]
      %v2253 = vld [vmem:[%s7 + $0x190] sm:$0xff]
      %v2254 = vld [vmem:[%s7 + $0x198] sm:$0xff]
      %v2255 = vld [vmem:[%s7 + $0x1a0] sm:$0xff]
      %v2256 = vld [vmem:[%s7 + $0x1a8] sm:$0xff]
      %v2257 = vld [vmem:[%s7 + $0x1b0] sm:$0xff]
      %v2258 = vld [vmem:[%s7 + $0x1b8] sm:$0xff]
      %v2259 = vld [vmem:[%s7 + $0x1c0] sm:$0xff]
      %v2260 = vld [vmem:[%s7 + $0x1c8] sm:$0xff]
      %v2261 = vld [vmem:[%s7 + $0x1d0] sm:$0xff]
      %v2262 = vld [vmem:[%s7 + $0x1d8] sm:$0xff]
      %v2263 = vld [vmem:[%s7 + $0x1e0] sm:$0xff]
      %v2264 = vld [vmem:[%s7 + $0x1e8] sm:$0xff]
      %v2265 = vld [vmem:[%s7 + $0x1f0] sm:$0xff]
      %v2266 = vld [vmem:[%s7 + $0x1f8] sm:$0xff]
      %v2267 = vld [vmem:[%s7 + $0x200] sm:$0xff]
      %v2268 = vld [vmem:[%s7 + $0x208] sm:$0xff]
      %v2269 = vld [vmem:[%s7 + $0x210] sm:$0xff]
      %v2270 = vld [vmem:[%s7 + $0x218] sm:$0xff]
      %v2271 = vld [vmem:[%s7 + $0x220] sm:$0xff]
      %v2272 = vld [vmem:[%s7 + $0x228] sm:$0xff]
      %v2273 = vld [vmem:[%s7 + $0x230] sm:$0xff]
      %v2274 = vld [vmem:[%s7 + $0x238] sm:$0xff]
      %v2275 = vld [vmem:[%s7 + $0x240] sm:$0xff]
      %v2276 = vld [vmem:[%s7 + $0x248] sm:$0xff]
      %v2277 = vld [vmem:[%s7 + $0x250] sm:$0xff]
      %v2278 = vld [vmem:[%s7 + $0x258] sm:$0xff]
      %v2279 = vld [vmem:[%s7 + $0x260] sm:$0xff]
      %v2280 = vld [vmem:[%s7 + $0x268] sm:$0xff]
      %v2281 = vld [vmem:[%s7 + $0x270] sm:$0xff]
      %v2282 = vld [vmem:[%s7 + $0x278] sm:$0xff]
      %v2283 = vld [vmem:[%s7 + $0x280] sm:$0xff]
      %v2284 = vld [vmem:[%s7 + $0x288] sm:$0xff]
      %v2285 = vld [vmem:[%s7 + $0x290] sm:$0xff]
      %v2286 = vld [vmem:[%s7 + $0x298] sm:$0xff]
      %v2287 = vld [vmem:[%s7 + $0x2a0] sm:$0xff]
      %v2288 = vld [vmem:[%s7 + $0x2a8] sm:$0xff]
      %v2289 = vld [vmem:[%s7 + $0x2b0] sm:$0xff]
      %v2290 = vld [vmem:[%s7 + $0x2b8] sm:$0xff]
      %v2291 = vld [vmem:[%s7 + $0x2c0] sm:$0xff]
      %v2292 = vld [vmem:[%s7 + $0x2c8] sm:$0xff]
      %v2293 = vld [vmem:[%s7 + $0x2d0] sm:$0xff]
      %v2294 = vld [vmem:[%s7 + $0x2d8] sm:$0xff]
      %v2295 = vld [vmem:[%s7 + $0x2e0] sm:$0xff]
      %v2296 = vld [vmem:[%s7 + $0x2e8] sm:$0xff]
      %v2297 = vld [vmem:[%s7 + $0x2f0] sm:$0xff]
      %v2298 = vld [vmem:[%s7 + $0x2f8] sm:$0xff]
      %v2299 = vld [vmem:[%s7 + $0x300] sm:$0xff]
      %v2300 = vld [vmem:[%s7 + $0x308] sm:$0xff]
      %v2301 = vld [vmem:[%s7 + $0x310] sm:$0xff]
      %v2302 = vld [vmem:[%s7 + $0x318] sm:$0xff]
      %v2303 = vld [vmem:[%s7 + $0x320] sm:$0xff]
      %v2304 = vld [vmem:[%s7 + $0x328] sm:$0xff]
      %v2305 = vld [vmem:[%s7 + $0x330] sm:$0xff]
      %v2306 = vld [vmem:[%s7 + $0x338] sm:$0xff]
      %v2307 = vld [vmem:[%s7 + $0x340] sm:$0xff]
      %v2308 = vld [vmem:[%s7 + $0x348] sm:$0xff]
      %v2309 = vld [vmem:[%s7 + $0x350] sm:$0xff]
      %v2310 = vld [vmem:[%s7 + $0x358] sm:$0xff]
      %v2311 = vld [vmem:[%s7 + $0x360] sm:$0xff]
      %v2312 = vld [vmem:[%s7 + $0x368] sm:$0xff]
      %v2313 = vld [vmem:[%s7 + $0x370] sm:$0xff]
      %v2314 = vld [vmem:[%s7 + $0x378] sm:$0xff]
      %v2315 = vld [vmem:[%s7 + $0x380] sm:$0xff]
      %v2316 = vld [vmem:[%s7 + $0x388] sm:$0xff]
      %v2317 = vld [vmem:[%s7 + $0x390] sm:$0xff]
      %v2318 = vld [vmem:[%s7 + $0x398] sm:$0xff]
      %v2319 = vld [vmem:[%s7 + $0x3a0] sm:$0xff]
      %v2320 = vld [vmem:[%s7 + $0x3a8] sm:$0xff]
      %v2321 = vld [vmem:[%s7 + $0x3b0] sm:$0xff]
      %v2322 = vld [vmem:[%s7 + $0x3b8] sm:$0xff]
      %v2323 = vld [vmem:[%s7 + $0x3c0] sm:$0xff]
      %v2324 = vld [vmem:[%s7 + $0x3c8] sm:$0xff]
      %v2325 = vld [vmem:[%s7 + $0x3d0] sm:$0xff]
      %v2326 = vld [vmem:[%s7 + $0x3d8] sm:$0xff]
      %v2327 = vld [vmem:[%s7 + $0x3e0] sm:$0xff]
      %v2328 = vld [vmem:[%s7 + $0x3e8] sm:$0xff]
      %v2329 = vld [vmem:[%s7 + $0x3f0] sm:$0xff]
      %v2330 = vld [vmem:[%s7 + $0x3f8] sm:$0xff]
      %v2331 = vld [vmem:[%s7 + $0x400] sm:$0xff]
      %v2332 = vld [vmem:[%s7 + $0x408] sm:$0xff]
      %v2333 = vld [vmem:[%s7 + $0x410] sm:$0xff]
      %v2334 = vld [vmem:[%s7 + $0x418] sm:$0xff]
      %v2335 = vld [vmem:[%s7 + $0x420] sm:$0xff]
      %v2336 = vld [vmem:[%s7 + $0x428] sm:$0xff]
      %v2337 = vld [vmem:[%s7 + $0x430] sm:$0xff]
      %v2338 = vld [vmem:[%s7 + $0x438] sm:$0xff]
      %v2339 = vld [vmem:[%s7 + $0x440] sm:$0xff]
      %v2340 = vld [vmem:[%s7 + $0x448] sm:$0xff]
      %v2341 = vld [vmem:[%s7 + $0x450] sm:$0xff]
      %v2342 = vld [vmem:[%s7 + $0x458] sm:$0xff]
      %v2343 = vld [vmem:[%s7 + $0x460] sm:$0xff]
      %v2344 = vld [vmem:[%s7 + $0x468] sm:$0xff]
      %v2345 = vld [vmem:[%s7 + $0x470] sm:$0xff]
      %v2346 = vld [vmem:[%s7 + $0x478] sm:$0xff]
      %v2347 = vld [vmem:[%s7 + $0x480] sm:$0xff]
      %v2348 = vld [vmem:[%s7 + $0x488] sm:$0xff]
      %v2349 = vld [vmem:[%s7 + $0x490] sm:$0xff]
      %v2350 = vld [vmem:[%s7 + $0x498] sm:$0xff]
      %v2351 = vld [vmem:[%s7 + $0x4a0] sm:$0xff]
      %v2352 = vld [vmem:[%s7 + $0x4a8] sm:$0xff]
      %v2353 = vld [vmem:[%s7 + $0x4b0] sm:$0xff]
      %v2354 = vld [vmem:[%s7 + $0x4b8] sm:$0xff]
      %v2355 = vld [vmem:[%s7 + $0x4c0] sm:$0xff]
      %v2356 = vld [vmem:[%s7 + $0x4c8] sm:$0xff]
      %v2357 = vld [vmem:[%s7 + $0x4d0] sm:$0xff]
      %v2358 = vld [vmem:[%s7 + $0x4d8] sm:$0xff]
      %v2359 = vld [vmem:[%s7 + $0x4e0] sm:$0xff]
      %v2360 = vld [vmem:[%s7 + $0x4e8] sm:$0xff]
      %v2361 = vld [vmem:[%s7 + $0x4f0] sm:$0xff]
      %v2362 = vld [vmem:[%s7 + $0x4f8] sm:$0xff]
      %v2363 = vld [vmem:[%s7 + $0x500] sm:$0xff]
      %v2364 = vld [vmem:[%s7 + $0x508] sm:$0xff]
      %v2365 = vld [vmem:[%s7 + $0x510] sm:$0xff]
      %v2366 = vld [vmem:[%s7 + $0x518] sm:$0xff]
      %v2367 = vld [vmem:[%s7 + $0x520] sm:$0xff]
      %v2368 = vld [vmem:[%s7 + $0x528] sm:$0xff]
      %v2369 = vld [vmem:[%s7 + $0x530] sm:$0xff]
      %v2370 = vld [vmem:[%s7 + $0x538] sm:$0xff]
      %v2371 = vld [vmem:[%s7 + $0x540] sm:$0xff]
      %v2372 = vld [vmem:[%s7 + $0x548] sm:$0xff]
      %v2373 = vld [vmem:[%s7 + $0x550] sm:$0xff]
      %v2374 = vld [vmem:[%s7 + $0x558] sm:$0xff]
      %v2375 = vld [vmem:[%s7 + $0x560] sm:$0xff]
      %v2376 = vld [vmem:[%s7 + $0x568] sm:$0xff]
      %v2377 = vld [vmem:[%s7 + $0x570] sm:$0xff]
      %v2378 = vld [vmem:[%s7 + $0x578] sm:$0xff]
      %v2379 = vld [vmem:[%s7 + $0x580] sm:$0xff]
      %v2380 = vld [vmem:[%s7 + $0x588] sm:$0xff]
      %v2381 = vld [vmem:[%s7 + $0x590] sm:$0xff]
      %v2382 = vld [vmem:[%s7 + $0x598] sm:$0xff]
      %v2383 = vld [vmem:[%s7 + $0x5a0] sm:$0xff]
      %v2384 = vld [vmem:[%s7 + $0x5a8] sm:$0xff]
      %v2385 = vld [vmem:[%s7 + $0x5b0] sm:$0xff]
      %v2386 = vld [vmem:[%s7 + $0x5b8] sm:$0xff]
      %v2387 = vld [vmem:[%s7 + $0x5c0] sm:$0xff]
      %v2388 = vld [vmem:[%s7 + $0x5c8] sm:$0xff]
      %v2389 = vld [vmem:[%s7 + $0x5d0] sm:$0xff]
      %v2390 = vld [vmem:[%s7 + $0x5d8] sm:$0xff]
      %v2391 = vld [vmem:[%s7 + $0x5e0] sm:$0xff]
      %v2392 = vld [vmem:[%s7 + $0x5e8] sm:$0xff]
      %v2393 = vld [vmem:[%s7 + $0x5f0] sm:$0xff]
      %v2394 = vld [vmem:[%s7 + $0x5f8] sm:$0xff]
      %v2395 = vld [vmem:[%s7 + $0x600] sm:$0xff]
      %v2396 = vld [vmem:[%s7 + $0x608] sm:$0xff]
      %v2397 = vld [vmem:[%s7 + $0x610] sm:$0xff]
      %v2398 = vld [vmem:[%s7 + $0x618] sm:$0xff]
      %v2399 = vld [vmem:[%s7 + $0x620] sm:$0xff]
      %v2400 = vld [vmem:[%s7 + $0x628] sm:$0xff]
      %v2401 = vld [vmem:[%s7 + $0x630] sm:$0xff]
      %v2402 = vld [vmem:[%s7 + $0x638] sm:$0xff]
      %v2403 = vld [vmem:[%s7 + $0x640] sm:$0xff]
      %v2404 = vld [vmem:[%s7 + $0x648] sm:$0xff]
      %v2405 = vld [vmem:[%s7 + $0x650] sm:$0xff]
      %v2406 = vld [vmem:[%s7 + $0x658] sm:$0xff]
      %v2407 = vld [vmem:[%s7 + $0x660] sm:$0xff]
      %v2408 = vld [vmem:[%s7 + $0x668] sm:$0xff]
      %v2409 = vld [vmem:[%s7 + $0x670] sm:$0xff]
      %v2410 = vld [vmem:[%s7 + $0x678] sm:$0xff]
      %v2411 = vld [vmem:[%s7 + $0x680] sm:$0xff]
      %v2412 = vld [vmem:[%s7 + $0x688] sm:$0xff]
      %v2413 = vld [vmem:[%s7 + $0x690] sm:$0xff]
      %v2414 = vld [vmem:[%s7 + $0x698] sm:$0xff]
      %v2415 = vld [vmem:[%s7 + $0x6a0] sm:$0xff]
      %v2416 = vld [vmem:[%s7 + $0x6a8] sm:$0xff]
      %v2417 = vld [vmem:[%s7 + $0x6b0] sm:$0xff]
      %v2418 = vld [vmem:[%s7 + $0x6b8] sm:$0xff]
      %v2419 = vld [vmem:[%s7 + $0x6c0] sm:$0xff]
      %v2420 = vld [vmem:[%s7 + $0x6c8] sm:$0xff]
      %v2421 = vld [vmem:[%s7 + $0x6d0] sm:$0xff]
      %v2422 = vld [vmem:[%s7 + $0x6d8] sm:$0xff]
      %v2423 = vld [vmem:[%s7 + $0x6e0] sm:$0xff]
      %v2424 = vld [vmem:[%s7 + $0x6e8] sm:$0xff]
      %v2425 = vld [vmem:[%s7 + $0x6f0] sm:$0xff]
      %v2426 = vld [vmem:[%s7 + $0x6f8] sm:$0xff]
      %v2427 = vld [vmem:[%s7 + $0x700] sm:$0xff]
      %v2428 = vld [vmem:[%s7 + $0x708] sm:$0xff]
      %v2429 = vld [vmem:[%s7 + $0x710] sm:$0xff]
      %v2430 = vld [vmem:[%s7 + $0x718] sm:$0xff]
      %v2431 = vld [vmem:[%s7 + $0x720] sm:$0xff]
      %v2432 = vld [vmem:[%s7 + $0x728] sm:$0xff]
      %v2433 = vld [vmem:[%s7 + $0x730] sm:$0xff]
      %v2434 = vld [vmem:[%s7 + $0x738] sm:$0xff]
      %v2435 = vld [vmem:[%s7 + $0x740] sm:$0xff]
      %v2436 = vld [vmem:[%s7 + $0x748] sm:$0xff]
      %v2437 = vld [vmem:[%s7 + $0x750] sm:$0xff]
      %v2438 = vld [vmem:[%s7 + $0x758] sm:$0xff]
      %v2439 = vld [vmem:[%s7 + $0x760] sm:$0xff]
      %v2440 = vld [vmem:[%s7 + $0x768] sm:$0xff]
      %v2441 = vld [vmem:[%s7 + $0x770] sm:$0xff]
      %v2442 = vld [vmem:[%s7 + $0x778] sm:$0xff]
      %v2443 = vld [vmem:[%s7 + $0x780] sm:$0xff]
      %v2444 = vld [vmem:[%s7 + $0x788] sm:$0xff]
      %v2445 = vld [vmem:[%s7 + $0x790] sm:$0xff]
      %v2446 = vld [vmem:[%s7 + $0x798] sm:$0xff]
      %v2447 = vld [vmem:[%s7 + $0x7a0] sm:$0xff]
      %v2448 = vld [vmem:[%s7 + $0x7a8] sm:$0xff]
      %v2449 = vld [vmem:[%s7 + $0x7b0] sm:$0xff]
      %v2450 = vld [vmem:[%s7 + $0x7b8] sm:$0xff]
      %v2451 = vld [vmem:[%s7 + $0x7c0] sm:$0xff]
      %v2452 = vld [vmem:[%s7 + $0x7c8] sm:$0xff]
      %v2453 = vld [vmem:[%s7 + $0x7d0] sm:$0xff]
      %v2454 = vld [vmem:[%s7 + $0x7d8] sm:$0xff]
      %v2455 = vld [vmem:[%s7 + $0x7e0] sm:$0xff]
      %v2456 = vld [vmem:[%s7 + $0x7e8] sm:$0xff]
      %v2457 = vld [vmem:[%s7 + $0x7f0] sm:$0xff]
      %v2458 = vld [vmem:[%s7 + $0x7f8] sm:$0xff]
      %v2459 = vpack.c.bf16 %v2082, %v2074
      %v2460 = vpack.c.bf16 %v2083, %v2075
      %v2461 = vpack.c.bf16 %v2084, %v2076
      %v2462 = vpack.c.bf16 %v2085, %v2077
      %v2463 = vpack.c.bf16 %v2086, %v2078
      %v2464 = vpack.c.bf16 %v2087, %v2079
      %v2465 = vpack.c.bf16 %v2088, %v2080
      %v2466 = vpack.c.bf16 %v2089, %v2081
      %v2467 = vpack.c.bf16 %v2098, %v2090
      %v2468 = vpack.c.bf16 %v2099, %v2091
      %v2469 = vpack.c.bf16 %v2100, %v2092
      %v2470 = vpack.c.bf16 %v2101, %v2093
      %v2471 = vpack.c.bf16 %v2102, %v2094
      %v2472 = vpack.c.bf16 %v2103, %v2095
      %v2473 = vpack.c.bf16 %v2104, %v2096
      %v2474 = vpack.c.bf16 %v2105, %v2097
      %v2475 = vpack.c.bf16 %v2114, %v2106
      %v2476 = vpack.c.bf16 %v2115, %v2107
      %v2477 = vpack.c.bf16 %v2116, %v2108
      %v2478 = vpack.c.bf16 %v2117, %v2109
      %v2479 = vpack.c.bf16 %v2118, %v2110
      %v2480 = vpack.c.bf16 %v2119, %v2111
      %v2481 = vpack.c.bf16 %v2120, %v2112
      %v2482 = vpack.c.bf16 %v2121, %v2113
      %v2483 = vpack.c.bf16 %v2130, %v2122
      %v2484 = vpack.c.bf16 %v2131, %v2123
      %v2485 = vpack.c.bf16 %v2132, %v2124
      %v2486 = vpack.c.bf16 %v2133, %v2125
      %v2487 = vpack.c.bf16 %v2134, %v2126
      %v2488 = vpack.c.bf16 %v2135, %v2127
      %v2489 = vpack.c.bf16 %v2136, %v2128
      %v2490 = vpack.c.bf16 %v2137, %v2129
      %v2491 = vpack.c.bf16 %v2146, %v2138
      %v2492 = vpack.c.bf16 %v2147, %v2139
      %v2493 = vpack.c.bf16 %v2148, %v2140
      %v2494 = vpack.c.bf16 %v2149, %v2141
      %v2495 = vpack.c.bf16 %v2150, %v2142
      %v2496 = vpack.c.bf16 %v2151, %v2143
      %v2497 = vpack.c.bf16 %v2152, %v2144
      %v2498 = vpack.c.bf16 %v2153, %v2145
      %v2499 = vpack.c.bf16 %v2162, %v2154
      %v2500 = vpack.c.bf16 %v2163, %v2155
      %v2501 = vpack.c.bf16 %v2164, %v2156
      %v2502 = vpack.c.bf16 %v2165, %v2157
      %v2503 = vpack.c.bf16 %v2166, %v2158
      %v2504 = vpack.c.bf16 %v2167, %v2159
      %v2505 = vpack.c.bf16 %v2168, %v2160
      %v2506 = vpack.c.bf16 %v2169, %v2161
      %v2507 = vpack.c.bf16 %v2178, %v2170
      %v2508 = vpack.c.bf16 %v2179, %v2171
      %v2509 = vpack.c.bf16 %v2180, %v2172
      %v2510 = vpack.c.bf16 %v2181, %v2173
      %v2511 = vpack.c.bf16 %v2182, %v2174
      %v2512 = vpack.c.bf16 %v2183, %v2175
      %v2513 = vpack.c.bf16 %v2184, %v2176
      %v2514 = vpack.c.bf16 %v2185, %v2177
      %v2515 = vpack.c.bf16 %v2194, %v2186
      %v2516 = vpack.c.bf16 %v2195, %v2187
      %v2517 = vpack.c.bf16 %v2196, %v2188
      %v2518 = vpack.c.bf16 %v2197, %v2189
      %v2519 = vpack.c.bf16 %v2198, %v2190
      %v2520 = vpack.c.bf16 %v2199, %v2191
      %v2521 = vpack.c.bf16 %v2200, %v2192
      %v2522 = vpack.c.bf16 %v2201, %v2193
      %v2524 = vlaneseq
      %v2525 = vshrl.u32 %v2524, 7
      %v2526 = vsub.s32 0, %v2525
      %v2527 = vrot.slane %v2202, %v2526
      %v2528 = vlaneseq
      %v2529 = vshrl.u32 %v2528, 7
      %v2530 = vsub.s32 1, %v2529
      %v2531 = vrot.slane %v2202, %v2530
      %v2532 = vlaneseq
      %v2533 = vshrl.u32 %v2532, 7
      %v2534 = vsub.s32 2, %v2533
      %v2535 = vrot.slane %v2202, %v2534
      %v2536 = vlaneseq
      %v2537 = vshrl.u32 %v2536, 7
      %v2538 = vsub.s32 3, %v2537
      %v2539 = vrot.slane %v2202, %v2538
      %v2800 = vunpack.c.l.b16 %v2203
      %v2801 = vunpack.c.h.b16 %v2203
      %v2802 = vunpack.c.l.b16 %v2204
      %v2803 = vunpack.c.h.b16 %v2204
      %v2804 = vunpack.c.l.b16 %v2205
      %v2805 = vunpack.c.h.b16 %v2205
      %v2806 = vunpack.c.l.b16 %v2206
      %v2807 = vunpack.c.h.b16 %v2206
      %v2808 = vunpack.c.l.b16 %v2207
      %v2809 = vunpack.c.h.b16 %v2207
      %v2810 = vunpack.c.l.b16 %v2208
      %v2811 = vunpack.c.h.b16 %v2208
      %v2812 = vunpack.c.l.b16 %v2209
      %v2813 = vunpack.c.h.b16 %v2209
      %v2814 = vunpack.c.l.b16 %v2210
      %v2815 = vunpack.c.h.b16 %v2210
      %v2816 = vunpack.c.l.b16 %v2211
      %v2817 = vunpack.c.h.b16 %v2211
      %v2818 = vunpack.c.l.b16 %v2212
      %v2819 = vunpack.c.h.b16 %v2212
      %v2820 = vunpack.c.l.b16 %v2213
      %v2821 = vunpack.c.h.b16 %v2213
      %v2822 = vunpack.c.l.b16 %v2214
      %v2823 = vunpack.c.h.b16 %v2214
      %v2824 = vunpack.c.l.b16 %v2215
      %v2825 = vunpack.c.h.b16 %v2215
      %v2826 = vunpack.c.l.b16 %v2216
      %v2827 = vunpack.c.h.b16 %v2216
      %v2828 = vunpack.c.l.b16 %v2217
      %v2829 = vunpack.c.h.b16 %v2217
      %v2830 = vunpack.c.l.b16 %v2218
      %v2831 = vunpack.c.h.b16 %v2218
      %v2832 = vunpack.c.l.b16 %v2219
      %v2833 = vunpack.c.h.b16 %v2219
      %v2834 = vunpack.c.l.b16 %v2220
      %v2835 = vunpack.c.h.b16 %v2220
      %v2836 = vunpack.c.l.b16 %v2221
      %v2837 = vunpack.c.h.b16 %v2221
      %v2838 = vunpack.c.l.b16 %v2222
      %v2839 = vunpack.c.h.b16 %v2222
      %v2840 = vunpack.c.l.b16 %v2223
      %v2841 = vunpack.c.h.b16 %v2223
      %v2842 = vunpack.c.l.b16 %v2224
      %v2843 = vunpack.c.h.b16 %v2224
      %v2844 = vunpack.c.l.b16 %v2225
      %v2845 = vunpack.c.h.b16 %v2225
      %v2846 = vunpack.c.l.b16 %v2226
      %v2847 = vunpack.c.h.b16 %v2226
      %v2848 = vunpack.c.l.b16 %v2227
      %v2849 = vunpack.c.h.b16 %v2227
      %v2850 = vunpack.c.l.b16 %v2228
      %v2851 = vunpack.c.h.b16 %v2228
      %v2852 = vunpack.c.l.b16 %v2229
      %v2853 = vunpack.c.h.b16 %v2229
      %v2854 = vunpack.c.l.b16 %v2230
      %v2855 = vunpack.c.h.b16 %v2230
      %v2856 = vunpack.c.l.b16 %v2231
      %v2857 = vunpack.c.h.b16 %v2231
      %v2858 = vunpack.c.l.b16 %v2232
      %v2859 = vunpack.c.h.b16 %v2232
      %v2860 = vunpack.c.l.b16 %v2233
      %v2861 = vunpack.c.h.b16 %v2233
      %v2862 = vunpack.c.l.b16 %v2234
      %v2863 = vunpack.c.h.b16 %v2234
      %v2864 = vunpack.c.l.b16 %v2235
      %v2865 = vunpack.c.h.b16 %v2235
      %v2866 = vunpack.c.l.b16 %v2236
      %v2867 = vunpack.c.h.b16 %v2236
      %v2868 = vunpack.c.l.b16 %v2237
      %v2869 = vunpack.c.h.b16 %v2237
      %v2870 = vunpack.c.l.b16 %v2238
      %v2871 = vunpack.c.h.b16 %v2238
      %v2872 = vunpack.c.l.b16 %v2239
      %v2873 = vunpack.c.h.b16 %v2239
      %v2874 = vunpack.c.l.b16 %v2240
      %v2875 = vunpack.c.h.b16 %v2240
      %v2876 = vunpack.c.l.b16 %v2241
      %v2877 = vunpack.c.h.b16 %v2241
      %v2878 = vunpack.c.l.b16 %v2242
      %v2879 = vunpack.c.h.b16 %v2242
      %v2880 = vunpack.c.l.b16 %v2243
      %v2881 = vunpack.c.h.b16 %v2243
      %v2882 = vunpack.c.l.b16 %v2244
      %v2883 = vunpack.c.h.b16 %v2244
      %v2884 = vunpack.c.l.b16 %v2245
      %v2885 = vunpack.c.h.b16 %v2245
      %v2886 = vunpack.c.l.b16 %v2246
      %v2887 = vunpack.c.h.b16 %v2246
      %v2888 = vunpack.c.l.b16 %v2247
      %v2889 = vunpack.c.h.b16 %v2247
      %v2890 = vunpack.c.l.b16 %v2248
      %v2891 = vunpack.c.h.b16 %v2248
      %v2892 = vunpack.c.l.b16 %v2249
      %v2893 = vunpack.c.h.b16 %v2249
      %v2894 = vunpack.c.l.b16 %v2250
      %v2895 = vunpack.c.h.b16 %v2250
      %v2896 = vunpack.c.l.b16 %v2251
      %v2897 = vunpack.c.h.b16 %v2251
      %v2898 = vunpack.c.l.b16 %v2252
      %v2899 = vunpack.c.h.b16 %v2252
      %v2900 = vunpack.c.l.b16 %v2253
      %v2901 = vunpack.c.h.b16 %v2253
      %v2902 = vunpack.c.l.b16 %v2254
      %v2903 = vunpack.c.h.b16 %v2254
      %v2904 = vunpack.c.l.b16 %v2255
      %v2905 = vunpack.c.h.b16 %v2255
      %v2906 = vunpack.c.l.b16 %v2256
      %v2907 = vunpack.c.h.b16 %v2256
      %v2908 = vunpack.c.l.b16 %v2257
      %v2909 = vunpack.c.h.b16 %v2257
      %v2910 = vunpack.c.l.b16 %v2258
      %v2911 = vunpack.c.h.b16 %v2258
      %v2912 = vunpack.c.l.b16 %v2259
      %v2913 = vunpack.c.h.b16 %v2259
      %v2914 = vunpack.c.l.b16 %v2260
      %v2915 = vunpack.c.h.b16 %v2260
      %v2916 = vunpack.c.l.b16 %v2261
      %v2917 = vunpack.c.h.b16 %v2261
      %v2918 = vunpack.c.l.b16 %v2262
      %v2919 = vunpack.c.h.b16 %v2262
      %v2920 = vunpack.c.l.b16 %v2263
      %v2921 = vunpack.c.h.b16 %v2263
      %v2922 = vunpack.c.l.b16 %v2264
      %v2923 = vunpack.c.h.b16 %v2264
      %v2924 = vunpack.c.l.b16 %v2265
      %v2925 = vunpack.c.h.b16 %v2265
      %v2926 = vunpack.c.l.b16 %v2266
      %v2927 = vunpack.c.h.b16 %v2266
      %v2928 = vunpack.c.l.b16 %v2267
      %v2929 = vunpack.c.h.b16 %v2267
      %v2930 = vunpack.c.l.b16 %v2268
      %v2931 = vunpack.c.h.b16 %v2268
      %v2932 = vunpack.c.l.b16 %v2269
      %v2933 = vunpack.c.h.b16 %v2269
      %v2934 = vunpack.c.l.b16 %v2270
      %v2935 = vunpack.c.h.b16 %v2270
      %v2936 = vunpack.c.l.b16 %v2271
      %v2937 = vunpack.c.h.b16 %v2271
      %v2938 = vunpack.c.l.b16 %v2272
      %v2939 = vunpack.c.h.b16 %v2272
      %v2940 = vunpack.c.l.b16 %v2273
      %v2941 = vunpack.c.h.b16 %v2273
      %v2942 = vunpack.c.l.b16 %v2274
      %v2943 = vunpack.c.h.b16 %v2274
      %v2944 = vunpack.c.l.b16 %v2275
      %v2945 = vunpack.c.h.b16 %v2275
      %v2946 = vunpack.c.l.b16 %v2276
      %v2947 = vunpack.c.h.b16 %v2276
      %v2948 = vunpack.c.l.b16 %v2277
      %v2949 = vunpack.c.h.b16 %v2277
      %v2950 = vunpack.c.l.b16 %v2278
      %v2951 = vunpack.c.h.b16 %v2278
      %v2952 = vunpack.c.l.b16 %v2279
      %v2953 = vunpack.c.h.b16 %v2279
      %v2954 = vunpack.c.l.b16 %v2280
      %v2955 = vunpack.c.h.b16 %v2280
      %v2956 = vunpack.c.l.b16 %v2281
      %v2957 = vunpack.c.h.b16 %v2281
      %v2958 = vunpack.c.l.b16 %v2282
      %v2959 = vunpack.c.h.b16 %v2282
      %v2960 = vunpack.c.l.b16 %v2283
      %v2961 = vunpack.c.h.b16 %v2283
      %v2962 = vunpack.c.l.b16 %v2284
      %v2963 = vunpack.c.h.b16 %v2284
      %v2964 = vunpack.c.l.b16 %v2285
      %v2965 = vunpack.c.h.b16 %v2285
      %v2966 = vunpack.c.l.b16 %v2286
      %v2967 = vunpack.c.h.b16 %v2286
      %v2968 = vunpack.c.l.b16 %v2287
      %v2969 = vunpack.c.h.b16 %v2287
      %v2970 = vunpack.c.l.b16 %v2288
      %v2971 = vunpack.c.h.b16 %v2288
      %v2972 = vunpack.c.l.b16 %v2289
      %v2973 = vunpack.c.h.b16 %v2289
      %v2974 = vunpack.c.l.b16 %v2290
      %v2975 = vunpack.c.h.b16 %v2290
      %v2976 = vunpack.c.l.b16 %v2291
      %v2977 = vunpack.c.h.b16 %v2291
      %v2978 = vunpack.c.l.b16 %v2292
      %v2979 = vunpack.c.h.b16 %v2292
      %v2980 = vunpack.c.l.b16 %v2293
      %v2981 = vunpack.c.h.b16 %v2293
      %v2982 = vunpack.c.l.b16 %v2294
      %v2983 = vunpack.c.h.b16 %v2294
      %v2984 = vunpack.c.l.b16 %v2295
      %v2985 = vunpack.c.h.b16 %v2295
      %v2986 = vunpack.c.l.b16 %v2296
      %v2987 = vunpack.c.h.b16 %v2296
      %v2988 = vunpack.c.l.b16 %v2297
      %v2989 = vunpack.c.h.b16 %v2297
      %v2990 = vunpack.c.l.b16 %v2298
      %v2991 = vunpack.c.h.b16 %v2298
      %v2992 = vunpack.c.l.b16 %v2299
      %v2993 = vunpack.c.h.b16 %v2299
      %v2994 = vunpack.c.l.b16 %v2300
      %v2995 = vunpack.c.h.b16 %v2300
      %v2996 = vunpack.c.l.b16 %v2301
      %v2997 = vunpack.c.h.b16 %v2301
      %v2998 = vunpack.c.l.b16 %v2302
      %v2999 = vunpack.c.h.b16 %v2302
      %v3000 = vunpack.c.l.b16 %v2303
      %v3001 = vunpack.c.h.b16 %v2303
      %v3002 = vunpack.c.l.b16 %v2304
      %v3003 = vunpack.c.h.b16 %v2304
      %v3004 = vunpack.c.l.b16 %v2305
      %v3005 = vunpack.c.h.b16 %v2305
      %v3006 = vunpack.c.l.b16 %v2306
      %v3007 = vunpack.c.h.b16 %v2306
      %v3008 = vunpack.c.l.b16 %v2307
      %v3009 = vunpack.c.h.b16 %v2307
      %v3010 = vunpack.c.l.b16 %v2308
      %v3011 = vunpack.c.h.b16 %v2308
      %v3012 = vunpack.c.l.b16 %v2309
      %v3013 = vunpack.c.h.b16 %v2309
      %v3014 = vunpack.c.l.b16 %v2310
      %v3015 = vunpack.c.h.b16 %v2310
      %v3016 = vunpack.c.l.b16 %v2311
      %v3017 = vunpack.c.h.b16 %v2311
      %v3018 = vunpack.c.l.b16 %v2312
      %v3019 = vunpack.c.h.b16 %v2312
      %v3020 = vunpack.c.l.b16 %v2313
      %v3021 = vunpack.c.h.b16 %v2313
      %v3022 = vunpack.c.l.b16 %v2314
      %v3023 = vunpack.c.h.b16 %v2314
      %v3024 = vunpack.c.l.b16 %v2315
      %v3025 = vunpack.c.h.b16 %v2315
      %v3026 = vunpack.c.l.b16 %v2316
      %v3027 = vunpack.c.h.b16 %v2316
      %v3028 = vunpack.c.l.b16 %v2317
      %v3029 = vunpack.c.h.b16 %v2317
      %v3030 = vunpack.c.l.b16 %v2318
      %v3031 = vunpack.c.h.b16 %v2318
      %v3032 = vunpack.c.l.b16 %v2319
      %v3033 = vunpack.c.h.b16 %v2319
      %v3034 = vunpack.c.l.b16 %v2320
      %v3035 = vunpack.c.h.b16 %v2320
      %v3036 = vunpack.c.l.b16 %v2321
      %v3037 = vunpack.c.h.b16 %v2321
      %v3038 = vunpack.c.l.b16 %v2322
      %v3039 = vunpack.c.h.b16 %v2322
      %v3040 = vunpack.c.l.b16 %v2323
      %v3041 = vunpack.c.h.b16 %v2323
      %v3042 = vunpack.c.l.b16 %v2324
      %v3043 = vunpack.c.h.b16 %v2324
      %v3044 = vunpack.c.l.b16 %v2325
      %v3045 = vunpack.c.h.b16 %v2325
      %v3046 = vunpack.c.l.b16 %v2326
      %v3047 = vunpack.c.h.b16 %v2326
      %v3048 = vunpack.c.l.b16 %v2327
      %v3049 = vunpack.c.h.b16 %v2327
      %v3050 = vunpack.c.l.b16 %v2328
      %v3051 = vunpack.c.h.b16 %v2328
      %v3052 = vunpack.c.l.b16 %v2329
      %v3053 = vunpack.c.h.b16 %v2329
      %v3054 = vunpack.c.l.b16 %v2330
      %v3055 = vunpack.c.h.b16 %v2330
      %v3056 = vunpack.c.l.b16 %v2331
      %v3057 = vunpack.c.h.b16 %v2331
      %v3058 = vunpack.c.l.b16 %v2332
      %v3059 = vunpack.c.h.b16 %v2332
      %v3060 = vunpack.c.l.b16 %v2333
      %v3061 = vunpack.c.h.b16 %v2333
      %v3062 = vunpack.c.l.b16 %v2334
      %v3063 = vunpack.c.h.b16 %v2334
      %v3064 = vunpack.c.l.b16 %v2335
      %v3065 = vunpack.c.h.b16 %v2335
      %v3066 = vunpack.c.l.b16 %v2336
      %v3067 = vunpack.c.h.b16 %v2336
      %v3068 = vunpack.c.l.b16 %v2337
      %v3069 = vunpack.c.h.b16 %v2337
      %v3070 = vunpack.c.l.b16 %v2338
      %v3071 = vunpack.c.h.b16 %v2338
      %v3072 = vunpack.c.l.b16 %v2339
      %v3073 = vunpack.c.h.b16 %v2339
      %v3074 = vunpack.c.l.b16 %v2340
      %v3075 = vunpack.c.h.b16 %v2340
      %v3076 = vunpack.c.l.b16 %v2341
      %v3077 = vunpack.c.h.b16 %v2341
      %v3078 = vunpack.c.l.b16 %v2342
      %v3079 = vunpack.c.h.b16 %v2342
      %v3080 = vunpack.c.l.b16 %v2343
      %v3081 = vunpack.c.h.b16 %v2343
      %v3082 = vunpack.c.l.b16 %v2344
      %v3083 = vunpack.c.h.b16 %v2344
      %v3084 = vunpack.c.l.b16 %v2345
      %v3085 = vunpack.c.h.b16 %v2345
      %v3086 = vunpack.c.l.b16 %v2346
      %v3087 = vunpack.c.h.b16 %v2346
      %v3088 = vunpack.c.l.b16 %v2347
      %v3089 = vunpack.c.h.b16 %v2347
      %v3090 = vunpack.c.l.b16 %v2348
      %v3091 = vunpack.c.h.b16 %v2348
      %v3092 = vunpack.c.l.b16 %v2349
      %v3093 = vunpack.c.h.b16 %v2349
      %v3094 = vunpack.c.l.b16 %v2350
      %v3095 = vunpack.c.h.b16 %v2350
      %v3096 = vunpack.c.l.b16 %v2351
      %v3097 = vunpack.c.h.b16 %v2351
      %v3098 = vunpack.c.l.b16 %v2352
      %v3099 = vunpack.c.h.b16 %v2352
      %v3100 = vunpack.c.l.b16 %v2353
      %v3101 = vunpack.c.h.b16 %v2353
      %v3102 = vunpack.c.l.b16 %v2354
      %v3103 = vunpack.c.h.b16 %v2354
      %v3104 = vunpack.c.l.b16 %v2355
      %v3105 = vunpack.c.h.b16 %v2355
      %v3106 = vunpack.c.l.b16 %v2356
      %v3107 = vunpack.c.h.b16 %v2356
      %v3108 = vunpack.c.l.b16 %v2357
      %v3109 = vunpack.c.h.b16 %v2357
      %v3110 = vunpack.c.l.b16 %v2358
      %v3111 = vunpack.c.h.b16 %v2358
      %v3112 = vunpack.c.l.b16 %v2359
      %v3113 = vunpack.c.h.b16 %v2359
      %v3114 = vunpack.c.l.b16 %v2360
      %v3115 = vunpack.c.h.b16 %v2360
      %v3116 = vunpack.c.l.b16 %v2361
      %v3117 = vunpack.c.h.b16 %v2361
      %v3118 = vunpack.c.l.b16 %v2362
      %v3119 = vunpack.c.h.b16 %v2362
      %v3120 = vunpack.c.l.b16 %v2363
      %v3121 = vunpack.c.h.b16 %v2363
      %v3122 = vunpack.c.l.b16 %v2364
      %v3123 = vunpack.c.h.b16 %v2364
      %v3124 = vunpack.c.l.b16 %v2365
      %v3125 = vunpack.c.h.b16 %v2365
      %v3126 = vunpack.c.l.b16 %v2366
      %v3127 = vunpack.c.h.b16 %v2366
      %v3128 = vunpack.c.l.b16 %v2367
      %v3129 = vunpack.c.h.b16 %v2367
      %v3130 = vunpack.c.l.b16 %v2368
      %v3131 = vunpack.c.h.b16 %v2368
      %v3132 = vunpack.c.l.b16 %v2369
      %v3133 = vunpack.c.h.b16 %v2369
      %v3134 = vunpack.c.l.b16 %v2370
      %v3135 = vunpack.c.h.b16 %v2370
      %v3136 = vunpack.c.l.b16 %v2371
      %v3137 = vunpack.c.h.b16 %v2371
      %v3138 = vunpack.c.l.b16 %v2372
      %v3139 = vunpack.c.h.b16 %v2372
      %v3140 = vunpack.c.l.b16 %v2373
      %v3141 = vunpack.c.h.b16 %v2373
      %v3142 = vunpack.c.l.b16 %v2374
      %v3143 = vunpack.c.h.b16 %v2374
      %v3144 = vunpack.c.l.b16 %v2375
      %v3145 = vunpack.c.h.b16 %v2375
      %v3146 = vunpack.c.l.b16 %v2376
      %v3147 = vunpack.c.h.b16 %v2376
      %v3148 = vunpack.c.l.b16 %v2377
      %v3149 = vunpack.c.h.b16 %v2377
      %v3150 = vunpack.c.l.b16 %v2378
      %v3151 = vunpack.c.h.b16 %v2378
      %v3152 = vunpack.c.l.b16 %v2379
      %v3153 = vunpack.c.h.b16 %v2379
      %v3154 = vunpack.c.l.b16 %v2380
      %v3155 = vunpack.c.h.b16 %v2380
      %v3156 = vunpack.c.l.b16 %v2381
      %v3157 = vunpack.c.h.b16 %v2381
      %v3158 = vunpack.c.l.b16 %v2382
      %v3159 = vunpack.c.h.b16 %v2382
      %v3160 = vunpack.c.l.b16 %v2383
      %v3161 = vunpack.c.h.b16 %v2383
      %v3162 = vunpack.c.l.b16 %v2384
      %v3163 = vunpack.c.h.b16 %v2384
      %v3164 = vunpack.c.l.b16 %v2385
      %v3165 = vunpack.c.h.b16 %v2385
      %v3166 = vunpack.c.l.b16 %v2386
      %v3167 = vunpack.c.h.b16 %v2386
      %v3168 = vunpack.c.l.b16 %v2387
      %v3169 = vunpack.c.h.b16 %v2387
      %v3170 = vunpack.c.l.b16 %v2388
      %v3171 = vunpack.c.h.b16 %v2388
      %v3172 = vunpack.c.l.b16 %v2389
      %v3173 = vunpack.c.h.b16 %v2389
      %v3174 = vunpack.c.l.b16 %v2390
      %v3175 = vunpack.c.h.b16 %v2390
      %v3176 = vunpack.c.l.b16 %v2391
      %v3177 = vunpack.c.h.b16 %v2391
      %v3178 = vunpack.c.l.b16 %v2392
      %v3179 = vunpack.c.h.b16 %v2392
      %v3180 = vunpack.c.l.b16 %v2393
      %v3181 = vunpack.c.h.b16 %v2393
      %v3182 = vunpack.c.l.b16 %v2394
      %v3183 = vunpack.c.h.b16 %v2394
      %v3184 = vunpack.c.l.b16 %v2395
      %v3185 = vunpack.c.h.b16 %v2395
      %v3186 = vunpack.c.l.b16 %v2396
      %v3187 = vunpack.c.h.b16 %v2396
      %v3188 = vunpack.c.l.b16 %v2397
      %v3189 = vunpack.c.h.b16 %v2397
      %v3190 = vunpack.c.l.b16 %v2398
      %v3191 = vunpack.c.h.b16 %v2398
      %v3192 = vunpack.c.l.b16 %v2399
      %v3193 = vunpack.c.h.b16 %v2399
      %v3194 = vunpack.c.l.b16 %v2400
      %v3195 = vunpack.c.h.b16 %v2400
      %v3196 = vunpack.c.l.b16 %v2401
      %v3197 = vunpack.c.h.b16 %v2401
      %v3198 = vunpack.c.l.b16 %v2402
      %v3199 = vunpack.c.h.b16 %v2402
      %v3200 = vunpack.c.l.b16 %v2403
      %v3201 = vunpack.c.h.b16 %v2403
      %v3202 = vunpack.c.l.b16 %v2404
      %v3203 = vunpack.c.h.b16 %v2404
      %v3204 = vunpack.c.l.b16 %v2405
      %v3205 = vunpack.c.h.b16 %v2405
      %v3206 = vunpack.c.l.b16 %v2406
      %v3207 = vunpack.c.h.b16 %v2406
      %v3208 = vunpack.c.l.b16 %v2407
      %v3209 = vunpack.c.h.b16 %v2407
      %v3210 = vunpack.c.l.b16 %v2408
      %v3211 = vunpack.c.h.b16 %v2408
      %v3212 = vunpack.c.l.b16 %v2409
      %v3213 = vunpack.c.h.b16 %v2409
      %v3214 = vunpack.c.l.b16 %v2410
      %v3215 = vunpack.c.h.b16 %v2410
      %v3216 = vunpack.c.l.b16 %v2411
      %v3217 = vunpack.c.h.b16 %v2411
      %v3218 = vunpack.c.l.b16 %v2412
      %v3219 = vunpack.c.h.b16 %v2412
      %v3220 = vunpack.c.l.b16 %v2413
      %v3221 = vunpack.c.h.b16 %v2413
      %v3222 = vunpack.c.l.b16 %v2414
      %v3223 = vunpack.c.h.b16 %v2414
      %v3224 = vunpack.c.l.b16 %v2415
      %v3225 = vunpack.c.h.b16 %v2415
      %v3226 = vunpack.c.l.b16 %v2416
      %v3227 = vunpack.c.h.b16 %v2416
      %v3228 = vunpack.c.l.b16 %v2417
      %v3229 = vunpack.c.h.b16 %v2417
      %v3230 = vunpack.c.l.b16 %v2418
      %v3231 = vunpack.c.h.b16 %v2418
      %v3232 = vunpack.c.l.b16 %v2419
      %v3233 = vunpack.c.h.b16 %v2419
      %v3234 = vunpack.c.l.b16 %v2420
      %v3235 = vunpack.c.h.b16 %v2420
      %v3236 = vunpack.c.l.b16 %v2421
      %v3237 = vunpack.c.h.b16 %v2421
      %v3238 = vunpack.c.l.b16 %v2422
      %v3239 = vunpack.c.h.b16 %v2422
      %v3240 = vunpack.c.l.b16 %v2423
      %v3241 = vunpack.c.h.b16 %v2423
      %v3242 = vunpack.c.l.b16 %v2424
      %v3243 = vunpack.c.h.b16 %v2424
      %v3244 = vunpack.c.l.b16 %v2425
      %v3245 = vunpack.c.h.b16 %v2425
      %v3246 = vunpack.c.l.b16 %v2426
      %v3247 = vunpack.c.h.b16 %v2426
      %v3248 = vunpack.c.l.b16 %v2427
      %v3249 = vunpack.c.h.b16 %v2427
      %v3250 = vunpack.c.l.b16 %v2428
      %v3251 = vunpack.c.h.b16 %v2428
      %v3252 = vunpack.c.l.b16 %v2429
      %v3253 = vunpack.c.h.b16 %v2429
      %v3254 = vunpack.c.l.b16 %v2430
      %v3255 = vunpack.c.h.b16 %v2430
      %v3256 = vunpack.c.l.b16 %v2431
      %v3257 = vunpack.c.h.b16 %v2431
      %v3258 = vunpack.c.l.b16 %v2432
      %v3259 = vunpack.c.h.b16 %v2432
      %v3260 = vunpack.c.l.b16 %v2433
      %v3261 = vunpack.c.h.b16 %v2433
      %v3262 = vunpack.c.l.b16 %v2434
      %v3263 = vunpack.c.h.b16 %v2434
      %v3264 = vunpack.c.l.b16 %v2435
      %v3265 = vunpack.c.h.b16 %v2435
      %v3266 = vunpack.c.l.b16 %v2436
      %v3267 = vunpack.c.h.b16 %v2436
      %v3268 = vunpack.c.l.b16 %v2437
      %v3269 = vunpack.c.h.b16 %v2437
      %v3270 = vunpack.c.l.b16 %v2438
      %v3271 = vunpack.c.h.b16 %v2438
      %v3272 = vunpack.c.l.b16 %v2439
      %v3273 = vunpack.c.h.b16 %v2439
      %v3274 = vunpack.c.l.b16 %v2440
      %v3275 = vunpack.c.h.b16 %v2440
      %v3276 = vunpack.c.l.b16 %v2441
      %v3277 = vunpack.c.h.b16 %v2441
      %v3278 = vunpack.c.l.b16 %v2442
      %v3279 = vunpack.c.h.b16 %v2442
      %v3280 = vunpack.c.l.b16 %v2443
      %v3281 = vunpack.c.h.b16 %v2443
      %v3282 = vunpack.c.l.b16 %v2444
      %v3283 = vunpack.c.h.b16 %v2444
      %v3284 = vunpack.c.l.b16 %v2445
      %v3285 = vunpack.c.h.b16 %v2445
      %v3286 = vunpack.c.l.b16 %v2446
      %v3287 = vunpack.c.h.b16 %v2446
      %v3288 = vunpack.c.l.b16 %v2447
      %v3289 = vunpack.c.h.b16 %v2447
      %v3290 = vunpack.c.l.b16 %v2448
      %v3291 = vunpack.c.h.b16 %v2448
      %v3292 = vunpack.c.l.b16 %v2449
      %v3293 = vunpack.c.h.b16 %v2449
      %v3294 = vunpack.c.l.b16 %v2450
      %v3295 = vunpack.c.h.b16 %v2450
      %v3296 = vunpack.c.l.b16 %v2451
      %v3297 = vunpack.c.h.b16 %v2451
      %v3298 = vunpack.c.l.b16 %v2452
      %v3299 = vunpack.c.h.b16 %v2452
      %v3300 = vunpack.c.l.b16 %v2453
      %v3301 = vunpack.c.h.b16 %v2453
      %v3302 = vunpack.c.l.b16 %v2454
      %v3303 = vunpack.c.h.b16 %v2454
      %v3304 = vunpack.c.l.b16 %v2455
      %v3305 = vunpack.c.h.b16 %v2455
      %v3306 = vunpack.c.l.b16 %v2456
      %v3307 = vunpack.c.h.b16 %v2456
      %v3308 = vunpack.c.l.b16 %v2457
      %v3309 = vunpack.c.h.b16 %v2457
      %v3310 = vunpack.c.l.b16 %v2458
      %v3311 = vunpack.c.h.b16 %v2458
      %v3312 = vpack.c.b16 %v2804, %v2800
      %v3313 = vpack.c.b16 %v2805, %v2801
      %v3314 = vpack.c.b16 %v2806, %v2802
      %v3315 = vpack.c.b16 %v2807, %v2803
      %v3316 = vpack.c.b16 %v2812, %v2808
      %v3317 = vpack.c.b16 %v2813, %v2809
      %v3318 = vpack.c.b16 %v2814, %v2810
      %v3319 = vpack.c.b16 %v2815, %v2811
      %v3320 = vpack.c.b16 %v2820, %v2816
      %v3321 = vpack.c.b16 %v2821, %v2817
      %v3322 = vpack.c.b16 %v2822, %v2818
      %v3323 = vpack.c.b16 %v2823, %v2819
      %v3324 = vpack.c.b16 %v2828, %v2824
      %v3325 = vpack.c.b16 %v2829, %v2825
      %v3326 = vpack.c.b16 %v2830, %v2826
      %v3327 = vpack.c.b16 %v2831, %v2827
      %v3328 = vpack.c.b16 %v2836, %v2832
      %v3329 = vpack.c.b16 %v2837, %v2833
      %v3330 = vpack.c.b16 %v2838, %v2834
      %v3331 = vpack.c.b16 %v2839, %v2835
      %v3332 = vpack.c.b16 %v2844, %v2840
      %v3333 = vpack.c.b16 %v2845, %v2841
      %v3334 = vpack.c.b16 %v2846, %v2842
      %v3335 = vpack.c.b16 %v2847, %v2843
      %v3336 = vpack.c.b16 %v2852, %v2848
      %v3337 = vpack.c.b16 %v2853, %v2849
      %v3338 = vpack.c.b16 %v2854, %v2850
      %v3339 = vpack.c.b16 %v2855, %v2851
      %v3340 = vpack.c.b16 %v2860, %v2856
      %v3341 = vpack.c.b16 %v2861, %v2857
      %v3342 = vpack.c.b16 %v2862, %v2858
      %v3343 = vpack.c.b16 %v2863, %v2859
      %v3344 = vpack.c.b16 %v2868, %v2864
      %v3345 = vpack.c.b16 %v2869, %v2865
      %v3346 = vpack.c.b16 %v2870, %v2866
      %v3347 = vpack.c.b16 %v2871, %v2867
      %v3348 = vpack.c.b16 %v2876, %v2872
      %v3349 = vpack.c.b16 %v2877, %v2873
      %v3350 = vpack.c.b16 %v2878, %v2874
      %v3351 = vpack.c.b16 %v2879, %v2875
      %v3352 = vpack.c.b16 %v2884, %v2880
      %v3353 = vpack.c.b16 %v2885, %v2881
      %v3354 = vpack.c.b16 %v2886, %v2882
      %v3355 = vpack.c.b16 %v2887, %v2883
      %v3356 = vpack.c.b16 %v2892, %v2888
      %v3357 = vpack.c.b16 %v2893, %v2889
      %v3358 = vpack.c.b16 %v2894, %v2890
      %v3359 = vpack.c.b16 %v2895, %v2891
      %v3360 = vpack.c.b16 %v2900, %v2896
      %v3361 = vpack.c.b16 %v2901, %v2897
      %v3362 = vpack.c.b16 %v2902, %v2898
      %v3363 = vpack.c.b16 %v2903, %v2899
      %v3364 = vpack.c.b16 %v2908, %v2904
      %v3365 = vpack.c.b16 %v2909, %v2905
      %v3366 = vpack.c.b16 %v2910, %v2906
      %v3367 = vpack.c.b16 %v2911, %v2907
      %v3368 = vpack.c.b16 %v2916, %v2912
      %v3369 = vpack.c.b16 %v2917, %v2913
      %v3370 = vpack.c.b16 %v2918, %v2914
      %v3371 = vpack.c.b16 %v2919, %v2915
      %v3372 = vpack.c.b16 %v2924, %v2920
      %v3373 = vpack.c.b16 %v2925, %v2921
      %v3374 = vpack.c.b16 %v2926, %v2922
      %v3375 = vpack.c.b16 %v2927, %v2923
      %v3376 = vpack.c.b16 %v2932, %v2928
      %v3377 = vpack.c.b16 %v2933, %v2929
      %v3378 = vpack.c.b16 %v2934, %v2930
      %v3379 = vpack.c.b16 %v2935, %v2931
      %v3380 = vpack.c.b16 %v2940, %v2936
      %v3381 = vpack.c.b16 %v2941, %v2937
      %v3382 = vpack.c.b16 %v2942, %v2938
      %v3383 = vpack.c.b16 %v2943, %v2939
      %v3384 = vpack.c.b16 %v2948, %v2944
      %v3385 = vpack.c.b16 %v2949, %v2945
      %v3386 = vpack.c.b16 %v2950, %v2946
      %v3387 = vpack.c.b16 %v2951, %v2947
      %v3388 = vpack.c.b16 %v2956, %v2952
      %v3389 = vpack.c.b16 %v2957, %v2953
      %v3390 = vpack.c.b16 %v2958, %v2954
      %v3391 = vpack.c.b16 %v2959, %v2955
      %v3392 = vpack.c.b16 %v2964, %v2960
      %v3393 = vpack.c.b16 %v2965, %v2961
      %v3394 = vpack.c.b16 %v2966, %v2962
      %v3395 = vpack.c.b16 %v2967, %v2963
      %v3396 = vpack.c.b16 %v2972, %v2968
      %v3397 = vpack.c.b16 %v2973, %v2969
      %v3398 = vpack.c.b16 %v2974, %v2970
      %v3399 = vpack.c.b16 %v2975, %v2971
      %v3400 = vpack.c.b16 %v2980, %v2976
      %v3401 = vpack.c.b16 %v2981, %v2977
      %v3402 = vpack.c.b16 %v2982, %v2978
      %v3403 = vpack.c.b16 %v2983, %v2979
      %v3404 = vpack.c.b16 %v2988, %v2984
      %v3405 = vpack.c.b16 %v2989, %v2985
      %v3406 = vpack.c.b16 %v2990, %v2986
      %v3407 = vpack.c.b16 %v2991, %v2987
      %v3408 = vpack.c.b16 %v2996, %v2992
      %v3409 = vpack.c.b16 %v2997, %v2993
      %v3410 = vpack.c.b16 %v2998, %v2994
      %v3411 = vpack.c.b16 %v2999, %v2995
      %v3412 = vpack.c.b16 %v3004, %v3000
      %v3413 = vpack.c.b16 %v3005, %v3001
      %v3414 = vpack.c.b16 %v3006, %v3002
      %v3415 = vpack.c.b16 %v3007, %v3003
      %v3416 = vpack.c.b16 %v3012, %v3008
      %v3417 = vpack.c.b16 %v3013, %v3009
      %v3418 = vpack.c.b16 %v3014, %v3010
      %v3419 = vpack.c.b16 %v3015, %v3011
      %v3420 = vpack.c.b16 %v3020, %v3016
      %v3421 = vpack.c.b16 %v3021, %v3017
      %v3422 = vpack.c.b16 %v3022, %v3018
      %v3423 = vpack.c.b16 %v3023, %v3019
      %v3424 = vpack.c.b16 %v3028, %v3024
      %v3425 = vpack.c.b16 %v3029, %v3025
      %v3426 = vpack.c.b16 %v3030, %v3026
      %v3427 = vpack.c.b16 %v3031, %v3027
      %v3428 = vpack.c.b16 %v3036, %v3032
      %v3429 = vpack.c.b16 %v3037, %v3033
      %v3430 = vpack.c.b16 %v3038, %v3034
      %v3431 = vpack.c.b16 %v3039, %v3035
      %v3432 = vpack.c.b16 %v3044, %v3040
      %v3433 = vpack.c.b16 %v3045, %v3041
      %v3434 = vpack.c.b16 %v3046, %v3042
      %v3435 = vpack.c.b16 %v3047, %v3043
      %v3436 = vpack.c.b16 %v3052, %v3048
      %v3437 = vpack.c.b16 %v3053, %v3049
      %v3438 = vpack.c.b16 %v3054, %v3050
      %v3439 = vpack.c.b16 %v3055, %v3051
      %v3440 = vpack.c.b16 %v3060, %v3056
      %v3441 = vpack.c.b16 %v3061, %v3057
      %v3442 = vpack.c.b16 %v3062, %v3058
      %v3443 = vpack.c.b16 %v3063, %v3059
      %v3444 = vpack.c.b16 %v3068, %v3064
      %v3445 = vpack.c.b16 %v3069, %v3065
      %v3446 = vpack.c.b16 %v3070, %v3066
      %v3447 = vpack.c.b16 %v3071, %v3067
      %v3448 = vpack.c.b16 %v3076, %v3072
      %v3449 = vpack.c.b16 %v3077, %v3073
      %v3450 = vpack.c.b16 %v3078, %v3074
      %v3451 = vpack.c.b16 %v3079, %v3075
      %v3452 = vpack.c.b16 %v3084, %v3080
      %v3453 = vpack.c.b16 %v3085, %v3081
      %v3454 = vpack.c.b16 %v3086, %v3082
      %v3455 = vpack.c.b16 %v3087, %v3083
      %v3456 = vpack.c.b16 %v3092, %v3088
      %v3457 = vpack.c.b16 %v3093, %v3089
      %v3458 = vpack.c.b16 %v3094, %v3090
      %v3459 = vpack.c.b16 %v3095, %v3091
      %v3460 = vpack.c.b16 %v3100, %v3096
      %v3461 = vpack.c.b16 %v3101, %v3097
      %v3462 = vpack.c.b16 %v3102, %v3098
      %v3463 = vpack.c.b16 %v3103, %v3099
      %v3464 = vpack.c.b16 %v3108, %v3104
      %v3465 = vpack.c.b16 %v3109, %v3105
      %v3466 = vpack.c.b16 %v3110, %v3106
      %v3467 = vpack.c.b16 %v3111, %v3107
      %v3468 = vpack.c.b16 %v3116, %v3112
      %v3469 = vpack.c.b16 %v3117, %v3113
      %v3470 = vpack.c.b16 %v3118, %v3114
      %v3471 = vpack.c.b16 %v3119, %v3115
      %v3472 = vpack.c.b16 %v3124, %v3120
      %v3473 = vpack.c.b16 %v3125, %v3121
      %v3474 = vpack.c.b16 %v3126, %v3122
      %v3475 = vpack.c.b16 %v3127, %v3123
      %v3476 = vpack.c.b16 %v3132, %v3128
      %v3477 = vpack.c.b16 %v3133, %v3129
      %v3478 = vpack.c.b16 %v3134, %v3130
      %v3479 = vpack.c.b16 %v3135, %v3131
      %v3480 = vpack.c.b16 %v3140, %v3136
      %v3481 = vpack.c.b16 %v3141, %v3137
      %v3482 = vpack.c.b16 %v3142, %v3138
      %v3483 = vpack.c.b16 %v3143, %v3139
      %v3484 = vpack.c.b16 %v3148, %v3144
      %v3485 = vpack.c.b16 %v3149, %v3145
      %v3486 = vpack.c.b16 %v3150, %v3146
      %v3487 = vpack.c.b16 %v3151, %v3147
      %v3488 = vpack.c.b16 %v3156, %v3152
      %v3489 = vpack.c.b16 %v3157, %v3153
      %v3490 = vpack.c.b16 %v3158, %v3154
      %v3491 = vpack.c.b16 %v3159, %v3155
      %v3492 = vpack.c.b16 %v3164, %v3160
      %v3493 = vpack.c.b16 %v3165, %v3161
      %v3494 = vpack.c.b16 %v3166, %v3162
      %v3495 = vpack.c.b16 %v3167, %v3163
      %v3496 = vpack.c.b16 %v3172, %v3168
      %v3497 = vpack.c.b16 %v3173, %v3169
      %v3498 = vpack.c.b16 %v3174, %v3170
      %v3499 = vpack.c.b16 %v3175, %v3171
      %v3500 = vpack.c.b16 %v3180, %v3176
      %v3501 = vpack.c.b16 %v3181, %v3177
      %v3502 = vpack.c.b16 %v3182, %v3178
      %v3503 = vpack.c.b16 %v3183, %v3179
      %v3504 = vpack.c.b16 %v3188, %v3184
      %v3505 = vpack.c.b16 %v3189, %v3185
      %v3506 = vpack.c.b16 %v3190, %v3186
      %v3507 = vpack.c.b16 %v3191, %v3187
      %v3508 = vpack.c.b16 %v3196, %v3192
      %v3509 = vpack.c.b16 %v3197, %v3193
      %v3510 = vpack.c.b16 %v3198, %v3194
      %v3511 = vpack.c.b16 %v3199, %v3195
      %v3512 = vpack.c.b16 %v3204, %v3200
      %v3513 = vpack.c.b16 %v3205, %v3201
      %v3514 = vpack.c.b16 %v3206, %v3202
      %v3515 = vpack.c.b16 %v3207, %v3203
      %v3516 = vpack.c.b16 %v3212, %v3208
      %v3517 = vpack.c.b16 %v3213, %v3209
      %v3518 = vpack.c.b16 %v3214, %v3210
      %v3519 = vpack.c.b16 %v3215, %v3211
      %v3520 = vpack.c.b16 %v3220, %v3216
      %v3521 = vpack.c.b16 %v3221, %v3217
      %v3522 = vpack.c.b16 %v3222, %v3218
      %v3523 = vpack.c.b16 %v3223, %v3219
      %v3524 = vpack.c.b16 %v3228, %v3224
      %v3525 = vpack.c.b16 %v3229, %v3225
      %v3526 = vpack.c.b16 %v3230, %v3226
      %v3527 = vpack.c.b16 %v3231, %v3227
      %v3528 = vpack.c.b16 %v3236, %v3232
      %v3529 = vpack.c.b16 %v3237, %v3233
      %v3530 = vpack.c.b16 %v3238, %v3234
      %v3531 = vpack.c.b16 %v3239, %v3235
      %v3532 = vpack.c.b16 %v3244, %v3240
      %v3533 = vpack.c.b16 %v3245, %v3241
      %v3534 = vpack.c.b16 %v3246, %v3242
      %v3535 = vpack.c.b16 %v3247, %v3243
      %v3536 = vpack.c.b16 %v3252, %v3248
      %v3537 = vpack.c.b16 %v3253, %v3249
      %v3538 = vpack.c.b16 %v3254, %v3250
      %v3539 = vpack.c.b16 %v3255, %v3251
      %v3540 = vpack.c.b16 %v3260, %v3256
      %v3541 = vpack.c.b16 %v3261, %v3257
      %v3542 = vpack.c.b16 %v3262, %v3258
      %v3543 = vpack.c.b16 %v3263, %v3259
      %v3544 = vpack.c.b16 %v3268, %v3264
      %v3545 = vpack.c.b16 %v3269, %v3265
      %v3546 = vpack.c.b16 %v3270, %v3266
      %v3547 = vpack.c.b16 %v3271, %v3267
      %v3548 = vpack.c.b16 %v3276, %v3272
      %v3549 = vpack.c.b16 %v3277, %v3273
      %v3550 = vpack.c.b16 %v3278, %v3274
      %v3551 = vpack.c.b16 %v3279, %v3275
      %v3552 = vpack.c.b16 %v3284, %v3280
      %v3553 = vpack.c.b16 %v3285, %v3281
      %v3554 = vpack.c.b16 %v3286, %v3282
      %v3555 = vpack.c.b16 %v3287, %v3283
      %v3556 = vpack.c.b16 %v3292, %v3288
      %v3557 = vpack.c.b16 %v3293, %v3289
      %v3558 = vpack.c.b16 %v3294, %v3290
      %v3559 = vpack.c.b16 %v3295, %v3291
      %v3560 = vpack.c.b16 %v3300, %v3296
      %v3561 = vpack.c.b16 %v3301, %v3297
      %v3562 = vpack.c.b16 %v3302, %v3298
      %v3563 = vpack.c.b16 %v3303, %v3299
      %v3564 = vpack.c.b16 %v3308, %v3304
      %v3565 = vpack.c.b16 %v3309, %v3305
      %v3566 = vpack.c.b16 %v3310, %v3306
      %v3567 = vpack.c.b16 %v3311, %v3307
      %3824 = vmatprep.subr.bf16.mxu0 %v3313
      %3825 = vmatpush1.bf16.msra.mxu0 %v3312
      %3826 = vmatprep.subr.bf16.mxu0 %v3317
      %3827 = vmatpush1.bf16.msra.mxu0 %v3316
      %3828 = vmatprep.subr.bf16.mxu0 %v3321
      %3829 = vmatpush1.bf16.msra.mxu0 %v3320
      %3830 = vmatprep.subr.bf16.mxu0 %v3325
      %3831 = vmatpush1.bf16.msra.mxu0 %v3324
      %3832 = vmatprep.subr.bf16.mxu0 %v3329
      %3833 = vmatpush1.bf16.msra.mxu0 %v3328
      %3834 = vmatprep.subr.bf16.mxu0 %v3333
      %3835 = vmatpush1.bf16.msra.mxu0 %v3332
      %3836 = vmatprep.subr.bf16.mxu0 %v3337
      %3837 = vmatpush1.bf16.msra.mxu0 %v3336
      %3838 = vmatprep.subr.bf16.mxu0 %v3341
      %3839 = vmatpush1.bf16.msra.mxu0 %v3340
      %3840 = vmatprep.subr.bf16.mxu0 %v3345
      %3841 = vmatpush1.bf16.msra.mxu0 %v3344
      %3842 = vmatprep.subr.bf16.mxu0 %v3349
      %3843 = vmatpush1.bf16.msra.mxu0 %v3348
      %3844 = vmatprep.subr.bf16.mxu0 %v3353
      %3845 = vmatpush1.bf16.msra.mxu0 %v3352
      %3846 = vmatprep.subr.bf16.mxu0 %v3357
      %3847 = vmatpush1.bf16.msra.mxu0 %v3356
      %3848 = vmatprep.subr.bf16.mxu0 %v3361
      %3849 = vmatpush1.bf16.msra.mxu0 %v3360
      %3850 = vmatprep.subr.bf16.mxu0 %v3365
      %3851 = vmatpush1.bf16.msra.mxu0 %v3364
      %3852 = vmatprep.subr.bf16.mxu0 %v3369
      %3853 = vmatpush1.bf16.msra.mxu0 %v3368
      %3854 = vmatprep.subr.bf16.mxu0 %v3373
      %3855 = vmatpush1.bf16.msra.mxu0 %v3372
      %3856 = vmatprep.mubr.bf16.mxu0 %v2460
      %3857 = vmatmul.mubr.bf16.gmra.mrb[0].mxu0 %v2459
      %v3858 = vpop.f32.mrb[0].mxu0
      %v3859 = vadd.f32 %v2527, %v3858
      %v3860 = vpop.f32.mrb[0].mxu0
      %v3861 = vadd.f32 %v2531, %v3860
      %v3862 = vpop.f32.mrb[0].mxu0
      %v3863 = vadd.f32 %v2527, %v3862
      %v3864 = vpop.f32.mrb[0].mxu0
      %v3865 = vadd.f32 %v2531, %v3864
      %3866 = vmatprep.mubr.bf16.mxu0 %v2468
      %3867 = vmatmul.mubr.bf16.gmra.mrb[0].mxu0 %v2467
      %v3868 = vpop.f32.mrb[0].mxu0
      %v3869 = vadd.f32 %v2527, %v3868
      %v3870 = vpop.f32.mrb[0].mxu0
      %v3871 = vadd.f32 %v2531, %v3870
      %v3872 = vpop.f32.mrb[0].mxu0
      %v3873 = vadd.f32 %v2527, %v3872
      %v3874 = vpop.f32.mrb[0].mxu0
      %v3875 = vadd.f32 %v2531, %v3874
      %3876 = vmatprep.mubr.bf16.mxu0 %v2476
      %3877 = vmatmul.mubr.bf16.gmra.mrb[0].mxu0 %v2475
      %v3878 = vpop.f32.mrb[0].mxu0
      %v3879 = vadd.f32 %v2527, %v3878
      %v3880 = vpop.f32.mrb[0].mxu0
      %v3881 = vadd.f32 %v2531, %v3880
      %v3882 = vpop.f32.mrb[0].mxu0
      %v3883 = vadd.f32 %v2527, %v3882
      %v3884 = vpop.f32.mrb[0].mxu0
      %v3885 = vadd.f32 %v2531, %v3884
      %3886 = vmatprep.mubr.bf16.mxu0 %v2484
      %3887 = vmatmul.mubr.bf16.gmra.mrb[0].mxu0 %v2483
      %v3888 = vpop.f32.mrb[0].mxu0
      %v3889 = vadd.f32 %v2527, %v3888
      %v3890 = vpop.f32.mrb[0].mxu0
      %v3891 = vadd.f32 %v2531, %v3890
      %v3892 = vpop.f32.mrb[0].mxu0
      %v3893 = vadd.f32 %v2527, %v3892
      %v3894 = vpop.f32.mrb[0].mxu0
      %v3895 = vadd.f32 %v2531, %v3894
      %3896 = vmatprep.mubr.bf16.mxu0 %v2492
      %3897 = vmatmul.mubr.bf16.gmra.mrb[0].mxu0 %v2491
      %v3898 = vpop.f32.mrb[0].mxu0
      %v3899 = vadd.f32 %v2527, %v3898
      %v3900 = vpop.f32.mrb[0].mxu0
      %v3901 = vadd.f32 %v2531, %v3900
      %v3902 = vpop.f32.mrb[0].mxu0
      %v3903 = vadd.f32 %v2527, %v3902
      %v3904 = vpop.f32.mrb[0].mxu0
      %v3905 = vadd.f32 %v2531, %v3904
      %3906 = vmatprep.mubr.bf16.mxu0 %v2500
      %3907 = vmatmul.mubr.bf16.gmra.mrb[0].mxu0 %v2499
      %v3908 = vpop.f32.mrb[0].mxu0
      %v3909 = vadd.f32 %v2527, %v3908
      %v3910 = vpop.f32.mrb[0].mxu0
      %v3911 = vadd.f32 %v2531, %v3910
      %v3912 = vpop.f32.mrb[0].mxu0
      %v3913 = vadd.f32 %v2527, %v3912
      %v3914 = vpop.f32.mrb[0].mxu0
      %v3915 = vadd.f32 %v2531, %v3914
      %3916 = vmatprep.mubr.bf16.mxu0 %v2508
      %3917 = vmatmul.mubr.bf16.gmra.mrb[0].mxu0 %v2507
      %v3918 = vpop.f32.mrb[0].mxu0
      %v3919 = vadd.f32 %v2527, %v3918
      %v3920 = vpop.f32.mrb[0].mxu0
      %v3921 = vadd.f32 %v2531, %v3920
      %v3922 = vpop.f32.mrb[0].mxu0
      %v3923 = vadd.f32 %v2527, %v3922
      %v3924 = vpop.f32.mrb[0].mxu0
      %v3925 = vadd.f32 %v2531, %v3924
      %3926 = vmatprep.mubr.bf16.mxu0 %v2516
      %3927 = vmatmul.mubr.bf16.gmra.mrb[0].mxu0 %v2515
      %v3928 = vpop.f32.mrb[0].mxu0
      %v3929 = vadd.f32 %v2527, %v3928
      %v3930 = vpop.f32.mrb[0].mxu0
      %v3931 = vadd.f32 %v2531, %v3930
      %v3932 = vpop.f32.mrb[0].mxu0
      %v3933 = vadd.f32 %v2527, %v3932
      %v3934 = vpop.f32.mrb[0].mxu0
      %v3935 = vadd.f32 %v2531, %v3934
      %3936 = vdwg.mxu0
      %3937 = vmatprep.subr.bf16.mxu0 %v3377
      %3938 = vmatpush1.bf16.msra.mxu0 %v3376
      %3939 = vmatprep.subr.bf16.mxu0 %v3381
      %3940 = vmatpush1.bf16.msra.mxu0 %v3380
      %3941 = vmatprep.subr.bf16.mxu0 %v3385
      %3942 = vmatpush1.bf16.msra.mxu0 %v3384
      %3943 = vmatprep.subr.bf16.mxu0 %v3389
      %3944 = vmatpush1.bf16.msra.mxu0 %v3388
      %3945 = vmatprep.subr.bf16.mxu0 %v3393
      %3946 = vmatpush1.bf16.msra.mxu0 %v3392
      %3947 = vmatprep.subr.bf16.mxu0 %v3397
      %3948 = vmatpush1.bf16.msra.mxu0 %v3396
      %3949 = vmatprep.subr.bf16.mxu0 %v3401
      %3950 = vmatpush1.bf16.msra.mxu0 %v3400
      %3951 = vmatprep.subr.bf16.mxu0 %v3405
      %3952 = vmatpush1.bf16.msra.mxu0 %v3404
      %3953 = vmatprep.subr.bf16.mxu0 %v3409
      %3954 = vmatpush1.bf16.msra.mxu0 %v3408
      %3955 = vmatprep.subr.bf16.mxu0 %v3413
      %3956 = vmatpush1.bf16.msra.mxu0 %v3412
      %3957 = vmatprep.subr.bf16.mxu0 %v3417
      %3958 = vmatpush1.bf16.msra.mxu0 %v3416
      %3959 = vmatprep.subr.bf16.mxu0 %v3421
      %3960 = vmatpush1.bf16.msra.mxu0 %v3420
      %3961 = vmatprep.subr.bf16.mxu0 %v3425
      %3962 = vmatpush1.bf16.msra.mxu0 %v3424
      %3963 = vmatprep.subr.bf16.mxu0 %v3429
      %3964 = vmatpush1.bf16.msra.mxu0 %v3428
      %3965 = vmatprep.subr.bf16.mxu0 %v3433
      %3966 = vmatpush1.bf16.msra.mxu0 %v3432
      %3967 = vmatprep.subr.bf16.mxu0 %v3437
      %3968 = vmatpush1.bf16.msra.mxu0 %v3436
      %3969 = vmatprep.mubr.bf16.mxu0 %v2462
      %3970 = vmatmul.mubr.bf16.gmra.mrb[0].mxu0 %v2461
      %v3971 = vpop.f32.mrb[0].mxu0
      %v3972 = vadd.f32 %v3859, %v3971
      %v3973 = vpop.f32.mrb[0].mxu0
      %v3974 = vadd.f32 %v3861, %v3973
      %v3975 = vpop.f32.mrb[0].mxu0
      %v3976 = vadd.f32 %v3863, %v3975
      %v3977 = vpop.f32.mrb[0].mxu0
      %v3978 = vadd.f32 %v3865, %v3977
      %3979 = vmatprep.mubr.bf16.mxu0 %v2470
      %3980 = vmatmul.mubr.bf16.gmra.mrb[0].mxu0 %v2469
      %v3981 = vpop.f32.mrb[0].mxu0
      %v3982 = vadd.f32 %v3869, %v3981
      %v3983 = vpop.f32.mrb[0].mxu0
      %v3984 = vadd.f32 %v3871, %v3983
      %v3985 = vpop.f32.mrb[0].mxu0
      %v3986 = vadd.f32 %v3873, %v3985
      %v3987 = vpop.f32.mrb[0].mxu0
      %v3988 = vadd.f32 %v3875, %v3987
      %3989 = vmatprep.mubr.bf16.mxu0 %v2478
      %3990 = vmatmul.mubr.bf16.gmra.mrb[0].mxu0 %v2477
      %v3991 = vpop.f32.mrb[0].mxu0
      %v3992 = vadd.f32 %v3879, %v3991
      %v3993 = vpop.f32.mrb[0].mxu0
      %v3994 = vadd.f32 %v3881, %v3993
      %v3995 = vpop.f32.mrb[0].mxu0
      %v3996 = vadd.f32 %v3883, %v3995
      %v3997 = vpop.f32.mrb[0].mxu0
      %v3998 = vadd.f32 %v3885, %v3997
      %3999 = vmatprep.mubr.bf16.mxu0 %v2486
      %4000 = vmatmul.mubr.bf16.gmra.mrb[0].mxu0 %v2485
      %v4001 = vpop.f32.mrb[0].mxu0
      %v4002 = vadd.f32 %v3889, %v4001
      %v4003 = vpop.f32.mrb[0].mxu0
      %v4004 = vadd.f32 %v3891, %v4003
      %v4005 = vpop.f32.mrb[0].mxu0
      %v4006 = vadd.f32 %v3893, %v4005
      %v4007 = vpop.f32.mrb[0].mxu0
      %v4008 = vadd.f32 %v3895, %v4007
      %4009 = vmatprep.mubr.bf16.mxu0 %v2494
      %4010 = vmatmul.mubr.bf16.gmra.mrb[0].mxu0 %v2493
      %v4011 = vpop.f32.mrb[0].mxu0
      %v4012 = vadd.f32 %v3899, %v4011
      %v4013 = vpop.f32.mrb[0].mxu0
      %v4014 = vadd.f32 %v3901, %v4013
      %v4015 = vpop.f32.mrb[0].mxu0
      %v4016 = vadd.f32 %v3903, %v4015
      %v4017 = vpop.f32.mrb[0].mxu0
      %v4018 = vadd.f32 %v3905, %v4017
      %4019 = vmatprep.mubr.bf16.mxu0 %v2502
      %4020 = vmatmul.mubr.bf16.gmra.mrb[0].mxu0 %v2501
      %v4021 = vpop.f32.mrb[0].mxu0
      %v4022 = vadd.f32 %v3909, %v4021
      %v4023 = vpop.f32.mrb[0].mxu0
      %v4024 = vadd.f32 %v3911, %v4023
      %v4025 = vpop.f32.mrb[0].mxu0
      %v4026 = vadd.f32 %v3913, %v4025
      %v4027 = vpop.f32.mrb[0].mxu0
      %v4028 = vadd.f32 %v3915, %v4027
      %4029 = vmatprep.mubr.bf16.mxu0 %v2510
      %4030 = vmatmul.mubr.bf16.gmra.mrb[0].mxu0 %v2509
      %v4031 = vpop.f32.mrb[0].mxu0
      %v4032 = vadd.f32 %v3919, %v4031
      %v4033 = vpop.f32.mrb[0].mxu0
      %v4034 = vadd.f32 %v3921, %v4033
      %v4035 = vpop.f32.mrb[0].mxu0
      %v4036 = vadd.f32 %v3923, %v4035
      %v4037 = vpop.f32.mrb[0].mxu0
      %v4038 = vadd.f32 %v3925, %v4037
      %4039 = vmatprep.mubr.bf16.mxu0 %v2518
      %4040 = vmatmul.mubr.bf16.gmra.mrb[0].mxu0 %v2517
      %v4041 = vpop.f32.mrb[0].mxu0
      %v4042 = vadd.f32 %v3929, %v4041
      %v4043 = vpop.f32.mrb[0].mxu0
      %v4044 = vadd.f32 %v3931, %v4043
      %v4045 = vpop.f32.mrb[0].mxu0
      %v4046 = vadd.f32 %v3933, %v4045
      %v4047 = vpop.f32.mrb[0].mxu0
      %v4048 = vadd.f32 %v3935, %v4047
      %4049 = vdwg.mxu0
      %4050 = vmatprep.subr.bf16.mxu0 %v3441
      %4051 = vmatpush1.bf16.msra.mxu0 %v3440
      %4052 = vmatprep.subr.bf16.mxu0 %v3445
      %4053 = vmatpush1.bf16.msra.mxu0 %v3444
      %4054 = vmatprep.subr.bf16.mxu0 %v3449
      %4055 = vmatpush1.bf16.msra.mxu0 %v3448
      %4056 = vmatprep.subr.bf16.mxu0 %v3453
      %4057 = vmatpush1.bf16.msra.mxu0 %v3452
      %4058 = vmatprep.subr.bf16.mxu0 %v3457
      %4059 = vmatpush1.bf16.msra.mxu0 %v3456
      %4060 = vmatprep.subr.bf16.mxu0 %v3461
      %4061 = vmatpush1.bf16.msra.mxu0 %v3460
      %4062 = vmatprep.subr.bf16.mxu0 %v3465
      %4063 = vmatpush1.bf16.msra.mxu0 %v3464
      %4064 = vmatprep.subr.bf16.mxu0 %v3469
      %4065 = vmatpush1.bf16.msra.mxu0 %v3468
      %4066 = vmatprep.subr.bf16.mxu0 %v3473
      %4067 = vmatpush1.bf16.msra.mxu0 %v3472
      %4068 = vmatprep.subr.bf16.mxu0 %v3477
      %4069 = vmatpush1.bf16.msra.mxu0 %v3476
      %4070 = vmatprep.subr.bf16.mxu0 %v3481
      %4071 = vmatpush1.bf16.msra.mxu0 %v3480
      %4072 = vmatprep.subr.bf16.mxu0 %v3485
      %4073 = vmatpush1.bf16.msra.mxu0 %v3484
      %4074 = vmatprep.subr.bf16.mxu0 %v3489
      %4075 = vmatpush1.bf16.msra.mxu0 %v3488
      %4076 = vmatprep.subr.bf16.mxu0 %v3493
      %4077 = vmatpush1.bf16.msra.mxu0 %v3492
      %4078 = vmatprep.subr.bf16.mxu0 %v3497
      %4079 = vmatpush1.bf16.msra.mxu0 %v3496
      %4080 = vmatprep.subr.bf16.mxu0 %v3501
      %4081 = vmatpush1.bf16.msra.mxu0 %v3500
      %4082 = vmatprep.mubr.bf16.mxu0 %v2464
      %4083 = vmatmul.mubr.bf16.gmra.mrb[0].mxu0 %v2463
      %v4084 = vpop.f32.mrb[0].mxu0
      %v4085 = vadd.f32 %v3972, %v4084
      %v4086 = vpop.f32.mrb[0].mxu0
      %v4087 = vadd.f32 %v3974, %v4086
      %v4088 = vpop.f32.mrb[0].mxu0
      %v4089 = vadd.f32 %v3976, %v4088
      %v4090 = vpop.f32.mrb[0].mxu0
      %v4091 = vadd.f32 %v3978, %v4090
      %4092 = vmatprep.mubr.bf16.mxu0 %v2472
      %4093 = vmatmul.mubr.bf16.gmra.mrb[0].mxu0 %v2471
      %v4094 = vpop.f32.mrb[0].mxu0
      %v4095 = vadd.f32 %v3982, %v4094
      %v4096 = vpop.f32.mrb[0].mxu0
      %v4097 = vadd.f32 %v3984, %v4096
      %v4098 = vpop.f32.mrb[0].mxu0
      %v4099 = vadd.f32 %v3986, %v4098
      %v4100 = vpop.f32.mrb[0].mxu0
      %v4101 = vadd.f32 %v3988, %v4100
      %4102 = vmatprep.mubr.bf16.mxu0 %v2480
      %4103 = vmatmul.mubr.bf16.gmra.mrb[0].mxu0 %v2479
      %v4104 = vpop.f32.mrb[0].mxu0
      %v4105 = vadd.f32 %v3992, %v4104
      %v4106 = vpop.f32.mrb[0].mxu0
      %v4107 = vadd.f32 %v3994, %v4106
      %v4108 = vpop.f32.mrb[0].mxu0
      %v4109 = vadd.f32 %v3996, %v4108
      %v4110 = vpop.f32.mrb[0].mxu0
      %v4111 = vadd.f32 %v3998, %v4110
      %4112 = vmatprep.mubr.bf16.mxu0 %v2488
      %4113 = vmatmul.mubr.bf16.gmra.mrb[0].mxu0 %v2487
      %v4114 = vpop.f32.mrb[0].mxu0
      %v4115 = vadd.f32 %v4002, %v4114
      %v4116 = vpop.f32.mrb[0].mxu0
      %v4117 = vadd.f32 %v4004, %v4116
      %v4118 = vpop.f32.mrb[0].mxu0
      %v4119 = vadd.f32 %v4006, %v4118
      %v4120 = vpop.f32.mrb[0].mxu0
      %v4121 = vadd.f32 %v4008, %v4120
      %4122 = vmatprep.mubr.bf16.mxu0 %v2496
      %4123 = vmatmul.mubr.bf16.gmra.mrb[0].mxu0 %v2495
      %v4124 = vpop.f32.mrb[0].mxu0
      %v4125 = vadd.f32 %v4012, %v4124
      %v4126 = vpop.f32.mrb[0].mxu0
      %v4127 = vadd.f32 %v4014, %v4126
      %v4128 = vpop.f32.mrb[0].mxu0
      %v4129 = vadd.f32 %v4016, %v4128
      %v4130 = vpop.f32.mrb[0].mxu0
      %v4131 = vadd.f32 %v4018, %v4130
      %4132 = vmatprep.mubr.bf16.mxu0 %v2504
      %4133 = vmatmul.mubr.bf16.gmra.mrb[0].mxu0 %v2503
      %v4134 = vpop.f32.mrb[0].mxu0
      %v4135 = vadd.f32 %v4022, %v4134
      %v4136 = vpop.f32.mrb[0].mxu0
      %v4137 = vadd.f32 %v4024, %v4136
      %v4138 = vpop.f32.mrb[0].mxu0
      %v4139 = vadd.f32 %v4026, %v4138
      %v4140 = vpop.f32.mrb[0].mxu0
      %v4141 = vadd.f32 %v4028, %v4140
      %4142 = vmatprep.mubr.bf16.mxu0 %v2512
      %4143 = vmatmul.mubr.bf16.gmra.mrb[0].mxu0 %v2511
      %v4144 = vpop.f32.mrb[0].mxu0
      %v4145 = vadd.f32 %v4032, %v4144
      %v4146 = vpop.f32.mrb[0].mxu0
      %v4147 = vadd.f32 %v4034, %v4146
      %v4148 = vpop.f32.mrb[0].mxu0
      %v4149 = vadd.f32 %v4036, %v4148
      %v4150 = vpop.f32.mrb[0].mxu0
      %v4151 = vadd.f32 %v4038, %v4150
      %4152 = vmatprep.mubr.bf16.mxu0 %v2520
      %4153 = vmatmul.mubr.bf16.gmra.mrb[0].mxu0 %v2519
      %v4154 = vpop.f32.mrb[0].mxu0
      %v4155 = vadd.f32 %v4042, %v4154
      %v4156 = vpop.f32.mrb[0].mxu0
      %v4157 = vadd.f32 %v4044, %v4156
      %v4158 = vpop.f32.mrb[0].mxu0
      %v4159 = vadd.f32 %v4046, %v4158
      %v4160 = vpop.f32.mrb[0].mxu0
      %v4161 = vadd.f32 %v4048, %v4160
      %4162 = vdwg.mxu0
      %4163 = vmatprep.subr.bf16.mxu0 %v3505
      %4164 = vmatpush1.bf16.msra.mxu0 %v3504
      %4165 = vmatprep.subr.bf16.mxu0 %v3509
      %4166 = vmatpush1.bf16.msra.mxu0 %v3508
      %4167 = vmatprep.subr.bf16.mxu0 %v3513
      %4168 = vmatpush1.bf16.msra.mxu0 %v3512
      %4169 = vmatprep.subr.bf16.mxu0 %v3517
      %4170 = vmatpush1.bf16.msra.mxu0 %v3516
      %4171 = vmatprep.subr.bf16.mxu0 %v3521
      %4172 = vmatpush1.bf16.msra.mxu0 %v3520
      %4173 = vmatprep.subr.bf16.mxu0 %v3525
      %4174 = vmatpush1.bf16.msra.mxu0 %v3524
      %4175 = vmatprep.subr.bf16.mxu0 %v3529
      %4176 = vmatpush1.bf16.msra.mxu0 %v3528
      %4177 = vmatprep.subr.bf16.mxu0 %v3533
      %4178 = vmatpush1.bf16.msra.mxu0 %v3532
      %4179 = vmatprep.subr.bf16.mxu0 %v3537
      %4180 = vmatpush1.bf16.msra.mxu0 %v3536
      %4181 = vmatprep.subr.bf16.mxu0 %v3541
      %4182 = vmatpush1.bf16.msra.mxu0 %v3540
      %4183 = vmatprep.subr.bf16.mxu0 %v3545
      %4184 = vmatpush1.bf16.msra.mxu0 %v3544
      %4185 = vmatprep.subr.bf16.mxu0 %v3549
      %4186 = vmatpush1.bf16.msra.mxu0 %v3548
      %4187 = vmatprep.subr.bf16.mxu0 %v3553
      %4188 = vmatpush1.bf16.msra.mxu0 %v3552
      %4189 = vmatprep.subr.bf16.mxu0 %v3557
      %4190 = vmatpush1.bf16.msra.mxu0 %v3556
      %4191 = vmatprep.subr.bf16.mxu0 %v3561
      %4192 = vmatpush1.bf16.msra.mxu0 %v3560
      %4193 = vmatprep.subr.bf16.mxu0 %v3565
      %4194 = vmatpush1.bf16.msra.mxu0 %v3564
      %4195 = vmatprep.mubr.bf16.mxu0 %v2466
      %4196 = vmatmul.mubr.bf16.gmra.mrb[0].mxu0 %v2465
      %v4197 = vpop.f32.mrb[0].mxu0
      %v4198 = vadd.f32 %v4085, %v4197
      %v4199 = vpop.f32.mrb[0].mxu0
      %v4200 = vadd.f32 %v4087, %v4199
      %v4201 = vpop.f32.mrb[0].mxu0
      %v4202 = vadd.f32 %v4089, %v4201
      %v4203 = vpop.f32.mrb[0].mxu0
      %v4204 = vadd.f32 %v4091, %v4203
      %4205 = vmatprep.mubr.bf16.mxu0 %v2474
      %4206 = vmatmul.mubr.bf16.gmra.mrb[0].mxu0 %v2473
      %v4207 = vpop.f32.mrb[0].mxu0
      %v4208 = vadd.f32 %v4095, %v4207
      %v4209 = vpop.f32.mrb[0].mxu0
      %v4210 = vadd.f32 %v4097, %v4209
      %v4211 = vpop.f32.mrb[0].mxu0
      %v4212 = vadd.f32 %v4099, %v4211
      %v4213 = vpop.f32.mrb[0].mxu0
      %v4214 = vadd.f32 %v4101, %v4213
      %4215 = vmatprep.mubr.bf16.mxu0 %v2482
      %4216 = vmatmul.mubr.bf16.gmra.mrb[0].mxu0 %v2481
      %v4217 = vpop.f32.mrb[0].mxu0
      %v4218 = vadd.f32 %v4105, %v4217
      %v4219 = vpop.f32.mrb[0].mxu0
      %v4220 = vadd.f32 %v4107, %v4219
      %v4221 = vpop.f32.mrb[0].mxu0
      %v4222 = vadd.f32 %v4109, %v4221
      %v4223 = vpop.f32.mrb[0].mxu0
      %v4224 = vadd.f32 %v4111, %v4223
      %4225 = vmatprep.mubr.bf16.mxu0 %v2490
      %4226 = vmatmul.mubr.bf16.gmra.mrb[0].mxu0 %v2489
      %v4227 = vpop.f32.mrb[0].mxu0
      %v4228 = vadd.f32 %v4115, %v4227
      %v4229 = vpop.f32.mrb[0].mxu0
      %v4230 = vadd.f32 %v4117, %v4229
      %v4231 = vpop.f32.mrb[0].mxu0
      %v4232 = vadd.f32 %v4119, %v4231
      %v4233 = vpop.f32.mrb[0].mxu0
      %v4234 = vadd.f32 %v4121, %v4233
      %4235 = vmatprep.mubr.bf16.mxu0 %v2498
      %4236 = vmatmul.mubr.bf16.gmra.mrb[0].mxu0 %v2497
      %v4237 = vpop.f32.mrb[0].mxu0
      %v4238 = vadd.f32 %v4125, %v4237
      %v4239 = vpop.f32.mrb[0].mxu0
      %v4240 = vadd.f32 %v4127, %v4239
      %v4241 = vpop.f32.mrb[0].mxu0
      %v4242 = vadd.f32 %v4129, %v4241
      %v4243 = vpop.f32.mrb[0].mxu0
      %v4244 = vadd.f32 %v4131, %v4243
      %4245 = vmatprep.mubr.bf16.mxu0 %v2506
      %4246 = vmatmul.mubr.bf16.gmra.mrb[0].mxu0 %v2505
      %v4247 = vpop.f32.mrb[0].mxu0
      %v4248 = vadd.f32 %v4135, %v4247
      %v4249 = vpop.f32.mrb[0].mxu0
      %v4250 = vadd.f32 %v4137, %v4249
      %v4251 = vpop.f32.mrb[0].mxu0
      %v4252 = vadd.f32 %v4139, %v4251
      %v4253 = vpop.f32.mrb[0].mxu0
      %v4254 = vadd.f32 %v4141, %v4253
      %4255 = vmatprep.mubr.bf16.mxu0 %v2514
      %4256 = vmatmul.mubr.bf16.gmra.mrb[0].mxu0 %v2513
      %v4257 = vpop.f32.mrb[0].mxu0
      %v4258 = vadd.f32 %v4145, %v4257
      %v4259 = vpop.f32.mrb[0].mxu0
      %v4260 = vadd.f32 %v4147, %v4259
      %v4261 = vpop.f32.mrb[0].mxu0
      %v4262 = vadd.f32 %v4149, %v4261
      %v4263 = vpop.f32.mrb[0].mxu0
      %v4264 = vadd.f32 %v4151, %v4263
      %4265 = vmatprep.mubr.bf16.mxu0 %v2522
      %4266 = vmatmul.mubr.bf16.gmra.mrb[0].mxu0 %v2521
      %v4267 = vpop.f32.mrb[0].mxu0
      %v4268 = vadd.f32 %v4155, %v4267
      %v4269 = vpop.f32.mrb[0].mxu0
      %v4270 = vadd.f32 %v4157, %v4269
      %v4271 = vpop.f32.mrb[0].mxu0
      %v4272 = vadd.f32 %v4159, %v4271
      %v4273 = vpop.f32.mrb[0].mxu0
      %v4274 = vadd.f32 %v4161, %v4273
      %4275 = vdwg.mxu0
      %4276 = vmatprep.subr.bf16.mxu0 %v3315
      %4277 = vmatpush1.bf16.msra.mxu0 %v3314
      %4278 = vmatprep.subr.bf16.mxu0 %v3319
      %4279 = vmatpush1.bf16.msra.mxu0 %v3318
      %4280 = vmatprep.subr.bf16.mxu0 %v3323
      %4281 = vmatpush1.bf16.msra.mxu0 %v3322
      %4282 = vmatprep.subr.bf16.mxu0 %v3327
      %4283 = vmatpush1.bf16.msra.mxu0 %v3326
      %4284 = vmatprep.subr.bf16.mxu0 %v3331
      %4285 = vmatpush1.bf16.msra.mxu0 %v3330
      %4286 = vmatprep.subr.bf16.mxu0 %v3335
      %4287 = vmatpush1.bf16.msra.mxu0 %v3334
      %4288 = vmatprep.subr.bf16.mxu0 %v3339
      %4289 = vmatpush1.bf16.msra.mxu0 %v3338
      %4290 = vmatprep.subr.bf16.mxu0 %v3343
      %4291 = vmatpush1.bf16.msra.mxu0 %v3342
      %4292 = vmatprep.subr.bf16.mxu0 %v3347
      %4293 = vmatpush1.bf16.msra.mxu0 %v3346
      %4294 = vmatprep.subr.bf16.mxu0 %v3351
      %4295 = vmatpush1.bf16.msra.mxu0 %v3350
      %4296 = vmatprep.subr.bf16.mxu0 %v3355
      %4297 = vmatpush1.bf16.msra.mxu0 %v3354
      %4298 = vmatprep.subr.bf16.mxu0 %v3359
      %4299 = vmatpush1.bf16.msra.mxu0 %v3358
      %4300 = vmatprep.subr.bf16.mxu0 %v3363
      %4301 = vmatpush1.bf16.msra.mxu0 %v3362
      %4302 = vmatprep.subr.bf16.mxu0 %v3367
      %4303 = vmatpush1.bf16.msra.mxu0 %v3366
      %4304 = vmatprep.subr.bf16.mxu0 %v3371
      %4305 = vmatpush1.bf16.msra.mxu0 %v3370
      %4306 = vmatprep.subr.bf16.mxu0 %v3375
      %4307 = vmatpush1.bf16.msra.mxu0 %v3374
      %4308 = vmatprep.mubr.bf16.mxu0 %v2460
      %4309 = vmatmul.mubr.bf16.gmra.mrb[0].mxu0 %v2459
      %v4310 = vpop.f32.mrb[0].mxu0
      %v4311 = vadd.f32 %v2535, %v4310
      %v4312 = vpop.f32.mrb[0].mxu0
      %v4313 = vadd.f32 %v2539, %v4312
      %v4314 = vpop.f32.mrb[0].mxu0
      %v4315 = vadd.f32 %v2535, %v4314
      %v4316 = vpop.f32.mrb[0].mxu0
      %v4317 = vadd.f32 %v2539, %v4316
      %4318 = vmatprep.mubr.bf16.mxu0 %v2468
      %4319 = vmatmul.mubr.bf16.gmra.mrb[0].mxu0 %v2467
      %v4320 = vpop.f32.mrb[0].mxu0
      %v4321 = vadd.f32 %v2535, %v4320
      %v4322 = vpop.f32.mrb[0].mxu0
      %v4323 = vadd.f32 %v2539, %v4322
      %v4324 = vpop.f32.mrb[0].mxu0
      %v4325 = vadd.f32 %v2535, %v4324
      %v4326 = vpop.f32.mrb[0].mxu0
      %v4327 = vadd.f32 %v2539, %v4326
      %4328 = vmatprep.mubr.bf16.mxu0 %v2476
      %4329 = vmatmul.mubr.bf16.gmra.mrb[0].mxu0 %v2475
      %v4330 = vpop.f32.mrb[0].mxu0
      %v4331 = vadd.f32 %v2535, %v4330
      %v4332 = vpop.f32.mrb[0].mxu0
      %v4333 = vadd.f32 %v2539, %v4332
      %v4334 = vpop.f32.mrb[0].mxu0
      %v4335 = vadd.f32 %v2535, %v4334
      %v4336 = vpop.f32.mrb[0].mxu0
      %v4337 = vadd.f32 %v2539, %v4336
      %4338 = vmatprep.mubr.bf16.mxu0 %v2484
      %4339 = vmatmul.mubr.bf16.gmra.mrb[0].mxu0 %v2483
      %v4340 = vpop.f32.mrb[0].mxu0
      %v4341 = vadd.f32 %v2535, %v4340
      %v4342 = vpop.f32.mrb[0].mxu0
      %v4343 = vadd.f32 %v2539, %v4342
      %v4344 = vpop.f32.mrb[0].mxu0
      %v4345 = vadd.f32 %v2535, %v4344
      %v4346 = vpop.f32.mrb[0].mxu0
      %v4347 = vadd.f32 %v2539, %v4346
      %4348 = vmatprep.mubr.bf16.mxu0 %v2492
      %4349 = vmatmul.mubr.bf16.gmra.mrb[0].mxu0 %v2491
      %v4350 = vpop.f32.mrb[0].mxu0
      %v4351 = vadd.f32 %v2535, %v4350
      %v4352 = vpop.f32.mrb[0].mxu0
      %v4353 = vadd.f32 %v2539, %v4352
      %v4354 = vpop.f32.mrb[0].mxu0
      %v4355 = vadd.f32 %v2535, %v4354
      %v4356 = vpop.f32.mrb[0].mxu0
      %v4357 = vadd.f32 %v2539, %v4356
      %4358 = vmatprep.mubr.bf16.mxu0 %v2500
      %4359 = vmatmul.mubr.bf16.gmra.mrb[0].mxu0 %v2499
      %v4360 = vpop.f32.mrb[0].mxu0
      %v4361 = vadd.f32 %v2535, %v4360
      %v4362 = vpop.f32.mrb[0].mxu0
      %v4363 = vadd.f32 %v2539, %v4362
      %v4364 = vpop.f32.mrb[0].mxu0
      %v4365 = vadd.f32 %v2535, %v4364
      %v4366 = vpop.f32.mrb[0].mxu0
      %v4367 = vadd.f32 %v2539, %v4366
      %4368 = vmatprep.mubr.bf16.mxu0 %v2508
      %4369 = vmatmul.mubr.bf16.gmra.mrb[0].mxu0 %v2507
      %v4370 = vpop.f32.mrb[0].mxu0
      %v4371 = vadd.f32 %v2535, %v4370
      %v4372 = vpop.f32.mrb[0].mxu0
      %v4373 = vadd.f32 %v2539, %v4372
      %v4374 = vpop.f32.mrb[0].mxu0
      %v4375 = vadd.f32 %v2535, %v4374
      %v4376 = vpop.f32.mrb[0].mxu0
      %v4377 = vadd.f32 %v2539, %v4376
      %4378 = vmatprep.mubr.bf16.mxu0 %v2516
      %4379 = vmatmul.mubr.bf16.gmra.mrb[0].mxu0 %v2515
      %v4380 = vpop.f32.mrb[0].mxu0
      %v4381 = vadd.f32 %v2535, %v4380
      %v4382 = vpop.f32.mrb[0].mxu0
      %v4383 = vadd.f32 %v2539, %v4382
      %v4384 = vpop.f32.mrb[0].mxu0
      %v4385 = vadd.f32 %v2535, %v4384
      %v4386 = vpop.f32.mrb[0].mxu0
      %v4387 = vadd.f32 %v2539, %v4386
      %4388 = vdwg.mxu0
      %4389 = vmatprep.subr.bf16.mxu0 %v3379
      %4390 = vmatpush1.bf16.msra.mxu0 %v3378
      %4391 = vmatprep.subr.bf16.mxu0 %v3383
      %4392 = vmatpush1.bf16.msra.mxu0 %v3382
      %4393 = vmatprep.subr.bf16.mxu0 %v3387
      %4394 = vmatpush1.bf16.msra.mxu0 %v3386
      %4395 = vmatprep.subr.bf16.mxu0 %v3391
      %4396 = vmatpush1.bf16.msra.mxu0 %v3390
      %4397 = vmatprep.subr.bf16.mxu0 %v3395
      %4398 = vmatpush1.bf16.msra.mxu0 %v3394
      %4399 = vmatprep.subr.bf16.mxu0 %v3399
      %4400 = vmatpush1.bf16.msra.mxu0 %v3398
      %4401 = vmatprep.subr.bf16.mxu0 %v3403
      %4402 = vmatpush1.bf16.msra.mxu0 %v3402
      %4403 = vmatprep.subr.bf16.mxu0 %v3407
      %4404 = vmatpush1.bf16.msra.mxu0 %v3406
      %4405 = vmatprep.subr.bf16.mxu0 %v3411
      %4406 = vmatpush1.bf16.msra.mxu0 %v3410
      %4407 = vmatprep.subr.bf16.mxu0 %v3415
      %4408 = vmatpush1.bf16.msra.mxu0 %v3414
      %4409 = vmatprep.subr.bf16.mxu0 %v3419
      %4410 = vmatpush1.bf16.msra.mxu0 %v3418
      %4411 = vmatprep.subr.bf16.mxu0 %v3423
      %4412 = vmatpush1.bf16.msra.mxu0 %v3422
      %4413 = vmatprep.subr.bf16.mxu0 %v3427
      %4414 = vmatpush1.bf16.msra.mxu0 %v3426
      %4415 = vmatprep.subr.bf16.mxu0 %v3431
      %4416 = vmatpush1.bf16.msra.mxu0 %v3430
      %4417 = vmatprep.subr.bf16.mxu0 %v3435
      %4418 = vmatpush1.bf16.msra.mxu0 %v3434
      %4419 = vmatprep.subr.bf16.mxu0 %v3439
      %4420 = vmatpush1.bf16.msra.mxu0 %v3438
      %4421 = vmatprep.mubr.bf16.mxu0 %v2462
      %4422 = vmatmul.mubr.bf16.gmra.mrb[0].mxu0 %v2461
      %v4423 = vpop.f32.mrb[0].mxu0
      %v4424 = vadd.f32 %v4311, %v4423
      %v4425 = vpop.f32.mrb[0].mxu0
      %v4426 = vadd.f32 %v4313, %v4425
      %v4427 = vpop.f32.mrb[0].mxu0
      %v4428 = vadd.f32 %v4315, %v4427
      %v4429 = vpop.f32.mrb[0].mxu0
      %v4430 = vadd.f32 %v4317, %v4429
      %4431 = vmatprep.mubr.bf16.mxu0 %v2470
      %4432 = vmatmul.mubr.bf16.gmra.mrb[0].mxu0 %v2469
      %v4433 = vpop.f32.mrb[0].mxu0
      %v4434 = vadd.f32 %v4321, %v4433
      %v4435 = vpop.f32.mrb[0].mxu0
      %v4436 = vadd.f32 %v4323, %v4435
      %v4437 = vpop.f32.mrb[0].mxu0
      %v4438 = vadd.f32 %v4325, %v4437
      %v4439 = vpop.f32.mrb[0].mxu0
      %v4440 = vadd.f32 %v4327, %v4439
      %4441 = vmatprep.mubr.bf16.mxu0 %v2478
      %4442 = vmatmul.mubr.bf16.gmra.mrb[0].mxu0 %v2477
      %v4443 = vpop.f32.mrb[0].mxu0
      %v4444 = vadd.f32 %v4331, %v4443
      %v4445 = vpop.f32.mrb[0].mxu0
      %v4446 = vadd.f32 %v4333, %v4445
      %v4447 = vpop.f32.mrb[0].mxu0
      %v4448 = vadd.f32 %v4335, %v4447
      %v4449 = vpop.f32.mrb[0].mxu0
      %v4450 = vadd.f32 %v4337, %v4449
      %4451 = vmatprep.mubr.bf16.mxu0 %v2486
      %4452 = vmatmul.mubr.bf16.gmra.mrb[0].mxu0 %v2485
      %v4453 = vpop.f32.mrb[0].mxu0
      %v4454 = vadd.f32 %v4341, %v4453
      %v4455 = vpop.f32.mrb[0].mxu0
      %v4456 = vadd.f32 %v4343, %v4455
      %v4457 = vpop.f32.mrb[0].mxu0
      %v4458 = vadd.f32 %v4345, %v4457
      %v4459 = vpop.f32.mrb[0].mxu0
      %v4460 = vadd.f32 %v4347, %v4459
      %4461 = vmatprep.mubr.bf16.mxu0 %v2494
      %4462 = vmatmul.mubr.bf16.gmra.mrb[0].mxu0 %v2493
      %v4463 = vpop.f32.mrb[0].mxu0
      %v4464 = vadd.f32 %v4351, %v4463
      %v4465 = vpop.f32.mrb[0].mxu0
      %v4466 = vadd.f32 %v4353, %v4465
      %v4467 = vpop.f32.mrb[0].mxu0
      %v4468 = vadd.f32 %v4355, %v4467
      %v4469 = vpop.f32.mrb[0].mxu0
      %v4470 = vadd.f32 %v4357, %v4469
      %4471 = vmatprep.mubr.bf16.mxu0 %v2502
      %4472 = vmatmul.mubr.bf16.gmra.mrb[0].mxu0 %v2501
      %v4473 = vpop.f32.mrb[0].mxu0
      %v4474 = vadd.f32 %v4361, %v4473
      %v4475 = vpop.f32.mrb[0].mxu0
      %v4476 = vadd.f32 %v4363, %v4475
      %v4477 = vpop.f32.mrb[0].mxu0
      %v4478 = vadd.f32 %v4365, %v4477
      %v4479 = vpop.f32.mrb[0].mxu0
      %v4480 = vadd.f32 %v4367, %v4479
      %4481 = vmatprep.mubr.bf16.mxu0 %v2510
      %4482 = vmatmul.mubr.bf16.gmra.mrb[0].mxu0 %v2509
      %v4483 = vpop.f32.mrb[0].mxu0
      %v4484 = vadd.f32 %v4371, %v4483
      %v4485 = vpop.f32.mrb[0].mxu0
      %v4486 = vadd.f32 %v4373, %v4485
      %v4487 = vpop.f32.mrb[0].mxu0
      %v4488 = vadd.f32 %v4375, %v4487
      %v4489 = vpop.f32.mrb[0].mxu0
      %v4490 = vadd.f32 %v4377, %v4489
      %4491 = vmatprep.mubr.bf16.mxu0 %v2518
      %4492 = vmatmul.mubr.bf16.gmra.mrb[0].mxu0 %v2517
      %v4493 = vpop.f32.mrb[0].mxu0
      %v4494 = vadd.f32 %v4381, %v4493
      %v4495 = vpop.f32.mrb[0].mxu0
      %v4496 = vadd.f32 %v4383, %v4495
      %v4497 = vpop.f32.mrb[0].mxu0
      %v4498 = vadd.f32 %v4385, %v4497
      %v4499 = vpop.f32.mrb[0].mxu0
      %v4500 = vadd.f32 %v4387, %v4499
      %4501 = vdwg.mxu0
      %4502 = vmatprep.subr.bf16.mxu0 %v3443
      %4503 = vmatpush1.bf16.msra.mxu0 %v3442
      %4504 = vmatprep.subr.bf16.mxu0 %v3447
      %4505 = vmatpush1.bf16.msra.mxu0 %v3446
      %4506 = vmatprep.subr.bf16.mxu0 %v3451
      %4507 = vmatpush1.bf16.msra.mxu0 %v3450
      %4508 = vmatprep.subr.bf16.mxu0 %v3455
      %4509 = vmatpush1.bf16.msra.mxu0 %v3454
      %4510 = vmatprep.subr.bf16.mxu0 %v3459
      %4511 = vmatpush1.bf16.msra.mxu0 %v3458
      %4512 = vmatprep.subr.bf16.mxu0 %v3463
      %4513 = vmatpush1.bf16.msra.mxu0 %v3462
      %4514 = vmatprep.subr.bf16.mxu0 %v3467
      %4515 = vmatpush1.bf16.msra.mxu0 %v3466
      %4516 = vmatprep.subr.bf16.mxu0 %v3471
      %4517 = vmatpush1.bf16.msra.mxu0 %v3470
      %4518 = vmatprep.subr.bf16.mxu0 %v3475
      %4519 = vmatpush1.bf16.msra.mxu0 %v3474
      %4520 = vmatprep.subr.bf16.mxu0 %v3479
      %4521 = vmatpush1.bf16.msra.mxu0 %v3478
      %4522 = vmatprep.subr.bf16.mxu0 %v3483
      %4523 = vmatpush1.bf16.msra.mxu0 %v3482
      %4524 = vmatprep.subr.bf16.mxu0 %v3487
      %4525 = vmatpush1.bf16.msra.mxu0 %v3486
      %4526 = vmatprep.subr.bf16.mxu0 %v3491
      %4527 = vmatpush1.bf16.msra.mxu0 %v3490
      %4528 = vmatprep.subr.bf16.mxu0 %v3495
      %4529 = vmatpush1.bf16.msra.mxu0 %v3494
      %4530 = vmatprep.subr.bf16.mxu0 %v3499
      %4531 = vmatpush1.bf16.msra.mxu0 %v3498
      %4532 = vmatprep.subr.bf16.mxu0 %v3503
      %4533 = vmatpush1.bf16.msra.mxu0 %v3502
      %4534 = vmatprep.mubr.bf16.mxu0 %v2464
      %4535 = vmatmul.mubr.bf16.gmra.mrb[0].mxu0 %v2463
      %v4536 = vpop.f32.mrb[0].mxu0
      %v4537 = vadd.f32 %v4424, %v4536
      %v4538 = vpop.f32.mrb[0].mxu0
      %v4539 = vadd.f32 %v4426, %v4538
      %v4540 = vpop.f32.mrb[0].mxu0
      %v4541 = vadd.f32 %v4428, %v4540
      %v4542 = vpop.f32.mrb[0].mxu0
      %v4543 = vadd.f32 %v4430, %v4542
      %4544 = vmatprep.mubr.bf16.mxu0 %v2472
      %4545 = vmatmul.mubr.bf16.gmra.mrb[0].mxu0 %v2471
      %v4546 = vpop.f32.mrb[0].mxu0
      %v4547 = vadd.f32 %v4434, %v4546
      %v4548 = vpop.f32.mrb[0].mxu0
      %v4549 = vadd.f32 %v4436, %v4548
      %v4550 = vpop.f32.mrb[0].mxu0
      %v4551 = vadd.f32 %v4438, %v4550
      %v4552 = vpop.f32.mrb[0].mxu0
      %v4553 = vadd.f32 %v4440, %v4552
      %4554 = vmatprep.mubr.bf16.mxu0 %v2480
      %4555 = vmatmul.mubr.bf16.gmra.mrb[0].mxu0 %v2479
      %v4556 = vpop.f32.mrb[0].mxu0
      %v4557 = vadd.f32 %v4444, %v4556
      %v4558 = vpop.f32.mrb[0].mxu0
      %v4559 = vadd.f32 %v4446, %v4558
      %v4560 = vpop.f32.mrb[0].mxu0
      %v4561 = vadd.f32 %v4448, %v4560
      %v4562 = vpop.f32.mrb[0].mxu0
      %v4563 = vadd.f32 %v4450, %v4562
      %4564 = vmatprep.mubr.bf16.mxu0 %v2488
      %4565 = vmatmul.mubr.bf16.gmra.mrb[0].mxu0 %v2487
      %v4566 = vpop.f32.mrb[0].mxu0
      %v4567 = vadd.f32 %v4454, %v4566
      %v4568 = vpop.f32.mrb[0].mxu0
      %v4569 = vadd.f32 %v4456, %v4568
      %v4570 = vpop.f32.mrb[0].mxu0
      %v4571 = vadd.f32 %v4458, %v4570
      %v4572 = vpop.f32.mrb[0].mxu0
      %v4573 = vadd.f32 %v4460, %v4572
      %4574 = vmatprep.mubr.bf16.mxu0 %v2496
      %4575 = vmatmul.mubr.bf16.gmra.mrb[0].mxu0 %v2495
      %v4576 = vpop.f32.mrb[0].mxu0
      %v4577 = vadd.f32 %v4464, %v4576
      %v4578 = vpop.f32.mrb[0].mxu0
      %v4579 = vadd.f32 %v4466, %v4578
      %v4580 = vpop.f32.mrb[0].mxu0
      %v4581 = vadd.f32 %v4468, %v4580
      %v4582 = vpop.f32.mrb[0].mxu0
      %v4583 = vadd.f32 %v4470, %v4582
      %4584 = vmatprep.mubr.bf16.mxu0 %v2504
      %4585 = vmatmul.mubr.bf16.gmra.mrb[0].mxu0 %v2503
      %v4586 = vpop.f32.mrb[0].mxu0
      %v4587 = vadd.f32 %v4474, %v4586
      %v4588 = vpop.f32.mrb[0].mxu0
      %v4589 = vadd.f32 %v4476, %v4588
      %v4590 = vpop.f32.mrb[0].mxu0
      %v4591 = vadd.f32 %v4478, %v4590
      %v4592 = vpop.f32.mrb[0].mxu0
      %v4593 = vadd.f32 %v4480, %v4592
      %4594 = vmatprep.mubr.bf16.mxu0 %v2512
      %4595 = vmatmul.mubr.bf16.gmra.mrb[0].mxu0 %v2511
      %v4596 = vpop.f32.mrb[0].mxu0
      %v4597 = vadd.f32 %v4484, %v4596
      %v4598 = vpop.f32.mrb[0].mxu0
      %v4599 = vadd.f32 %v4486, %v4598
      %v4600 = vpop.f32.mrb[0].mxu0
      %v4601 = vadd.f32 %v4488, %v4600
      %v4602 = vpop.f32.mrb[0].mxu0
      %v4603 = vadd.f32 %v4490, %v4602
      %4604 = vmatprep.mubr.bf16.mxu0 %v2520
      %4605 = vmatmul.mubr.bf16.gmra.mrb[0].mxu0 %v2519
      %v4606 = vpop.f32.mrb[0].mxu0
      %v4607 = vadd.f32 %v4494, %v4606
      %v4608 = vpop.f32.mrb[0].mxu0
      %v4609 = vadd.f32 %v4496, %v4608
      %v4610 = vpop.f32.mrb[0].mxu0
      %v4611 = vadd.f32 %v4498, %v4610
      %v4612 = vpop.f32.mrb[0].mxu0
      %v4613 = vadd.f32 %v4500, %v4612
      %4614 = vdwg.mxu0
      %4615 = vmatprep.subr.bf16.mxu0 %v3507
      %4616 = vmatpush1.bf16.msra.mxu0 %v3506
      %4617 = vmatprep.subr.bf16.mxu0 %v3511
      %4618 = vmatpush1.bf16.msra.mxu0 %v3510
      %4619 = vmatprep.subr.bf16.mxu0 %v3515
      %4620 = vmatpush1.bf16.msra.mxu0 %v3514
      %4621 = vmatprep.subr.bf16.mxu0 %v3519
      %4622 = vmatpush1.bf16.msra.mxu0 %v3518
      %4623 = vmatprep.subr.bf16.mxu0 %v3523
      %4624 = vmatpush1.bf16.msra.mxu0 %v3522
      %4625 = vmatprep.subr.bf16.mxu0 %v3527
      %4626 = vmatpush1.bf16.msra.mxu0 %v3526
      %4627 = vmatprep.subr.bf16.mxu0 %v3531
      %4628 = vmatpush1.bf16.msra.mxu0 %v3530
      %4629 = vmatprep.subr.bf16.mxu0 %v3535
      %4630 = vmatpush1.bf16.msra.mxu0 %v3534
      %4631 = vmatprep.subr.bf16.mxu0 %v3539
      %4632 = vmatpush1.bf16.msra.mxu0 %v3538
      %4633 = vmatprep.subr.bf16.mxu0 %v3543
      %4634 = vmatpush1.bf16.msra.mxu0 %v3542
      %4635 = vmatprep.subr.bf16.mxu0 %v3547
      %4636 = vmatpush1.bf16.msra.mxu0 %v3546
      %4637 = vmatprep.subr.bf16.mxu0 %v3551
      %4638 = vmatpush1.bf16.msra.mxu0 %v3550
      %4639 = vmatprep.subr.bf16.mxu0 %v3555
      %4640 = vmatpush1.bf16.msra.mxu0 %v3554
      %4641 = vmatprep.subr.bf16.mxu0 %v3559
      %4642 = vmatpush1.bf16.msra.mxu0 %v3558
      %4643 = vmatprep.subr.bf16.mxu0 %v3563
      %4644 = vmatpush1.bf16.msra.mxu0 %v3562
      %4645 = vmatprep.subr.bf16.mxu0 %v3567
      %4646 = vmatpush1.bf16.msra.mxu0 %v3566
      %4647 = vmatprep.mubr.bf16.mxu0 %v2466
      %4648 = vmatmul.mubr.bf16.gmra.mrb[0].mxu0 %v2465
      %v4649 = vpop.f32.mrb[0].mxu0
      %v4650 = vadd.f32 %v4537, %v4649
      %v4651 = vpop.f32.mrb[0].mxu0
      %v4652 = vadd.f32 %v4539, %v4651
      %v4653 = vpop.f32.mrb[0].mxu0
      %v4654 = vadd.f32 %v4541, %v4653
      %v4655 = vpop.f32.mrb[0].mxu0
      %v4656 = vadd.f32 %v4543, %v4655
      %4657 = vmatprep.mubr.bf16.mxu0 %v2474
      %4658 = vmatmul.mubr.bf16.gmra.mrb[0].mxu0 %v2473
      %v4659 = vpop.f32.mrb[0].mxu0
      %v4660 = vadd.f32 %v4547, %v4659
      %v4661 = vpop.f32.mrb[0].mxu0
      %v4662 = vadd.f32 %v4549, %v4661
      %v4663 = vpop.f32.mrb[0].mxu0
      %v4664 = vadd.f32 %v4551, %v4663
      %v4665 = vpop.f32.mrb[0].mxu0
      %v4666 = vadd.f32 %v4553, %v4665
      %4667 = vmatprep.mubr.bf16.mxu0 %v2482
      %4668 = vmatmul.mubr.bf16.gmra.mrb[0].mxu0 %v2481
      %v4669 = vpop.f32.mrb[0].mxu0
      %v4670 = vadd.f32 %v4557, %v4669
      %v4671 = vpop.f32.mrb[0].mxu0
      %v4672 = vadd.f32 %v4559, %v4671
      %v4673 = vpop.f32.mrb[0].mxu0
      %v4674 = vadd.f32 %v4561, %v4673
      %v4675 = vpop.f32.mrb[0].mxu0
      %v4676 = vadd.f32 %v4563, %v4675
      %4677 = vmatprep.mubr.bf16.mxu0 %v2490
      %4678 = vmatmul.mubr.bf16.gmra.mrb[0].mxu0 %v2489
      %v4679 = vpop.f32.mrb[0].mxu0
      %v4680 = vadd.f32 %v4567, %v4679
      %v4681 = vpop.f32.mrb[0].mxu0
      %v4682 = vadd.f32 %v4569, %v4681
      %v4683 = vpop.f32.mrb[0].mxu0
      %v4684 = vadd.f32 %v4571, %v4683
      %v4685 = vpop.f32.mrb[0].mxu0
      %v4686 = vadd.f32 %v4573, %v4685
      %4687 = vmatprep.mubr.bf16.mxu0 %v2498
      %4688 = vmatmul.mubr.bf16.gmra.mrb[0].mxu0 %v2497
      %v4689 = vpop.f32.mrb[0].mxu0
      %v4690 = vadd.f32 %v4577, %v4689
      %v4691 = vpop.f32.mrb[0].mxu0
      %v4692 = vadd.f32 %v4579, %v4691
      %v4693 = vpop.f32.mrb[0].mxu0
      %v4694 = vadd.f32 %v4581, %v4693
      %v4695 = vpop.f32.mrb[0].mxu0
      %v4696 = vadd.f32 %v4583, %v4695
      %4697 = vmatprep.mubr.bf16.mxu0 %v2506
      %4698 = vmatmul.mubr.bf16.gmra.mrb[0].mxu0 %v2505
      %v4699 = vpop.f32.mrb[0].mxu0
      %v4700 = vadd.f32 %v4587, %v4699
      %v4701 = vpop.f32.mrb[0].mxu0
      %v4702 = vadd.f32 %v4589, %v4701
      %v4703 = vpop.f32.mrb[0].mxu0
      %v4704 = vadd.f32 %v4591, %v4703
      %v4705 = vpop.f32.mrb[0].mxu0
      %v4706 = vadd.f32 %v4593, %v4705
      %4707 = vmatprep.mubr.bf16.mxu0 %v2514
      %4708 = vmatmul.mubr.bf16.gmra.mrb[0].mxu0 %v2513
      %v4709 = vpop.f32.mrb[0].mxu0
      %v4710 = vadd.f32 %v4597, %v4709
      %v4711 = vpop.f32.mrb[0].mxu0
      %v4712 = vadd.f32 %v4599, %v4711
      %v4713 = vpop.f32.mrb[0].mxu0
      %v4714 = vadd.f32 %v4601, %v4713
      %v4715 = vpop.f32.mrb[0].mxu0
      %v4716 = vadd.f32 %v4603, %v4715
      %4717 = vmatprep.mubr.bf16.mxu0 %v2522
      %4718 = vmatmul.mubr.bf16.gmra.mrb[0].mxu0 %v2521
      %v4719 = vpop.f32.mrb[0].mxu0
      %v4720 = vadd.f32 %v4607, %v4719
      %v4721 = vpop.f32.mrb[0].mxu0
      %v4722 = vadd.f32 %v4609, %v4721
      %v4723 = vpop.f32.mrb[0].mxu0
      %v4724 = vadd.f32 %v4611, %v4723
      %v4725 = vpop.f32.mrb[0].mxu0
      %v4726 = vadd.f32 %v4613, %v4725
      %4727 = vdwg.mxu0
      %v4728 = vmax.f32 %v4198, 0.0
      %v4729 = vmax.f32 %v4200, 0.0
      %v4730 = vmax.f32 %v4650, 0.0
      %v4731 = vmax.f32 %v4652, 0.0
      %v4732 = vmax.f32 %v4202, 0.0
      %v4733 = vmax.f32 %v4204, 0.0
      %v4734 = vmax.f32 %v4654, 0.0
      %v4735 = vmax.f32 %v4656, 0.0
      %v4736 = vmax.f32 %v4208, 0.0
      %v4737 = vmax.f32 %v4210, 0.0
      %v4738 = vmax.f32 %v4660, 0.0
      %v4739 = vmax.f32 %v4662, 0.0
      %v4740 = vmax.f32 %v4212, 0.0
      %v4741 = vmax.f32 %v4214, 0.0
      %v4742 = vmax.f32 %v4664, 0.0
      %v4743 = vmax.f32 %v4666, 0.0
      %v4744 = vmax.f32 %v4218, 0.0
      %v4745 = vmax.f32 %v4220, 0.0
      %v4746 = vmax.f32 %v4670, 0.0
      %v4747 = vmax.f32 %v4672, 0.0
      %v4748 = vmax.f32 %v4222, 0.0
      %v4749 = vmax.f32 %v4224, 0.0
      %v4750 = vmax.f32 %v4674, 0.0
      %v4751 = vmax.f32 %v4676, 0.0
      %v4752 = vmax.f32 %v4228, 0.0
      %v4753 = vmax.f32 %v4230, 0.0
      %v4754 = vmax.f32 %v4680, 0.0
      %v4755 = vmax.f32 %v4682, 0.0
      %v4756 = vmax.f32 %v4232, 0.0
      %v4757 = vmax.f32 %v4234, 0.0
      %v4758 = vmax.f32 %v4684, 0.0
      %v4759 = vmax.f32 %v4686, 0.0
      %v4760 = vmax.f32 %v4238, 0.0
      %v4761 = vmax.f32 %v4240, 0.0
      %v4762 = vmax.f32 %v4690, 0.0
      %v4763 = vmax.f32 %v4692, 0.0
      %v4764 = vmax.f32 %v4242, 0.0
      %v4765 = vmax.f32 %v4244, 0.0
      %v4766 = vmax.f32 %v4694, 0.0
      %v4767 = vmax.f32 %v4696, 0.0
      %v4768 = vmax.f32 %v4248, 0.0
      %v4769 = vmax.f32 %v4250, 0.0
      %v4770 = vmax.f32 %v4700, 0.0
      %v4771 = vmax.f32 %v4702, 0.0
      %v4772 = vmax.f32 %v4252, 0.0
      %v4773 = vmax.f32 %v4254, 0.0
      %v4774 = vmax.f32 %v4704, 0.0
      %v4775 = vmax.f32 %v4706, 0.0
      %v4776 = vmax.f32 %v4258, 0.0
      %v4777 = vmax.f32 %v4260, 0.0
      %v4778 = vmax.f32 %v4710, 0.0
      %v4779 = vmax.f32 %v4712, 0.0
      %v4780 = vmax.f32 %v4262, 0.0
      %v4781 = vmax.f32 %v4264, 0.0
      %v4782 = vmax.f32 %v4714, 0.0
      %v4783 = vmax.f32 %v4716, 0.0
      %v4784 = vmax.f32 %v4268, 0.0
      %v4785 = vmax.f32 %v4270, 0.0
      %v4786 = vmax.f32 %v4720, 0.0
      %v4787 = vmax.f32 %v4722, 0.0
      %v4788 = vmax.f32 %v4272, 0.0
      %v4789 = vmax.f32 %v4274, 0.0
      %v4790 = vmax.f32 %v4724, 0.0
      %v4791 = vmax.f32 %v4726, 0.0
      %v4792 = vld [vmem:[%s8] sm:$0xff]
      %v4793 = vld [vmem:[%s8 + $0x8] sm:$0xff]
      %v4794 = vld [vmem:[%s8 + $0x10] sm:$0xff]
      %v4795 = vld [vmem:[%s8 + $0x18] sm:$0xff]
      %v4796 = vld [vmem:[%s8 + $0x20] sm:$0xff]
      %v4797 = vld [vmem:[%s8 + $0x28] sm:$0xff]
      %v4798 = vld [vmem:[%s8 + $0x30] sm:$0xff]
      %v4799 = vld [vmem:[%s8 + $0x38] sm:$0xff]
      %v4800 = vld [vmem:[%s8 + $0x40] sm:$0xff]
      %v4801 = vld [vmem:[%s8 + $0x48] sm:$0xff]
      %v4802 = vld [vmem:[%s8 + $0x50] sm:$0xff]
      %v4803 = vld [vmem:[%s8 + $0x58] sm:$0xff]
      %v4804 = vld [vmem:[%s8 + $0x60] sm:$0xff]
      %v4805 = vld [vmem:[%s8 + $0x68] sm:$0xff]
      %v4806 = vld [vmem:[%s8 + $0x70] sm:$0xff]
      %v4807 = vld [vmem:[%s8 + $0x78] sm:$0xff]
      %v4808 = vld [vmem:[%s8 + $0x80] sm:$0xff]
      %v4809 = vld [vmem:[%s8 + $0x88] sm:$0xff]
      %v4810 = vld [vmem:[%s8 + $0x90] sm:$0xff]
      %v4811 = vld [vmem:[%s8 + $0x98] sm:$0xff]
      %v4812 = vld [vmem:[%s8 + $0xa0] sm:$0xff]
      %v4813 = vld [vmem:[%s8 + $0xa8] sm:$0xff]
      %v4814 = vld [vmem:[%s8 + $0xb0] sm:$0xff]
      %v4815 = vld [vmem:[%s8 + $0xb8] sm:$0xff]
      %v4816 = vld [vmem:[%s8 + $0xc0] sm:$0xff]
      %v4817 = vld [vmem:[%s8 + $0xc8] sm:$0xff]
      %v4818 = vld [vmem:[%s8 + $0xd0] sm:$0xff]
      %v4819 = vld [vmem:[%s8 + $0xd8] sm:$0xff]
      %v4820 = vld [vmem:[%s8 + $0xe0] sm:$0xff]
      %v4821 = vld [vmem:[%s8 + $0xe8] sm:$0xff]
      %v4822 = vld [vmem:[%s8 + $0xf0] sm:$0xff]
      %v4823 = vld [vmem:[%s8 + $0xf8] sm:$0xff]
      %v4824 = vld [vmem:[%s8 + $0x100] sm:$0xff]
      %v4825 = vld [vmem:[%s8 + $0x108] sm:$0xff]
      %v4826 = vld [vmem:[%s8 + $0x110] sm:$0xff]
      %v4827 = vld [vmem:[%s8 + $0x118] sm:$0xff]
      %v4828 = vld [vmem:[%s8 + $0x120] sm:$0xff]
      %v4829 = vld [vmem:[%s8 + $0x128] sm:$0xff]
      %v4830 = vld [vmem:[%s8 + $0x130] sm:$0xff]
      %v4831 = vld [vmem:[%s8 + $0x138] sm:$0xff]
      %v4832 = vld [vmem:[%s8 + $0x140] sm:$0xff]
      %v4833 = vld [vmem:[%s8 + $0x148] sm:$0xff]
      %v4834 = vld [vmem:[%s8 + $0x150] sm:$0xff]
      %v4835 = vld [vmem:[%s8 + $0x158] sm:$0xff]
      %v4836 = vld [vmem:[%s8 + $0x160] sm:$0xff]
      %v4837 = vld [vmem:[%s8 + $0x168] sm:$0xff]
      %v4838 = vld [vmem:[%s8 + $0x170] sm:$0xff]
      %v4839 = vld [vmem:[%s8 + $0x178] sm:$0xff]
      %v4840 = vld [vmem:[%s8 + $0x180] sm:$0xff]
      %v4841 = vld [vmem:[%s8 + $0x188] sm:$0xff]
      %v4842 = vld [vmem:[%s8 + $0x190] sm:$0xff]
      %v4843 = vld [vmem:[%s8 + $0x198] sm:$0xff]
      %v4844 = vld [vmem:[%s8 + $0x1a0] sm:$0xff]
      %v4845 = vld [vmem:[%s8 + $0x1a8] sm:$0xff]
      %v4846 = vld [vmem:[%s8 + $0x1b0] sm:$0xff]
      %v4847 = vld [vmem:[%s8 + $0x1b8] sm:$0xff]
      %v4848 = vld [vmem:[%s8 + $0x1c0] sm:$0xff]
      %v4849 = vld [vmem:[%s8 + $0x1c8] sm:$0xff]
      %v4850 = vld [vmem:[%s8 + $0x1d0] sm:$0xff]
      %v4851 = vld [vmem:[%s8 + $0x1d8] sm:$0xff]
      %v4852 = vld [vmem:[%s8 + $0x1e0] sm:$0xff]
      %v4853 = vld [vmem:[%s8 + $0x1e8] sm:$0xff]
      %v4854 = vld [vmem:[%s8 + $0x1f0] sm:$0xff]
      %v4855 = vld [vmem:[%s8 + $0x1f8] sm:$0xff]
      %s4856 = scalar_lea.vmem %s11, 5
      %v4857 = vld [vmem:[%s4856] ss:$8 sm:$0x3]
      %v4858 = vpack.c.bf16 %v4732, %v4728
      %v4859 = vpack.c.bf16 %v4733, %v4729
      %v4860 = vpack.c.bf16 %v4734, %v4730
      %v4861 = vpack.c.bf16 %v4735, %v4731
      %v4862 = vpack.c.bf16 %v4740, %v4736
      %v4863 = vpack.c.bf16 %v4741, %v4737
      %v4864 = vpack.c.bf16 %v4742, %v4738
      %v4865 = vpack.c.bf16 %v4743, %v4739
      %v4866 = vpack.c.bf16 %v4748, %v4744
      %v4867 = vpack.c.bf16 %v4749, %v4745
      %v4868 = vpack.c.bf16 %v4750, %v4746
      %v4869 = vpack.c.bf16 %v4751, %v4747
      %v4870 = vpack.c.bf16 %v4756, %v4752
      %v4871 = vpack.c.bf16 %v4757, %v4753
      %v4872 = vpack.c.bf16 %v4758, %v4754
      %v4873 = vpack.c.bf16 %v4759, %v4755
      %v4874 = vpack.c.bf16 %v4764, %v4760
      %v4875 = vpack.c.bf16 %v4765, %v4761
      %v4876 = vpack.c.bf16 %v4766, %v4762
      %v4877 = vpack.c.bf16 %v4767, %v4763
      %v4878 = vpack.c.bf16 %v4772, %v4768
      %v4879 = vpack.c.bf16 %v4773, %v4769
      %v4880 = vpack.c.bf16 %v4774, %v4770
      %v4881 = vpack.c.bf16 %v4775, %v4771
      %v4882 = vpack.c.bf16 %v4780, %v4776
      %v4883 = vpack.c.bf16 %v4781, %v4777
      %v4884 = vpack.c.bf16 %v4782, %v4778
      %v4885 = vpack.c.bf16 %v4783, %v4779
      %v4886 = vpack.c.bf16 %v4788, %v4784
      %v4887 = vpack.c.bf16 %v4789, %v4785
      %v4888 = vpack.c.bf16 %v4790, %v4786
      %v4889 = vpack.c.bf16 %v4791, %v4787
      %v4891 = vlaneseq
      %v4892 = vshrl.u32 %v4891, 7
      %v4893 = vsub.s32 0, %v4892
      %v4894 = vrot.slane %v4857, %v4893
      %v4895 = vlaneseq
      %v4896 = vshrl.u32 %v4895, 7
      %v4897 = vsub.s32 1, %v4896
      %v4898 = vrot.slane %v4857, %v4897
      %v4965 = vunpack.c.l.b16 %v4792
      %v4966 = vunpack.c.h.b16 %v4792
      %v4967 = vunpack.c.l.b16 %v4793
      %v4968 = vunpack.c.h.b16 %v4793
      %v4969 = vunpack.c.l.b16 %v4794
      %v4970 = vunpack.c.h.b16 %v4794
      %v4971 = vunpack.c.l.b16 %v4795
      %v4972 = vunpack.c.h.b16 %v4795
      %v4973 = vunpack.c.l.b16 %v4796
      %v4974 = vunpack.c.h.b16 %v4796
      %v4975 = vunpack.c.l.b16 %v4797
      %v4976 = vunpack.c.h.b16 %v4797
      %v4977 = vunpack.c.l.b16 %v4798
      %v4978 = vunpack.c.h.b16 %v4798
      %v4979 = vunpack.c.l.b16 %v4799
      %v4980 = vunpack.c.h.b16 %v4799
      %v4981 = vunpack.c.l.b16 %v4800
      %v4982 = vunpack.c.h.b16 %v4800
      %v4983 = vunpack.c.l.b16 %v4801
      %v4984 = vunpack.c.h.b16 %v4801
      %v4985 = vunpack.c.l.b16 %v4802
      %v4986 = vunpack.c.h.b16 %v4802
      %v4987 = vunpack.c.l.b16 %v4803
      %v4988 = vunpack.c.h.b16 %v4803
      %v4989 = vunpack.c.l.b16 %v4804
      %v4990 = vunpack.c.h.b16 %v4804
      %v4991 = vunpack.c.l.b16 %v4805
      %v4992 = vunpack.c.h.b16 %v4805
      %v4993 = vunpack.c.l.b16 %v4806
      %v4994 = vunpack.c.h.b16 %v4806
      %v4995 = vunpack.c.l.b16 %v4807
      %v4996 = vunpack.c.h.b16 %v4807
      %v4997 = vunpack.c.l.b16 %v4808
      %v4998 = vunpack.c.h.b16 %v4808
      %v4999 = vunpack.c.l.b16 %v4809
      %v5000 = vunpack.c.h.b16 %v4809
      %v5001 = vunpack.c.l.b16 %v4810
      %v5002 = vunpack.c.h.b16 %v4810
      %v5003 = vunpack.c.l.b16 %v4811
      %v5004 = vunpack.c.h.b16 %v4811
      %v5005 = vunpack.c.l.b16 %v4812
      %v5006 = vunpack.c.h.b16 %v4812
      %v5007 = vunpack.c.l.b16 %v4813
      %v5008 = vunpack.c.h.b16 %v4813
      %v5009 = vunpack.c.l.b16 %v4814
      %v5010 = vunpack.c.h.b16 %v4814
      %v5011 = vunpack.c.l.b16 %v4815
      %v5012 = vunpack.c.h.b16 %v4815
      %v5013 = vunpack.c.l.b16 %v4816
      %v5014 = vunpack.c.h.b16 %v4816
      %v5015 = vunpack.c.l.b16 %v4817
      %v5016 = vunpack.c.h.b16 %v4817
      %v5017 = vunpack.c.l.b16 %v4818
      %v5018 = vunpack.c.h.b16 %v4818
      %v5019 = vunpack.c.l.b16 %v4819
      %v5020 = vunpack.c.h.b16 %v4819
      %v5021 = vunpack.c.l.b16 %v4820
      %v5022 = vunpack.c.h.b16 %v4820
      %v5023 = vunpack.c.l.b16 %v4821
      %v5024 = vunpack.c.h.b16 %v4821
      %v5025 = vunpack.c.l.b16 %v4822
      %v5026 = vunpack.c.h.b16 %v4822
      %v5027 = vunpack.c.l.b16 %v4823
      %v5028 = vunpack.c.h.b16 %v4823
      %v5029 = vunpack.c.l.b16 %v4824
      %v5030 = vunpack.c.h.b16 %v4824
      %v5031 = vunpack.c.l.b16 %v4825
      %v5032 = vunpack.c.h.b16 %v4825
      %v5033 = vunpack.c.l.b16 %v4826
      %v5034 = vunpack.c.h.b16 %v4826
      %v5035 = vunpack.c.l.b16 %v4827
      %v5036 = vunpack.c.h.b16 %v4827
      %v5037 = vunpack.c.l.b16 %v4828
      %v5038 = vunpack.c.h.b16 %v4828
      %v5039 = vunpack.c.l.b16 %v4829
      %v5040 = vunpack.c.h.b16 %v4829
      %v5041 = vunpack.c.l.b16 %v4830
      %v5042 = vunpack.c.h.b16 %v4830
      %v5043 = vunpack.c.l.b16 %v4831
      %v5044 = vunpack.c.h.b16 %v4831
      %v5045 = vunpack.c.l.b16 %v4832
      %v5046 = vunpack.c.h.b16 %v4832
      %v5047 = vunpack.c.l.b16 %v4833
      %v5048 = vunpack.c.h.b16 %v4833
      %v5049 = vunpack.c.l.b16 %v4834
      %v5050 = vunpack.c.h.b16 %v4834
      %v5051 = vunpack.c.l.b16 %v4835
      %v5052 = vunpack.c.h.b16 %v4835
      %v5053 = vunpack.c.l.b16 %v4836
      %v5054 = vunpack.c.h.b16 %v4836
      %v5055 = vunpack.c.l.b16 %v4837
      %v5056 = vunpack.c.h.b16 %v4837
      %v5057 = vunpack.c.l.b16 %v4838
      %v5058 = vunpack.c.h.b16 %v4838
      %v5059 = vunpack.c.l.b16 %v4839
      %v5060 = vunpack.c.h.b16 %v4839
      %v5061 = vunpack.c.l.b16 %v4840
      %v5062 = vunpack.c.h.b16 %v4840
      %v5063 = vunpack.c.l.b16 %v4841
      %v5064 = vunpack.c.h.b16 %v4841
      %v5065 = vunpack.c.l.b16 %v4842
      %v5066 = vunpack.c.h.b16 %v4842
      %v5067 = vunpack.c.l.b16 %v4843
      %v5068 = vunpack.c.h.b16 %v4843
      %v5069 = vunpack.c.l.b16 %v4844
      %v5070 = vunpack.c.h.b16 %v4844
      %v5071 = vunpack.c.l.b16 %v4845
      %v5072 = vunpack.c.h.b16 %v4845
      %v5073 = vunpack.c.l.b16 %v4846
      %v5074 = vunpack.c.h.b16 %v4846
      %v5075 = vunpack.c.l.b16 %v4847
      %v5076 = vunpack.c.h.b16 %v4847
      %v5077 = vunpack.c.l.b16 %v4848
      %v5078 = vunpack.c.h.b16 %v4848
      %v5079 = vunpack.c.l.b16 %v4849
      %v5080 = vunpack.c.h.b16 %v4849
      %v5081 = vunpack.c.l.b16 %v4850
      %v5082 = vunpack.c.h.b16 %v4850
      %v5083 = vunpack.c.l.b16 %v4851
      %v5084 = vunpack.c.h.b16 %v4851
      %v5085 = vunpack.c.l.b16 %v4852
      %v5086 = vunpack.c.h.b16 %v4852
      %v5087 = vunpack.c.l.b16 %v4853
      %v5088 = vunpack.c.h.b16 %v4853
      %v5089 = vunpack.c.l.b16 %v4854
      %v5090 = vunpack.c.h.b16 %v4854
      %v5091 = vunpack.c.l.b16 %v4855
      %v5092 = vunpack.c.h.b16 %v4855
      %v5093 = vpack.c.b16 %v4967, %v4965
      %v5094 = vpack.c.b16 %v4968, %v4966
      %v5095 = vpack.c.b16 %v4971, %v4969
      %v5096 = vpack.c.b16 %v4972, %v4970
      %v5097 = vpack.c.b16 %v4975, %v4973
      %v5098 = vpack.c.b16 %v4976, %v4974
      %v5099 = vpack.c.b16 %v4979, %v4977
      %v5100 = vpack.c.b16 %v4980, %v4978
      %v5101 = vpack.c.b16 %v4983, %v4981
      %v5102 = vpack.c.b16 %v4984, %v4982
      %v5103 = vpack.c.b16 %v4987, %v4985
      %v5104 = vpack.c.b16 %v4988, %v4986
      %v5105 = vpack.c.b16 %v4991, %v4989
      %v5106 = vpack.c.b16 %v4992, %v4990
      %v5107 = vpack.c.b16 %v4995, %v4993
      %v5108 = vpack.c.b16 %v4996, %v4994
      %v5109 = vpack.c.b16 %v4999, %v4997
      %v5110 = vpack.c.b16 %v5000, %v4998
      %v5111 = vpack.c.b16 %v5003, %v5001
      %v5112 = vpack.c.b16 %v5004, %v5002
      %v5113 = vpack.c.b16 %v5007, %v5005
      %v5114 = vpack.c.b16 %v5008, %v5006
      %v5115 = vpack.c.b16 %v5011, %v5009
      %v5116 = vpack.c.b16 %v5012, %v5010
      %v5117 = vpack.c.b16 %v5015, %v5013
      %v5118 = vpack.c.b16 %v5016, %v5014
      %v5119 = vpack.c.b16 %v5019, %v5017
      %v5120 = vpack.c.b16 %v5020, %v5018
      %v5121 = vpack.c.b16 %v5023, %v5021
      %v5122 = vpack.c.b16 %v5024, %v5022
      %v5123 = vpack.c.b16 %v5027, %v5025
      %v5124 = vpack.c.b16 %v5028, %v5026
      %v5125 = vpack.c.b16 %v5031, %v5029
      %v5126 = vpack.c.b16 %v5032, %v5030
      %v5127 = vpack.c.b16 %v5035, %v5033
      %v5128 = vpack.c.b16 %v5036, %v5034
      %v5129 = vpack.c.b16 %v5039, %v5037
      %v5130 = vpack.c.b16 %v5040, %v5038
      %v5131 = vpack.c.b16 %v5043, %v5041
      %v5132 = vpack.c.b16 %v5044, %v5042
      %v5133 = vpack.c.b16 %v5047, %v5045
      %v5134 = vpack.c.b16 %v5048, %v5046
      %v5135 = vpack.c.b16 %v5051, %v5049
      %v5136 = vpack.c.b16 %v5052, %v5050
      %v5137 = vpack.c.b16 %v5055, %v5053
      %v5138 = vpack.c.b16 %v5056, %v5054
      %v5139 = vpack.c.b16 %v5059, %v5057
      %v5140 = vpack.c.b16 %v5060, %v5058
      %v5141 = vpack.c.b16 %v5063, %v5061
      %v5142 = vpack.c.b16 %v5064, %v5062
      %v5143 = vpack.c.b16 %v5067, %v5065
      %v5144 = vpack.c.b16 %v5068, %v5066
      %v5145 = vpack.c.b16 %v5071, %v5069
      %v5146 = vpack.c.b16 %v5072, %v5070
      %v5147 = vpack.c.b16 %v5075, %v5073
      %v5148 = vpack.c.b16 %v5076, %v5074
      %v5149 = vpack.c.b16 %v5079, %v5077
      %v5150 = vpack.c.b16 %v5080, %v5078
      %v5151 = vpack.c.b16 %v5083, %v5081
      %v5152 = vpack.c.b16 %v5084, %v5082
      %v5153 = vpack.c.b16 %v5087, %v5085
      %v5154 = vpack.c.b16 %v5088, %v5086
      %v5155 = vpack.c.b16 %v5091, %v5089
      %v5156 = vpack.c.b16 %v5092, %v5090
      %5221 = vmatprep.subr.bf16.mxu0 %v5094
      %5222 = vmatpush1.bf16.msra.mxu0 %v5093
      %5223 = vmatprep.subr.bf16.mxu0 %v5096
      %5224 = vmatpush1.bf16.msra.mxu0 %v5095
      %5225 = vmatprep.subr.bf16.mxu0 %v5098
      %5226 = vmatpush1.bf16.msra.mxu0 %v5097
      %5227 = vmatprep.subr.bf16.mxu0 %v5100
      %5228 = vmatpush1.bf16.msra.mxu0 %v5099
      %5229 = vmatprep.subr.bf16.mxu0 %v5102
      %5230 = vmatpush1.bf16.msra.mxu0 %v5101
      %5231 = vmatprep.subr.bf16.mxu0 %v5104
      %5232 = vmatpush1.bf16.msra.mxu0 %v5103
      %5233 = vmatprep.subr.bf16.mxu0 %v5106
      %5234 = vmatpush1.bf16.msra.mxu0 %v5105
      %5235 = vmatprep.subr.bf16.mxu0 %v5108
      %5236 = vmatpush1.bf16.msra.mxu0 %v5107
      %5237 = vmatprep.subr.bf16.mxu0 %v5110
      %5238 = vmatpush1.bf16.msra.mxu0 %v5109
      %5239 = vmatprep.subr.bf16.mxu0 %v5112
      %5240 = vmatpush1.bf16.msra.mxu0 %v5111
      %5241 = vmatprep.subr.bf16.mxu0 %v5114
      %5242 = vmatpush1.bf16.msra.mxu0 %v5113
      %5243 = vmatprep.subr.bf16.mxu0 %v5116
      %5244 = vmatpush1.bf16.msra.mxu0 %v5115
      %5245 = vmatprep.subr.bf16.mxu0 %v5118
      %5246 = vmatpush1.bf16.msra.mxu0 %v5117
      %5247 = vmatprep.subr.bf16.mxu0 %v5120
      %5248 = vmatpush1.bf16.msra.mxu0 %v5119
      %5249 = vmatprep.subr.bf16.mxu0 %v5122
      %5250 = vmatpush1.bf16.msra.mxu0 %v5121
      %5251 = vmatprep.subr.bf16.mxu0 %v5124
      %5252 = vmatpush1.bf16.msra.mxu0 %v5123
      %5253 = vmatprep.mubr.bf16.mxu0 %v4859
      %5254 = vmatmul.mubr.bf16.gmra.mrb[0].mxu0 %v4858
      %v5255 = vpop.f32.mrb[0].mxu0
      %v5256 = vadd.f32 %v4894, %v5255
      %v5257 = vpop.f32.mrb[0].mxu0
      %v5258 = vadd.f32 %v4898, %v5257
      %v5259 = vpop.f32.mrb[0].mxu0
      %v5260 = vadd.f32 %v4894, %v5259
      %v5261 = vpop.f32.mrb[0].mxu0
      %v5262 = vadd.f32 %v4898, %v5261
      %5263 = vmatprep.mubr.bf16.mxu0 %v4863
      %5264 = vmatmul.mubr.bf16.gmra.mrb[0].mxu0 %v4862
      %v5265 = vpop.f32.mrb[0].mxu0
      %v5266 = vadd.f32 %v4894, %v5265
      %v5267 = vpop.f32.mrb[0].mxu0
      %v5268 = vadd.f32 %v4898, %v5267
      %v5269 = vpop.f32.mrb[0].mxu0
      %v5270 = vadd.f32 %v4894, %v5269
      %v5271 = vpop.f32.mrb[0].mxu0
      %v5272 = vadd.f32 %v4898, %v5271
      %5273 = vmatprep.mubr.bf16.mxu0 %v4867
      %5274 = vmatmul.mubr.bf16.gmra.mrb[0].mxu0 %v4866
      %v5275 = vpop.f32.mrb[0].mxu0
      %v5276 = vadd.f32 %v4894, %v5275
      %v5277 = vpop.f32.mrb[0].mxu0
      %v5278 = vadd.f32 %v4898, %v5277
      %v5279 = vpop.f32.mrb[0].mxu0
      %v5280 = vadd.f32 %v4894, %v5279
      %v5281 = vpop.f32.mrb[0].mxu0
      %v5282 = vadd.f32 %v4898, %v5281
      %5283 = vmatprep.mubr.bf16.mxu0 %v4871
      %5284 = vmatmul.mubr.bf16.gmra.mrb[0].mxu0 %v4870
      %v5285 = vpop.f32.mrb[0].mxu0
      %v5286 = vadd.f32 %v4894, %v5285
      %v5287 = vpop.f32.mrb[0].mxu0
      %v5288 = vadd.f32 %v4898, %v5287
      %v5289 = vpop.f32.mrb[0].mxu0
      %v5290 = vadd.f32 %v4894, %v5289
      %v5291 = vpop.f32.mrb[0].mxu0
      %v5292 = vadd.f32 %v4898, %v5291
      %5293 = vmatprep.mubr.bf16.mxu0 %v4875
      %5294 = vmatmul.mubr.bf16.gmra.mrb[0].mxu0 %v4874
      %v5295 = vpop.f32.mrb[0].mxu0
      %v5296 = vadd.f32 %v4894, %v5295
      %v5297 = vpop.f32.mrb[0].mxu0
      %v5298 = vadd.f32 %v4898, %v5297
      %v5299 = vpop.f32.mrb[0].mxu0
      %v5300 = vadd.f32 %v4894, %v5299
      %v5301 = vpop.f32.mrb[0].mxu0
      %v5302 = vadd.f32 %v4898, %v5301
      %5303 = vmatprep.mubr.bf16.mxu0 %v4879
      %5304 = vmatmul.mubr.bf16.gmra.mrb[0].mxu0 %v4878
      %v5305 = vpop.f32.mrb[0].mxu0
      %v5306 = vadd.f32 %v4894, %v5305
      %v5307 = vpop.f32.mrb[0].mxu0
      %v5308 = vadd.f32 %v4898, %v5307
      %v5309 = vpop.f32.mrb[0].mxu0
      %v5310 = vadd.f32 %v4894, %v5309
      %v5311 = vpop.f32.mrb[0].mxu0
      %v5312 = vadd.f32 %v4898, %v5311
      %5313 = vmatprep.mubr.bf16.mxu0 %v4883
      %5314 = vmatmul.mubr.bf16.gmra.mrb[0].mxu0 %v4882
      %v5315 = vpop.f32.mrb[0].mxu0
      %v5316 = vadd.f32 %v4894, %v5315
      %v5317 = vpop.f32.mrb[0].mxu0
      %v5318 = vadd.f32 %v4898, %v5317
      %v5319 = vpop.f32.mrb[0].mxu0
      %v5320 = vadd.f32 %v4894, %v5319
      %v5321 = vpop.f32.mrb[0].mxu0
      %v5322 = vadd.f32 %v4898, %v5321
      %5323 = vmatprep.mubr.bf16.mxu0 %v4887
      %5324 = vmatmul.mubr.bf16.gmra.mrb[0].mxu0 %v4886
      %v5325 = vpop.f32.mrb[0].mxu0
      %v5326 = vadd.f32 %v4894, %v5325
      %v5327 = vpop.f32.mrb[0].mxu0
      %v5328 = vadd.f32 %v4898, %v5327
      %v5329 = vpop.f32.mrb[0].mxu0
      %v5330 = vadd.f32 %v4894, %v5329
      %v5331 = vpop.f32.mrb[0].mxu0
      %v5332 = vadd.f32 %v4898, %v5331
      %5333 = vdwg.mxu0
      %5334 = vmatprep.subr.bf16.mxu0 %v5126
      %5335 = vmatpush1.bf16.msra.mxu0 %v5125
      %5336 = vmatprep.subr.bf16.mxu0 %v5128
      %5337 = vmatpush1.bf16.msra.mxu0 %v5127
      %5338 = vmatprep.subr.bf16.mxu0 %v5130
      %5339 = vmatpush1.bf16.msra.mxu0 %v5129
      %5340 = vmatprep.subr.bf16.mxu0 %v5132
      %5341 = vmatpush1.bf16.msra.mxu0 %v5131
      %5342 = vmatprep.subr.bf16.mxu0 %v5134
      %5343 = vmatpush1.bf16.msra.mxu0 %v5133
      %5344 = vmatprep.subr.bf16.mxu0 %v5136
      %5345 = vmatpush1.bf16.msra.mxu0 %v5135
      %5346 = vmatprep.subr.bf16.mxu0 %v5138
      %5347 = vmatpush1.bf16.msra.mxu0 %v5137
      %5348 = vmatprep.subr.bf16.mxu0 %v5140
      %5349 = vmatpush1.bf16.msra.mxu0 %v5139
      %5350 = vmatprep.subr.bf16.mxu0 %v5142
      %5351 = vmatpush1.bf16.msra.mxu0 %v5141
      %5352 = vmatprep.subr.bf16.mxu0 %v5144
      %5353 = vmatpush1.bf16.msra.mxu0 %v5143
      %5354 = vmatprep.subr.bf16.mxu0 %v5146
      %5355 = vmatpush1.bf16.msra.mxu0 %v5145
      %5356 = vmatprep.subr.bf16.mxu0 %v5148
      %5357 = vmatpush1.bf16.msra.mxu0 %v5147
      %5358 = vmatprep.subr.bf16.mxu0 %v5150
      %5359 = vmatpush1.bf16.msra.mxu0 %v5149
      %5360 = vmatprep.subr.bf16.mxu0 %v5152
      %5361 = vmatpush1.bf16.msra.mxu0 %v5151
      %5362 = vmatprep.subr.bf16.mxu0 %v5154
      %5363 = vmatpush1.bf16.msra.mxu0 %v5153
      %5364 = vmatprep.subr.bf16.mxu0 %v5156
      %5365 = vmatpush1.bf16.msra.mxu0 %v5155
      %5366 = vmatprep.mubr.bf16.mxu0 %v4861
      %5367 = vmatmul.mubr.bf16.gmra.mrb[0].mxu0 %v4860
      %v5368 = vpop.f32.mrb[0].mxu0
      %v5369 = vadd.f32 %v5256, %v5368
      %v5370 = vpop.f32.mrb[0].mxu0
      %v5371 = vadd.f32 %v5258, %v5370
      %v5372 = vpop.f32.mrb[0].mxu0
      %v5373 = vadd.f32 %v5260, %v5372
      %v5374 = vpop.f32.mrb[0].mxu0
      %v5375 = vadd.f32 %v5262, %v5374
      %5376 = vmatprep.mubr.bf16.mxu0 %v4865
      %5377 = vmatmul.mubr.bf16.gmra.mrb[0].mxu0 %v4864
      %v5378 = vpop.f32.mrb[0].mxu0
      %v5379 = vadd.f32 %v5266, %v5378
      %v5380 = vpop.f32.mrb[0].mxu0
      %v5381 = vadd.f32 %v5268, %v5380
      %v5382 = vpop.f32.mrb[0].mxu0
      %v5383 = vadd.f32 %v5270, %v5382
      %v5384 = vpop.f32.mrb[0].mxu0
      %v5385 = vadd.f32 %v5272, %v5384
      %5386 = vmatprep.mubr.bf16.mxu0 %v4869
      %5387 = vmatmul.mubr.bf16.gmra.mrb[0].mxu0 %v4868
      %v5388 = vpop.f32.mrb[0].mxu0
      %v5389 = vadd.f32 %v5276, %v5388
      %v5390 = vpop.f32.mrb[0].mxu0
      %v5391 = vadd.f32 %v5278, %v5390
      %v5392 = vpop.f32.mrb[0].mxu0
      %v5393 = vadd.f32 %v5280, %v5392
      %v5394 = vpop.f32.mrb[0].mxu0
      %v5395 = vadd.f32 %v5282, %v5394
      %5396 = vmatprep.mubr.bf16.mxu0 %v4873
      %5397 = vmatmul.mubr.bf16.gmra.mrb[0].mxu0 %v4872
      %v5398 = vpop.f32.mrb[0].mxu0
      %v5399 = vadd.f32 %v5286, %v5398
      %v5400 = vpop.f32.mrb[0].mxu0
      %v5401 = vadd.f32 %v5288, %v5400
      %v5402 = vpop.f32.mrb[0].mxu0
      %v5403 = vadd.f32 %v5290, %v5402
      %v5404 = vpop.f32.mrb[0].mxu0
      %v5405 = vadd.f32 %v5292, %v5404
      %5406 = vmatprep.mubr.bf16.mxu0 %v4877
      %5407 = vmatmul.mubr.bf16.gmra.mrb[0].mxu0 %v4876
      %v5408 = vpop.f32.mrb[0].mxu0
      %v5409 = vadd.f32 %v5296, %v5408
      %v5410 = vpop.f32.mrb[0].mxu0
      %v5411 = vadd.f32 %v5298, %v5410
      %v5412 = vpop.f32.mrb[0].mxu0
      %v5413 = vadd.f32 %v5300, %v5412
      %v5414 = vpop.f32.mrb[0].mxu0
      %v5415 = vadd.f32 %v5302, %v5414
      %5416 = vmatprep.mubr.bf16.mxu0 %v4881
      %5417 = vmatmul.mubr.bf16.gmra.mrb[0].mxu0 %v4880
      %v5418 = vpop.f32.mrb[0].mxu0
      %v5419 = vadd.f32 %v5306, %v5418
      %v5420 = vpop.f32.mrb[0].mxu0
      %v5421 = vadd.f32 %v5308, %v5420
      %v5422 = vpop.f32.mrb[0].mxu0
      %v5423 = vadd.f32 %v5310, %v5422
      %v5424 = vpop.f32.mrb[0].mxu0
      %v5425 = vadd.f32 %v5312, %v5424
      %5426 = vmatprep.mubr.bf16.mxu0 %v4885
      %5427 = vmatmul.mubr.bf16.gmra.mrb[0].mxu0 %v4884
      %v5428 = vpop.f32.mrb[0].mxu0
      %v5429 = vadd.f32 %v5316, %v5428
      %v5430 = vpop.f32.mrb[0].mxu0
      %v5431 = vadd.f32 %v5318, %v5430
      %v5432 = vpop.f32.mrb[0].mxu0
      %v5433 = vadd.f32 %v5320, %v5432
      %v5434 = vpop.f32.mrb[0].mxu0
      %v5435 = vadd.f32 %v5322, %v5434
      %5436 = vmatprep.mubr.bf16.mxu0 %v4889
      %5437 = vmatmul.mubr.bf16.gmra.mrb[0].mxu0 %v4888
      %v5438 = vpop.f32.mrb[0].mxu0
      %v5439 = vadd.f32 %v5326, %v5438
      %v5440 = vpop.f32.mrb[0].mxu0
      %v5441 = vadd.f32 %v5328, %v5440
      %v5442 = vpop.f32.mrb[0].mxu0
      %v5443 = vadd.f32 %v5330, %v5442
      %v5444 = vpop.f32.mrb[0].mxu0
      %v5445 = vadd.f32 %v5332, %v5444
      %5446 = vdwg.mxu0
      %v5447 = vmax.f32 %v5369, 0.0
      %v5448 = vmax.f32 %v5371, 0.0
      %v5449 = vmax.f32 %v5373, 0.0
      %v5450 = vmax.f32 %v5375, 0.0
      %v5451 = vmax.f32 %v5379, 0.0
      %v5452 = vmax.f32 %v5381, 0.0
      %v5453 = vmax.f32 %v5383, 0.0
      %v5454 = vmax.f32 %v5385, 0.0
      %v5455 = vmax.f32 %v5389, 0.0
      %v5456 = vmax.f32 %v5391, 0.0
      %v5457 = vmax.f32 %v5393, 0.0
      %v5458 = vmax.f32 %v5395, 0.0
      %v5459 = vmax.f32 %v5399, 0.0
      %v5460 = vmax.f32 %v5401, 0.0
      %v5461 = vmax.f32 %v5403, 0.0
      %v5462 = vmax.f32 %v5405, 0.0
      %v5463 = vmax.f32 %v5409, 0.0
      %v5464 = vmax.f32 %v5411, 0.0
      %v5465 = vmax.f32 %v5413, 0.0
      %v5466 = vmax.f32 %v5415, 0.0
      %v5467 = vmax.f32 %v5419, 0.0
      %v5468 = vmax.f32 %v5421, 0.0
      %v5469 = vmax.f32 %v5423, 0.0
      %v5470 = vmax.f32 %v5425, 0.0
      %v5471 = vmax.f32 %v5429, 0.0
      %v5472 = vmax.f32 %v5431, 0.0
      %v5473 = vmax.f32 %v5433, 0.0
      %v5474 = vmax.f32 %v5435, 0.0
      %v5475 = vmax.f32 %v5439, 0.0
      %v5476 = vmax.f32 %v5441, 0.0
      %v5477 = vmax.f32 %v5443, 0.0
      %v5478 = vmax.f32 %v5445, 0.0
      %v5479 = vld [vmem:[%s9] sm:$0xff]
      %v5480 = vld [vmem:[%s9 + $0x8] sm:$0xff]
      %v5481 = vld [vmem:[%s9 + $0x10] sm:$0xff]
      %v5482 = vld [vmem:[%s9 + $0x18] sm:$0xff]
      %v5483 = vld [vmem:[%s9 + $0x20] sm:$0xff]
      %v5484 = vld [vmem:[%s9 + $0x28] sm:$0xff]
      %v5485 = vld [vmem:[%s9 + $0x30] sm:$0xff]
      %v5486 = vld [vmem:[%s9 + $0x38] sm:$0xff]
      %v5487 = vld [vmem:[%s9 + $0x40] sm:$0xff]
      %v5488 = vld [vmem:[%s9 + $0x48] sm:$0xff]
      %v5489 = vld [vmem:[%s9 + $0x50] sm:$0xff]
      %v5490 = vld [vmem:[%s9 + $0x58] sm:$0xff]
      %v5491 = vld [vmem:[%s9 + $0x60] sm:$0xff]
      %v5492 = vld [vmem:[%s9 + $0x68] sm:$0xff]
      %v5493 = vld [vmem:[%s9 + $0x70] sm:$0xff]
      %v5494 = vld [vmem:[%s9 + $0x78] sm:$0xff]
      %v5495 = vld [vmem:[%s9 + $0x80] sm:$0xff]
      %v5496 = vld [vmem:[%s9 + $0x88] sm:$0xff]
      %v5497 = vld [vmem:[%s9 + $0x90] sm:$0xff]
      %v5498 = vld [vmem:[%s9 + $0x98] sm:$0xff]
      %v5499 = vld [vmem:[%s9 + $0xa0] sm:$0xff]
      %v5500 = vld [vmem:[%s9 + $0xa8] sm:$0xff]
      %v5501 = vld [vmem:[%s9 + $0xb0] sm:$0xff]
      %v5502 = vld [vmem:[%s9 + $0xb8] sm:$0xff]
      %v5503 = vld [vmem:[%s9 + $0xc0] sm:$0xff]
      %v5504 = vld [vmem:[%s9 + $0xc8] sm:$0xff]
      %v5505 = vld [vmem:[%s9 + $0xd0] sm:$0xff]
      %v5506 = vld [vmem:[%s9 + $0xd8] sm:$0xff]
      %v5507 = vld [vmem:[%s9 + $0xe0] sm:$0xff]
      %v5508 = vld [vmem:[%s9 + $0xe8] sm:$0xff]
      %v5509 = vld [vmem:[%s9 + $0xf0] sm:$0xff]
      %v5510 = vld [vmem:[%s9 + $0xf8] sm:$0xff]
      %s5511 = scalar_lea.vmem %s11, 6
      %v5512 = vld [vmem:[%s5511] ss:$8 sm:$0x3]
      %v5513 = vpack.c.bf16 %v5449, %v5447
      %v5514 = vpack.c.bf16 %v5450, %v5448
      %v5515 = vpack.c.bf16 %v5453, %v5451
      %v5516 = vpack.c.bf16 %v5454, %v5452
      %v5517 = vpack.c.bf16 %v5457, %v5455
      %v5518 = vpack.c.bf16 %v5458, %v5456
      %v5519 = vpack.c.bf16 %v5461, %v5459
      %v5520 = vpack.c.bf16 %v5462, %v5460
      %v5521 = vpack.c.bf16 %v5465, %v5463
      %v5522 = vpack.c.bf16 %v5466, %v5464
      %v5523 = vpack.c.bf16 %v5469, %v5467
      %v5524 = vpack.c.bf16 %v5470, %v5468
      %v5525 = vpack.c.bf16 %v5473, %v5471
      %v5526 = vpack.c.bf16 %v5474, %v5472
      %v5527 = vpack.c.bf16 %v5477, %v5475
      %v5528 = vpack.c.bf16 %v5478, %v5476
      %v5530 = vlaneseq
      %v5531 = vshrl.u32 %v5530, 7
      %v5532 = vsub.s32 0, %v5531
      %v5533 = vrot.slane %v5512, %v5532
      %v5534 = vlaneseq
      %v5535 = vshrl.u32 %v5534, 7
      %v5536 = vsub.s32 1, %v5535
      %v5537 = vrot.slane %v5512, %v5536
      %v5572 = vunpack.c.l.b16 %v5479
      %v5573 = vunpack.c.h.b16 %v5479
      %v5574 = vunpack.c.l.b16 %v5480
      %v5575 = vunpack.c.h.b16 %v5480
      %v5576 = vunpack.c.l.b16 %v5481
      %v5577 = vunpack.c.h.b16 %v5481
      %v5578 = vunpack.c.l.b16 %v5482
      %v5579 = vunpack.c.h.b16 %v5482
      %v5580 = vunpack.c.l.b16 %v5483
      %v5581 = vunpack.c.h.b16 %v5483
      %v5582 = vunpack.c.l.b16 %v5484
      %v5583 = vunpack.c.h.b16 %v5484
      %v5584 = vunpack.c.l.b16 %v5485
      %v5585 = vunpack.c.h.b16 %v5485
      %v5586 = vunpack.c.l.b16 %v5486
      %v5587 = vunpack.c.h.b16 %v5486
      %v5588 = vunpack.c.l.b16 %v5487
      %v5589 = vunpack.c.h.b16 %v5487
      %v5590 = vunpack.c.l.b16 %v5488
      %v5591 = vunpack.c.h.b16 %v5488
      %v5592 = vunpack.c.l.b16 %v5489
      %v5593 = vunpack.c.h.b16 %v5489
      %v5594 = vunpack.c.l.b16 %v5490
      %v5595 = vunpack.c.h.b16 %v5490
      %v5596 = vunpack.c.l.b16 %v5491
      %v5597 = vunpack.c.h.b16 %v5491
      %v5598 = vunpack.c.l.b16 %v5492
      %v5599 = vunpack.c.h.b16 %v5492
      %v5600 = vunpack.c.l.b16 %v5493
      %v5601 = vunpack.c.h.b16 %v5493
      %v5602 = vunpack.c.l.b16 %v5494
      %v5603 = vunpack.c.h.b16 %v5494
      %v5604 = vunpack.c.l.b16 %v5495
      %v5605 = vunpack.c.h.b16 %v5495
      %v5606 = vunpack.c.l.b16 %v5496
      %v5607 = vunpack.c.h.b16 %v5496
      %v5608 = vunpack.c.l.b16 %v5497
      %v5609 = vunpack.c.h.b16 %v5497
      %v5610 = vunpack.c.l.b16 %v5498
      %v5611 = vunpack.c.h.b16 %v5498
      %v5612 = vunpack.c.l.b16 %v5499
      %v5613 = vunpack.c.h.b16 %v5499
      %v5614 = vunpack.c.l.b16 %v5500
      %v5615 = vunpack.c.h.b16 %v5500
      %v5616 = vunpack.c.l.b16 %v5501
      %v5617 = vunpack.c.h.b16 %v5501
      %v5618 = vunpack.c.l.b16 %v5502
      %v5619 = vunpack.c.h.b16 %v5502
      %v5620 = vunpack.c.l.b16 %v5503
      %v5621 = vunpack.c.h.b16 %v5503
      %v5622 = vunpack.c.l.b16 %v5504
      %v5623 = vunpack.c.h.b16 %v5504
      %v5624 = vunpack.c.l.b16 %v5505
      %v5625 = vunpack.c.h.b16 %v5505
      %v5626 = vunpack.c.l.b16 %v5506
      %v5627 = vunpack.c.h.b16 %v5506
      %v5628 = vunpack.c.l.b16 %v5507
      %v5629 = vunpack.c.h.b16 %v5507
      %v5630 = vunpack.c.l.b16 %v5508
      %v5631 = vunpack.c.h.b16 %v5508
      %v5632 = vunpack.c.l.b16 %v5509
      %v5633 = vunpack.c.h.b16 %v5509
      %v5634 = vunpack.c.l.b16 %v5510
      %v5635 = vunpack.c.h.b16 %v5510
      %v5636 = vpack.c.b16 %v5574, %v5572
      %v5637 = vpack.c.b16 %v5575, %v5573
      %v5638 = vpack.c.b16 %v5578, %v5576
      %v5639 = vpack.c.b16 %v5579, %v5577
      %v5640 = vpack.c.b16 %v5582, %v5580
      %v5641 = vpack.c.b16 %v5583, %v5581
      %v5642 = vpack.c.b16 %v5586, %v5584
      %v5643 = vpack.c.b16 %v5587, %v5585
      %v5644 = vpack.c.b16 %v5590, %v5588
      %v5645 = vpack.c.b16 %v5591, %v5589
      %v5646 = vpack.c.b16 %v5594, %v5592
      %v5647 = vpack.c.b16 %v5595, %v5593
      %v5648 = vpack.c.b16 %v5598, %v5596
      %v5649 = vpack.c.b16 %v5599, %v5597
      %v5650 = vpack.c.b16 %v5602, %v5600
      %v5651 = vpack.c.b16 %v5603, %v5601
      %v5652 = vpack.c.b16 %v5606, %v5604
      %v5653 = vpack.c.b16 %v5607, %v5605
      %v5654 = vpack.c.b16 %v5610, %v5608
      %v5655 = vpack.c.b16 %v5611, %v5609
      %v5656 = vpack.c.b16 %v5614, %v5612
      %v5657 = vpack.c.b16 %v5615, %v5613
      %v5658 = vpack.c.b16 %v5618, %v5616
      %v5659 = vpack.c.b16 %v5619, %v5617
      %v5660 = vpack.c.b16 %v5622, %v5620
      %v5661 = vpack.c.b16 %v5623, %v5621
      %v5662 = vpack.c.b16 %v5626, %v5624
      %v5663 = vpack.c.b16 %v5627, %v5625
      %v5664 = vpack.c.b16 %v5630, %v5628
      %v5665 = vpack.c.b16 %v5631, %v5629
      %v5666 = vpack.c.b16 %v5634, %v5632
      %v5667 = vpack.c.b16 %v5635, %v5633
      %5700 = vmatprep.subr.bf16.mxu0 %v5637
      %5701 = vmatpush1.bf16.msra.mxu0 %v5636
      %5702 = vmatprep.subr.bf16.mxu0 %v5639
      %5703 = vmatpush1.bf16.msra.mxu0 %v5638
      %5704 = vmatprep.subr.bf16.mxu0 %v5641
      %5705 = vmatpush1.bf16.msra.mxu0 %v5640
      %5706 = vmatprep.subr.bf16.mxu0 %v5643
      %5707 = vmatpush1.bf16.msra.mxu0 %v5642
      %5708 = vmatprep.subr.bf16.mxu0 %v5645
      %5709 = vmatpush1.bf16.msra.mxu0 %v5644
      %5710 = vmatprep.subr.bf16.mxu0 %v5647
      %5711 = vmatpush1.bf16.msra.mxu0 %v5646
      %5712 = vmatprep.subr.bf16.mxu0 %v5649
      %5713 = vmatpush1.bf16.msra.mxu0 %v5648
      %5714 = vmatprep.subr.bf16.mxu0 %v5651
      %5715 = vmatpush1.bf16.msra.mxu0 %v5650
      %5716 = vmatprep.subr.bf16.mxu0 %v5653
      %5717 = vmatpush1.bf16.msra.mxu0 %v5652
      %5718 = vmatprep.subr.bf16.mxu0 %v5655
      %5719 = vmatpush1.bf16.msra.mxu0 %v5654
      %5720 = vmatprep.subr.bf16.mxu0 %v5657
      %5721 = vmatpush1.bf16.msra.mxu0 %v5656
      %5722 = vmatprep.subr.bf16.mxu0 %v5659
      %5723 = vmatpush1.bf16.msra.mxu0 %v5658
      %5724 = vmatprep.subr.bf16.mxu0 %v5661
      %5725 = vmatpush1.bf16.msra.mxu0 %v5660
      %5726 = vmatprep.subr.bf16.mxu0 %v5663
      %5727 = vmatpush1.bf16.msra.mxu0 %v5662
      %5728 = vmatprep.subr.bf16.mxu0 %v5665
      %5729 = vmatpush1.bf16.msra.mxu0 %v5664
      %5730 = vmatprep.subr.bf16.mxu0 %v5667
      %5731 = vmatpush1.bf16.msra.mxu0 %v5666
      %5732 = vmatprep.mubr.bf16.mxu0 %v5514
      %5733 = vmatmul.mubr.bf16.gmra.mrb[0].mxu0 %v5513
      %v5734 = vpop.f32.mrb[0].mxu0
      %v5735 = vadd.f32 %v5533, %v5734
      %v5736 = vpop.f32.mrb[0].mxu0
      %v5737 = vadd.f32 %v5537, %v5736
      %v5738 = vpop.f32.mrb[0].mxu0
      %v5739 = vadd.f32 %v5533, %v5738
      %v5740 = vpop.f32.mrb[0].mxu0
      %v5741 = vadd.f32 %v5537, %v5740
      %5742 = vmatprep.mubr.bf16.mxu0 %v5516
      %5743 = vmatmul.mubr.bf16.gmra.mrb[0].mxu0 %v5515
      %v5744 = vpop.f32.mrb[0].mxu0
      %v5745 = vadd.f32 %v5533, %v5744
      %v5746 = vpop.f32.mrb[0].mxu0
      %v5747 = vadd.f32 %v5537, %v5746
      %v5748 = vpop.f32.mrb[0].mxu0
      %v5749 = vadd.f32 %v5533, %v5748
      %v5750 = vpop.f32.mrb[0].mxu0
      %v5751 = vadd.f32 %v5537, %v5750
      %5752 = vmatprep.mubr.bf16.mxu0 %v5518
      %5753 = vmatmul.mubr.bf16.gmra.mrb[0].mxu0 %v5517
      %v5754 = vpop.f32.mrb[0].mxu0
      %v5755 = vadd.f32 %v5533, %v5754
      %v5756 = vpop.f32.mrb[0].mxu0
      %v5757 = vadd.f32 %v5537, %v5756
      %v5758 = vpop.f32.mrb[0].mxu0
      %v5759 = vadd.f32 %v5533, %v5758
      %v5760 = vpop.f32.mrb[0].mxu0
      %v5761 = vadd.f32 %v5537, %v5760
      %5762 = vmatprep.mubr.bf16.mxu0 %v5520
      %5763 = vmatmul.mubr.bf16.gmra.mrb[0].mxu0 %v5519
      %v5764 = vpop.f32.mrb[0].mxu0
      %v5765 = vadd.f32 %v5533, %v5764
      %v5766 = vpop.f32.mrb[0].mxu0
      %v5767 = vadd.f32 %v5537, %v5766
      %v5768 = vpop.f32.mrb[0].mxu0
      %v5769 = vadd.f32 %v5533, %v5768
      %v5770 = vpop.f32.mrb[0].mxu0
      %v5771 = vadd.f32 %v5537, %v5770
      %5772 = vmatprep.mubr.bf16.mxu0 %v5522
      %5773 = vmatmul.mubr.bf16.gmra.mrb[0].mxu0 %v5521
      %v5774 = vpop.f32.mrb[0].mxu0
      %v5775 = vadd.f32 %v5533, %v5774
      %v5776 = vpop.f32.mrb[0].mxu0
      %v5777 = vadd.f32 %v5537, %v5776
      %v5778 = vpop.f32.mrb[0].mxu0
      %v5779 = vadd.f32 %v5533, %v5778
      %v5780 = vpop.f32.mrb[0].mxu0
      %v5781 = vadd.f32 %v5537, %v5780
      %5782 = vmatprep.mubr.bf16.mxu0 %v5524
      %5783 = vmatmul.mubr.bf16.gmra.mrb[0].mxu0 %v5523
      %v5784 = vpop.f32.mrb[0].mxu0
      %v5785 = vadd.f32 %v5533, %v5784
      %v5786 = vpop.f32.mrb[0].mxu0
      %v5787 = vadd.f32 %v5537, %v5786
      %v5788 = vpop.f32.mrb[0].mxu0
      %v5789 = vadd.f32 %v5533, %v5788
      %v5790 = vpop.f32.mrb[0].mxu0
      %v5791 = vadd.f32 %v5537, %v5790
      %5792 = vmatprep.mubr.bf16.mxu0 %v5526
      %5793 = vmatmul.mubr.bf16.gmra.mrb[0].mxu0 %v5525
      %v5794 = vpop.f32.mrb[0].mxu0
      %v5795 = vadd.f32 %v5533, %v5794
      %v5796 = vpop.f32.mrb[0].mxu0
      %v5797 = vadd.f32 %v5537, %v5796
      %v5798 = vpop.f32.mrb[0].mxu0
      %v5799 = vadd.f32 %v5533, %v5798
      %v5800 = vpop.f32.mrb[0].mxu0
      %v5801 = vadd.f32 %v5537, %v5800
      %5802 = vmatprep.mubr.bf16.mxu0 %v5528
      %5803 = vmatmul.mubr.bf16.gmra.mrb[0].mxu0 %v5527
      %v5804 = vpop.f32.mrb[0].mxu0
      %v5805 = vadd.f32 %v5533, %v5804
      %v5806 = vpop.f32.mrb[0].mxu0
      %v5807 = vadd.f32 %v5537, %v5806
      %v5808 = vpop.f32.mrb[0].mxu0
      %v5809 = vadd.f32 %v5533, %v5808
      %v5810 = vpop.f32.mrb[0].mxu0
      %v5811 = vadd.f32 %v5537, %v5810
      %5812 = vdwg.mxu0
      %v5813 = vmax.f32 %v5735, 0.0
      %v5814 = vmax.f32 %v5737, 0.0
      %v5815 = vmax.f32 %v5739, 0.0
      %v5816 = vmax.f32 %v5741, 0.0
      %v5817 = vmax.f32 %v5745, 0.0
      %v5818 = vmax.f32 %v5747, 0.0
      %v5819 = vmax.f32 %v5749, 0.0
      %v5820 = vmax.f32 %v5751, 0.0
      %v5821 = vmax.f32 %v5755, 0.0
      %v5822 = vmax.f32 %v5757, 0.0
      %v5823 = vmax.f32 %v5759, 0.0
      %v5824 = vmax.f32 %v5761, 0.0
      %v5825 = vmax.f32 %v5765, 0.0
      %v5826 = vmax.f32 %v5767, 0.0
      %v5827 = vmax.f32 %v5769, 0.0
      %v5828 = vmax.f32 %v5771, 0.0
      %v5829 = vmax.f32 %v5775, 0.0
      %v5830 = vmax.f32 %v5777, 0.0
      %v5831 = vmax.f32 %v5779, 0.0
      %v5832 = vmax.f32 %v5781, 0.0
      %v5833 = vmax.f32 %v5785, 0.0
      %v5834 = vmax.f32 %v5787, 0.0
      %v5835 = vmax.f32 %v5789, 0.0
      %v5836 = vmax.f32 %v5791, 0.0
      %v5837 = vmax.f32 %v5795, 0.0
      %v5838 = vmax.f32 %v5797, 0.0
      %v5839 = vmax.f32 %v5799, 0.0
      %v5840 = vmax.f32 %v5801, 0.0
      %v5841 = vmax.f32 %v5805, 0.0
      %v5842 = vmax.f32 %v5807, 0.0
      %v5843 = vmax.f32 %v5809, 0.0
      %v5844 = vmax.f32 %v5811, 0.0
      %v5845 = vld [vmem:[%s10] sm:$0xf]
      %v5846 = vld [vmem:[%s10 + $0x4] sm:$0xf]
      %v5847 = vld [vmem:[%s10 + $0x8] sm:$0xf]
      %v5848 = vld [vmem:[%s10 + $0xc] sm:$0xf]
      %v5849 = vld [vmem:[%s10 + $0x10] sm:$0xf]
      %v5850 = vld [vmem:[%s10 + $0x14] sm:$0xf]
      %v5851 = vld [vmem:[%s10 + $0x18] sm:$0xf]
      %v5852 = vld [vmem:[%s10 + $0x1c] sm:$0xf]
      %v5853 = vld [vmem:[%s10 + $0x20] sm:$0xf]
      %v5854 = vld [vmem:[%s10 + $0x24] sm:$0xf]
      %v5855 = vld [vmem:[%s10 + $0x28] sm:$0xf]
      %v5856 = vld [vmem:[%s10 + $0x2c] sm:$0xf]
      %v5857 = vld [vmem:[%s10 + $0x30] sm:$0xf]
      %v5858 = vld [vmem:[%s10 + $0x34] sm:$0xf]
      %v5859 = vld [vmem:[%s10 + $0x38] sm:$0xf]
      %v5860 = vld [vmem:[%s10 + $0x3c] sm:$0xf]
      %v5861 = vld [vmem:[%s10 + $0x40] sm:$0xf]
      %v5862 = vld [vmem:[%s10 + $0x44] sm:$0xf]
      %v5863 = vld [vmem:[%s10 + $0x48] sm:$0xf]
      %v5864 = vld [vmem:[%s10 + $0x4c] sm:$0xf]
      %v5865 = vld [vmem:[%s10 + $0x50] sm:$0xf]
      %v5866 = vld [vmem:[%s10 + $0x54] sm:$0xf]
      %v5867 = vld [vmem:[%s10 + $0x58] sm:$0xf]
      %v5868 = vld [vmem:[%s10 + $0x5c] sm:$0xf]
      %v5869 = vld [vmem:[%s10 + $0x60] sm:$0xf]
      %v5870 = vld [vmem:[%s10 + $0x64] sm:$0xf]
      %v5871 = vld [vmem:[%s10 + $0x68] sm:$0xf]
      %v5872 = vld [vmem:[%s10 + $0x6c] sm:$0xf]
      %v5873 = vld [vmem:[%s10 + $0x70] sm:$0xf]
      %v5874 = vld [vmem:[%s10 + $0x74] sm:$0xf]
      %v5875 = vld [vmem:[%s10 + $0x78] sm:$0xf]
      %v5876 = vld [vmem:[%s10 + $0x7c] sm:$0xf]
      %v5877 = vld [vmem:[%s11 + $0x7] ss:$0 sm:$0xff]
      %v5878 = vpack.c.bf16 %v5815, %v5813
      %v5879 = vpack.c.bf16 %v5816, %v5814
      %v5880 = vpack.c.bf16 %v5819, %v5817
      %v5881 = vpack.c.bf16 %v5820, %v5818
      %v5882 = vpack.c.bf16 %v5823, %v5821
      %v5883 = vpack.c.bf16 %v5824, %v5822
      %v5884 = vpack.c.bf16 %v5827, %v5825
      %v5885 = vpack.c.bf16 %v5828, %v5826
      %v5886 = vpack.c.bf16 %v5831, %v5829
      %v5887 = vpack.c.bf16 %v5832, %v5830
      %v5888 = vpack.c.bf16 %v5835, %v5833
      %v5889 = vpack.c.bf16 %v5836, %v5834
      %v5890 = vpack.c.bf16 %v5839, %v5837
      %v5891 = vpack.c.bf16 %v5840, %v5838
      %v5892 = vpack.c.bf16 %v5843, %v5841
      %v5893 = vpack.c.bf16 %v5844, %v5842
      %v5926 = vunpack.c.l.b16 %v5845
      %v5927 = vunpack.c.l.b16 %v5846
      %v5928 = vunpack.c.l.b16 %v5847
      %v5929 = vunpack.c.l.b16 %v5848
      %v5930 = vunpack.c.l.b16 %v5849
      %v5931 = vunpack.c.l.b16 %v5850
      %v5932 = vunpack.c.l.b16 %v5851
      %v5933 = vunpack.c.l.b16 %v5852
      %v5934 = vunpack.c.l.b16 %v5853
      %v5935 = vunpack.c.l.b16 %v5854
      %v5936 = vunpack.c.l.b16 %v5855
      %v5937 = vunpack.c.l.b16 %v5856
      %v5938 = vunpack.c.l.b16 %v5857
      %v5939 = vunpack.c.l.b16 %v5858
      %v5940 = vunpack.c.l.b16 %v5859
      %v5941 = vunpack.c.l.b16 %v5860
      %v5942 = vunpack.c.l.b16 %v5861
      %v5943 = vunpack.c.l.b16 %v5862
      %v5944 = vunpack.c.l.b16 %v5863
      %v5945 = vunpack.c.l.b16 %v5864
      %v5946 = vunpack.c.l.b16 %v5865
      %v5947 = vunpack.c.l.b16 %v5866
      %v5948 = vunpack.c.l.b16 %v5867
      %v5949 = vunpack.c.l.b16 %v5868
      %v5950 = vunpack.c.l.b16 %v5869
      %v5951 = vunpack.c.l.b16 %v5870
      %v5952 = vunpack.c.l.b16 %v5871
      %v5953 = vunpack.c.l.b16 %v5872
      %v5954 = vunpack.c.l.b16 %v5873
      %v5955 = vunpack.c.l.b16 %v5874
      %v5956 = vunpack.c.l.b16 %v5875
      %v5957 = vunpack.c.l.b16 %v5876
      %v5958 = vpack.c.b16 %v5927, %v5926
      %v5959 = vpack.c.b16 %v5929, %v5928
      %v5960 = vpack.c.b16 %v5931, %v5930
      %v5961 = vpack.c.b16 %v5933, %v5932
      %v5962 = vpack.c.b16 %v5935, %v5934
      %v5963 = vpack.c.b16 %v5937, %v5936
      %v5964 = vpack.c.b16 %v5939, %v5938
      %v5965 = vpack.c.b16 %v5941, %v5940
      %v5966 = vpack.c.b16 %v5943, %v5942
      %v5967 = vpack.c.b16 %v5945, %v5944
      %v5968 = vpack.c.b16 %v5947, %v5946
      %v5969 = vpack.c.b16 %v5949, %v5948
      %v5970 = vpack.c.b16 %v5951, %v5950
      %v5971 = vpack.c.b16 %v5953, %v5952
      %v5972 = vpack.c.b16 %v5955, %v5954
      %v5973 = vpack.c.b16 %v5957, %v5956
      %5990 = vmatprep.subr.bf16.mxu0 0
      %5991 = vmatpush1.bf16.msra.mxu0 %v5958
      %5992 = vmatprep.subr.bf16.mxu0 0
      %5993 = vmatpush1.bf16.msra.mxu0 %v5959
      %5994 = vmatprep.subr.bf16.mxu0 0
      %5995 = vmatpush1.bf16.msra.mxu0 %v5960
      %5996 = vmatprep.subr.bf16.mxu0 0
      %5997 = vmatpush1.bf16.msra.mxu0 %v5961
      %5998 = vmatprep.subr.bf16.mxu0 0
      %5999 = vmatpush1.bf16.msra.mxu0 %v5962
      %6000 = vmatprep.subr.bf16.mxu0 0
      %6001 = vmatpush1.bf16.msra.mxu0 %v5963
      %6002 = vmatprep.subr.bf16.mxu0 0
      %6003 = vmatpush1.bf16.msra.mxu0 %v5964
      %6004 = vmatprep.subr.bf16.mxu0 0
      %6005 = vmatpush1.bf16.msra.mxu0 %v5965
      %6006 = vmatprep.subr.bf16.mxu0 0
      %6007 = vmatpush1.bf16.msra.mxu0 %v5966
      %6008 = vmatprep.subr.bf16.mxu0 0
      %6009 = vmatpush1.bf16.msra.mxu0 %v5967
      %6010 = vmatprep.subr.bf16.mxu0 0
      %6011 = vmatpush1.bf16.msra.mxu0 %v5968
      %6012 = vmatprep.subr.bf16.mxu0 0
      %6013 = vmatpush1.bf16.msra.mxu0 %v5969
      %6014 = vmatprep.subr.bf16.mxu0 0
      %6015 = vmatpush1.bf16.msra.mxu0 %v5970
      %6016 = vmatprep.subr.bf16.mxu0 0
      %6017 = vmatpush1.bf16.msra.mxu0 %v5971
      %6018 = vmatprep.subr.bf16.mxu0 0
      %6019 = vmatpush1.bf16.msra.mxu0 %v5972
      %6020 = vmatprep.subr.bf16.mxu0 0
      %6021 = vmatpush1.bf16.msra.mxu0 %v5973
      %6022 = vmatprep.mubr.bf16.mxu0 %v5879
      %6023 = vmatmul.mubr.bf16.gmra.mrb[0].mxu0 %v5878
      %v6024 = vpop.f32.mrb[0].mxu0
      %v6025 = vadd.f32 %v5877, %v6024
      %v6026 = vpop.f32.mrb[0].mxu0
      %v6027 = vpop.f32.mrb[0].mxu0
      %v6028 = vadd.f32 %v5877, %v6027
      %v6029 = vpop.f32.mrb[0].mxu0
      %6030 = vmatprep.mubr.bf16.mxu0 %v5881
      %6031 = vmatmul.mubr.bf16.gmra.mrb[0].mxu0 %v5880
      %v6032 = vpop.f32.mrb[0].mxu0
      %v6033 = vadd.f32 %v5877, %v6032
      %v6034 = vpop.f32.mrb[0].mxu0
      %v6035 = vpop.f32.mrb[0].mxu0
      %v6036 = vadd.f32 %v5877, %v6035
      %v6037 = vpop.f32.mrb[0].mxu0
      %6038 = vmatprep.mubr.bf16.mxu0 %v5883
      %6039 = vmatmul.mubr.bf16.gmra.mrb[0].mxu0 %v5882
      %v6040 = vpop.f32.mrb[0].mxu0
      %v6041 = vadd.f32 %v5877, %v6040
      %v6042 = vpop.f32.mrb[0].mxu0
      %v6043 = vpop.f32.mrb[0].mxu0
      %v6044 = vadd.f32 %v5877, %v6043
      %v6045 = vpop.f32.mrb[0].mxu0
      %6046 = vmatprep.mubr.bf16.mxu0 %v5885
      %6047 = vmatmul.mubr.bf16.gmra.mrb[0].mxu0 %v5884
      %v6048 = vpop.f32.mrb[0].mxu0
      %v6049 = vadd.f32 %v5877, %v6048
      %v6050 = vpop.f32.mrb[0].mxu0
      %v6051 = vpop.f32.mrb[0].mxu0
      %v6052 = vadd.f32 %v5877, %v6051
      %v6053 = vpop.f32.mrb[0].mxu0
      %6054 = vmatprep.mubr.bf16.mxu0 %v5887
      %6055 = vmatmul.mubr.bf16.gmra.mrb[0].mxu0 %v5886
      %v6056 = vpop.f32.mrb[0].mxu0
      %v6057 = vadd.f32 %v5877, %v6056
      %v6058 = vpop.f32.mrb[0].mxu0
      %v6059 = vpop.f32.mrb[0].mxu0
      %v6060 = vadd.f32 %v5877, %v6059
      %v6061 = vpop.f32.mrb[0].mxu0
      %6062 = vmatprep.mubr.bf16.mxu0 %v5889
      %6063 = vmatmul.mubr.bf16.gmra.mrb[0].mxu0 %v5888
      %v6064 = vpop.f32.mrb[0].mxu0
      %v6065 = vadd.f32 %v5877, %v6064
      %v6066 = vpop.f32.mrb[0].mxu0
      %v6067 = vpop.f32.mrb[0].mxu0
      %v6068 = vadd.f32 %v5877, %v6067
      %v6069 = vpop.f32.mrb[0].mxu0
      %6070 = vmatprep.mubr.bf16.mxu0 %v5891
      %6071 = vmatmul.mubr.bf16.gmra.mrb[0].mxu0 %v5890
      %v6072 = vpop.f32.mrb[0].mxu0
      %v6073 = vadd.f32 %v5877, %v6072
      %v6074 = vpop.f32.mrb[0].mxu0
      %v6075 = vpop.f32.mrb[0].mxu0
      %v6076 = vadd.f32 %v5877, %v6075
      %v6077 = vpop.f32.mrb[0].mxu0
      %6078 = vmatprep.mubr.bf16.mxu0 %v5893
      %6079 = vmatmul.mubr.bf16.gmra.mrb[0].mxu0 %v5892
      %v6080 = vpop.f32.mrb[0].mxu0
      %v6081 = vadd.f32 %v5877, %v6080
      %v6082 = vpop.f32.mrb[0].mxu0
      %v6083 = vpop.f32.mrb[0].mxu0
      %v6084 = vadd.f32 %v5877, %v6083
      %v6085 = vpop.f32.mrb[0].mxu0
      %6086 = vdwg.mxu0
      %6087 = vst [vmem:[%s468] sm:$0xff] %v6025
      %6088 = vst [vmem:[%s468 + $0x8] sm:$0xff] %v6028
      %6089 = vst [vmem:[%s468 + $0x10] sm:$0xff] %v6033
      %6090 = vst [vmem:[%s468 + $0x18] sm:$0xff] %v6036
      %6091 = vst [vmem:[%s468 + $0x20] sm:$0xff] %v6041
      %6092 = vst [vmem:[%s468 + $0x28] sm:$0xff] %v6044
      %6093 = vst [vmem:[%s468 + $0x30] sm:$0xff] %v6049
      %6094 = vst [vmem:[%s468 + $0x38] sm:$0xff] %v6052
      %6095 = vst [vmem:[%s468 + $0x40] sm:$0xff] %v6057
      %6096 = vst [vmem:[%s468 + $0x48] sm:$0xff] %v6060
      %6097 = vst [vmem:[%s468 + $0x50] sm:$0xff] %v6065
      %6098 = vst [vmem:[%s468 + $0x58] sm:$0xff] %v6068
      %6099 = vst [vmem:[%s468 + $0x60] sm:$0xff] %v6073
      %6100 = vst [vmem:[%s468 + $0x68] sm:$0xff] %v6076
      %6101 = vst [vmem:[%s468 + $0x70] sm:$0xff] %v6081
      %6102 = vst [vmem:[%s468 + $0x78] sm:$0xff] %v6084
      %s6103 = smul.u32 16, %s28
      %p6104 = scmp.lt.s32.totalorder %s27, 1
      %s6105 = scalar_select %p6104, %s27, 1
      %p6106 = scmp.lt.s32.totalorder %s6103, 47
      %s6107 = scalar_select %p6106, %s6103, 47
      %s6108 = smul.addr %s6105, 48
      %s6109 = sadd.s32 %s6107, %s6108
      %s6110 = smul.addr %s6109, 8
      %s6111 = scalar_lea.vmem %s12, %s6110
      // Predicated region
      $region69: #{pointnet_forward.3} parent=67 // pred_check
        %p6112 = pneg %p319
      $region70: #{pointnet_forward.3} parent=67 // pred_check_branch
        %6114 = sbr.rel (%p6112) target = $region72
      $region71: #{pointnet_forward.3} parent=67 // pred_region
        %s6115 = smul.u32 16, %s28
      $region72: #{pointnet_forward.3} parent=67 // pred_fallthru
        _
    $region68: #{pointnet_forward.3} parent=5 // pred_fallthru
      _
    %p6116 = scmp.le.s32.totalorder 2, %s18
    // Predicated region
    $region73: #{pointnet_forward.3} parent=5 // pred_check
      %p6117 = pneg %p6116
    $region74: #{pointnet_forward.3} parent=5 // pred_check_branch
      %6119 = sbr.rel (%p6117) target = $region76
    $region75: #{pointnet_forward.3} parent=5 // pred_region
      %s6120 = ssub.s32 %s18, 2
      // Predicated region
      $region77: #{pointnet_forward.3} parent=75 // pred_check
        %p6121 = pneg %p325
      $region78: #{pointnet_forward.3} parent=75 // pred_check_branch
        %6123 = sbr.rel (%p6121) target = $region80
      $region79: #{pointnet_forward.3} parent=75 // pred_region
        %s6124 = smul.u32 16, %s30
        %p6125 = scmp.lt.s32.totalorder %s29, 1
        %s6126 = scalar_select %p6125, %s29, 1
        %p6127 = scmp.lt.s32.totalorder %s6124, 47
        %s6128 = scalar_select %p6127, %s6124, 47
        %s6129 = smul.addr %s6126, 48
        %s6130 = sadd.s32 %s6128, %s6129
        %s6131 = smul.addr %s6130, 8
        %s6132 = scalar_lea.vmem %s12, %s6131
      $region80: #{pointnet_forward.3} parent=75 // pred_fallthru
        _
    $region76: #{pointnet_forward.3} parent=5 // pred_fallthru
      _
  $region6: #{pointnet_forward.3} parent=0 // loop_footer
    %s22 = sadd.s32 1, %s18
  $region7: #{pointnet_forward.3} parent=0 // loop_footer_branch
    %17 = sbr.rel target = $region3
  $region8: #{pointnet_forward.3} parent=0 // loop_exit
    _

</llo_original>
